<compile_context>
chip_gen: v7x
topology: tpu7x:2x2x1
jax: 0.10.0
libtpu: 0.0.40
codegen_flags: <defaults>
</compile_context>

<pallas_src>
import jax
import jax.numpy as jnp
from jax.experimental import pallas as pl
from jax.experimental.pallas import tpu as pltpu

F32 = jnp.float32
B = 2          # batch; the packed constants below assume B == 2
NEG = -1e30    # mask value for padded logit lanes


# ------------------------------ fused kernel -------------------------------

def _net_kernel(p1_ref, g0_ref, w1_ref, b1_ref, w2_ref, b2_ref,
                wf_ref, bf1_ref, wfc2_ref, bf2_ref, o_ref):
    # ---- conv1: one im2col matmul. Rows of p1 are ordered (dr, dc, b, oh1, ow1)
    #      where the conv1 output pixel is (2*oh1+dr, 2*ow1+dc).
    c1 = jnp.dot(p1_ref[...], w1_ref[...], preferred_element_type=F32)   # (1152, 16)

    # ---- 2x2 max-pool over the (dr, dc) row-blocks, then bias + relu
    #      (bias is per-channel constant, so it commutes with the max).
    m1 = jnp.maximum(jnp.maximum(c1[0:288], c1[288:576]),
                     jnp.maximum(c1[576:864], c1[864:1152]))             # (288, 16)
    a1 = jnp.maximum(m1 + b1_ref[...], 0.0)      # rows = b*144 + oh1*12 + ow1

    # ---- conv2 via tap accumulation:
    #      U[j, oc]   = sum_{ki,kj,c} a1[j + 12*ki + kj, c] * w2[ki,kj,c,oc]
    #      c2[r2, oc] = U[base(r2), oc]          (one-hot gather matmul with g0)
    u = jnp.zeros((236, 32), F32)
    for ki in range(5):
        for kj in range(5):
            t = ki * 5 + kj
            off = ki * 12 + kj
            u = u + jnp.dot(a1[off:off + 236, :], w2_ref[t],
                            preferred_element_type=F32)                  # (236, 32)
    c2 = jnp.dot(g0_ref[...], u, preferred_element_type=F32)             # (128, 32)
    # c2 rows ordered (dr, dc, p, b) with p = oh2q*4 + ow2q

    # ---- 2x2 max-pool over (dr, dc) row-blocks, bias + relu
    m2 = jnp.maximum(jnp.maximum(c2[0:32], c2[32:64]),
                     jnp.maximum(c2[64:96], c2[96:128]))                 # (32, 32)
    a2 = jnp.maximum(m2 + b2_ref[...], 0.0)      # rows = p*2 + b, lanes = channel

    # ---- fc1 with the (C,H,W) flatten folded into the weight:
    #      out[b, n] = sum_p sum_c a2[p*2+b, c] * wf[p, c, n]
    acc = jnp.zeros((B, 128), F32)
    for p in range(16):
        acc = acc + jnp.dot(a2[2 * p:2 * p + 2, :], wf_ref[p],
                            preferred_element_type=F32)                  # (2, 128)
    h = jnp.maximum(acc + bf1_ref[...], 0.0)                             # (2, 128)

    # ---- fc2 + log_softmax epilogue (padded class lanes carry a -1e30 bias)
    z = jnp.dot(h, wfc2_ref[...], preferred_element_type=F32) + bf2_ref[...]   # (2, 16)
    m = jnp.max(z, axis=-1, keepdims=True)
    s = z - m
    lse = jnp.log(jnp.sum(jnp.exp(s), axis=-1, keepdims=True))
    o_ref[...] = (s - lse)[:, :10]


# --------------------------- one-time weight prep ---------------------------

def init_params(key):
    """PyTorch-layout parameters (same init scheme as nn.Conv2d / nn.Linear)."""
    ks = jax.random.split(key, 8)

    def u(k, shape, fan_in):
        bound = 1.0 / jnp.sqrt(fan_in)
        return jax.random.uniform(k, shape, F32, -bound, bound)

    return {
        "conv1_w": u(ks[0], (10, 1, 5, 5), 1 * 5 * 5),
        "conv1_b": u(ks[1], (10,), 1 * 5 * 5),
        "conv2_w": u(ks[2], (20, 10, 5, 5), 10 * 5 * 5),
        "conv2_b": u(ks[3], (20,), 10 * 5 * 5),
        "fc1_w": u(ks[4], (100, 320), 320),
        "fc1_b": u(ks[5], (100,), 320),
        "fc2_w": u(ks[6], (10, 100), 100),
        "fc2_b": u(ks[7], (10,), 100),
    }


def pack_params(p):
    """One-time packing: transposes, zero padding, flatten-folding, gather matrix."""
    # conv1: (OC=10, 1, 5, 5) -> (K=32, N=16), rows = ki*5+kj
    w1 = jnp.transpose(p["conv1_w"][:, 0], (1, 2, 0)).reshape(25, 10)
    w1 = jnp.pad(w1, ((0, 7), (0, 6))).astype(F32)                       # (32, 16)
    b1 = jnp.pad(p["conv1_b"], (0, 6)).reshape(1, 16).astype(F32)

    # conv2: (OC=20, C=10, 5, 5) -> (25, C_pad=16, OC_pad=32), tap-major
    w2 = jnp.transpose(p["conv2_w"], (2, 3, 1, 0)).reshape(25, 10, 20)
    w2 = jnp.pad(w2, ((0, 0), (0, 6), (0, 12))).astype(F32)              # (25, 16, 32)
    b2 = jnp.pad(p["conv2_b"], (0, 12)).reshape(1, 32).astype(F32)

    # fc1 (100, 320) with torch feature index f = c*16 + p  ->  wf[p, c, n]
    wf = jnp.transpose(p["fc1_w"].reshape(100, 20, 16), (2, 1, 0))       # (16, 20, 100)
    wf = jnp.pad(wf, ((0, 0), (0, 12), (0, 28))).astype(F32)             # (16, 32, 128)
    bf1 = jnp.pad(p["fc1_b"], (0, 28)).reshape(1, 128).astype(F32)

    # fc2 (10, 100) -> pre-transposed (128, 16); padded class lanes get -1e30 bias
    wfc2 = jnp.pad(p["fc2_w"].T, ((0, 28), (0, 6))).astype(F32)          # (128, 16)
    bf2 = jnp.concatenate(
        [p["fc2_b"].astype(F32), jnp.full((6,), NEG, F32)]).reshape(1, 16)

    # conv2 gather: one-hot matrix mapping output row r2 -> pooled1 base row.
    # r2 = (dr*2+dc)*32 + (oh2q*4+ow2q)*2 + b ; base = b*144 + (2*oh2q+dr)*12 + (2*ow2q+dc)
    r2 = jnp.arange(128)
    q = r2 // 32
    dr, dc = q // 2, q % 2
    rem = r2 % 32
    pp, b = rem // 2, rem % 2
    ohq, owq = pp // 4, pp % 4
    base = b * 144 + (2 * ohq + dr) * 12 + (2 * owq + dc)
    g0 = jax.nn.one_hot(base, 236, dtype=F32)                            # (128, 236)

    return dict(w1=w1, b1=b1, w2=w2, b2=b2, wf=wf, bf1=bf1,
                wfc2=wfc2, bf2=bf2, g0=g0)


# ------------------------------ forward wrapper -----------------------------

def _conv1_patches(x_nchw):
    """im2col for conv1 on the raw input, rows ordered (dr, dc, b, oh1, ow1)."""
    xs = x_nchw[:, 0].astype(F32)                                        # (B, 28, 28)
    cols = [xs[:, ki:ki + 24, kj:kj + 24] for ki in range(5) for kj in range(5)]
    pat = jnp.stack(cols, axis=-1)                                       # (B, 24, 24, 25)
    pat = pat.reshape(B, 12, 2, 12, 2, 25)                               # (b, oh1, dr, ow1, dc, k)
    pat = pat.transpose(2, 4, 0, 1, 3, 5)                                # (dr, dc, b, oh1, ow1, k)
    pat = pat.reshape(4 * B * 144, 25)
    return jnp.pad(pat, ((0, 0), (0, 7)))                                # (1152, 32)


def net_forward(packed, x_nchw):
    assert x_nchw.shape == (B, 1, 28, 28)
    p1 = _conv1_patches(x_nchw)
    vmem = pl.BlockSpec(memory_space=pltpu.MemorySpace.VMEM)
    return pl.pallas_call(
        _net_kernel,
        out_shape=jax.ShapeDtypeStruct((B, 10), F32),
        in_specs=[vmem] * 10,
        out_specs=vmem,
    )(p1, packed["g0"], packed["w1"], packed["b1"], packed["w2"],
      packed["b2"], packed["wf"], packed["bf1"], packed["wfc2"], packed["bf2"])


# --------------------------- pure-JAX reference -----------------------------

def reference_forward(params, x):
    hp = jax.lax.Precision.HIGHEST
    y = jax.lax.conv_general_dilated(
        x.astype(F32), params["conv1_w"], (1, 1), "VALID",
        dimension_numbers=("NCHW", "OIHW", "NCHW"), precision=hp)
    y = y + params["conv1_b"][None, :, None, None]
    b, c, h, w = y.shape
    y = jnp.maximum(y.reshape(b, c, h // 2, 2, w // 2, 2).max(axis=(3, 5)), 0.0)
    y = jax.lax.conv_general_dilated(
        y, params["conv2_w"], (1, 1), "VALID",
        dimension_numbers=("NCHW", "OIHW", "NCHW"), precision=hp)
    y = y + params["conv2_b"][None, :, None, None]
    b, c, h, w = y.shape
    y = jnp.maximum(y.reshape(b, c, h // 2, 2, w // 2, 2).max(axis=(3, 5)), 0.0)
    y = y.reshape(b, -1)
    y = jnp.maximum(jnp.dot(y, params["fc1_w"].T, precision=hp) + params["fc1_b"], 0.0)
    y = jnp.dot(y, params["fc2_w"].T, precision=hp) + params["fc2_b"]
    return jax.nn.log_softmax(y, axis=-1)


# ----------------------------------- main ------------------------------------

if __name__ == "__main__":
    key = jax.random.PRNGKey(0)
    pkey, xkey = jax.random.split(key)
    params = init_params(pkey)
    packed = pack_params(params)                     # one-time weight packing
    x = jax.random.normal(xkey, (B, 1, 28, 28), dtype=F32)

    out = jax.jit(net_forward)(packed, x)
    out = jax.block_until_ready(out)

    ref = jax.jit(reference_forward)(params, x)
    ref = jax.block_until_ready(ref)

    assert out.shape == (B, 10)
    assert bool(jnp.all(jnp.isfinite(out)))
    assert bool(jnp.allclose(jnp.sum(jnp.exp(out), axis=1), 1.0, atol=1e-4))
    max_err = float(jnp.max(jnp.abs(out - ref)))
    assert max_err < 1e-3, f"mismatch vs reference: max abs err {max_err}"
    print("KERNEL_OK")
</pallas_src>

<mosaic_0001>
module attributes {stable_mosaic.version = 11 : i64} {
  func.func @_net_kernel(%arg0: memref<1152x32xf32, #tpu.memory_space<vmem>>, %arg1: memref<128x236xf32, #tpu.memory_space<vmem>>, %arg2: memref<32x16xf32, #tpu.memory_space<vmem>>, %arg3: memref<1x16xf32, #tpu.memory_space<vmem>>, %arg4: memref<25x16x32xf32, #tpu.memory_space<vmem>>, %arg5: memref<1x32xf32, #tpu.memory_space<vmem>>, %arg6: memref<16x32x128xf32, #tpu.memory_space<vmem>>, %arg7: memref<1x128xf32, #tpu.memory_space<vmem>>, %arg8: memref<128x16xf32, #tpu.memory_space<vmem>>, %arg9: memref<1x16xf32, #tpu.memory_space<vmem>>, %arg10: memref<2x10xf32, #tpu.memory_space<vmem>>) attributes {dimension_semantics = [], scalar_prefetch = 0 : i64, scratch_operands = 0 : i64, tpu.core_type = #tpu.core_type<tc>} {
    %c0 = arith.constant 0 : index
    %c0_0 = arith.constant 0 : index
    %0 = vector.load %arg0[%c0, %c0_0] : memref<1152x32xf32, #tpu.memory_space<vmem>>, vector<1152x32xf32>
    %c0_1 = arith.constant 0 : index
    %c0_2 = arith.constant 0 : index
    %1 = vector.load %arg2[%c0_1, %c0_2] : memref<32x16xf32, #tpu.memory_space<vmem>>, vector<32x16xf32>
    %cst = arith.constant dense<0.000000e+00> : vector<1152x16xf32>
    %2 = tpu.matmul %0, %1, %cst {dimension_numbers = #tpu.dot_dimension_numbers<[1], [0], [0], [1], [0, 0, 1, 1], [], []>} : vector<1152x32xf32>, vector<32x16xf32>, vector<1152x16xf32> -> vector<1152x16xf32>
    %3 = vector.extract_strided_slice %2 {offsets = [0, 0], sizes = [288, 16], strides = [1, 1]} : vector<1152x16xf32> to vector<288x16xf32>
    %4 = vector.extract_strided_slice %2 {offsets = [288, 0], sizes = [288, 16], strides = [1, 1]} : vector<1152x16xf32> to vector<288x16xf32>
    %5 = arith.maximumf %3, %4 : vector<288x16xf32>
    %6 = vector.extract_strided_slice %2 {offsets = [576, 0], sizes = [288, 16], strides = [1, 1]} : vector<1152x16xf32> to vector<288x16xf32>
    %7 = vector.extract_strided_slice %2 {offsets = [864, 0], sizes = [288, 16], strides = [1, 1]} : vector<1152x16xf32> to vector<288x16xf32>
    %8 = arith.maximumf %6, %7 : vector<288x16xf32>
    %9 = arith.maximumf %5, %8 : vector<288x16xf32>
    %c0_3 = arith.constant 0 : index
    %c0_4 = arith.constant 0 : index
    %10 = vector.load %arg3[%c0_3, %c0_4] : memref<1x16xf32, #tpu.memory_space<vmem>>, vector<1x16xf32>
    %11 = vector.broadcast %10 : vector<1x16xf32> to vector<288x16xf32>
    %12 = arith.addf %9, %11 : vector<288x16xf32>
    %cst_5 = arith.constant 0.000000e+00 : f32
    %13 = vector.broadcast %cst_5 : f32 to vector<288x16xf32>
    %14 = arith.maximumf %12, %13 : vector<288x16xf32>
    %cst_6 = arith.constant 0.000000e+00 : f32
    %15 = vector.broadcast %cst_6 : f32 to vector<236x32xf32>
    %16 = vector.extract_strided_slice %14 {offsets = [0, 0], sizes = [236, 16], strides = [1, 1]} : vector<288x16xf32> to vector<236x16xf32>
    %c0_7 = arith.constant 0 : index
    %c0_8 = arith.constant 0 : index
    %c0_9 = arith.constant 0 : index
    %17 = vector.load %arg4[%c0_7, %c0_8, %c0_9] : memref<25x16x32xf32, #tpu.memory_space<vmem>>, vector<1x16x32xf32>
    %18 = vector.shape_cast %17 : vector<1x16x32xf32> to vector<16x32xf32>
    %cst_10 = arith.constant dense<0.000000e+00> : vector<236x32xf32>
    %19 = tpu.matmul %16, %18, %cst_10 {dimension_numbers = #tpu.dot_dimension_numbers<[1], [0], [0], [1], [0, 0, 1, 1], [], []>} : vector<236x16xf32>, vector<16x32xf32>, vector<236x32xf32> -> vector<236x32xf32>
    %20 = arith.addf %15, %19 : vector<236x32xf32>
    %21 = vector.extract_strided_slice %14 {offsets = [1, 0], sizes = [236, 16], strides = [1, 1]} : vector<288x16xf32> to vector<236x16xf32>
    %c1 = arith.constant 1 : index
    %c0_11 = arith.constant 0 : index
    %c0_12 = arith.constant 0 : index
    %22 = vector.load %arg4[%c1, %c0_11, %c0_12] : memref<25x16x32xf32, #tpu.memory_space<vmem>>, vector<1x16x32xf32>
    %23 = vector.shape_cast %22 : vector<1x16x32xf32> to vector<16x32xf32>
    %cst_13 = arith.constant dense<0.000000e+00> : vector<236x32xf32>
    %24 = tpu.matmul %21, %23, %cst_13 {dimension_numbers = #tpu.dot_dimension_numbers<[1], [0], [0], [1], [0, 0, 1, 1], [], []>} : vector<236x16xf32>, vector<16x32xf32>, vector<236x32xf32> -> vector<236x32xf32>
    %25 = arith.addf %20, %24 : vector<236x32xf32>
    %26 = vector.extract_strided_slice %14 {offsets = [2, 0], sizes = [236, 16], strides = [1, 1]} : vector<288x16xf32> to vector<236x16xf32>
    %c2 = arith.constant 2 : index
    %c0_14 = arith.constant 0 : index
    %c0_15 = arith.constant 0 : index
    %27 = vector.load %arg4[%c2, %c0_14, %c0_15] : memref<25x16x32xf32, #tpu.memory_space<vmem>>, vector<1x16x32xf32>
    %28 = vector.shape_cast %27 : vector<1x16x32xf32> to vector<16x32xf32>
    %cst_16 = arith.constant dense<0.000000e+00> : vector<236x32xf32>
    %29 = tpu.matmul %26, %28, %cst_16 {dimension_numbers = #tpu.dot_dimension_numbers<[1], [0], [0], [1], [0, 0, 1, 1], [], []>} : vector<236x16xf32>, vector<16x32xf32>, vector<236x32xf32> -> vector<236x32xf32>
    %30 = arith.addf %25, %29 : vector<236x32xf32>
    %31 = vector.extract_strided_slice %14 {offsets = [3, 0], sizes = [236, 16], strides = [1, 1]} : vector<288x16xf32> to vector<236x16xf32>
    %c3 = arith.constant 3 : index
    %c0_17 = arith.constant 0 : index
    %c0_18 = arith.constant 0 : index
    %32 = vector.load %arg4[%c3, %c0_17, %c0_18] : memref<25x16x32xf32, #tpu.memory_space<vmem>>, vector<1x16x32xf32>
    %33 = vector.shape_cast %32 : vector<1x16x32xf32> to vector<16x32xf32>
    %cst_19 = arith.constant dense<0.000000e+00> : vector<236x32xf32>
    %34 = tpu.matmul %31, %33, %cst_19 {dimension_numbers = #tpu.dot_dimension_numbers<[1], [0], [0], [1], [0, 0, 1, 1], [], []>} : vector<236x16xf32>, vector<16x32xf32>, vector<236x32xf32> -> vector<236x32xf32>
    %35 = arith.addf %30, %34 : vector<236x32xf32>
    %36 = vector.extract_strided_slice %14 {offsets = [4, 0], sizes = [236, 16], strides = [1, 1]} : vector<288x16xf32> to vector<236x16xf32>
    %c4 = arith.constant 4 : index
    %c0_20 = arith.constant 0 : index
    %c0_21 = arith.constant 0 : index
    %37 = vector.load %arg4[%c4, %c0_20, %c0_21] : memref<25x16x32xf32, #tpu.memory_space<vmem>>, vector<1x16x32xf32>
    %38 = vector.shape_cast %37 : vector<1x16x32xf32> to vector<16x32xf32>
    %cst_22 = arith.constant dense<0.000000e+00> : vector<236x32xf32>
    %39 = tpu.matmul %36, %38, %cst_22 {dimension_numbers = #tpu.dot_dimension_numbers<[1], [0], [0], [1], [0, 0, 1, 1], [], []>} : vector<236x16xf32>, vector<16x32xf32>, vector<236x32xf32> -> vector<236x32xf32>
    %40 = arith.addf %35, %39 : vector<236x32xf32>
    %41 = vector.extract_strided_slice %14 {offsets = [12, 0], sizes = [236, 16], strides = [1, 1]} : vector<288x16xf32> to vector<236x16xf32>
    %c5 = arith.constant 5 : index
    %c0_23 = arith.constant 0 : index
    %c0_24 = arith.constant 0 : index
    %42 = vector.load %arg4[%c5, %c0_23, %c0_24] : memref<25x16x32xf32, #tpu.memory_space<vmem>>, vector<1x16x32xf32>
    %43 = vector.shape_cast %42 : vector<1x16x32xf32> to vector<16x32xf32>
    %cst_25 = arith.constant dense<0.000000e+00> : vector<236x32xf32>
    %44 = tpu.matmul %41, %43, %cst_25 {dimension_numbers = #tpu.dot_dimension_numbers<[1], [0], [0], [1], [0, 0, 1, 1], [], []>} : vector<236x16xf32>, vector<16x32xf32>, vector<236x32xf32> -> vector<236x32xf32>
    %45 = arith.addf %40, %44 : vector<236x32xf32>
    %46 = vector.extract_strided_slice %14 {offsets = [13, 0], sizes = [236, 16], strides = [1, 1]} : vector<288x16xf32> to vector<236x16xf32>
    %c6 = arith.constant 6 : index
    %c0_26 = arith.constant 0 : index
    %c0_27 = arith.constant 0 : index
    %47 = vector.load %arg4[%c6, %c0_26, %c0_27] : memref<25x16x32xf32, #tpu.memory_space<vmem>>, vector<1x16x32xf32>
    %48 = vector.shape_cast %47 : vector<1x16x32xf32> to vector<16x32xf32>
    %cst_28 = arith.constant dense<0.000000e+00> : vector<236x32xf32>
    %49 = tpu.matmul %46, %48, %cst_28 {dimension_numbers = #tpu.dot_dimension_numbers<[1], [0], [0], [1], [0, 0, 1, 1], [], []>} : vector<236x16xf32>, vector<16x32xf32>, vector<236x32xf32> -> vector<236x32xf32>
    %50 = arith.addf %45, %49 : vector<236x32xf32>
    %51 = vector.extract_strided_slice %14 {offsets = [14, 0], sizes = [236, 16], strides = [1, 1]} : vector<288x16xf32> to vector<236x16xf32>
    %c7 = arith.constant 7 : index
    %c0_29 = arith.constant 0 : index
    %c0_30 = arith.constant 0 : index
    %52 = vector.load %arg4[%c7, %c0_29, %c0_30] : memref<25x16x32xf32, #tpu.memory_space<vmem>>, vector<1x16x32xf32>
    %53 = vector.shape_cast %52 : vector<1x16x32xf32> to vector<16x32xf32>
    %cst_31 = arith.constant dense<0.000000e+00> : vector<236x32xf32>
    %54 = tpu.matmul %51, %53, %cst_31 {dimension_numbers = #tpu.dot_dimension_numbers<[1], [0], [0], [1], [0, 0, 1, 1], [], []>} : vector<236x16xf32>, vector<16x32xf32>, vector<236x32xf32> -> vector<236x32xf32>
    %55 = arith.addf %50, %54 : vector<236x32xf32>
    %56 = vector.extract_strided_slice %14 {offsets = [15, 0], sizes = [236, 16], strides = [1, 1]} : vector<288x16xf32> to vector<236x16xf32>
    %c8 = arith.constant 8 : index
    %c0_32 = arith.constant 0 : index
    %c0_33 = arith.constant 0 : index
    %57 = vector.load %arg4[%c8, %c0_32, %c0_33] : memref<25x16x32xf32, #tpu.memory_space<vmem>>, vector<1x16x32xf32>
    %58 = vector.shape_cast %57 : vector<1x16x32xf32> to vector<16x32xf32>
    %cst_34 = arith.constant dense<0.000000e+00> : vector<236x32xf32>
    %59 = tpu.matmul %56, %58, %cst_34 {dimension_numbers = #tpu.dot_dimension_numbers<[1], [0], [0], [1], [0, 0, 1, 1], [], []>} : vector<236x16xf32>, vector<16x32xf32>, vector<236x32xf32> -> vector<236x32xf32>
    %60 = arith.addf %55, %59 : vector<236x32xf32>
    %61 = vector.extract_strided_slice %14 {offsets = [16, 0], sizes = [236, 16], strides = [1, 1]} : vector<288x16xf32> to vector<236x16xf32>
    %c9 = arith.constant 9 : index
    %c0_35 = arith.constant 0 : index
    %c0_36 = arith.constant 0 : index
    %62 = vector.load %arg4[%c9, %c0_35, %c0_36] : memref<25x16x32xf32, #tpu.memory_space<vmem>>, vector<1x16x32xf32>
    %63 = vector.shape_cast %62 : vector<1x16x32xf32> to vector<16x32xf32>
    %cst_37 = arith.constant dense<0.000000e+00> : vector<236x32xf32>
    %64 = tpu.matmul %61, %63, %cst_37 {dimension_numbers = #tpu.dot_dimension_numbers<[1], [0], [0], [1], [0, 0, 1, 1], [], []>} : vector<236x16xf32>, vector<16x32xf32>, vector<236x32xf32> -> vector<236x32xf32>
    %65 = arith.addf %60, %64 : vector<236x32xf32>
    %66 = vector.extract_strided_slice %14 {offsets = [24, 0], sizes = [236, 16], strides = [1, 1]} : vector<288x16xf32> to vector<236x16xf32>
    %c10 = arith.constant 10 : index
    %c0_38 = arith.constant 0 : index
    %c0_39 = arith.constant 0 : index
    %67 = vector.load %arg4[%c10, %c0_38, %c0_39] : memref<25x16x32xf32, #tpu.memory_space<vmem>>, vector<1x16x32xf32>
    %68 = vector.shape_cast %67 : vector<1x16x32xf32> to vector<16x32xf32>
    %cst_40 = arith.constant dense<0.000000e+00> : vector<236x32xf32>
    %69 = tpu.matmul %66, %68, %cst_40 {dimension_numbers = #tpu.dot_dimension_numbers<[1], [0], [0], [1], [0, 0, 1, 1], [], []>} : vector<236x16xf32>, vector<16x32xf32>, vector<236x32xf32> -> vector<236x32xf32>
    %70 = arith.addf %65, %69 : vector<236x32xf32>
    %71 = vector.extract_strided_slice %14 {offsets = [25, 0], sizes = [236, 16], strides = [1, 1]} : vector<288x16xf32> to vector<236x16xf32>
    %c11 = arith.constant 11 : index
    %c0_41 = arith.constant 0 : index
    %c0_42 = arith.constant 0 : index
    %72 = vector.load %arg4[%c11, %c0_41, %c0_42] : memref<25x16x32xf32, #tpu.memory_space<vmem>>, vector<1x16x32xf32>
    %73 = vector.shape_cast %72 : vector<1x16x32xf32> to vector<16x32xf32>
    %cst_43 = arith.constant dense<0.000000e+00> : vector<236x32xf32>
    %74 = tpu.matmul %71, %73, %cst_43 {dimension_numbers = #tpu.dot_dimension_numbers<[1], [0], [0], [1], [0, 0, 1, 1], [], []>} : vector<236x16xf32>, vector<16x32xf32>, vector<236x32xf32> -> vector<236x32xf32>
    %75 = arith.addf %70, %74 : vector<236x32xf32>
    %76 = vector.extract_strided_slice %14 {offsets = [26, 0], sizes = [236, 16], strides = [1, 1]} : vector<288x16xf32> to vector<236x16xf32>
    %c12 = arith.constant 12 : index
    %c0_44 = arith.constant 0 : index
    %c0_45 = arith.constant 0 : index
    %77 = vector.load %arg4[%c12, %c0_44, %c0_45] : memref<25x16x32xf32, #tpu.memory_space<vmem>>, vector<1x16x32xf32>
    %78 = vector.shape_cast %77 : vector<1x16x32xf32> to vector<16x32xf32>
    %cst_46 = arith.constant dense<0.000000e+00> : vector<236x32xf32>
    %79 = tpu.matmul %76, %78, %cst_46 {dimension_numbers = #tpu.dot_dimension_numbers<[1], [0], [0], [1], [0, 0, 1, 1], [], []>} : vector<236x16xf32>, vector<16x32xf32>, vector<236x32xf32> -> vector<236x32xf32>
    %80 = arith.addf %75, %79 : vector<236x32xf32>
    %81 = vector.extract_strided_slice %14 {offsets = [27, 0], sizes = [236, 16], strides = [1, 1]} : vector<288x16xf32> to vector<236x16xf32>
    %c13 = arith.constant 13 : index
    %c0_47 = arith.constant 0 : index
    %c0_48 = arith.constant 0 : index
    %82 = vector.load %arg4[%c13, %c0_47, %c0_48] : memref<25x16x32xf32, #tpu.memory_space<vmem>>, vector<1x16x32xf32>
    %83 = vector.shape_cast %82 : vector<1x16x32xf32> to vector<16x32xf32>
    %cst_49 = arith.constant dense<0.000000e+00> : vector<236x32xf32>
    %84 = tpu.matmul %81, %83, %cst_49 {dimension_numbers = #tpu.dot_dimension_numbers<[1], [0], [0], [1], [0, 0, 1, 1], [], []>} : vector<236x16xf32>, vector<16x32xf32>, vector<236x32xf32> -> vector<236x32xf32>
    %85 = arith.addf %80, %84 : vector<236x32xf32>
    %86 = vector.extract_strided_slice %14 {offsets = [28, 0], sizes = [236, 16], strides = [1, 1]} : vector<288x16xf32> to vector<236x16xf32>
    %c14 = arith.constant 14 : index
    %c0_50 = arith.constant 0 : index
    %c0_51 = arith.constant 0 : index
    %87 = vector.load %arg4[%c14, %c0_50, %c0_51] : memref<25x16x32xf32, #tpu.memory_space<vmem>>, vector<1x16x32xf32>
    %88 = vector.shape_cast %87 : vector<1x16x32xf32> to vector<16x32xf32>
    %cst_52 = arith.constant dense<0.000000e+00> : vector<236x32xf32>
    %89 = tpu.matmul %86, %88, %cst_52 {dimension_numbers = #tpu.dot_dimension_numbers<[1], [0], [0], [1], [0, 0, 1, 1], [], []>} : vector<236x16xf32>, vector<16x32xf32>, vector<236x32xf32> -> vector<236x32xf32>
    %90 = arith.addf %85, %89 : vector<236x32xf32>
    %91 = vector.extract_strided_slice %14 {offsets = [36, 0], sizes = [236, 16], strides = [1, 1]} : vector<288x16xf32> to vector<236x16xf32>
    %c15 = arith.constant 15 : index
    %c0_53 = arith.constant 0 : index
    %c0_54 = arith.constant 0 : index
    %92 = vector.load %arg4[%c15, %c0_53, %c0_54] : memref<25x16x32xf32, #tpu.memory_space<vmem>>, vector<1x16x32xf32>
    %93 = vector.shape_cast %92 : vector<1x16x32xf32> to vector<16x32xf32>
    %cst_55 = arith.constant dense<0.000000e+00> : vector<236x32xf32>
    %94 = tpu.matmul %91, %93, %cst_55 {dimension_numbers = #tpu.dot_dimension_numbers<[1], [0], [0], [1], [0, 0, 1, 1], [], []>} : vector<236x16xf32>, vector<16x32xf32>, vector<236x32xf32> -> vector<236x32xf32>
    %95 = arith.addf %90, %94 : vector<236x32xf32>
    %96 = vector.extract_strided_slice %14 {offsets = [37, 0], sizes = [236, 16], strides = [1, 1]} : vector<288x16xf32> to vector<236x16xf32>
    %c16 = arith.constant 16 : index
    %c0_56 = arith.constant 0 : index
    %c0_57 = arith.constant 0 : index
    %97 = vector.load %arg4[%c16, %c0_56, %c0_57] : memref<25x16x32xf32, #tpu.memory_space<vmem>>, vector<1x16x32xf32>
    %98 = vector.shape_cast %97 : vector<1x16x32xf32> to vector<16x32xf32>
    %cst_58 = arith.constant dense<0.000000e+00> : vector<236x32xf32>
    %99 = tpu.matmul %96, %98, %cst_58 {dimension_numbers = #tpu.dot_dimension_numbers<[1], [0], [0], [1], [0, 0, 1, 1], [], []>} : vector<236x16xf32>, vector<16x32xf32>, vector<236x32xf32> -> vector<236x32xf32>
    %100 = arith.addf %95, %99 : vector<236x32xf32>
    %101 = vector.extract_strided_slice %14 {offsets = [38, 0], sizes = [236, 16], strides = [1, 1]} : vector<288x16xf32> to vector<236x16xf32>
    %c17 = arith.constant 17 : index
    %c0_59 = arith.constant 0 : index
    %c0_60 = arith.constant 0 : index
    %102 = vector.load %arg4[%c17, %c0_59, %c0_60] : memref<25x16x32xf32, #tpu.memory_space<vmem>>, vector<1x16x32xf32>
    %103 = vector.shape_cast %102 : vector<1x16x32xf32> to vector<16x32xf32>
    %cst_61 = arith.constant dense<0.000000e+00> : vector<236x32xf32>
    %104 = tpu.matmul %101, %103, %cst_61 {dimension_numbers = #tpu.dot_dimension_numbers<[1], [0], [0], [1], [0, 0, 1, 1], [], []>} : vector<236x16xf32>, vector<16x32xf32>, vector<236x32xf32> -> vector<236x32xf32>
    %105 = arith.addf %100, %104 : vector<236x32xf32>
    %106 = vector.extract_strided_slice %14 {offsets = [39, 0], sizes = [236, 16], strides = [1, 1]} : vector<288x16xf32> to vector<236x16xf32>
    %c18 = arith.constant 18 : index
    %c0_62 = arith.constant 0 : index
    %c0_63 = arith.constant 0 : index
    %107 = vector.load %arg4[%c18, %c0_62, %c0_63] : memref<25x16x32xf32, #tpu.memory_space<vmem>>, vector<1x16x32xf32>
    %108 = vector.shape_cast %107 : vector<1x16x32xf32> to vector<16x32xf32>
    %cst_64 = arith.constant dense<0.000000e+00> : vector<236x32xf32>
    %109 = tpu.matmul %106, %108, %cst_64 {dimension_numbers = #tpu.dot_dimension_numbers<[1], [0], [0], [1], [0, 0, 1, 1], [], []>} : vector<236x16xf32>, vector<16x32xf32>, vector<236x32xf32> -> vector<236x32xf32>
    %110 = arith.addf %105, %109 : vector<236x32xf32>
    %111 = vector.extract_strided_slice %14 {offsets = [40, 0], sizes = [236, 16], strides = [1, 1]} : vector<288x16xf32> to vector<236x16xf32>
    %c19 = arith.constant 19 : index
    %c0_65 = arith.constant 0 : index
    %c0_66 = arith.constant 0 : index
    %112 = vector.load %arg4[%c19, %c0_65, %c0_66] : memref<25x16x32xf32, #tpu.memory_space<vmem>>, vector<1x16x32xf32>
    %113 = vector.shape_cast %112 : vector<1x16x32xf32> to vector<16x32xf32>
    %cst_67 = arith.constant dense<0.000000e+00> : vector<236x32xf32>
    %114 = tpu.matmul %111, %113, %cst_67 {dimension_numbers = #tpu.dot_dimension_numbers<[1], [0], [0], [1], [0, 0, 1, 1], [], []>} : vector<236x16xf32>, vector<16x32xf32>, vector<236x32xf32> -> vector<236x32xf32>
    %115 = arith.addf %110, %114 : vector<236x32xf32>
    %116 = vector.extract_strided_slice %14 {offsets = [48, 0], sizes = [236, 16], strides = [1, 1]} : vector<288x16xf32> to vector<236x16xf32>
    %c20 = arith.constant 20 : index
    %c0_68 = arith.constant 0 : index
    %c0_69 = arith.constant 0 : index
    %117 = vector.load %arg4[%c20, %c0_68, %c0_69] : memref<25x16x32xf32, #tpu.memory_space<vmem>>, vector<1x16x32xf32>
    %118 = vector.shape_cast %117 : vector<1x16x32xf32> to vector<16x32xf32>
    %cst_70 = arith.constant dense<0.000000e+00> : vector<236x32xf32>
    %119 = tpu.matmul %116, %118, %cst_70 {dimension_numbers = #tpu.dot_dimension_numbers<[1], [0], [0], [1], [0, 0, 1, 1], [], []>} : vector<236x16xf32>, vector<16x32xf32>, vector<236x32xf32> -> vector<236x32xf32>
    %120 = arith.addf %115, %119 : vector<236x32xf32>
    %121 = vector.extract_strided_slice %14 {offsets = [49, 0], sizes = [236, 16], strides = [1, 1]} : vector<288x16xf32> to vector<236x16xf32>
    %c21 = arith.constant 21 : index
    %c0_71 = arith.constant 0 : index
    %c0_72 = arith.constant 0 : index
    %122 = vector.load %arg4[%c21, %c0_71, %c0_72] : memref<25x16x32xf32, #tpu.memory_space<vmem>>, vector<1x16x32xf32>
    %123 = vector.shape_cast %122 : vector<1x16x32xf32> to vector<16x32xf32>
    %cst_73 = arith.constant dense<0.000000e+00> : vector<236x32xf32>
    %124 = tpu.matmul %121, %123, %cst_73 {dimension_numbers = #tpu.dot_dimension_numbers<[1], [0], [0], [1], [0, 0, 1, 1], [], []>} : vector<236x16xf32>, vector<16x32xf32>, vector<236x32xf32> -> vector<236x32xf32>
    %125 = arith.addf %120, %124 : vector<236x32xf32>
    %126 = vector.extract_strided_slice %14 {offsets = [50, 0], sizes = [236, 16], strides = [1, 1]} : vector<288x16xf32> to vector<236x16xf32>
    %c22 = arith.constant 22 : index
    %c0_74 = arith.constant 0 : index
    %c0_75 = arith.constant 0 : index
    %127 = vector.load %arg4[%c22, %c0_74, %c0_75] : memref<25x16x32xf32, #tpu.memory_space<vmem>>, vector<1x16x32xf32>
    %128 = vector.shape_cast %127 : vector<1x16x32xf32> to vector<16x32xf32>
    %cst_76 = arith.constant dense<0.000000e+00> : vector<236x32xf32>
    %129 = tpu.matmul %126, %128, %cst_76 {dimension_numbers = #tpu.dot_dimension_numbers<[1], [0], [0], [1], [0, 0, 1, 1], [], []>} : vector<236x16xf32>, vector<16x32xf32>, vector<236x32xf32> -> vector<236x32xf32>
    %130 = arith.addf %125, %129 : vector<236x32xf32>
    %131 = vector.extract_strided_slice %14 {offsets = [51, 0], sizes = [236, 16], strides = [1, 1]} : vector<288x16xf32> to vector<236x16xf32>
    %c23 = arith.constant 23 : index
    %c0_77 = arith.constant 0 : index
    %c0_78 = arith.constant 0 : index
    %132 = vector.load %arg4[%c23, %c0_77, %c0_78] : memref<25x16x32xf32, #tpu.memory_space<vmem>>, vector<1x16x32xf32>
    %133 = vector.shape_cast %132 : vector<1x16x32xf32> to vector<16x32xf32>
    %cst_79 = arith.constant dense<0.000000e+00> : vector<236x32xf32>
    %134 = tpu.matmul %131, %133, %cst_79 {dimension_numbers = #tpu.dot_dimension_numbers<[1], [0], [0], [1], [0, 0, 1, 1], [], []>} : vector<236x16xf32>, vector<16x32xf32>, vector<236x32xf32> -> vector<236x32xf32>
    %135 = arith.addf %130, %134 : vector<236x32xf32>
    %136 = vector.extract_strided_slice %14 {offsets = [52, 0], sizes = [236, 16], strides = [1, 1]} : vector<288x16xf32> to vector<236x16xf32>
    %c24 = arith.constant 24 : index
    %c0_80 = arith.constant 0 : index
    %c0_81 = arith.constant 0 : index
    %137 = vector.load %arg4[%c24, %c0_80, %c0_81] : memref<25x16x32xf32, #tpu.memory_space<vmem>>, vector<1x16x32xf32>
    %138 = vector.shape_cast %137 : vector<1x16x32xf32> to vector<16x32xf32>
    %cst_82 = arith.constant dense<0.000000e+00> : vector<236x32xf32>
    %139 = tpu.matmul %136, %138, %cst_82 {dimension_numbers = #tpu.dot_dimension_numbers<[1], [0], [0], [1], [0, 0, 1, 1], [], []>} : vector<236x16xf32>, vector<16x32xf32>, vector<236x32xf32> -> vector<236x32xf32>
    %140 = arith.addf %135, %139 : vector<236x32xf32>
    %c0_83 = arith.constant 0 : index
    %c0_84 = arith.constant 0 : index
    %141 = vector.load %arg1[%c0_83, %c0_84] : memref<128x236xf32, #tpu.memory_space<vmem>>, vector<128x236xf32>
    %cst_85 = arith.constant dense<0.000000e+00> : vector<128x32xf32>
    %142 = tpu.matmul %141, %140, %cst_85 {dimension_numbers = #tpu.dot_dimension_numbers<[1], [0], [0], [1], [0, 0, 1, 1], [], []>} : vector<128x236xf32>, vector<236x32xf32>, vector<128x32xf32> -> vector<128x32xf32>
    %143 = vector.extract_strided_slice %142 {offsets = [0, 0], sizes = [32, 32], strides = [1, 1]} : vector<128x32xf32> to vector<32x32xf32>
    %144 = vector.extract_strided_slice %142 {offsets = [32, 0], sizes = [32, 32], strides = [1, 1]} : vector<128x32xf32> to vector<32x32xf32>
    %145 = arith.maximumf %143, %144 : vector<32x32xf32>
    %146 = vector.extract_strided_slice %142 {offsets = [64, 0], sizes = [32, 32], strides = [1, 1]} : vector<128x32xf32> to vector<32x32xf32>
    %147 = vector.extract_strided_slice %142 {offsets = [96, 0], sizes = [32, 32], strides = [1, 1]} : vector<128x32xf32> to vector<32x32xf32>
    %148 = arith.maximumf %146, %147 : vector<32x32xf32>
    %149 = arith.maximumf %145, %148 : vector<32x32xf32>
    %c0_86 = arith.constant 0 : index
    %c0_87 = arith.constant 0 : index
    %150 = vector.load %arg5[%c0_86, %c0_87] : memref<1x32xf32, #tpu.memory_space<vmem>>, vector<1x32xf32>
    %151 = vector.broadcast %150 : vector<1x32xf32> to vector<32x32xf32>
    %152 = arith.addf %149, %151 : vector<32x32xf32>
    %cst_88 = arith.constant 0.000000e+00 : f32
    %153 = vector.broadcast %cst_88 : f32 to vector<32x32xf32>
    %154 = arith.maximumf %152, %153 : vector<32x32xf32>
    %cst_89 = arith.constant 0.000000e+00 : f32
    %155 = vector.broadcast %cst_89 : f32 to vector<2x128xf32>
    %156 = vector.extract_strided_slice %154 {offsets = [0, 0], sizes = [2, 32], strides = [1, 1]} : vector<32x32xf32> to vector<2x32xf32>
    %c0_90 = arith.constant 0 : index
    %c0_91 = arith.constant 0 : index
    %c0_92 = arith.constant 0 : index
    %157 = vector.load %arg6[%c0_90, %c0_91, %c0_92] : memref<16x32x128xf32, #tpu.memory_space<vmem>>, vector<1x32x128xf32>
    %158 = vector.shape_cast %157 : vector<1x32x128xf32> to vector<32x128xf32>
    %cst_93 = arith.constant dense<0.000000e+00> : vector<2x128xf32>
    %159 = tpu.matmul %156, %158, %cst_93 {dimension_numbers = #tpu.dot_dimension_numbers<[1], [0], [0], [1], [0, 0, 1, 1], [], []>} : vector<2x32xf32>, vector<32x128xf32>, vector<2x128xf32> -> vector<2x128xf32>
    %160 = arith.addf %155, %159 : vector<2x128xf32>
    %161 = vector.extract_strided_slice %154 {offsets = [2, 0], sizes = [2, 32], strides = [1, 1]} : vector<32x32xf32> to vector<2x32xf32>
    %c1_94 = arith.constant 1 : index
    %c0_95 = arith.constant 0 : index
    %c0_96 = arith.constant 0 : index
    %162 = vector.load %arg6[%c1_94, %c0_95, %c0_96] : memref<16x32x128xf32, #tpu.memory_space<vmem>>, vector<1x32x128xf32>
    %163 = vector.shape_cast %162 : vector<1x32x128xf32> to vector<32x128xf32>
    %cst_97 = arith.constant dense<0.000000e+00> : vector<2x128xf32>
    %164 = tpu.matmul %161, %163, %cst_97 {dimension_numbers = #tpu.dot_dimension_numbers<[1], [0], [0], [1], [0, 0, 1, 1], [], []>} : vector<2x32xf32>, vector<32x128xf32>, vector<2x128xf32> -> vector<2x128xf32>
    %165 = arith.addf %160, %164 : vector<2x128xf32>
    %166 = vector.extract_strided_slice %154 {offsets = [4, 0], sizes = [2, 32], strides = [1, 1]} : vector<32x32xf32> to vector<2x32xf32>
    %c2_98 = arith.constant 2 : index
    %c0_99 = arith.constant 0 : index
    %c0_100 = arith.constant 0 : index
    %167 = vector.load %arg6[%c2_98, %c0_99, %c0_100] : memref<16x32x128xf32, #tpu.memory_space<vmem>>, vector<1x32x128xf32>
    %168 = vector.shape_cast %167 : vector<1x32x128xf32> to vector<32x128xf32>
    %cst_101 = arith.constant dense<0.000000e+00> : vector<2x128xf32>
    %169 = tpu.matmul %166, %168, %cst_101 {dimension_numbers = #tpu.dot_dimension_numbers<[1], [0], [0], [1], [0, 0, 1, 1], [], []>} : vector<2x32xf32>, vector<32x128xf32>, vector<2x128xf32> -> vector<2x128xf32>
    %170 = arith.addf %165, %169 : vector<2x128xf32>
    %171 = vector.extract_strided_slice %154 {offsets = [6, 0], sizes = [2, 32], strides = [1, 1]} : vector<32x32xf32> to vector<2x32xf32>
    %c3_102 = arith.constant 3 : index
    %c0_103 = arith.constant 0 : index
    %c0_104 = arith.constant 0 : index
    %172 = vector.load %arg6[%c3_102, %c0_103, %c0_104] : memref<16x32x128xf32, #tpu.memory_space<vmem>>, vector<1x32x128xf32>
    %173 = vector.shape_cast %172 : vector<1x32x128xf32> to vector<32x128xf32>
    %cst_105 = arith.constant dense<0.000000e+00> : vector<2x128xf32>
    %174 = tpu.matmul %171, %173, %cst_105 {dimension_numbers = #tpu.dot_dimension_numbers<[1], [0], [0], [1], [0, 0, 1, 1], [], []>} : vector<2x32xf32>, vector<32x128xf32>, vector<2x128xf32> -> vector<2x128xf32>
    %175 = arith.addf %170, %174 : vector<2x128xf32>
    %176 = vector.extract_strided_slice %154 {offsets = [8, 0], sizes = [2, 32], strides = [1, 1]} : vector<32x32xf32> to vector<2x32xf32>
    %c4_106 = arith.constant 4 : index
    %c0_107 = arith.constant 0 : index
    %c0_108 = arith.constant 0 : index
    %177 = vector.load %arg6[%c4_106, %c0_107, %c0_108] : memref<16x32x128xf32, #tpu.memory_space<vmem>>, vector<1x32x128xf32>
    %178 = vector.shape_cast %177 : vector<1x32x128xf32> to vector<32x128xf32>
    %cst_109 = arith.constant dense<0.000000e+00> : vector<2x128xf32>
    %179 = tpu.matmul %176, %178, %cst_109 {dimension_numbers = #tpu.dot_dimension_numbers<[1], [0], [0], [1], [0, 0, 1, 1], [], []>} : vector<2x32xf32>, vector<32x128xf32>, vector<2x128xf32> -> vector<2x128xf32>
    %180 = arith.addf %175, %179 : vector<2x128xf32>
    %181 = vector.extract_strided_slice %154 {offsets = [10, 0], sizes = [2, 32], strides = [1, 1]} : vector<32x32xf32> to vector<2x32xf32>
    %c5_110 = arith.constant 5 : index
    %c0_111 = arith.constant 0 : index
    %c0_112 = arith.constant 0 : index
    %182 = vector.load %arg6[%c5_110, %c0_111, %c0_112] : memref<16x32x128xf32, #tpu.memory_space<vmem>>, vector<1x32x128xf32>
    %183 = vector.shape_cast %182 : vector<1x32x128xf32> to vector<32x128xf32>
    %cst_113 = arith.constant dense<0.000000e+00> : vector<2x128xf32>
    %184 = tpu.matmul %181, %183, %cst_113 {dimension_numbers = #tpu.dot_dimension_numbers<[1], [0], [0], [1], [0, 0, 1, 1], [], []>} : vector<2x32xf32>, vector<32x128xf32>, vector<2x128xf32> -> vector<2x128xf32>
    %185 = arith.addf %180, %184 : vector<2x128xf32>
    %186 = vector.extract_strided_slice %154 {offsets = [12, 0], sizes = [2, 32], strides = [1, 1]} : vector<32x32xf32> to vector<2x32xf32>
    %c6_114 = arith.constant 6 : index
    %c0_115 = arith.constant 0 : index
    %c0_116 = arith.constant 0 : index
    %187 = vector.load %arg6[%c6_114, %c0_115, %c0_116] : memref<16x32x128xf32, #tpu.memory_space<vmem>>, vector<1x32x128xf32>
    %188 = vector.shape_cast %187 : vector<1x32x128xf32> to vector<32x128xf32>
    %cst_117 = arith.constant dense<0.000000e+00> : vector<2x128xf32>
    %189 = tpu.matmul %186, %188, %cst_117 {dimension_numbers = #tpu.dot_dimension_numbers<[1], [0], [0], [1], [0, 0, 1, 1], [], []>} : vector<2x32xf32>, vector<32x128xf32>, vector<2x128xf32> -> vector<2x128xf32>
    %190 = arith.addf %185, %189 : vector<2x128xf32>
    %191 = vector.extract_strided_slice %154 {offsets = [14, 0], sizes = [2, 32], strides = [1, 1]} : vector<32x32xf32> to vector<2x32xf32>
    %c7_118 = arith.constant 7 : index
    %c0_119 = arith.constant 0 : index
    %c0_120 = arith.constant 0 : index
    %192 = vector.load %arg6[%c7_118, %c0_119, %c0_120] : memref<16x32x128xf32, #tpu.memory_space<vmem>>, vector<1x32x128xf32>
    %193 = vector.shape_cast %192 : vector<1x32x128xf32> to vector<32x128xf32>
    %cst_121 = arith.constant dense<0.000000e+00> : vector<2x128xf32>
    %194 = tpu.matmul %191, %193, %cst_121 {dimension_numbers = #tpu.dot_dimension_numbers<[1], [0], [0], [1], [0, 0, 1, 1], [], []>} : vector<2x32xf32>, vector<32x128xf32>, vector<2x128xf32> -> vector<2x128xf32>
    %195 = arith.addf %190, %194 : vector<2x128xf32>
    %196 = vector.extract_strided_slice %154 {offsets = [16, 0], sizes = [2, 32], strides = [1, 1]} : vector<32x32xf32> to vector<2x32xf32>
    %c8_122 = arith.constant 8 : index
    %c0_123 = arith.constant 0 : index
    %c0_124 = arith.constant 0 : index
    %197 = vector.load %arg6[%c8_122, %c0_123, %c0_124] : memref<16x32x128xf32, #tpu.memory_space<vmem>>, vector<1x32x128xf32>
    %198 = vector.shape_cast %197 : vector<1x32x128xf32> to vector<32x128xf32>
    %cst_125 = arith.constant dense<0.000000e+00> : vector<2x128xf32>
    %199 = tpu.matmul %196, %198, %cst_125 {dimension_numbers = #tpu.dot_dimension_numbers<[1], [0], [0], [1], [0, 0, 1, 1], [], []>} : vector<2x32xf32>, vector<32x128xf32>, vector<2x128xf32> -> vector<2x128xf32>
    %200 = arith.addf %195, %199 : vector<2x128xf32>
    %201 = vector.extract_strided_slice %154 {offsets = [18, 0], sizes = [2, 32], strides = [1, 1]} : vector<32x32xf32> to vector<2x32xf32>
    %c9_126 = arith.constant 9 : index
    %c0_127 = arith.constant 0 : index
    %c0_128 = arith.constant 0 : index
    %202 = vector.load %arg6[%c9_126, %c0_127, %c0_128] : memref<16x32x128xf32, #tpu.memory_space<vmem>>, vector<1x32x128xf32>
    %203 = vector.shape_cast %202 : vector<1x32x128xf32> to vector<32x128xf32>
    %cst_129 = arith.constant dense<0.000000e+00> : vector<2x128xf32>
    %204 = tpu.matmul %201, %203, %cst_129 {dimension_numbers = #tpu.dot_dimension_numbers<[1], [0], [0], [1], [0, 0, 1, 1], [], []>} : vector<2x32xf32>, vector<32x128xf32>, vector<2x128xf32> -> vector<2x128xf32>
    %205 = arith.addf %200, %204 : vector<2x128xf32>
    %206 = vector.extract_strided_slice %154 {offsets = [20, 0], sizes = [2, 32], strides = [1, 1]} : vector<32x32xf32> to vector<2x32xf32>
    %c10_130 = arith.constant 10 : index
    %c0_131 = arith.constant 0 : index
    %c0_132 = arith.constant 0 : index
    %207 = vector.load %arg6[%c10_130, %c0_131, %c0_132] : memref<16x32x128xf32, #tpu.memory_space<vmem>>, vector<1x32x128xf32>
    %208 = vector.shape_cast %207 : vector<1x32x128xf32> to vector<32x128xf32>
    %cst_133 = arith.constant dense<0.000000e+00> : vector<2x128xf32>
    %209 = tpu.matmul %206, %208, %cst_133 {dimension_numbers = #tpu.dot_dimension_numbers<[1], [0], [0], [1], [0, 0, 1, 1], [], []>} : vector<2x32xf32>, vector<32x128xf32>, vector<2x128xf32> -> vector<2x128xf32>
    %210 = arith.addf %205, %209 : vector<2x128xf32>
    %211 = vector.extract_strided_slice %154 {offsets = [22, 0], sizes = [2, 32], strides = [1, 1]} : vector<32x32xf32> to vector<2x32xf32>
    %c11_134 = arith.constant 11 : index
    %c0_135 = arith.constant 0 : index
    %c0_136 = arith.constant 0 : index
    %212 = vector.load %arg6[%c11_134, %c0_135, %c0_136] : memref<16x32x128xf32, #tpu.memory_space<vmem>>, vector<1x32x128xf32>
    %213 = vector.shape_cast %212 : vector<1x32x128xf32> to vector<32x128xf32>
    %cst_137 = arith.constant dense<0.000000e+00> : vector<2x128xf32>
    %214 = tpu.matmul %211, %213, %cst_137 {dimension_numbers = #tpu.dot_dimension_numbers<[1], [0], [0], [1], [0, 0, 1, 1], [], []>} : vector<2x32xf32>, vector<32x128xf32>, vector<2x128xf32> -> vector<2x128xf32>
    %215 = arith.addf %210, %214 : vector<2x128xf32>
    %216 = vector.extract_strided_slice %154 {offsets = [24, 0], sizes = [2, 32], strides = [1, 1]} : vector<32x32xf32> to vector<2x32xf32>
    %c12_138 = arith.constant 12 : index
    %c0_139 = arith.constant 0 : index
    %c0_140 = arith.constant 0 : index
    %217 = vector.load %arg6[%c12_138, %c0_139, %c0_140] : memref<16x32x128xf32, #tpu.memory_space<vmem>>, vector<1x32x128xf32>
    %218 = vector.shape_cast %217 : vector<1x32x128xf32> to vector<32x128xf32>
    %cst_141 = arith.constant dense<0.000000e+00> : vector<2x128xf32>
    %219 = tpu.matmul %216, %218, %cst_141 {dimension_numbers = #tpu.dot_dimension_numbers<[1], [0], [0], [1], [0, 0, 1, 1], [], []>} : vector<2x32xf32>, vector<32x128xf32>, vector<2x128xf32> -> vector<2x128xf32>
    %220 = arith.addf %215, %219 : vector<2x128xf32>
    %221 = vector.extract_strided_slice %154 {offsets = [26, 0], sizes = [2, 32], strides = [1, 1]} : vector<32x32xf32> to vector<2x32xf32>
    %c13_142 = arith.constant 13 : index
    %c0_143 = arith.constant 0 : index
    %c0_144 = arith.constant 0 : index
    %222 = vector.load %arg6[%c13_142, %c0_143, %c0_144] : memref<16x32x128xf32, #tpu.memory_space<vmem>>, vector<1x32x128xf32>
    %223 = vector.shape_cast %222 : vector<1x32x128xf32> to vector<32x128xf32>
    %cst_145 = arith.constant dense<0.000000e+00> : vector<2x128xf32>
    %224 = tpu.matmul %221, %223, %cst_145 {dimension_numbers = #tpu.dot_dimension_numbers<[1], [0], [0], [1], [0, 0, 1, 1], [], []>} : vector<2x32xf32>, vector<32x128xf32>, vector<2x128xf32> -> vector<2x128xf32>
    %225 = arith.addf %220, %224 : vector<2x128xf32>
    %226 = vector.extract_strided_slice %154 {offsets = [28, 0], sizes = [2, 32], strides = [1, 1]} : vector<32x32xf32> to vector<2x32xf32>
    %c14_146 = arith.constant 14 : index
    %c0_147 = arith.constant 0 : index
    %c0_148 = arith.constant 0 : index
    %227 = vector.load %arg6[%c14_146, %c0_147, %c0_148] : memref<16x32x128xf32, #tpu.memory_space<vmem>>, vector<1x32x128xf32>
    %228 = vector.shape_cast %227 : vector<1x32x128xf32> to vector<32x128xf32>
    %cst_149 = arith.constant dense<0.000000e+00> : vector<2x128xf32>
    %229 = tpu.matmul %226, %228, %cst_149 {dimension_numbers = #tpu.dot_dimension_numbers<[1], [0], [0], [1], [0, 0, 1, 1], [], []>} : vector<2x32xf32>, vector<32x128xf32>, vector<2x128xf32> -> vector<2x128xf32>
    %230 = arith.addf %225, %229 : vector<2x128xf32>
    %231 = vector.extract_strided_slice %154 {offsets = [30, 0], sizes = [2, 32], strides = [1, 1]} : vector<32x32xf32> to vector<2x32xf32>
    %c15_150 = arith.constant 15 : index
    %c0_151 = arith.constant 0 : index
    %c0_152 = arith.constant 0 : index
    %232 = vector.load %arg6[%c15_150, %c0_151, %c0_152] : memref<16x32x128xf32, #tpu.memory_space<vmem>>, vector<1x32x128xf32>
    %233 = vector.shape_cast %232 : vector<1x32x128xf32> to vector<32x128xf32>
    %cst_153 = arith.constant dense<0.000000e+00> : vector<2x128xf32>
    %234 = tpu.matmul %231, %233, %cst_153 {dimension_numbers = #tpu.dot_dimension_numbers<[1], [0], [0], [1], [0, 0, 1, 1], [], []>} : vector<2x32xf32>, vector<32x128xf32>, vector<2x128xf32> -> vector<2x128xf32>
    %235 = arith.addf %230, %234 : vector<2x128xf32>
    %c0_154 = arith.constant 0 : index
    %c0_155 = arith.constant 0 : index
    %236 = vector.load %arg7[%c0_154, %c0_155] : memref<1x128xf32, #tpu.memory_space<vmem>>, vector<1x128xf32>
    %237 = vector.broadcast %236 : vector<1x128xf32> to vector<2x128xf32>
    %238 = arith.addf %235, %237 : vector<2x128xf32>
    %cst_156 = arith.constant 0.000000e+00 : f32
    %239 = vector.broadcast %cst_156 : f32 to vector<2x128xf32>
    %240 = arith.maximumf %238, %239 : vector<2x128xf32>
    %c0_157 = arith.constant 0 : index
    %c0_158 = arith.constant 0 : index
    %241 = vector.load %arg8[%c0_157, %c0_158] : memref<128x16xf32, #tpu.memory_space<vmem>>, vector<128x16xf32>
    %cst_159 = arith.constant dense<0.000000e+00> : vector<2x16xf32>
    %242 = tpu.matmul %240, %241, %cst_159 {dimension_numbers = #tpu.dot_dimension_numbers<[1], [0], [0], [1], [0, 0, 1, 1], [], []>} : vector<2x128xf32>, vector<128x16xf32>, vector<2x16xf32> -> vector<2x16xf32>
    %c0_160 = arith.constant 0 : index
    %c0_161 = arith.constant 0 : index
    %243 = vector.load %arg9[%c0_160, %c0_161] : memref<1x16xf32, #tpu.memory_space<vmem>>, vector<1x16xf32>
    %244 = vector.broadcast %243 : vector<1x16xf32> to vector<2x16xf32>
    %245 = arith.addf %242, %244 : vector<2x16xf32>
    %cst_162 = arith.constant dense<0xFF800000> : vector<2xf32>
    %246 = vector.multi_reduction <maximumf>, %245, %cst_162 [1] : vector<2x16xf32> to vector<2xf32>
    %247 = vector.shape_cast %246 : vector<2xf32> to vector<2x1xf32>
    %248 = vector.broadcast %247 : vector<2x1xf32> to vector<2x16xf32>
    %249 = arith.subf %245, %248 : vector<2x16xf32>
    %250 = math.exp %249 : vector<2x16xf32>
    %cst_163 = arith.constant dense<0.000000e+00> : vector<2xf32>
    %251 = vector.multi_reduction <add>, %250, %cst_163 [1] : vector<2x16xf32> to vector<2xf32>
    %252 = vector.shape_cast %251 : vector<2xf32> to vector<2x1xf32>
    %253 = math.log %252 : vector<2x1xf32>
    %254 = vector.broadcast %253 : vector<2x1xf32> to vector<2x16xf32>
    %255 = arith.subf %249, %254 : vector<2x16xf32>
    %256 = vector.extract_strided_slice %255 {offsets = [0, 0], sizes = [2, 10], strides = [1, 1]} : vector<2x16xf32> to vector<2x10xf32>
    %c0_164 = arith.constant 0 : index
    %c0_165 = arith.constant 0 : index
    %257 = vector.load %arg10[%c0_164, %c0_165] : memref<2x10xf32, #tpu.memory_space<vmem>>, vector<2x10xf32>
    tpu.vector_store %arg10[%c0_164, %c0_165], %256 {strides = array<i32>} : memref<2x10xf32, #tpu.memory_space<vmem>>, vector<2x10xf32>,
    return
  }
}

</mosaic_0001>

<llo_original>
// kernel: net_forward.1
$region0: #{net_forward.1}
  #allocation0 [shape = 'u32[]', space=smem, size = 0x4, offset = 0x4, fixed_abs, tag = 'smem constant byte address 0x4 - core index']
  #allocation1 [shape = 'u32[144,128]{1,0:T(1,128)}', space=vmem, size = 0x12000, scoped, tag = 'internal scratch']
  %s0 = inlined_call_operand.vmem [shape: f32[1152,32], index: 0, kind: input, shape index: {}]
  %s1 = inlined_call_operand.vmem [shape: f32[128,236], index: 1, kind: input, shape index: {}]
  %s2 = inlined_call_operand.vmem [shape: f32[32,16], index: 2, kind: input, shape index: {}]
  %s3 = inlined_call_operand.vmem [shape: f32[1,16], index: 3, kind: input, shape index: {}]
  %s4 = inlined_call_operand.vmem [shape: f32[25,16,32], index: 4, kind: input, shape index: {}]
  %s5 = inlined_call_operand.vmem [shape: f32[1,32], index: 5, kind: input, shape index: {}]
  %s6 = inlined_call_operand.vmem [shape: f32[16,32,128], index: 6, kind: input, shape index: {}]
  %s7 = inlined_call_operand.vmem [shape: f32[1,128], index: 7, kind: input, shape index: {}]
  %s8 = inlined_call_operand.vmem [shape: f32[128,16], index: 8, kind: input, shape index: {}]
  %s9 = inlined_call_operand.vmem [shape: f32[1,16], index: 9, kind: input, shape index: {}]
  %s10 = inlined_call_operand.hbm [shape: f32[2,10], index: 10, kind: output, shape index: {}]
  %s11 = sld [smem:[#allocation0]]
  $region50: #{net_forward.1} parent=0
    _
  %s13 = ssub.s32 1, %s11
  %s14 = scalar_select 0, %s13, %s11
  $region1: #{net_forward.1} parent=0
    #allocation2 [shape = 'u8[1024]{0}', space=vmem, size = 0x400, scoped, tag = 'output window, operand 0, single buffered']
    #allocation3 [shape = 's32[1]{0}', space=sflag, size = 0x4, scoped, tag = 'scoped memory for net_forward.1']
    %15 = vsyncpa [#allocation3], 0
    // Predicated region
    $region2: #{net_forward.1} parent=1 // pred_check
      _
    $region3: #{net_forward.1} parent=1 // pred_check_branch
      %17 = sbr.rel (0) target = $region5
    $region4: #{net_forward.1} parent=1 // pred_region
      _
    $region5: #{net_forward.1} parent=1 // pred_fallthru
      _
    // Predicated region
    $region6: #{net_forward.1} parent=1 // pred_check
      _
    $region7: #{net_forward.1} parent=1 // pred_check_branch
      %19 = sbr.rel (0) target = $region9
    $region8: #{net_forward.1} parent=1 // pred_region
      _
    $region9: #{net_forward.1} parent=1 // pred_fallthru
      _
    // Predicated region
    $region10: #{net_forward.1} parent=1 // pred_check
      _
    $region11: #{net_forward.1} parent=1 // pred_check_branch
      %21 = sbr.rel (0) target = $region13
    $region12: #{net_forward.1} parent=1 // pred_region
      _
    $region13: #{net_forward.1} parent=1 // pred_fallthru
      _
    // Predicated region
    $region14: #{net_forward.1} parent=1 // pred_check
      _
    $region15: #{net_forward.1} parent=1 // pred_check_branch
      %23 = sbr.rel (0) target = $region17
    $region16: #{net_forward.1} parent=1 // pred_region
      _
    $region17: #{net_forward.1} parent=1 // pred_fallthru
      _
    // Predicated region
    $region18: #{net_forward.1} parent=1 // pred_check
      _
    $region19: #{net_forward.1} parent=1 // pred_check_branch
      %25 = sbr.rel (0) target = $region21
    $region20: #{net_forward.1} parent=1 // pred_region
      _
    $region21: #{net_forward.1} parent=1 // pred_fallthru
      _
    // Predicated region
    $region22: #{net_forward.1} parent=1 // pred_check
      _
    $region23: #{net_forward.1} parent=1 // pred_check_branch
      %27 = sbr.rel (0) target = $region25
    $region24: #{net_forward.1} parent=1 // pred_region
      _
    $region25: #{net_forward.1} parent=1 // pred_fallthru
      _
    // Predicated region
    $region26: #{net_forward.1} parent=1 // pred_check
      _
    $region27: #{net_forward.1} parent=1 // pred_check_branch
      %29 = sbr.rel (0) target = $region29
    $region28: #{net_forward.1} parent=1 // pred_region
      _
    $region29: #{net_forward.1} parent=1 // pred_fallthru
      _
    // Predicated region
    $region30: #{net_forward.1} parent=1 // pred_check
      _
    $region31: #{net_forward.1} parent=1 // pred_check_branch
      %31 = sbr.rel (0) target = $region33
    $region32: #{net_forward.1} parent=1 // pred_region
      _
    $region33: #{net_forward.1} parent=1 // pred_fallthru
      _
    // Predicated region
    $region34: #{net_forward.1} parent=1 // pred_check
      _
    $region35: #{net_forward.1} parent=1 // pred_check_branch
      %33 = sbr.rel (0) target = $region37
    $region36: #{net_forward.1} parent=1 // pred_region
      _
    $region37: #{net_forward.1} parent=1 // pred_fallthru
      _
    // Predicated region
    $region38: #{net_forward.1} parent=1 // pred_check
      _
    $region39: #{net_forward.1} parent=1 // pred_check_branch
      %35 = sbr.rel (0) target = $region41
    $region40: #{net_forward.1} parent=1 // pred_region
      _
    $region41: #{net_forward.1} parent=1 // pred_fallthru
      _
    %v36 = vld [vmem:[%s0] sm:$0xff]
    %v37 = vld [vmem:[%s0 + $0x8] sm:$0xff]
    %v38 = vld [vmem:[%s0 + $0x10] sm:$0xff]
    %v39 = vld [vmem:[%s0 + $0x18] sm:$0xff]
    %v40 = vld [vmem:[%s0 + $0x20] sm:$0xff]
    %v41 = vld [vmem:[%s0 + $0x28] sm:$0xff]
    %v42 = vld [vmem:[%s0 + $0x30] sm:$0xff]
    %v43 = vld [vmem:[%s0 + $0x38] sm:$0xff]
    %v44 = vld [vmem:[%s0 + $0x40] sm:$0xff]
    %v45 = vld [vmem:[%s0 + $0x48] sm:$0xff]
    %v46 = vld [vmem:[%s0 + $0x50] sm:$0xff]
    %v47 = vld [vmem:[%s0 + $0x58] sm:$0xff]
    %v48 = vld [vmem:[%s0 + $0x60] sm:$0xff]
    %v49 = vld [vmem:[%s0 + $0x68] sm:$0xff]
    %v50 = vld [vmem:[%s0 + $0x70] sm:$0xff]
    %v51 = vld [vmem:[%s0 + $0x78] sm:$0xff]
    %v52 = vld [vmem:[%s0 + $0x80] sm:$0xff]
    %v53 = vld [vmem:[%s0 + $0x88] sm:$0xff]
    %v54 = vld [vmem:[%s0 + $0x90] sm:$0xff]
    %v55 = vld [vmem:[%s0 + $0x98] sm:$0xff]
    %v56 = vld [vmem:[%s0 + $0xa0] sm:$0xff]
    %v57 = vld [vmem:[%s0 + $0xa8] sm:$0xff]
    %v58 = vld [vmem:[%s0 + $0xb0] sm:$0xff]
    %v59 = vld [vmem:[%s0 + $0xb8] sm:$0xff]
    %v60 = vld [vmem:[%s0 + $0xc0] sm:$0xff]
    %v61 = vld [vmem:[%s0 + $0xc8] sm:$0xff]
    %v62 = vld [vmem:[%s0 + $0xd0] sm:$0xff]
    %v63 = vld [vmem:[%s0 + $0xd8] sm:$0xff]
    %v64 = vld [vmem:[%s0 + $0xe0] sm:$0xff]
    %v65 = vld [vmem:[%s0 + $0xe8] sm:$0xff]
    %v66 = vld [vmem:[%s0 + $0xf0] sm:$0xff]
    %v67 = vld [vmem:[%s0 + $0xf8] sm:$0xff]
    %v68 = vld [vmem:[%s0 + $0x100] sm:$0xff]
    %v69 = vld [vmem:[%s0 + $0x108] sm:$0xff]
    %v70 = vld [vmem:[%s0 + $0x110] sm:$0xff]
    %v71 = vld [vmem:[%s0 + $0x118] sm:$0xff]
    %v72 = vld [vmem:[%s0 + $0x120] sm:$0xff]
    %v73 = vld [vmem:[%s0 + $0x128] sm:$0xff]
    %v74 = vld [vmem:[%s0 + $0x130] sm:$0xff]
    %v75 = vld [vmem:[%s0 + $0x138] sm:$0xff]
    %v76 = vld [vmem:[%s0 + $0x140] sm:$0xff]
    %v77 = vld [vmem:[%s0 + $0x148] sm:$0xff]
    %v78 = vld [vmem:[%s0 + $0x150] sm:$0xff]
    %v79 = vld [vmem:[%s0 + $0x158] sm:$0xff]
    %v80 = vld [vmem:[%s0 + $0x160] sm:$0xff]
    %v81 = vld [vmem:[%s0 + $0x168] sm:$0xff]
    %v82 = vld [vmem:[%s0 + $0x170] sm:$0xff]
    %v83 = vld [vmem:[%s0 + $0x178] sm:$0xff]
    %v84 = vld [vmem:[%s0 + $0x180] sm:$0xff]
    %v85 = vld [vmem:[%s0 + $0x188] sm:$0xff]
    %v86 = vld [vmem:[%s0 + $0x190] sm:$0xff]
    %v87 = vld [vmem:[%s0 + $0x198] sm:$0xff]
    %v88 = vld [vmem:[%s0 + $0x1a0] sm:$0xff]
    %v89 = vld [vmem:[%s0 + $0x1a8] sm:$0xff]
    %v90 = vld [vmem:[%s0 + $0x1b0] sm:$0xff]
    %v91 = vld [vmem:[%s0 + $0x1b8] sm:$0xff]
    %v92 = vld [vmem:[%s0 + $0x1c0] sm:$0xff]
    %v93 = vld [vmem:[%s0 + $0x1c8] sm:$0xff]
    %v94 = vld [vmem:[%s0 + $0x1d0] sm:$0xff]
    %v95 = vld [vmem:[%s0 + $0x1d8] sm:$0xff]
    %v96 = vld [vmem:[%s0 + $0x1e0] sm:$0xff]
    %v97 = vld [vmem:[%s0 + $0x1e8] sm:$0xff]
    %v98 = vld [vmem:[%s0 + $0x1f0] sm:$0xff]
    %v99 = vld [vmem:[%s0 + $0x1f8] sm:$0xff]
    %v100 = vld [vmem:[%s0 + $0x200] sm:$0xff]
    %v101 = vld [vmem:[%s0 + $0x208] sm:$0xff]
    %v102 = vld [vmem:[%s0 + $0x210] sm:$0xff]
    %v103 = vld [vmem:[%s0 + $0x218] sm:$0xff]
    %v104 = vld [vmem:[%s0 + $0x220] sm:$0xff]
    %v105 = vld [vmem:[%s0 + $0x228] sm:$0xff]
    %v106 = vld [vmem:[%s0 + $0x230] sm:$0xff]
    %v107 = vld [vmem:[%s0 + $0x238] sm:$0xff]
    %v108 = vld [vmem:[%s0 + $0x240] sm:$0xff]
    %v109 = vld [vmem:[%s0 + $0x248] sm:$0xff]
    %v110 = vld [vmem:[%s0 + $0x250] sm:$0xff]
    %v111 = vld [vmem:[%s0 + $0x258] sm:$0xff]
    %v112 = vld [vmem:[%s0 + $0x260] sm:$0xff]
    %v113 = vld [vmem:[%s0 + $0x268] sm:$0xff]
    %v114 = vld [vmem:[%s0 + $0x270] sm:$0xff]
    %v115 = vld [vmem:[%s0 + $0x278] sm:$0xff]
    %v116 = vld [vmem:[%s0 + $0x280] sm:$0xff]
    %v117 = vld [vmem:[%s0 + $0x288] sm:$0xff]
    %v118 = vld [vmem:[%s0 + $0x290] sm:$0xff]
    %v119 = vld [vmem:[%s0 + $0x298] sm:$0xff]
    %v120 = vld [vmem:[%s0 + $0x2a0] sm:$0xff]
    %v121 = vld [vmem:[%s0 + $0x2a8] sm:$0xff]
    %v122 = vld [vmem:[%s0 + $0x2b0] sm:$0xff]
    %v123 = vld [vmem:[%s0 + $0x2b8] sm:$0xff]
    %v124 = vld [vmem:[%s0 + $0x2c0] sm:$0xff]
    %v125 = vld [vmem:[%s0 + $0x2c8] sm:$0xff]
    %v126 = vld [vmem:[%s0 + $0x2d0] sm:$0xff]
    %v127 = vld [vmem:[%s0 + $0x2d8] sm:$0xff]
    %v128 = vld [vmem:[%s0 + $0x2e0] sm:$0xff]
    %v129 = vld [vmem:[%s0 + $0x2e8] sm:$0xff]
    %v130 = vld [vmem:[%s0 + $0x2f0] sm:$0xff]
    %v131 = vld [vmem:[%s0 + $0x2f8] sm:$0xff]
    %v132 = vld [vmem:[%s0 + $0x300] sm:$0xff]
    %v133 = vld [vmem:[%s0 + $0x308] sm:$0xff]
    %v134 = vld [vmem:[%s0 + $0x310] sm:$0xff]
    %v135 = vld [vmem:[%s0 + $0x318] sm:$0xff]
    %v136 = vld [vmem:[%s0 + $0x320] sm:$0xff]
    %v137 = vld [vmem:[%s0 + $0x328] sm:$0xff]
    %v138 = vld [vmem:[%s0 + $0x330] sm:$0xff]
    %v139 = vld [vmem:[%s0 + $0x338] sm:$0xff]
    %v140 = vld [vmem:[%s0 + $0x340] sm:$0xff]
    %v141 = vld [vmem:[%s0 + $0x348] sm:$0xff]
    %v142 = vld [vmem:[%s0 + $0x350] sm:$0xff]
    %v143 = vld [vmem:[%s0 + $0x358] sm:$0xff]
    %v144 = vld [vmem:[%s0 + $0x360] sm:$0xff]
    %v145 = vld [vmem:[%s0 + $0x368] sm:$0xff]
    %v146 = vld [vmem:[%s0 + $0x370] sm:$0xff]
    %v147 = vld [vmem:[%s0 + $0x378] sm:$0xff]
    %v148 = vld [vmem:[%s0 + $0x380] sm:$0xff]
    %v149 = vld [vmem:[%s0 + $0x388] sm:$0xff]
    %v150 = vld [vmem:[%s0 + $0x390] sm:$0xff]
    %v151 = vld [vmem:[%s0 + $0x398] sm:$0xff]
    %v152 = vld [vmem:[%s0 + $0x3a0] sm:$0xff]
    %v153 = vld [vmem:[%s0 + $0x3a8] sm:$0xff]
    %v154 = vld [vmem:[%s0 + $0x3b0] sm:$0xff]
    %v155 = vld [vmem:[%s0 + $0x3b8] sm:$0xff]
    %v156 = vld [vmem:[%s0 + $0x3c0] sm:$0xff]
    %v157 = vld [vmem:[%s0 + $0x3c8] sm:$0xff]
    %v158 = vld [vmem:[%s0 + $0x3d0] sm:$0xff]
    %v159 = vld [vmem:[%s0 + $0x3d8] sm:$0xff]
    %v160 = vld [vmem:[%s0 + $0x3e0] sm:$0xff]
    %v161 = vld [vmem:[%s0 + $0x3e8] sm:$0xff]
    %v162 = vld [vmem:[%s0 + $0x3f0] sm:$0xff]
    %v163 = vld [vmem:[%s0 + $0x3f8] sm:$0xff]
    %v164 = vld [vmem:[%s0 + $0x400] sm:$0xff]
    %v165 = vld [vmem:[%s0 + $0x408] sm:$0xff]
    %v166 = vld [vmem:[%s0 + $0x410] sm:$0xff]
    %v167 = vld [vmem:[%s0 + $0x418] sm:$0xff]
    %v168 = vld [vmem:[%s0 + $0x420] sm:$0xff]
    %v169 = vld [vmem:[%s0 + $0x428] sm:$0xff]
    %v170 = vld [vmem:[%s0 + $0x430] sm:$0xff]
    %v171 = vld [vmem:[%s0 + $0x438] sm:$0xff]
    %v172 = vld [vmem:[%s0 + $0x440] sm:$0xff]
    %v173 = vld [vmem:[%s0 + $0x448] sm:$0xff]
    %v174 = vld [vmem:[%s0 + $0x450] sm:$0xff]
    %v175 = vld [vmem:[%s0 + $0x458] sm:$0xff]
    %v176 = vld [vmem:[%s0 + $0x460] sm:$0xff]
    %v177 = vld [vmem:[%s0 + $0x468] sm:$0xff]
    %v178 = vld [vmem:[%s0 + $0x470] sm:$0xff]
    %v179 = vld [vmem:[%s0 + $0x478] sm:$0xff]
    %v180 = vld [vmem:[%s2] sm:$0xff]
    %v181 = vld [vmem:[%s2 + $0x8] sm:$0xff]
    %v182 = vld [vmem:[%s2 + $0x10] sm:$0xff]
    %v183 = vld [vmem:[%s2 + $0x18] sm:$0xff]
    %vm184 = vcmask 261120
    %v186 = vsel %vm184, %v36, 0
    %v189 = vsel %vm184, %v37, 0
    %v192 = vsel %vm184, %v38, 0
    %v195 = vsel %vm184, %v39, 0
    %v198 = vsel %vm184, %v40, 0
    %v201 = vsel %vm184, %v41, 0
    %v204 = vsel %vm184, %v42, 0
    %v207 = vsel %vm184, %v43, 0
    %v210 = vsel %vm184, %v44, 0
    %v213 = vsel %vm184, %v45, 0
    %v216 = vsel %vm184, %v46, 0
    %v219 = vsel %vm184, %v47, 0
    %v222 = vsel %vm184, %v48, 0
    %v225 = vsel %vm184, %v49, 0
    %v228 = vsel %vm184, %v50, 0
    %v231 = vsel %vm184, %v51, 0
    %v234 = vsel %vm184, %v52, 0
    %v237 = vsel %vm184, %v53, 0
    %v240 = vsel %vm184, %v54, 0
    %v243 = vsel %vm184, %v55, 0
    %v246 = vsel %vm184, %v56, 0
    %v249 = vsel %vm184, %v57, 0
    %v252 = vsel %vm184, %v58, 0
    %v255 = vsel %vm184, %v59, 0
    %v258 = vsel %vm184, %v60, 0
    %v261 = vsel %vm184, %v61, 0
    %v264 = vsel %vm184, %v62, 0
    %v267 = vsel %vm184, %v63, 0
    %v270 = vsel %vm184, %v64, 0
    %v273 = vsel %vm184, %v65, 0
    %v276 = vsel %vm184, %v66, 0
    %v279 = vsel %vm184, %v67, 0
    %v282 = vsel %vm184, %v68, 0
    %v285 = vsel %vm184, %v69, 0
    %v288 = vsel %vm184, %v70, 0
    %v291 = vsel %vm184, %v71, 0
    %v294 = vsel %vm184, %v72, 0
    %v297 = vsel %vm184, %v73, 0
    %v300 = vsel %vm184, %v74, 0
    %v303 = vsel %vm184, %v75, 0
    %v306 = vsel %vm184, %v76, 0
    %v309 = vsel %vm184, %v77, 0
    %v312 = vsel %vm184, %v78, 0
    %v315 = vsel %vm184, %v79, 0
    %v318 = vsel %vm184, %v80, 0
    %v321 = vsel %vm184, %v81, 0
    %v324 = vsel %vm184, %v82, 0
    %v327 = vsel %vm184, %v83, 0
    %v330 = vsel %vm184, %v84, 0
    %v333 = vsel %vm184, %v85, 0
    %v336 = vsel %vm184, %v86, 0
    %v339 = vsel %vm184, %v87, 0
    %v342 = vsel %vm184, %v88, 0
    %v345 = vsel %vm184, %v89, 0
    %v348 = vsel %vm184, %v90, 0
    %v351 = vsel %vm184, %v91, 0
    %v354 = vsel %vm184, %v92, 0
    %v357 = vsel %vm184, %v93, 0
    %v360 = vsel %vm184, %v94, 0
    %v363 = vsel %vm184, %v95, 0
    %v366 = vsel %vm184, %v96, 0
    %v369 = vsel %vm184, %v97, 0
    %v372 = vsel %vm184, %v98, 0
    %v375 = vsel %vm184, %v99, 0
    %v378 = vsel %vm184, %v100, 0
    %v381 = vsel %vm184, %v101, 0
    %v384 = vsel %vm184, %v102, 0
    %v387 = vsel %vm184, %v103, 0
    %v390 = vsel %vm184, %v104, 0
    %v393 = vsel %vm184, %v105, 0
    %v396 = vsel %vm184, %v106, 0
    %v399 = vsel %vm184, %v107, 0
    %v402 = vsel %vm184, %v108, 0
    %v405 = vsel %vm184, %v109, 0
    %v408 = vsel %vm184, %v110, 0
    %v411 = vsel %vm184, %v111, 0
    %v414 = vsel %vm184, %v112, 0
    %v417 = vsel %vm184, %v113, 0
    %v420 = vsel %vm184, %v114, 0
    %v423 = vsel %vm184, %v115, 0
    %v426 = vsel %vm184, %v116, 0
    %v429 = vsel %vm184, %v117, 0
    %v432 = vsel %vm184, %v118, 0
    %v435 = vsel %vm184, %v119, 0
    %v438 = vsel %vm184, %v120, 0
    %v441 = vsel %vm184, %v121, 0
    %v444 = vsel %vm184, %v122, 0
    %v447 = vsel %vm184, %v123, 0
    %v450 = vsel %vm184, %v124, 0
    %v453 = vsel %vm184, %v125, 0
    %v456 = vsel %vm184, %v126, 0
    %v459 = vsel %vm184, %v127, 0
    %v462 = vsel %vm184, %v128, 0
    %v465 = vsel %vm184, %v129, 0
    %v468 = vsel %vm184, %v130, 0
    %v471 = vsel %vm184, %v131, 0
    %v474 = vsel %vm184, %v132, 0
    %v477 = vsel %vm184, %v133, 0
    %v480 = vsel %vm184, %v134, 0
    %v483 = vsel %vm184, %v135, 0
    %v486 = vsel %vm184, %v136, 0
    %v489 = vsel %vm184, %v137, 0
    %v492 = vsel %vm184, %v138, 0
    %v495 = vsel %vm184, %v139, 0
    %v498 = vsel %vm184, %v140, 0
    %v501 = vsel %vm184, %v141, 0
    %v504 = vsel %vm184, %v142, 0
    %v507 = vsel %vm184, %v143, 0
    %v510 = vsel %vm184, %v144, 0
    %v513 = vsel %vm184, %v145, 0
    %v516 = vsel %vm184, %v146, 0
    %v519 = vsel %vm184, %v147, 0
    %v522 = vsel %vm184, %v148, 0
    %v525 = vsel %vm184, %v149, 0
    %v528 = vsel %vm184, %v150, 0
    %v531 = vsel %vm184, %v151, 0
    %v534 = vsel %vm184, %v152, 0
    %v537 = vsel %vm184, %v153, 0
    %v540 = vsel %vm184, %v154, 0
    %v543 = vsel %vm184, %v155, 0
    %v546 = vsel %vm184, %v156, 0
    %v549 = vsel %vm184, %v157, 0
    %v552 = vsel %vm184, %v158, 0
    %v555 = vsel %vm184, %v159, 0
    %v558 = vsel %vm184, %v160, 0
    %v561 = vsel %vm184, %v161, 0
    %v564 = vsel %vm184, %v162, 0
    %v567 = vsel %vm184, %v163, 0
    %v570 = vsel %vm184, %v164, 0
    %v573 = vsel %vm184, %v165, 0
    %v576 = vsel %vm184, %v166, 0
    %v579 = vsel %vm184, %v167, 0
    %v582 = vsel %vm184, %v168, 0
    %v585 = vsel %vm184, %v169, 0
    %v588 = vsel %vm184, %v170, 0
    %v591 = vsel %vm184, %v171, 0
    %v594 = vsel %vm184, %v172, 0
    %v597 = vsel %vm184, %v173, 0
    %v600 = vsel %vm184, %v174, 0
    %v603 = vsel %vm184, %v175, 0
    %v606 = vsel %vm184, %v176, 0
    %v609 = vsel %vm184, %v177, 0
    %v612 = vsel %vm184, %v178, 0
    %v615 = vsel %vm184, %v179, 0
    %617 = vmatprep.subr.mxu0 0.0
    %618 = vmatpush1.msra.mxu0 %v180
    %619 = vmatprep.subr.mxu0 0.0
    %620 = vmatpush1.msra.mxu0 %v181
    %621 = vmatprep.subr.mxu0 0.0
    %622 = vmatpush1.msra.mxu0 %v182
    %623 = vmatprep.subr.mxu0 0.0
    %624 = vmatpush1.msra.mxu0 %v183
    %625 = vmatprep.subr.mxu0 0.0
    %626 = vmatpush1.msra.mxu0 0.0
    %627 = vmatprep.subr.mxu0 0.0
    %628 = vmatpush1.msra.mxu0 0.0
    %629 = vmatprep.subr.mxu0 0.0
    %630 = vmatpush1.msra.mxu0 0.0
    %631 = vmatprep.subr.mxu0 0.0
    %632 = vmatpush1.msra.mxu0 0.0
    %633 = vmatprep.subr.mxu0 0.0
    %634 = vmatpush1.msra.mxu0 0.0
    %635 = vmatprep.subr.mxu0 0.0
    %636 = vmatpush1.msra.mxu0 0.0
    %637 = vmatprep.subr.mxu0 0.0
    %638 = vmatpush1.msra.mxu0 0.0
    %639 = vmatprep.subr.mxu0 0.0
    %640 = vmatpush1.msra.mxu0 0.0
    %641 = vmatprep.subr.mxu0 0.0
    %642 = vmatpush1.msra.mxu0 0.0
    %643 = vmatprep.subr.mxu0 0.0
    %644 = vmatpush1.msra.mxu0 0.0
    %645 = vmatprep.subr.mxu0 0.0
    %646 = vmatpush1.msra.mxu0 0.0
    %647 = vmatprep.subr.mxu0 0.0
    %648 = vmatpush1.msra.mxu0 0.0
    %649 = vmatprep.subr.mxu0 0.0
    %650 = vmatpush1.msra.mxu0 0.0
    %651 = vmatprep.subr.mxu0 0.0
    %652 = vmatpush1.msra.mxu0 0.0
    %653 = vmatprep.subr.mxu0 0.0
    %654 = vmatpush1.msra.mxu0 0.0
    %655 = vmatprep.subr.mxu0 0.0
    %656 = vmatpush1.msra.mxu0 0.0
    %657 = vmatprep.subr.mxu0 0.0
    %658 = vmatpush1.msra.mxu0 0.0
    %659 = vmatprep.subr.mxu0 0.0
    %660 = vmatpush1.msra.mxu0 0.0
    %661 = vmatprep.subr.mxu0 0.0
    %662 = vmatpush1.msra.mxu0 0.0
    %663 = vmatprep.subr.mxu0 0.0
    %664 = vmatpush1.msra.mxu0 0.0
    %665 = vmatprep.subr.mxu0 0.0
    %666 = vmatpush1.msra.mxu0 0.0
    %667 = vmatprep.subr.mxu0 0.0
    %668 = vmatpush1.msra.mxu0 0.0
    %669 = vmatprep.subr.mxu0 0.0
    %670 = vmatpush1.msra.mxu0 0.0
    %671 = vmatprep.subr.mxu0 0.0
    %672 = vmatpush1.msra.mxu0 0.0
    %673 = vmatprep.subr.mxu0 0.0
    %674 = vmatpush1.msra.mxu0 0.0
    %675 = vmatprep.subr.mxu0 0.0
    %676 = vmatpush1.msra.mxu0 0.0
    %677 = vmatprep.subr.mxu0 0.0
    %678 = vmatpush1.msra.mxu0 0.0
    %679 = vmatprep.subr.mxu0 0.0
    %680 = vmatpush1.msra.mxu0 0.0
    %681 = vmatprep.mubr.f32.mxu0 0.0
    %682 = vmatmul.mubr.f32.gmra.mrb[0].mxu0 %v186
    %v683 = vpop.f32.mrb[0].mxu0
    %v684 = vadd.f32 0.0, %v683
    %v685 = vpop.f32.mrb[0].mxu0
    %686 = vmatprep.mubr.f32.mxu0 0.0
    %687 = vmatmul.mubr.f32.gmra.mrb[0].mxu0 %v189
    %v688 = vpop.f32.mrb[0].mxu0
    %v689 = vadd.f32 0.0, %v688
    %v690 = vpop.f32.mrb[0].mxu0
    %691 = vmatprep.mubr.f32.mxu0 0.0
    %692 = vmatmul.mubr.f32.gmra.mrb[0].mxu0 %v192
    %v693 = vpop.f32.mrb[0].mxu0
    %v694 = vadd.f32 0.0, %v693
    %v695 = vpop.f32.mrb[0].mxu0
    %696 = vmatprep.mubr.f32.mxu0 0.0
    %697 = vmatmul.mubr.f32.gmra.mrb[0].mxu0 %v195
    %v698 = vpop.f32.mrb[0].mxu0
    %v699 = vadd.f32 0.0, %v698
    %v700 = vpop.f32.mrb[0].mxu0
    %701 = vmatprep.mubr.f32.mxu0 0.0
    %702 = vmatmul.mubr.f32.gmra.mrb[0].mxu0 %v198
    %v703 = vpop.f32.mrb[0].mxu0
    %v704 = vadd.f32 0.0, %v703
    %v705 = vpop.f32.mrb[0].mxu0
    %706 = vmatprep.mubr.f32.mxu0 0.0
    %707 = vmatmul.mubr.f32.gmra.mrb[0].mxu0 %v201
    %v708 = vpop.f32.mrb[0].mxu0
    %v709 = vadd.f32 0.0, %v708
    %v710 = vpop.f32.mrb[0].mxu0
    %711 = vmatprep.mubr.f32.mxu0 0.0
    %712 = vmatmul.mubr.f32.gmra.mrb[0].mxu0 %v204
    %v713 = vpop.f32.mrb[0].mxu0
    %v714 = vadd.f32 0.0, %v713
    %v715 = vpop.f32.mrb[0].mxu0
    %716 = vmatprep.mubr.f32.mxu0 0.0
    %717 = vmatmul.mubr.f32.gmra.mrb[0].mxu0 %v207
    %v718 = vpop.f32.mrb[0].mxu0
    %v719 = vadd.f32 0.0, %v718
    %v720 = vpop.f32.mrb[0].mxu0
    %721 = vmatprep.mubr.f32.mxu0 0.0
    %722 = vmatmul.mubr.f32.gmra.mrb[0].mxu0 %v210
    %v723 = vpop.f32.mrb[0].mxu0
    %v724 = vadd.f32 0.0, %v723
    %v725 = vpop.f32.mrb[0].mxu0
    %726 = vmatprep.mubr.f32.mxu0 0.0
    %727 = vmatmul.mubr.f32.gmra.mrb[0].mxu0 %v213
    %v728 = vpop.f32.mrb[0].mxu0
    %v729 = vadd.f32 0.0, %v728
    %v730 = vpop.f32.mrb[0].mxu0
    %731 = vmatprep.mubr.f32.mxu0 0.0
    %732 = vmatmul.mubr.f32.gmra.mrb[0].mxu0 %v216
    %v733 = vpop.f32.mrb[0].mxu0
    %v734 = vadd.f32 0.0, %v733
    %v735 = vpop.f32.mrb[0].mxu0
    %736 = vmatprep.mubr.f32.mxu0 0.0
    %737 = vmatmul.mubr.f32.gmra.mrb[0].mxu0 %v219
    %v738 = vpop.f32.mrb[0].mxu0
    %v739 = vadd.f32 0.0, %v738
    %v740 = vpop.f32.mrb[0].mxu0
    %741 = vmatprep.mubr.f32.mxu0 0.0
    %742 = vmatmul.mubr.f32.gmra.mrb[0].mxu0 %v222
    %v743 = vpop.f32.mrb[0].mxu0
    %v744 = vadd.f32 0.0, %v743
    %v745 = vpop.f32.mrb[0].mxu0
    %746 = vmatprep.mubr.f32.mxu0 0.0
    %747 = vmatmul.mubr.f32.gmra.mrb[0].mxu0 %v225
    %v748 = vpop.f32.mrb[0].mxu0
    %v749 = vadd.f32 0.0, %v748
    %v750 = vpop.f32.mrb[0].mxu0
    %751 = vmatprep.mubr.f32.mxu0 0.0
    %752 = vmatmul.mubr.f32.gmra.mrb[0].mxu0 %v228
    %v753 = vpop.f32.mrb[0].mxu0
    %v754 = vadd.f32 0.0, %v753
    %v755 = vpop.f32.mrb[0].mxu0
    %756 = vmatprep.mubr.f32.mxu0 0.0
    %757 = vmatmul.mubr.f32.gmra.mrb[0].mxu0 %v231
    %v758 = vpop.f32.mrb[0].mxu0
    %v759 = vadd.f32 0.0, %v758
    %v760 = vpop.f32.mrb[0].mxu0
    %761 = vmatprep.mubr.f32.mxu0 0.0
    %762 = vmatmul.mubr.f32.gmra.mrb[0].mxu0 %v234
    %v763 = vpop.f32.mrb[0].mxu0
    %v764 = vadd.f32 0.0, %v763
    %v765 = vpop.f32.mrb[0].mxu0
    %766 = vmatprep.mubr.f32.mxu0 0.0
    %767 = vmatmul.mubr.f32.gmra.mrb[0].mxu0 %v237
    %v768 = vpop.f32.mrb[0].mxu0
    %v769 = vadd.f32 0.0, %v768
    %v770 = vpop.f32.mrb[0].mxu0
    %771 = vmatprep.mubr.f32.mxu0 0.0
    %772 = vmatmul.mubr.f32.gmra.mrb[0].mxu0 %v240
    %v773 = vpop.f32.mrb[0].mxu0
    %v774 = vadd.f32 0.0, %v773
    %v775 = vpop.f32.mrb[0].mxu0
    %776 = vmatprep.mubr.f32.mxu0 0.0
    %777 = vmatmul.mubr.f32.gmra.mrb[0].mxu0 %v243
    %v778 = vpop.f32.mrb[0].mxu0
    %v779 = vadd.f32 0.0, %v778
    %v780 = vpop.f32.mrb[0].mxu0
    %781 = vmatprep.mubr.f32.mxu0 0.0
    %782 = vmatmul.mubr.f32.gmra.mrb[0].mxu0 %v246
    %v783 = vpop.f32.mrb[0].mxu0
    %v784 = vadd.f32 0.0, %v783
    %v785 = vpop.f32.mrb[0].mxu0
    %786 = vmatprep.mubr.f32.mxu0 0.0
    %787 = vmatmul.mubr.f32.gmra.mrb[0].mxu0 %v249
    %v788 = vpop.f32.mrb[0].mxu0
    %v789 = vadd.f32 0.0, %v788
    %v790 = vpop.f32.mrb[0].mxu0
    %791 = vmatprep.mubr.f32.mxu0 0.0
    %792 = vmatmul.mubr.f32.gmra.mrb[0].mxu0 %v252
    %v793 = vpop.f32.mrb[0].mxu0
    %v794 = vadd.f32 0.0, %v793
    %v795 = vpop.f32.mrb[0].mxu0
    %796 = vmatprep.mubr.f32.mxu0 0.0
    %797 = vmatmul.mubr.f32.gmra.mrb[0].mxu0 %v255
    %v798 = vpop.f32.mrb[0].mxu0
    %v799 = vadd.f32 0.0, %v798
    %v800 = vpop.f32.mrb[0].mxu0
    %801 = vmatprep.mubr.f32.mxu0 0.0
    %802 = vmatmul.mubr.f32.gmra.mrb[0].mxu0 %v258
    %v803 = vpop.f32.mrb[0].mxu0
    %v804 = vadd.f32 0.0, %v803
    %v805 = vpop.f32.mrb[0].mxu0
    %806 = vmatprep.mubr.f32.mxu0 0.0
    %807 = vmatmul.mubr.f32.gmra.mrb[0].mxu0 %v261
    %v808 = vpop.f32.mrb[0].mxu0
    %v809 = vadd.f32 0.0, %v808
    %v810 = vpop.f32.mrb[0].mxu0
    %811 = vmatprep.mubr.f32.mxu0 0.0
    %812 = vmatmul.mubr.f32.gmra.mrb[0].mxu0 %v264
    %v813 = vpop.f32.mrb[0].mxu0
    %v814 = vadd.f32 0.0, %v813
    %v815 = vpop.f32.mrb[0].mxu0
    %816 = vmatprep.mubr.f32.mxu0 0.0
    %817 = vmatmul.mubr.f32.gmra.mrb[0].mxu0 %v267
    %v818 = vpop.f32.mrb[0].mxu0
    %v819 = vadd.f32 0.0, %v818
    %v820 = vpop.f32.mrb[0].mxu0
    %821 = vmatprep.mubr.f32.mxu0 0.0
    %822 = vmatmul.mubr.f32.gmra.mrb[0].mxu0 %v270
    %v823 = vpop.f32.mrb[0].mxu0
    %v824 = vadd.f32 0.0, %v823
    %v825 = vpop.f32.mrb[0].mxu0
    %826 = vmatprep.mubr.f32.mxu0 0.0
    %827 = vmatmul.mubr.f32.gmra.mrb[0].mxu0 %v273
    %v828 = vpop.f32.mrb[0].mxu0
    %v829 = vadd.f32 0.0, %v828
    %v830 = vpop.f32.mrb[0].mxu0
    %831 = vmatprep.mubr.f32.mxu0 0.0
    %832 = vmatmul.mubr.f32.gmra.mrb[0].mxu0 %v276
    %v833 = vpop.f32.mrb[0].mxu0
    %v834 = vadd.f32 0.0, %v833
    %v835 = vpop.f32.mrb[0].mxu0
    %836 = vmatprep.mubr.f32.mxu0 0.0
    %837 = vmatmul.mubr.f32.gmra.mrb[0].mxu0 %v279
    %v838 = vpop.f32.mrb[0].mxu0
    %v839 = vadd.f32 0.0, %v838
    %v840 = vpop.f32.mrb[0].mxu0
    %841 = vmatprep.mubr.f32.mxu0 0.0
    %842 = vmatmul.mubr.f32.gmra.mrb[0].mxu0 %v282
    %v843 = vpop.f32.mrb[0].mxu0
    %v844 = vadd.f32 0.0, %v843
    %v845 = vpop.f32.mrb[0].mxu0
    %846 = vmatprep.mubr.f32.mxu0 0.0
    %847 = vmatmul.mubr.f32.gmra.mrb[0].mxu0 %v285
    %v848 = vpop.f32.mrb[0].mxu0
    %v849 = vadd.f32 0.0, %v848
    %v850 = vpop.f32.mrb[0].mxu0
    %851 = vmatprep.mubr.f32.mxu0 0.0
    %852 = vmatmul.mubr.f32.gmra.mrb[0].mxu0 %v288
    %v853 = vpop.f32.mrb[0].mxu0
    %v854 = vadd.f32 0.0, %v853
    %v855 = vpop.f32.mrb[0].mxu0
    %856 = vmatprep.mubr.f32.mxu0 0.0
    %857 = vmatmul.mubr.f32.gmra.mrb[0].mxu0 %v291
    %v858 = vpop.f32.mrb[0].mxu0
    %v859 = vadd.f32 0.0, %v858
    %v860 = vpop.f32.mrb[0].mxu0
    %861 = vmatprep.mubr.f32.mxu0 0.0
    %862 = vmatmul.mubr.f32.gmra.mrb[0].mxu0 %v294
    %v863 = vpop.f32.mrb[0].mxu0
    %v864 = vadd.f32 0.0, %v863
    %v865 = vpop.f32.mrb[0].mxu0
    %866 = vmatprep.mubr.f32.mxu0 0.0
    %867 = vmatmul.mubr.f32.gmra.mrb[0].mxu0 %v297
    %v868 = vpop.f32.mrb[0].mxu0
    %v869 = vadd.f32 0.0, %v868
    %v870 = vpop.f32.mrb[0].mxu0
    %871 = vmatprep.mubr.f32.mxu0 0.0
    %872 = vmatmul.mubr.f32.gmra.mrb[0].mxu0 %v300
    %v873 = vpop.f32.mrb[0].mxu0
    %v874 = vadd.f32 0.0, %v873
    %v875 = vpop.f32.mrb[0].mxu0
    %876 = vmatprep.mubr.f32.mxu0 0.0
    %877 = vmatmul.mubr.f32.gmra.mrb[0].mxu0 %v303
    %v878 = vpop.f32.mrb[0].mxu0
    %v879 = vadd.f32 0.0, %v878
    %v880 = vpop.f32.mrb[0].mxu0
    %881 = vmatprep.mubr.f32.mxu0 0.0
    %882 = vmatmul.mubr.f32.gmra.mrb[0].mxu0 %v306
    %v883 = vpop.f32.mrb[0].mxu0
    %v884 = vadd.f32 0.0, %v883
    %v885 = vpop.f32.mrb[0].mxu0
    %886 = vmatprep.mubr.f32.mxu0 0.0
    %887 = vmatmul.mubr.f32.gmra.mrb[0].mxu0 %v309
    %v888 = vpop.f32.mrb[0].mxu0
    %v889 = vadd.f32 0.0, %v888
    %v890 = vpop.f32.mrb[0].mxu0
    %891 = vmatprep.mubr.f32.mxu0 0.0
    %892 = vmatmul.mubr.f32.gmra.mrb[0].mxu0 %v312
    %v893 = vpop.f32.mrb[0].mxu0
    %v894 = vadd.f32 0.0, %v893
    %v895 = vpop.f32.mrb[0].mxu0
    %896 = vmatprep.mubr.f32.mxu0 0.0
    %897 = vmatmul.mubr.f32.gmra.mrb[0].mxu0 %v315
    %v898 = vpop.f32.mrb[0].mxu0
    %v899 = vadd.f32 0.0, %v898
    %v900 = vpop.f32.mrb[0].mxu0
    %901 = vmatprep.mubr.f32.mxu0 0.0
    %902 = vmatmul.mubr.f32.gmra.mrb[0].mxu0 %v318
    %v903 = vpop.f32.mrb[0].mxu0
    %v904 = vadd.f32 0.0, %v903
    %v905 = vpop.f32.mrb[0].mxu0
    %906 = vmatprep.mubr.f32.mxu0 0.0
    %907 = vmatmul.mubr.f32.gmra.mrb[0].mxu0 %v321
    %v908 = vpop.f32.mrb[0].mxu0
    %v909 = vadd.f32 0.0, %v908
    %v910 = vpop.f32.mrb[0].mxu0
    %911 = vmatprep.mubr.f32.mxu0 0.0
    %912 = vmatmul.mubr.f32.gmra.mrb[0].mxu0 %v324
    %v913 = vpop.f32.mrb[0].mxu0
    %v914 = vadd.f32 0.0, %v913
    %v915 = vpop.f32.mrb[0].mxu0
    %916 = vmatprep.mubr.f32.mxu0 0.0
    %917 = vmatmul.mubr.f32.gmra.mrb[0].mxu0 %v327
    %v918 = vpop.f32.mrb[0].mxu0
    %v919 = vadd.f32 0.0, %v918
    %v920 = vpop.f32.mrb[0].mxu0
    %921 = vmatprep.mubr.f32.mxu0 0.0
    %922 = vmatmul.mubr.f32.gmra.mrb[0].mxu0 %v330
    %v923 = vpop.f32.mrb[0].mxu0
    %v924 = vadd.f32 0.0, %v923
    %v925 = vpop.f32.mrb[0].mxu0
    %926 = vmatprep.mubr.f32.mxu0 0.0
    %927 = vmatmul.mubr.f32.gmra.mrb[0].mxu0 %v333
    %v928 = vpop.f32.mrb[0].mxu0
    %v929 = vadd.f32 0.0, %v928
    %v930 = vpop.f32.mrb[0].mxu0
    %931 = vmatprep.mubr.f32.mxu0 0.0
    %932 = vmatmul.mubr.f32.gmra.mrb[0].mxu0 %v336
    %v933 = vpop.f32.mrb[0].mxu0
    %v934 = vadd.f32 0.0, %v933
    %v935 = vpop.f32.mrb[0].mxu0
    %936 = vmatprep.mubr.f32.mxu0 0.0
    %937 = vmatmul.mubr.f32.gmra.mrb[0].mxu0 %v339
    %v938 = vpop.f32.mrb[0].mxu0
    %v939 = vadd.f32 0.0, %v938
    %v940 = vpop.f32.mrb[0].mxu0
    %941 = vmatprep.mubr.f32.mxu0 0.0
    %942 = vmatmul.mubr.f32.gmra.mrb[0].mxu0 %v342
    %v943 = vpop.f32.mrb[0].mxu0
    %v944 = vadd.f32 0.0, %v943
    %v945 = vpop.f32.mrb[0].mxu0
    %946 = vmatprep.mubr.f32.mxu0 0.0
    %947 = vmatmul.mubr.f32.gmra.mrb[0].mxu0 %v345
    %v948 = vpop.f32.mrb[0].mxu0
    %v949 = vadd.f32 0.0, %v948
    %v950 = vpop.f32.mrb[0].mxu0
    %951 = vmatprep.mubr.f32.mxu0 0.0
    %952 = vmatmul.mubr.f32.gmra.mrb[0].mxu0 %v348
    %v953 = vpop.f32.mrb[0].mxu0
    %v954 = vadd.f32 0.0, %v953
    %v955 = vpop.f32.mrb[0].mxu0
    %956 = vmatprep.mubr.f32.mxu0 0.0
    %957 = vmatmul.mubr.f32.gmra.mrb[0].mxu0 %v351
    %v958 = vpop.f32.mrb[0].mxu0
    %v959 = vadd.f32 0.0, %v958
    %v960 = vpop.f32.mrb[0].mxu0
    %961 = vmatprep.mubr.f32.mxu0 0.0
    %962 = vmatmul.mubr.f32.gmra.mrb[0].mxu0 %v354
    %v963 = vpop.f32.mrb[0].mxu0
    %v964 = vadd.f32 0.0, %v963
    %v965 = vpop.f32.mrb[0].mxu0
    %966 = vmatprep.mubr.f32.mxu0 0.0
    %967 = vmatmul.mubr.f32.gmra.mrb[0].mxu0 %v357
    %v968 = vpop.f32.mrb[0].mxu0
    %v969 = vadd.f32 0.0, %v968
    %v970 = vpop.f32.mrb[0].mxu0
    %971 = vmatprep.mubr.f32.mxu0 0.0
    %972 = vmatmul.mubr.f32.gmra.mrb[0].mxu0 %v360
    %v973 = vpop.f32.mrb[0].mxu0
    %v974 = vadd.f32 0.0, %v973
    %v975 = vpop.f32.mrb[0].mxu0
    %976 = vmatprep.mubr.f32.mxu0 0.0
    %977 = vmatmul.mubr.f32.gmra.mrb[0].mxu0 %v363
    %v978 = vpop.f32.mrb[0].mxu0
    %v979 = vadd.f32 0.0, %v978
    %v980 = vpop.f32.mrb[0].mxu0
    %981 = vmatprep.mubr.f32.mxu0 0.0
    %982 = vmatmul.mubr.f32.gmra.mrb[0].mxu0 %v366
    %v983 = vpop.f32.mrb[0].mxu0
    %v984 = vadd.f32 0.0, %v983
    %v985 = vpop.f32.mrb[0].mxu0
    %986 = vmatprep.mubr.f32.mxu0 0.0
    %987 = vmatmul.mubr.f32.gmra.mrb[0].mxu0 %v369
    %v988 = vpop.f32.mrb[0].mxu0
    %v989 = vadd.f32 0.0, %v988
    %v990 = vpop.f32.mrb[0].mxu0
    %991 = vmatprep.mubr.f32.mxu0 0.0
    %992 = vmatmul.mubr.f32.gmra.mrb[0].mxu0 %v372
    %v993 = vpop.f32.mrb[0].mxu0
    %v994 = vadd.f32 0.0, %v993
    %v995 = vpop.f32.mrb[0].mxu0
    %996 = vmatprep.mubr.f32.mxu0 0.0
    %997 = vmatmul.mubr.f32.gmra.mrb[0].mxu0 %v375
    %v998 = vpop.f32.mrb[0].mxu0
    %v999 = vadd.f32 0.0, %v998
    %v1000 = vpop.f32.mrb[0].mxu0
    %1001 = vmatprep.mubr.f32.mxu0 0.0
    %1002 = vmatmul.mubr.f32.gmra.mrb[0].mxu0 %v378
    %v1003 = vpop.f32.mrb[0].mxu0
    %v1004 = vadd.f32 0.0, %v1003
    %v1005 = vpop.f32.mrb[0].mxu0
    %1006 = vmatprep.mubr.f32.mxu0 0.0
    %1007 = vmatmul.mubr.f32.gmra.mrb[0].mxu0 %v381
    %v1008 = vpop.f32.mrb[0].mxu0
    %v1009 = vadd.f32 0.0, %v1008
    %v1010 = vpop.f32.mrb[0].mxu0
    %1011 = vmatprep.mubr.f32.mxu0 0.0
    %1012 = vmatmul.mubr.f32.gmra.mrb[0].mxu0 %v384
    %v1013 = vpop.f32.mrb[0].mxu0
    %v1014 = vadd.f32 0.0, %v1013
    %v1015 = vpop.f32.mrb[0].mxu0
    %1016 = vmatprep.mubr.f32.mxu0 0.0
    %1017 = vmatmul.mubr.f32.gmra.mrb[0].mxu0 %v387
    %v1018 = vpop.f32.mrb[0].mxu0
    %v1019 = vadd.f32 0.0, %v1018
    %v1020 = vpop.f32.mrb[0].mxu0
    %1021 = vmatprep.mubr.f32.mxu0 0.0
    %1022 = vmatmul.mubr.f32.gmra.mrb[0].mxu0 %v390
    %v1023 = vpop.f32.mrb[0].mxu0
    %v1024 = vadd.f32 0.0, %v1023
    %v1025 = vpop.f32.mrb[0].mxu0
    %1026 = vmatprep.mubr.f32.mxu0 0.0
    %1027 = vmatmul.mubr.f32.gmra.mrb[0].mxu0 %v393
    %v1028 = vpop.f32.mrb[0].mxu0
    %v1029 = vadd.f32 0.0, %v1028
    %v1030 = vpop.f32.mrb[0].mxu0
    %1031 = vmatprep.mubr.f32.mxu0 0.0
    %1032 = vmatmul.mubr.f32.gmra.mrb[0].mxu0 %v396
    %v1033 = vpop.f32.mrb[0].mxu0
    %v1034 = vadd.f32 0.0, %v1033
    %v1035 = vpop.f32.mrb[0].mxu0
    %1036 = vmatprep.mubr.f32.mxu0 0.0
    %1037 = vmatmul.mubr.f32.gmra.mrb[0].mxu0 %v399
    %v1038 = vpop.f32.mrb[0].mxu0
    %v1039 = vadd.f32 0.0, %v1038
    %v1040 = vpop.f32.mrb[0].mxu0
    %1041 = vmatprep.mubr.f32.mxu0 0.0
    %1042 = vmatmul.mubr.f32.gmra.mrb[0].mxu0 %v402
    %v1043 = vpop.f32.mrb[0].mxu0
    %v1044 = vadd.f32 0.0, %v1043
    %v1045 = vpop.f32.mrb[0].mxu0
    %1046 = vmatprep.mubr.f32.mxu0 0.0
    %1047 = vmatmul.mubr.f32.gmra.mrb[0].mxu0 %v405
    %v1048 = vpop.f32.mrb[0].mxu0
    %v1049 = vadd.f32 0.0, %v1048
    %v1050 = vpop.f32.mrb[0].mxu0
    %1051 = vmatprep.mubr.f32.mxu0 0.0
    %1052 = vmatmul.mubr.f32.gmra.mrb[0].mxu0 %v408
    %v1053 = vpop.f32.mrb[0].mxu0
    %v1054 = vadd.f32 0.0, %v1053
    %v1055 = vpop.f32.mrb[0].mxu0
    %1056 = vmatprep.mubr.f32.mxu0 0.0
    %1057 = vmatmul.mubr.f32.gmra.mrb[0].mxu0 %v411
    %v1058 = vpop.f32.mrb[0].mxu0
    %v1059 = vadd.f32 0.0, %v1058
    %v1060 = vpop.f32.mrb[0].mxu0
    %1061 = vmatprep.mubr.f32.mxu0 0.0
    %1062 = vmatmul.mubr.f32.gmra.mrb[0].mxu0 %v414
    %v1063 = vpop.f32.mrb[0].mxu0
    %v1064 = vadd.f32 0.0, %v1063
    %v1065 = vpop.f32.mrb[0].mxu0
    %1066 = vmatprep.mubr.f32.mxu0 0.0
    %1067 = vmatmul.mubr.f32.gmra.mrb[0].mxu0 %v417
    %v1068 = vpop.f32.mrb[0].mxu0
    %v1069 = vadd.f32 0.0, %v1068
    %v1070 = vpop.f32.mrb[0].mxu0
    %1071 = vmatprep.mubr.f32.mxu0 0.0
    %1072 = vmatmul.mubr.f32.gmra.mrb[0].mxu0 %v420
    %v1073 = vpop.f32.mrb[0].mxu0
    %v1074 = vadd.f32 0.0, %v1073
    %v1075 = vpop.f32.mrb[0].mxu0
    %1076 = vmatprep.mubr.f32.mxu0 0.0
    %1077 = vmatmul.mubr.f32.gmra.mrb[0].mxu0 %v423
    %v1078 = vpop.f32.mrb[0].mxu0
    %v1079 = vadd.f32 0.0, %v1078
    %v1080 = vpop.f32.mrb[0].mxu0
    %1081 = vmatprep.mubr.f32.mxu0 0.0
    %1082 = vmatmul.mubr.f32.gmra.mrb[0].mxu0 %v426
    %v1083 = vpop.f32.mrb[0].mxu0
    %v1084 = vadd.f32 0.0, %v1083
    %v1085 = vpop.f32.mrb[0].mxu0
    %1086 = vmatprep.mubr.f32.mxu0 0.0
    %1087 = vmatmul.mubr.f32.gmra.mrb[0].mxu0 %v429
    %v1088 = vpop.f32.mrb[0].mxu0
    %v1089 = vadd.f32 0.0, %v1088
    %v1090 = vpop.f32.mrb[0].mxu0
    %1091 = vmatprep.mubr.f32.mxu0 0.0
    %1092 = vmatmul.mubr.f32.gmra.mrb[0].mxu0 %v432
    %v1093 = vpop.f32.mrb[0].mxu0
    %v1094 = vadd.f32 0.0, %v1093
    %v1095 = vpop.f32.mrb[0].mxu0
    %1096 = vmatprep.mubr.f32.mxu0 0.0
    %1097 = vmatmul.mubr.f32.gmra.mrb[0].mxu0 %v435
    %v1098 = vpop.f32.mrb[0].mxu0
    %v1099 = vadd.f32 0.0, %v1098
    %v1100 = vpop.f32.mrb[0].mxu0
    %1101 = vmatprep.mubr.f32.mxu0 0.0
    %1102 = vmatmul.mubr.f32.gmra.mrb[0].mxu0 %v438
    %v1103 = vpop.f32.mrb[0].mxu0
    %v1104 = vadd.f32 0.0, %v1103
    %v1105 = vpop.f32.mrb[0].mxu0
    %1106 = vmatprep.mubr.f32.mxu0 0.0
    %1107 = vmatmul.mubr.f32.gmra.mrb[0].mxu0 %v441
    %v1108 = vpop.f32.mrb[0].mxu0
    %v1109 = vadd.f32 0.0, %v1108
    %v1110 = vpop.f32.mrb[0].mxu0
    %1111 = vmatprep.mubr.f32.mxu0 0.0
    %1112 = vmatmul.mubr.f32.gmra.mrb[0].mxu0 %v444
    %v1113 = vpop.f32.mrb[0].mxu0
    %v1114 = vadd.f32 0.0, %v1113
    %v1115 = vpop.f32.mrb[0].mxu0
    %1116 = vmatprep.mubr.f32.mxu0 0.0
    %1117 = vmatmul.mubr.f32.gmra.mrb[0].mxu0 %v447
    %v1118 = vpop.f32.mrb[0].mxu0
    %v1119 = vadd.f32 0.0, %v1118
    %v1120 = vpop.f32.mrb[0].mxu0
    %1121 = vmatprep.mubr.f32.mxu0 0.0
    %1122 = vmatmul.mubr.f32.gmra.mrb[0].mxu0 %v450
    %v1123 = vpop.f32.mrb[0].mxu0
    %v1124 = vadd.f32 0.0, %v1123
    %v1125 = vpop.f32.mrb[0].mxu0
    %1126 = vmatprep.mubr.f32.mxu0 0.0
    %1127 = vmatmul.mubr.f32.gmra.mrb[0].mxu0 %v453
    %v1128 = vpop.f32.mrb[0].mxu0
    %v1129 = vadd.f32 0.0, %v1128
    %v1130 = vpop.f32.mrb[0].mxu0
    %1131 = vmatprep.mubr.f32.mxu0 0.0
    %1132 = vmatmul.mubr.f32.gmra.mrb[0].mxu0 %v456
    %v1133 = vpop.f32.mrb[0].mxu0
    %v1134 = vadd.f32 0.0, %v1133
    %v1135 = vpop.f32.mrb[0].mxu0
    %1136 = vmatprep.mubr.f32.mxu0 0.0
    %1137 = vmatmul.mubr.f32.gmra.mrb[0].mxu0 %v459
    %v1138 = vpop.f32.mrb[0].mxu0
    %v1139 = vadd.f32 0.0, %v1138
    %v1140 = vpop.f32.mrb[0].mxu0
    %1141 = vmatprep.mubr.f32.mxu0 0.0
    %1142 = vmatmul.mubr.f32.gmra.mrb[0].mxu0 %v462
    %v1143 = vpop.f32.mrb[0].mxu0
    %v1144 = vadd.f32 0.0, %v1143
    %v1145 = vpop.f32.mrb[0].mxu0
    %1146 = vmatprep.mubr.f32.mxu0 0.0
    %1147 = vmatmul.mubr.f32.gmra.mrb[0].mxu0 %v465
    %v1148 = vpop.f32.mrb[0].mxu0
    %v1149 = vadd.f32 0.0, %v1148
    %v1150 = vpop.f32.mrb[0].mxu0
    %1151 = vmatprep.mubr.f32.mxu0 0.0
    %1152 = vmatmul.mubr.f32.gmra.mrb[0].mxu0 %v468
    %v1153 = vpop.f32.mrb[0].mxu0
    %v1154 = vadd.f32 0.0, %v1153
    %v1155 = vpop.f32.mrb[0].mxu0
    %1156 = vmatprep.mubr.f32.mxu0 0.0
    %1157 = vmatmul.mubr.f32.gmra.mrb[0].mxu0 %v471
    %v1158 = vpop.f32.mrb[0].mxu0
    %v1159 = vadd.f32 0.0, %v1158
    %v1160 = vpop.f32.mrb[0].mxu0
    %1161 = vmatprep.mubr.f32.mxu0 0.0
    %1162 = vmatmul.mubr.f32.gmra.mrb[0].mxu0 %v474
    %v1163 = vpop.f32.mrb[0].mxu0
    %v1164 = vadd.f32 0.0, %v1163
    %v1165 = vpop.f32.mrb[0].mxu0
    %1166 = vmatprep.mubr.f32.mxu0 0.0
    %1167 = vmatmul.mubr.f32.gmra.mrb[0].mxu0 %v477
    %v1168 = vpop.f32.mrb[0].mxu0
    %v1169 = vadd.f32 0.0, %v1168
    %v1170 = vpop.f32.mrb[0].mxu0
    %1171 = vmatprep.mubr.f32.mxu0 0.0
    %1172 = vmatmul.mubr.f32.gmra.mrb[0].mxu0 %v480
    %v1173 = vpop.f32.mrb[0].mxu0
    %v1174 = vadd.f32 0.0, %v1173
    %v1175 = vpop.f32.mrb[0].mxu0
    %1176 = vmatprep.mubr.f32.mxu0 0.0
    %1177 = vmatmul.mubr.f32.gmra.mrb[0].mxu0 %v483
    %v1178 = vpop.f32.mrb[0].mxu0
    %v1179 = vadd.f32 0.0, %v1178
    %v1180 = vpop.f32.mrb[0].mxu0
    %1181 = vmatprep.mubr.f32.mxu0 0.0
    %1182 = vmatmul.mubr.f32.gmra.mrb[0].mxu0 %v486
    %v1183 = vpop.f32.mrb[0].mxu0
    %v1184 = vadd.f32 0.0, %v1183
    %v1185 = vpop.f32.mrb[0].mxu0
    %1186 = vmatprep.mubr.f32.mxu0 0.0
    %1187 = vmatmul.mubr.f32.gmra.mrb[0].mxu0 %v489
    %v1188 = vpop.f32.mrb[0].mxu0
    %v1189 = vadd.f32 0.0, %v1188
    %v1190 = vpop.f32.mrb[0].mxu0
    %1191 = vmatprep.mubr.f32.mxu0 0.0
    %1192 = vmatmul.mubr.f32.gmra.mrb[0].mxu0 %v492
    %v1193 = vpop.f32.mrb[0].mxu0
    %v1194 = vadd.f32 0.0, %v1193
    %v1195 = vpop.f32.mrb[0].mxu0
    %1196 = vmatprep.mubr.f32.mxu0 0.0
    %1197 = vmatmul.mubr.f32.gmra.mrb[0].mxu0 %v495
    %v1198 = vpop.f32.mrb[0].mxu0
    %v1199 = vadd.f32 0.0, %v1198
    %v1200 = vpop.f32.mrb[0].mxu0
    %1201 = vmatprep.mubr.f32.mxu0 0.0
    %1202 = vmatmul.mubr.f32.gmra.mrb[0].mxu0 %v498
    %v1203 = vpop.f32.mrb[0].mxu0
    %v1204 = vadd.f32 0.0, %v1203
    %v1205 = vpop.f32.mrb[0].mxu0
    %1206 = vmatprep.mubr.f32.mxu0 0.0
    %1207 = vmatmul.mubr.f32.gmra.mrb[0].mxu0 %v501
    %v1208 = vpop.f32.mrb[0].mxu0
    %v1209 = vadd.f32 0.0, %v1208
    %v1210 = vpop.f32.mrb[0].mxu0
    %1211 = vmatprep.mubr.f32.mxu0 0.0
    %1212 = vmatmul.mubr.f32.gmra.mrb[0].mxu0 %v504
    %v1213 = vpop.f32.mrb[0].mxu0
    %v1214 = vadd.f32 0.0, %v1213
    %v1215 = vpop.f32.mrb[0].mxu0
    %1216 = vmatprep.mubr.f32.mxu0 0.0
    %1217 = vmatmul.mubr.f32.gmra.mrb[0].mxu0 %v507
    %v1218 = vpop.f32.mrb[0].mxu0
    %v1219 = vadd.f32 0.0, %v1218
    %v1220 = vpop.f32.mrb[0].mxu0
    %1221 = vmatprep.mubr.f32.mxu0 0.0
    %1222 = vmatmul.mubr.f32.gmra.mrb[0].mxu0 %v510
    %v1223 = vpop.f32.mrb[0].mxu0
    %v1224 = vadd.f32 0.0, %v1223
    %v1225 = vpop.f32.mrb[0].mxu0
    %1226 = vmatprep.mubr.f32.mxu0 0.0
    %1227 = vmatmul.mubr.f32.gmra.mrb[0].mxu0 %v513
    %v1228 = vpop.f32.mrb[0].mxu0
    %v1229 = vadd.f32 0.0, %v1228
    %v1230 = vpop.f32.mrb[0].mxu0
    %1231 = vmatprep.mubr.f32.mxu0 0.0
    %1232 = vmatmul.mubr.f32.gmra.mrb[0].mxu0 %v516
    %v1233 = vpop.f32.mrb[0].mxu0
    %v1234 = vadd.f32 0.0, %v1233
    %v1235 = vpop.f32.mrb[0].mxu0
    %1236 = vmatprep.mubr.f32.mxu0 0.0
    %1237 = vmatmul.mubr.f32.gmra.mrb[0].mxu0 %v519
    %v1238 = vpop.f32.mrb[0].mxu0
    %v1239 = vadd.f32 0.0, %v1238
    %v1240 = vpop.f32.mrb[0].mxu0
    %1241 = vmatprep.mubr.f32.mxu0 0.0
    %1242 = vmatmul.mubr.f32.gmra.mrb[0].mxu0 %v522
    %v1243 = vpop.f32.mrb[0].mxu0
    %v1244 = vadd.f32 0.0, %v1243
    %v1245 = vpop.f32.mrb[0].mxu0
    %1246 = vmatprep.mubr.f32.mxu0 0.0
    %1247 = vmatmul.mubr.f32.gmra.mrb[0].mxu0 %v525
    %v1248 = vpop.f32.mrb[0].mxu0
    %v1249 = vadd.f32 0.0, %v1248
    %v1250 = vpop.f32.mrb[0].mxu0
    %1251 = vmatprep.mubr.f32.mxu0 0.0
    %1252 = vmatmul.mubr.f32.gmra.mrb[0].mxu0 %v528
    %v1253 = vpop.f32.mrb[0].mxu0
    %v1254 = vadd.f32 0.0, %v1253
    %v1255 = vpop.f32.mrb[0].mxu0
    %1256 = vmatprep.mubr.f32.mxu0 0.0
    %1257 = vmatmul.mubr.f32.gmra.mrb[0].mxu0 %v531
    %v1258 = vpop.f32.mrb[0].mxu0
    %v1259 = vadd.f32 0.0, %v1258
    %v1260 = vpop.f32.mrb[0].mxu0
    %1261 = vmatprep.mubr.f32.mxu0 0.0
    %1262 = vmatmul.mubr.f32.gmra.mrb[0].mxu0 %v534
    %v1263 = vpop.f32.mrb[0].mxu0
    %v1264 = vadd.f32 0.0, %v1263
    %v1265 = vpop.f32.mrb[0].mxu0
    %1266 = vmatprep.mubr.f32.mxu0 0.0
    %1267 = vmatmul.mubr.f32.gmra.mrb[0].mxu0 %v537
    %v1268 = vpop.f32.mrb[0].mxu0
    %v1269 = vadd.f32 0.0, %v1268
    %v1270 = vpop.f32.mrb[0].mxu0
    %1271 = vmatprep.mubr.f32.mxu0 0.0
    %1272 = vmatmul.mubr.f32.gmra.mrb[0].mxu0 %v540
    %v1273 = vpop.f32.mrb[0].mxu0
    %v1274 = vadd.f32 0.0, %v1273
    %v1275 = vpop.f32.mrb[0].mxu0
    %1276 = vmatprep.mubr.f32.mxu0 0.0
    %1277 = vmatmul.mubr.f32.gmra.mrb[0].mxu0 %v543
    %v1278 = vpop.f32.mrb[0].mxu0
    %v1279 = vadd.f32 0.0, %v1278
    %v1280 = vpop.f32.mrb[0].mxu0
    %1281 = vmatprep.mubr.f32.mxu0 0.0
    %1282 = vmatmul.mubr.f32.gmra.mrb[0].mxu0 %v546
    %v1283 = vpop.f32.mrb[0].mxu0
    %v1284 = vadd.f32 0.0, %v1283
    %v1285 = vpop.f32.mrb[0].mxu0
    %1286 = vmatprep.mubr.f32.mxu0 0.0
    %1287 = vmatmul.mubr.f32.gmra.mrb[0].mxu0 %v549
    %v1288 = vpop.f32.mrb[0].mxu0
    %v1289 = vadd.f32 0.0, %v1288
    %v1290 = vpop.f32.mrb[0].mxu0
    %1291 = vmatprep.mubr.f32.mxu0 0.0
    %1292 = vmatmul.mubr.f32.gmra.mrb[0].mxu0 %v552
    %v1293 = vpop.f32.mrb[0].mxu0
    %v1294 = vadd.f32 0.0, %v1293
    %v1295 = vpop.f32.mrb[0].mxu0
    %1296 = vmatprep.mubr.f32.mxu0 0.0
    %1297 = vmatmul.mubr.f32.gmra.mrb[0].mxu0 %v555
    %v1298 = vpop.f32.mrb[0].mxu0
    %v1299 = vadd.f32 0.0, %v1298
    %v1300 = vpop.f32.mrb[0].mxu0
    %1301 = vmatprep.mubr.f32.mxu0 0.0
    %1302 = vmatmul.mubr.f32.gmra.mrb[0].mxu0 %v558
    %v1303 = vpop.f32.mrb[0].mxu0
    %v1304 = vadd.f32 0.0, %v1303
    %v1305 = vpop.f32.mrb[0].mxu0
    %1306 = vmatprep.mubr.f32.mxu0 0.0
    %1307 = vmatmul.mubr.f32.gmra.mrb[0].mxu0 %v561
    %v1308 = vpop.f32.mrb[0].mxu0
    %v1309 = vadd.f32 0.0, %v1308
    %v1310 = vpop.f32.mrb[0].mxu0
    %1311 = vmatprep.mubr.f32.mxu0 0.0
    %1312 = vmatmul.mubr.f32.gmra.mrb[0].mxu0 %v564
    %v1313 = vpop.f32.mrb[0].mxu0
    %v1314 = vadd.f32 0.0, %v1313
    %v1315 = vpop.f32.mrb[0].mxu0
    %1316 = vmatprep.mubr.f32.mxu0 0.0
    %1317 = vmatmul.mubr.f32.gmra.mrb[0].mxu0 %v567
    %v1318 = vpop.f32.mrb[0].mxu0
    %v1319 = vadd.f32 0.0, %v1318
    %v1320 = vpop.f32.mrb[0].mxu0
    %1321 = vmatprep.mubr.f32.mxu0 0.0
    %1322 = vmatmul.mubr.f32.gmra.mrb[0].mxu0 %v570
    %v1323 = vpop.f32.mrb[0].mxu0
    %v1324 = vadd.f32 0.0, %v1323
    %v1325 = vpop.f32.mrb[0].mxu0
    %1326 = vmatprep.mubr.f32.mxu0 0.0
    %1327 = vmatmul.mubr.f32.gmra.mrb[0].mxu0 %v573
    %v1328 = vpop.f32.mrb[0].mxu0
    %v1329 = vadd.f32 0.0, %v1328
    %v1330 = vpop.f32.mrb[0].mxu0
    %1331 = vmatprep.mubr.f32.mxu0 0.0
    %1332 = vmatmul.mubr.f32.gmra.mrb[0].mxu0 %v576
    %v1333 = vpop.f32.mrb[0].mxu0
    %v1334 = vadd.f32 0.0, %v1333
    %v1335 = vpop.f32.mrb[0].mxu0
    %1336 = vmatprep.mubr.f32.mxu0 0.0
    %1337 = vmatmul.mubr.f32.gmra.mrb[0].mxu0 %v579
    %v1338 = vpop.f32.mrb[0].mxu0
    %v1339 = vadd.f32 0.0, %v1338
    %v1340 = vpop.f32.mrb[0].mxu0
    %1341 = vmatprep.mubr.f32.mxu0 0.0
    %1342 = vmatmul.mubr.f32.gmra.mrb[0].mxu0 %v582
    %v1343 = vpop.f32.mrb[0].mxu0
    %v1344 = vadd.f32 0.0, %v1343
    %v1345 = vpop.f32.mrb[0].mxu0
    %1346 = vmatprep.mubr.f32.mxu0 0.0
    %1347 = vmatmul.mubr.f32.gmra.mrb[0].mxu0 %v585
    %v1348 = vpop.f32.mrb[0].mxu0
    %v1349 = vadd.f32 0.0, %v1348
    %v1350 = vpop.f32.mrb[0].mxu0
    %1351 = vmatprep.mubr.f32.mxu0 0.0
    %1352 = vmatmul.mubr.f32.gmra.mrb[0].mxu0 %v588
    %v1353 = vpop.f32.mrb[0].mxu0
    %v1354 = vadd.f32 0.0, %v1353
    %v1355 = vpop.f32.mrb[0].mxu0
    %1356 = vmatprep.mubr.f32.mxu0 0.0
    %1357 = vmatmul.mubr.f32.gmra.mrb[0].mxu0 %v591
    %v1358 = vpop.f32.mrb[0].mxu0
    %v1359 = vadd.f32 0.0, %v1358
    %v1360 = vpop.f32.mrb[0].mxu0
    %1361 = vmatprep.mubr.f32.mxu0 0.0
    %1362 = vmatmul.mubr.f32.gmra.mrb[0].mxu0 %v594
    %v1363 = vpop.f32.mrb[0].mxu0
    %v1364 = vadd.f32 0.0, %v1363
    %v1365 = vpop.f32.mrb[0].mxu0
    %1366 = vmatprep.mubr.f32.mxu0 0.0
    %1367 = vmatmul.mubr.f32.gmra.mrb[0].mxu0 %v597
    %v1368 = vpop.f32.mrb[0].mxu0
    %v1369 = vadd.f32 0.0, %v1368
    %v1370 = vpop.f32.mrb[0].mxu0
    %1371 = vmatprep.mubr.f32.mxu0 0.0
    %1372 = vmatmul.mubr.f32.gmra.mrb[0].mxu0 %v600
    %v1373 = vpop.f32.mrb[0].mxu0
    %v1374 = vadd.f32 0.0, %v1373
    %v1375 = vpop.f32.mrb[0].mxu0
    %1376 = vmatprep.mubr.f32.mxu0 0.0
    %1377 = vmatmul.mubr.f32.gmra.mrb[0].mxu0 %v603
    %v1378 = vpop.f32.mrb[0].mxu0
    %v1379 = vadd.f32 0.0, %v1378
    %v1380 = vpop.f32.mrb[0].mxu0
    %1381 = vmatprep.mubr.f32.mxu0 0.0
    %1382 = vmatmul.mubr.f32.gmra.mrb[0].mxu0 %v606
    %v1383 = vpop.f32.mrb[0].mxu0
    %v1384 = vadd.f32 0.0, %v1383
    %v1385 = vpop.f32.mrb[0].mxu0
    %1386 = vmatprep.mubr.f32.mxu0 0.0
    %1387 = vmatmul.mubr.f32.gmra.mrb[0].mxu0 %v609
    %v1388 = vpop.f32.mrb[0].mxu0
    %v1389 = vadd.f32 0.0, %v1388
    %v1390 = vpop.f32.mrb[0].mxu0
    %1391 = vmatprep.mubr.f32.mxu0 0.0
    %1392 = vmatmul.mubr.f32.gmra.mrb[0].mxu0 %v612
    %v1393 = vpop.f32.mrb[0].mxu0
    %v1394 = vadd.f32 0.0, %v1393
    %v1395 = vpop.f32.mrb[0].mxu0
    %1396 = vmatprep.mubr.f32.mxu0 0.0
    %1397 = vmatmul.mubr.f32.gmra.mrb[0].mxu0 %v615
    %v1398 = vpop.f32.mrb[0].mxu0
    %v1399 = vadd.f32 0.0, %v1398
    %v1400 = vpop.f32.mrb[0].mxu0
    %1401 = vdwg.mxu0
    %v1402 = vmax.f32 %v684, %v864
    %v1403 = vmax.f32 %v689, %v869
    %v1404 = vmax.f32 %v694, %v874
    %v1405 = vmax.f32 %v699, %v879
    %v1406 = vmax.f32 %v704, %v884
    %v1407 = vmax.f32 %v709, %v889
    %v1408 = vmax.f32 %v714, %v894
    %v1409 = vmax.f32 %v719, %v899
    %v1410 = vmax.f32 %v724, %v904
    %v1411 = vmax.f32 %v729, %v909
    %v1412 = vmax.f32 %v734, %v914
    %v1413 = vmax.f32 %v739, %v919
    %v1414 = vmax.f32 %v744, %v924
    %v1415 = vmax.f32 %v749, %v929
    %v1416 = vmax.f32 %v754, %v934
    %v1417 = vmax.f32 %v759, %v939
    %v1418 = vmax.f32 %v764, %v944
    %v1419 = vmax.f32 %v769, %v949
    %v1420 = vmax.f32 %v774, %v954
    %v1421 = vmax.f32 %v779, %v959
    %v1422 = vmax.f32 %v784, %v964
    %v1423 = vmax.f32 %v789, %v969
    %v1424 = vmax.f32 %v794, %v974
    %v1425 = vmax.f32 %v799, %v979
    %v1426 = vmax.f32 %v804, %v984
    %v1427 = vmax.f32 %v809, %v989
    %v1428 = vmax.f32 %v814, %v994
    %v1429 = vmax.f32 %v819, %v999
    %v1430 = vmax.f32 %v824, %v1004
    %v1431 = vmax.f32 %v829, %v1009
    %v1432 = vmax.f32 %v834, %v1014
    %v1433 = vmax.f32 %v839, %v1019
    %v1434 = vmax.f32 %v844, %v1024
    %v1435 = vmax.f32 %v849, %v1029
    %v1436 = vmax.f32 %v854, %v1034
    %v1437 = vmax.f32 %v859, %v1039
    %v1438 = vmax.f32 %v1044, %v1224
    %v1439 = vmax.f32 %v1049, %v1229
    %v1440 = vmax.f32 %v1054, %v1234
    %v1441 = vmax.f32 %v1059, %v1239
    %v1442 = vmax.f32 %v1064, %v1244
    %v1443 = vmax.f32 %v1069, %v1249
    %v1444 = vmax.f32 %v1074, %v1254
    %v1445 = vmax.f32 %v1079, %v1259
    %v1446 = vmax.f32 %v1084, %v1264
    %v1447 = vmax.f32 %v1089, %v1269
    %v1448 = vmax.f32 %v1094, %v1274
    %v1449 = vmax.f32 %v1099, %v1279
    %v1450 = vmax.f32 %v1104, %v1284
    %v1451 = vmax.f32 %v1109, %v1289
    %v1452 = vmax.f32 %v1114, %v1294
    %v1453 = vmax.f32 %v1119, %v1299
    %v1454 = vmax.f32 %v1124, %v1304
    %v1455 = vmax.f32 %v1129, %v1309
    %v1456 = vmax.f32 %v1134, %v1314
    %v1457 = vmax.f32 %v1139, %v1319
    %v1458 = vmax.f32 %v1144, %v1324
    %v1459 = vmax.f32 %v1149, %v1329
    %v1460 = vmax.f32 %v1154, %v1334
    %v1461 = vmax.f32 %v1159, %v1339
    %v1462 = vmax.f32 %v1164, %v1344
    %v1463 = vmax.f32 %v1169, %v1349
    %v1464 = vmax.f32 %v1174, %v1354
    %v1465 = vmax.f32 %v1179, %v1359
    %v1466 = vmax.f32 %v1184, %v1364
    %v1467 = vmax.f32 %v1189, %v1369
    %v1468 = vmax.f32 %v1194, %v1374
    %v1469 = vmax.f32 %v1199, %v1379
    %v1470 = vmax.f32 %v1204, %v1384
    %v1471 = vmax.f32 %v1209, %v1389
    %v1472 = vmax.f32 %v1214, %v1394
    %v1473 = vmax.f32 %v1219, %v1399
    %v1474 = vmax.f32 %v1402, %v1438
    %v1475 = vmax.f32 %v1403, %v1439
    %v1476 = vmax.f32 %v1404, %v1440
    %v1477 = vmax.f32 %v1405, %v1441
    %v1478 = vmax.f32 %v1406, %v1442
    %v1479 = vmax.f32 %v1407, %v1443
    %v1480 = vmax.f32 %v1408, %v1444
    %v1481 = vmax.f32 %v1409, %v1445
    %v1482 = vmax.f32 %v1410, %v1446
    %v1483 = vmax.f32 %v1411, %v1447
    %v1484 = vmax.f32 %v1412, %v1448
    %v1485 = vmax.f32 %v1413, %v1449
    %v1486 = vmax.f32 %v1414, %v1450
    %v1487 = vmax.f32 %v1415, %v1451
    %v1488 = vmax.f32 %v1416, %v1452
    %v1489 = vmax.f32 %v1417, %v1453
    %v1490 = vmax.f32 %v1418, %v1454
    %v1491 = vmax.f32 %v1419, %v1455
    %v1492 = vmax.f32 %v1420, %v1456
    %v1493 = vmax.f32 %v1421, %v1457
    %v1494 = vmax.f32 %v1422, %v1458
    %v1495 = vmax.f32 %v1423, %v1459
    %v1496 = vmax.f32 %v1424, %v1460
    %v1497 = vmax.f32 %v1425, %v1461
    %v1498 = vmax.f32 %v1426, %v1462
    %v1499 = vmax.f32 %v1427, %v1463
    %v1500 = vmax.f32 %v1428, %v1464
    %v1501 = vmax.f32 %v1429, %v1465
    %v1502 = vmax.f32 %v1430, %v1466
    %v1503 = vmax.f32 %v1431, %v1467
    %v1504 = vmax.f32 %v1432, %v1468
    %v1505 = vmax.f32 %v1433, %v1469
    %v1506 = vmax.f32 %v1434, %v1470
    %v1507 = vmax.f32 %v1435, %v1471
    %v1508 = vmax.f32 %v1436, %v1472
    %v1509 = vmax.f32 %v1437, %v1473
    %v1510 = vld [vmem:[%s3] sm:$0x1]
    %v1512 = vlaneseq
    %v1513 = vshrl.u32 %v1512, 7
    %v1514 = vsub.s32 0, %v1513
    %v1515 = vrot.slane %v1510, %v1514
    %v1517 = vadd.f32 %v1474, %v1515
    %v1518 = vadd.f32 %v1475, %v1515
    %v1519 = vadd.f32 %v1476, %v1515
    %v1520 = vadd.f32 %v1477, %v1515
    %v1521 = vadd.f32 %v1478, %v1515
    %v1522 = vadd.f32 %v1479, %v1515
    %v1523 = vadd.f32 %v1480, %v1515
    %v1524 = vadd.f32 %v1481, %v1515
    %v1525 = vadd.f32 %v1482, %v1515
    %v1526 = vadd.f32 %v1483, %v1515
    %v1527 = vadd.f32 %v1484, %v1515
    %v1528 = vadd.f32 %v1485, %v1515
    %v1529 = vadd.f32 %v1486, %v1515
    %v1530 = vadd.f32 %v1487, %v1515
    %v1531 = vadd.f32 %v1488, %v1515
    %v1532 = vadd.f32 %v1489, %v1515
    %v1533 = vadd.f32 %v1490, %v1515
    %v1534 = vadd.f32 %v1491, %v1515
    %v1535 = vadd.f32 %v1492, %v1515
    %v1536 = vadd.f32 %v1493, %v1515
    %v1537 = vadd.f32 %v1494, %v1515
    %v1538 = vadd.f32 %v1495, %v1515
    %v1539 = vadd.f32 %v1496, %v1515
    %v1540 = vadd.f32 %v1497, %v1515
    %v1541 = vadd.f32 %v1498, %v1515
    %v1542 = vadd.f32 %v1499, %v1515
    %v1543 = vadd.f32 %v1500, %v1515
    %v1544 = vadd.f32 %v1501, %v1515
    %v1545 = vadd.f32 %v1502, %v1515
    %v1546 = vadd.f32 %v1503, %v1515
    %v1547 = vadd.f32 %v1504, %v1515
    %v1548 = vadd.f32 %v1505, %v1515
    %v1549 = vadd.f32 %v1506, %v1515
    %v1550 = vadd.f32 %v1507, %v1515
    %v1551 = vadd.f32 %v1508, %v1515
    %v1552 = vadd.f32 %v1509, %v1515
    %v1553 = vmax.f32 %v1517, 0.0
    %v1554 = vmax.f32 %v1518, 0.0
    %v1555 = vmax.f32 %v1519, 0.0
    %v1556 = vmax.f32 %v1520, 0.0
    %v1557 = vmax.f32 %v1521, 0.0
    %v1558 = vmax.f32 %v1522, 0.0
    %v1559 = vmax.f32 %v1523, 0.0
    %v1560 = vmax.f32 %v1524, 0.0
    %v1561 = vmax.f32 %v1525, 0.0
    %v1562 = vmax.f32 %v1526, 0.0
    %v1563 = vmax.f32 %v1527, 0.0
    %v1564 = vmax.f32 %v1528, 0.0
    %v1565 = vmax.f32 %v1529, 0.0
    %v1566 = vmax.f32 %v1530, 0.0
    %v1567 = vmax.f32 %v1531, 0.0
    %v1568 = vmax.f32 %v1532, 0.0
    %v1569 = vmax.f32 %v1533, 0.0
    %v1570 = vmax.f32 %v1534, 0.0
    %v1571 = vmax.f32 %v1535, 0.0
    %v1572 = vmax.f32 %v1536, 0.0
    %v1573 = vmax.f32 %v1537, 0.0
    %v1574 = vmax.f32 %v1538, 0.0
    %v1575 = vmax.f32 %v1539, 0.0
    %v1576 = vmax.f32 %v1540, 0.0
    %v1577 = vmax.f32 %v1541, 0.0
    %v1578 = vmax.f32 %v1542, 0.0
    %v1579 = vmax.f32 %v1543, 0.0
    %v1580 = vmax.f32 %v1544, 0.0
    %v1581 = vmax.f32 %v1545, 0.0
    %v1582 = vmax.f32 %v1546, 0.0
    %v1583 = vmax.f32 %v1547, 0.0
    %v1584 = vmax.f32 %v1548, 0.0
    %v1585 = vmax.f32 %v1549, 0.0
    %v1586 = vmax.f32 %v1550, 0.0
    %v1587 = vmax.f32 %v1551, 0.0
    %v1588 = vmax.f32 %v1552, 0.0
    %v1589 = vld [vmem:[%s4] sm:$0xff]
    %v1590 = vld [vmem:[%s4 + $0x8] sm:$0xff]
    %s1591 = scalar_lea.vmem %s4, 16
    %v1592 = vld [vmem:[%s1591] sm:$0xff]
    %v1593 = vld [vmem:[%s1591 + $0x8] sm:$0xff]
    %vm1624 = vcmask 1046528
    %v1625 = vrot.slane %v1553, 1
    %v1626 = vrot.slane %v1554, 1
    %v1627 = vsel %vm1624, %v1625, %v1626
    %v1628 = vrot.slane %v1555, 1
    %v1629 = vsel %vm1624, %v1626, %v1628
    %v1630 = vrot.slane %v1556, 1
    %v1631 = vsel %vm1624, %v1628, %v1630
    %v1632 = vrot.slane %v1557, 1
    %v1633 = vsel %vm1624, %v1630, %v1632
    %v1634 = vrot.slane %v1558, 1
    %v1635 = vsel %vm1624, %v1632, %v1634
    %v1636 = vrot.slane %v1559, 1
    %v1637 = vsel %vm1624, %v1634, %v1636
    %v1638 = vrot.slane %v1560, 1
    %v1639 = vsel %vm1624, %v1636, %v1638
    %v1640 = vrot.slane %v1561, 1
    %v1641 = vsel %vm1624, %v1638, %v1640
    %v1642 = vrot.slane %v1562, 1
    %v1643 = vsel %vm1624, %v1640, %v1642
    %v1644 = vrot.slane %v1563, 1
    %v1645 = vsel %vm1624, %v1642, %v1644
    %v1646 = vrot.slane %v1564, 1
    %v1647 = vsel %vm1624, %v1644, %v1646
    %v1648 = vrot.slane %v1565, 1
    %v1649 = vsel %vm1624, %v1646, %v1648
    %v1650 = vrot.slane %v1566, 1
    %v1651 = vsel %vm1624, %v1648, %v1650
    %v1652 = vrot.slane %v1567, 1
    %v1653 = vsel %vm1624, %v1650, %v1652
    %v1654 = vrot.slane %v1568, 1
    %v1655 = vsel %vm1624, %v1652, %v1654
    %v1656 = vrot.slane %v1569, 1
    %v1657 = vsel %vm1624, %v1654, %v1656
    %v1658 = vrot.slane %v1570, 1
    %v1659 = vsel %vm1624, %v1656, %v1658
    %v1660 = vrot.slane %v1571, 1
    %v1661 = vsel %vm1624, %v1658, %v1660
    %v1662 = vrot.slane %v1572, 1
    %v1663 = vsel %vm1624, %v1660, %v1662
    %v1664 = vrot.slane %v1573, 1
    %v1665 = vsel %vm1624, %v1662, %v1664
    %v1666 = vrot.slane %v1574, 1
    %v1667 = vsel %vm1624, %v1664, %v1666
    %v1668 = vrot.slane %v1575, 1
    %v1669 = vsel %vm1624, %v1666, %v1668
    %v1670 = vrot.slane %v1576, 1
    %v1671 = vsel %vm1624, %v1668, %v1670
    %v1672 = vrot.slane %v1577, 1
    %v1673 = vsel %vm1624, %v1670, %v1672
    %v1674 = vrot.slane %v1578, 1
    %v1675 = vsel %vm1624, %v1672, %v1674
    %v1676 = vrot.slane %v1579, 1
    %v1677 = vsel %vm1624, %v1674, %v1676
    %v1678 = vrot.slane %v1580, 1
    %v1679 = vsel %vm1624, %v1676, %v1678
    %v1680 = vrot.slane %v1581, 1
    %v1681 = vsel %vm1624, %v1678, %v1680
    %v1682 = vrot.slane %v1582, 1
    %v1683 = vsel %vm1624, %v1680, %v1682
    %vm1684 = vcmask 130048
    %v1685 = vsel %vm1684, %v1627, 0
    %v1687 = vsel %vm1684, %v1629, 0
    %v1689 = vsel %vm1684, %v1631, 0
    %v1691 = vsel %vm1684, %v1633, 0
    %v1693 = vsel %vm1684, %v1635, 0
    %v1695 = vsel %vm1684, %v1637, 0
    %v1697 = vsel %vm1684, %v1639, 0
    %v1699 = vsel %vm1684, %v1641, 0
    %v1701 = vsel %vm1684, %v1643, 0
    %v1703 = vsel %vm1684, %v1645, 0
    %v1705 = vsel %vm1684, %v1647, 0
    %v1707 = vsel %vm1684, %v1649, 0
    %v1709 = vsel %vm1684, %v1651, 0
    %v1711 = vsel %vm1684, %v1653, 0
    %v1713 = vsel %vm1684, %v1655, 0
    %v1715 = vsel %vm1684, %v1657, 0
    %v1717 = vsel %vm1684, %v1659, 0
    %v1719 = vsel %vm1684, %v1661, 0
    %v1721 = vsel %vm1684, %v1663, 0
    %v1723 = vsel %vm1684, %v1665, 0
    %v1725 = vsel %vm1684, %v1667, 0
    %v1727 = vsel %vm1684, %v1669, 0
    %v1729 = vsel %vm1684, %v1671, 0
    %v1731 = vsel %vm1684, %v1673, 0
    %v1733 = vsel %vm1684, %v1675, 0
    %v1735 = vsel %vm1684, %v1677, 0
    %v1737 = vsel %vm1684, %v1679, 0
    %v1739 = vsel %vm1684, %v1681, 0
    %v1741 = vsel %vm1684, %v1683, 0
    %v1743 = vsel %vm1684, %v1682, 0
    %1745 = vmatprep.subr.mxu0 0.0
    %1746 = vmatpush1.msra.mxu0 %v1592
    %1747 = vmatprep.subr.mxu0 0.0
    %1748 = vmatpush1.msra.mxu0 %v1593
    %1749 = vmatprep.subr.mxu0 0.0
    %1750 = vmatpush1.msra.mxu0 0.0
    %1751 = vmatprep.subr.mxu0 0.0
    %1752 = vmatpush1.msra.mxu0 0.0
    %1753 = vmatprep.subr.mxu0 0.0
    %1754 = vmatpush1.msra.mxu0 0.0
    %1755 = vmatprep.subr.mxu0 0.0
    %1756 = vmatpush1.msra.mxu0 0.0
    %1757 = vmatprep.subr.mxu0 0.0
    %1758 = vmatpush1.msra.mxu0 0.0
    %1759 = vmatprep.subr.mxu0 0.0
    %1760 = vmatpush1.msra.mxu0 0.0
    %1761 = vmatprep.subr.mxu0 0.0
    %1762 = vmatpush1.msra.mxu0 0.0
    %1763 = vmatprep.subr.mxu0 0.0
    %1764 = vmatpush1.msra.mxu0 0.0
    %1765 = vmatprep.subr.mxu0 0.0
    %1766 = vmatpush1.msra.mxu0 0.0
    %1767 = vmatprep.subr.mxu0 0.0
    %1768 = vmatpush1.msra.mxu0 0.0
    %1769 = vmatprep.subr.mxu0 0.0
    %1770 = vmatpush1.msra.mxu0 0.0
    %1771 = vmatprep.subr.mxu0 0.0
    %1772 = vmatpush1.msra.mxu0 0.0
    %1773 = vmatprep.subr.mxu0 0.0
    %1774 = vmatpush1.msra.mxu0 0.0
    %1775 = vmatprep.subr.mxu0 0.0
    %1776 = vmatpush1.msra.mxu0 0.0
    %1777 = vmatprep.subr.mxu0 0.0
    %1778 = vmatpush1.msra.mxu0 0.0
    %1779 = vmatprep.subr.mxu0 0.0
    %1780 = vmatpush1.msra.mxu0 0.0
    %1781 = vmatprep.subr.mxu0 0.0
    %1782 = vmatpush1.msra.mxu0 0.0
    %1783 = vmatprep.subr.mxu0 0.0
    %1784 = vmatpush1.msra.mxu0 0.0
    %1785 = vmatprep.subr.mxu0 0.0
    %1786 = vmatpush1.msra.mxu0 0.0
    %1787 = vmatprep.subr.mxu0 0.0
    %1788 = vmatpush1.msra.mxu0 0.0
    %1789 = vmatprep.subr.mxu0 0.0
    %1790 = vmatpush1.msra.mxu0 0.0
    %1791 = vmatprep.subr.mxu0 0.0
    %1792 = vmatpush1.msra.mxu0 0.0
    %1793 = vmatprep.subr.mxu0 0.0
    %1794 = vmatpush1.msra.mxu0 0.0
    %1795 = vmatprep.subr.mxu0 0.0
    %1796 = vmatpush1.msra.mxu0 0.0
    %1797 = vmatprep.subr.mxu0 0.0
    %1798 = vmatpush1.msra.mxu0 0.0
    %1799 = vmatprep.subr.mxu0 0.0
    %1800 = vmatpush1.msra.mxu0 0.0
    %1801 = vmatprep.subr.mxu0 0.0
    %1802 = vmatpush1.msra.mxu0 0.0
    %1803 = vmatprep.subr.mxu0 0.0
    %1804 = vmatpush1.msra.mxu0 0.0
    %1805 = vmatprep.subr.mxu0 0.0
    %1806 = vmatpush1.msra.mxu0 0.0
    %1807 = vmatprep.subr.mxu0 0.0
    %1808 = vmatpush1.msra.mxu0 0.0
    %1809 = vmatprep.mubr.f32.mxu0 0.0
    %1810 = vmatmul.mubr.f32.gmra.mrb[0].mxu0 %v1685
    %v1811 = vpop.f32.mrb[0].mxu0
    %v1812 = vadd.f32 0.0, %v1811
    %v1813 = vpop.f32.mrb[0].mxu0
    %1814 = vmatprep.mubr.f32.mxu0 0.0
    %1815 = vmatmul.mubr.f32.gmra.mrb[0].mxu0 %v1687
    %v1816 = vpop.f32.mrb[0].mxu0
    %v1817 = vadd.f32 0.0, %v1816
    %v1818 = vpop.f32.mrb[0].mxu0
    %1819 = vmatprep.mubr.f32.mxu0 0.0
    %1820 = vmatmul.mubr.f32.gmra.mrb[0].mxu0 %v1689
    %v1821 = vpop.f32.mrb[0].mxu0
    %v1822 = vadd.f32 0.0, %v1821
    %v1823 = vpop.f32.mrb[0].mxu0
    %1824 = vmatprep.mubr.f32.mxu0 0.0
    %1825 = vmatmul.mubr.f32.gmra.mrb[0].mxu0 %v1691
    %v1826 = vpop.f32.mrb[0].mxu0
    %v1827 = vadd.f32 0.0, %v1826
    %v1828 = vpop.f32.mrb[0].mxu0
    %1829 = vmatprep.mubr.f32.mxu0 0.0
    %1830 = vmatmul.mubr.f32.gmra.mrb[0].mxu0 %v1693
    %v1831 = vpop.f32.mrb[0].mxu0
    %v1832 = vadd.f32 0.0, %v1831
    %v1833 = vpop.f32.mrb[0].mxu0
    %1834 = vmatprep.mubr.f32.mxu0 0.0
    %1835 = vmatmul.mubr.f32.gmra.mrb[0].mxu0 %v1695
    %v1836 = vpop.f32.mrb[0].mxu0
    %v1837 = vadd.f32 0.0, %v1836
    %v1838 = vpop.f32.mrb[0].mxu0
    %1839 = vmatprep.mubr.f32.mxu0 0.0
    %1840 = vmatmul.mubr.f32.gmra.mrb[0].mxu0 %v1697
    %v1841 = vpop.f32.mrb[0].mxu0
    %v1842 = vadd.f32 0.0, %v1841
    %v1843 = vpop.f32.mrb[0].mxu0
    %1844 = vmatprep.mubr.f32.mxu0 0.0
    %1845 = vmatmul.mubr.f32.gmra.mrb[0].mxu0 %v1699
    %v1846 = vpop.f32.mrb[0].mxu0
    %v1847 = vadd.f32 0.0, %v1846
    %v1848 = vpop.f32.mrb[0].mxu0
    %1849 = vmatprep.mubr.f32.mxu0 0.0
    %1850 = vmatmul.mubr.f32.gmra.mrb[0].mxu0 %v1701
    %v1851 = vpop.f32.mrb[0].mxu0
    %v1852 = vadd.f32 0.0, %v1851
    %v1853 = vpop.f32.mrb[0].mxu0
    %1854 = vmatprep.mubr.f32.mxu0 0.0
    %1855 = vmatmul.mubr.f32.gmra.mrb[0].mxu0 %v1703
    %v1856 = vpop.f32.mrb[0].mxu0
    %v1857 = vadd.f32 0.0, %v1856
    %v1858 = vpop.f32.mrb[0].mxu0
    %1859 = vmatprep.mubr.f32.mxu0 0.0
    %1860 = vmatmul.mubr.f32.gmra.mrb[0].mxu0 %v1705
    %v1861 = vpop.f32.mrb[0].mxu0
    %v1862 = vadd.f32 0.0, %v1861
    %v1863 = vpop.f32.mrb[0].mxu0
    %1864 = vmatprep.mubr.f32.mxu0 0.0
    %1865 = vmatmul.mubr.f32.gmra.mrb[0].mxu0 %v1707
    %v1866 = vpop.f32.mrb[0].mxu0
    %v1867 = vadd.f32 0.0, %v1866
    %v1868 = vpop.f32.mrb[0].mxu0
    %1869 = vmatprep.mubr.f32.mxu0 0.0
    %1870 = vmatmul.mubr.f32.gmra.mrb[0].mxu0 %v1709
    %v1871 = vpop.f32.mrb[0].mxu0
    %v1872 = vadd.f32 0.0, %v1871
    %v1873 = vpop.f32.mrb[0].mxu0
    %1874 = vmatprep.mubr.f32.mxu0 0.0
    %1875 = vmatmul.mubr.f32.gmra.mrb[0].mxu0 %v1711
    %v1876 = vpop.f32.mrb[0].mxu0
    %v1877 = vadd.f32 0.0, %v1876
    %v1878 = vpop.f32.mrb[0].mxu0
    %1879 = vmatprep.mubr.f32.mxu0 0.0
    %1880 = vmatmul.mubr.f32.gmra.mrb[0].mxu0 %v1713
    %v1881 = vpop.f32.mrb[0].mxu0
    %v1882 = vadd.f32 0.0, %v1881
    %v1883 = vpop.f32.mrb[0].mxu0
    %1884 = vmatprep.mubr.f32.mxu0 0.0
    %1885 = vmatmul.mubr.f32.gmra.mrb[0].mxu0 %v1715
    %v1886 = vpop.f32.mrb[0].mxu0
    %v1887 = vadd.f32 0.0, %v1886
    %v1888 = vpop.f32.mrb[0].mxu0
    %1889 = vmatprep.mubr.f32.mxu0 0.0
    %1890 = vmatmul.mubr.f32.gmra.mrb[0].mxu0 %v1717
    %v1891 = vpop.f32.mrb[0].mxu0
    %v1892 = vadd.f32 0.0, %v1891
    %v1893 = vpop.f32.mrb[0].mxu0
    %1894 = vmatprep.mubr.f32.mxu0 0.0
    %1895 = vmatmul.mubr.f32.gmra.mrb[0].mxu0 %v1719
    %v1896 = vpop.f32.mrb[0].mxu0
    %v1897 = vadd.f32 0.0, %v1896
    %v1898 = vpop.f32.mrb[0].mxu0
    %1899 = vmatprep.mubr.f32.mxu0 0.0
    %1900 = vmatmul.mubr.f32.gmra.mrb[0].mxu0 %v1721
    %v1901 = vpop.f32.mrb[0].mxu0
    %v1902 = vadd.f32 0.0, %v1901
    %v1903 = vpop.f32.mrb[0].mxu0
    %1904 = vmatprep.mubr.f32.mxu0 0.0
    %1905 = vmatmul.mubr.f32.gmra.mrb[0].mxu0 %v1723
    %v1906 = vpop.f32.mrb[0].mxu0
    %v1907 = vadd.f32 0.0, %v1906
    %v1908 = vpop.f32.mrb[0].mxu0
    %1909 = vmatprep.mubr.f32.mxu0 0.0
    %1910 = vmatmul.mubr.f32.gmra.mrb[0].mxu0 %v1725
    %v1911 = vpop.f32.mrb[0].mxu0
    %v1912 = vadd.f32 0.0, %v1911
    %v1913 = vpop.f32.mrb[0].mxu0
    %1914 = vmatprep.mubr.f32.mxu0 0.0
    %1915 = vmatmul.mubr.f32.gmra.mrb[0].mxu0 %v1727
    %v1916 = vpop.f32.mrb[0].mxu0
    %v1917 = vadd.f32 0.0, %v1916
    %v1918 = vpop.f32.mrb[0].mxu0
    %1919 = vmatprep.mubr.f32.mxu0 0.0
    %1920 = vmatmul.mubr.f32.gmra.mrb[0].mxu0 %v1729
    %v1921 = vpop.f32.mrb[0].mxu0
    %v1922 = vadd.f32 0.0, %v1921
    %v1923 = vpop.f32.mrb[0].mxu0
    %1924 = vmatprep.mubr.f32.mxu0 0.0
    %1925 = vmatmul.mubr.f32.gmra.mrb[0].mxu0 %v1731
    %v1926 = vpop.f32.mrb[0].mxu0
    %v1927 = vadd.f32 0.0, %v1926
    %v1928 = vpop.f32.mrb[0].mxu0
    %1929 = vmatprep.mubr.f32.mxu0 0.0
    %1930 = vmatmul.mubr.f32.gmra.mrb[0].mxu0 %v1733
    %v1931 = vpop.f32.mrb[0].mxu0
    %v1932 = vadd.f32 0.0, %v1931
    %v1933 = vpop.f32.mrb[0].mxu0
    %1934 = vmatprep.mubr.f32.mxu0 0.0
    %1935 = vmatmul.mubr.f32.gmra.mrb[0].mxu0 %v1735
    %v1936 = vpop.f32.mrb[0].mxu0
    %v1937 = vadd.f32 0.0, %v1936
    %v1938 = vpop.f32.mrb[0].mxu0
    %1939 = vmatprep.mubr.f32.mxu0 0.0
    %1940 = vmatmul.mubr.f32.gmra.mrb[0].mxu0 %v1737
    %v1941 = vpop.f32.mrb[0].mxu0
    %v1942 = vadd.f32 0.0, %v1941
    %v1943 = vpop.f32.mrb[0].mxu0
    %1944 = vmatprep.mubr.f32.mxu0 0.0
    %1945 = vmatmul.mubr.f32.gmra.mrb[0].mxu0 %v1739
    %v1946 = vpop.f32.mrb[0].mxu0
    %v1947 = vadd.f32 0.0, %v1946
    %v1948 = vpop.f32.mrb[0].mxu0
    %1949 = vmatprep.mubr.f32.mxu0 0.0
    %1950 = vmatmul.mubr.f32.gmra.mrb[0].mxu0 %v1741
    %v1951 = vpop.f32.mrb[0].mxu0
    %v1952 = vadd.f32 0.0, %v1951
    %v1953 = vpop.f32.mrb[0].mxu0
    %1954 = vmatprep.mubr.f32.mxu0 0.0
    %1955 = vmatmul.mubr.f32.gmra.mrb[0].mxu0 %v1743
    %v1956 = vpop.f32.mrb[0].mxu0
    %v1957 = vadd.f32 0.0, %v1956
    %v1958 = vpop.f32.mrb[0].mxu0
    %1959 = vdwg.mxu0
    %v1960 = vsel %vm1684, %v1553, 0
    %v1962 = vsel %vm1684, %v1554, 0
    %v1964 = vsel %vm1684, %v1555, 0
    %v1966 = vsel %vm1684, %v1556, 0
    %v1968 = vsel %vm1684, %v1557, 0
    %v1970 = vsel %vm1684, %v1558, 0
    %v1972 = vsel %vm1684, %v1559, 0
    %v1974 = vsel %vm1684, %v1560, 0
    %v1976 = vsel %vm1684, %v1561, 0
    %v1978 = vsel %vm1684, %v1562, 0
    %v1980 = vsel %vm1684, %v1563, 0
    %v1982 = vsel %vm1684, %v1564, 0
    %v1984 = vsel %vm1684, %v1565, 0
    %v1986 = vsel %vm1684, %v1566, 0
    %v1988 = vsel %vm1684, %v1567, 0
    %v1990 = vsel %vm1684, %v1568, 0
    %v1992 = vsel %vm1684, %v1569, 0
    %v1994 = vsel %vm1684, %v1570, 0
    %v1996 = vsel %vm1684, %v1571, 0
    %v1998 = vsel %vm1684, %v1572, 0
    %v2000 = vsel %vm1684, %v1573, 0
    %v2002 = vsel %vm1684, %v1574, 0
    %v2004 = vsel %vm1684, %v1575, 0
    %v2006 = vsel %vm1684, %v1576, 0
    %v2008 = vsel %vm1684, %v1577, 0
    %v2010 = vsel %vm1684, %v1578, 0
    %v2012 = vsel %vm1684, %v1579, 0
    %v2014 = vsel %vm1684, %v1580, 0
    %v2016 = vsel %vm1684, %v1581, 0
    %v2018 = vsel %vm1684, %v1582, 0
    %2020 = vmatprep.subr.mxu0 0.0
    %2021 = vmatpush1.msra.mxu0 %v1589
    %2022 = vmatprep.subr.mxu0 0.0
    %2023 = vmatpush1.msra.mxu0 %v1590
    %2024 = vmatprep.subr.mxu0 0.0
    %2025 = vmatpush1.msra.mxu0 0.0
    %2026 = vmatprep.subr.mxu0 0.0
    %2027 = vmatpush1.msra.mxu0 0.0
    %2028 = vmatprep.subr.mxu0 0.0
    %2029 = vmatpush1.msra.mxu0 0.0
    %2030 = vmatprep.subr.mxu0 0.0
    %2031 = vmatpush1.msra.mxu0 0.0
    %2032 = vmatprep.subr.mxu0 0.0
    %2033 = vmatpush1.msra.mxu0 0.0
    %2034 = vmatprep.subr.mxu0 0.0
    %2035 = vmatpush1.msra.mxu0 0.0
    %2036 = vmatprep.subr.mxu0 0.0
    %2037 = vmatpush1.msra.mxu0 0.0
    %2038 = vmatprep.subr.mxu0 0.0
    %2039 = vmatpush1.msra.mxu0 0.0
    %2040 = vmatprep.subr.mxu0 0.0
    %2041 = vmatpush1.msra.mxu0 0.0
    %2042 = vmatprep.subr.mxu0 0.0
    %2043 = vmatpush1.msra.mxu0 0.0
    %2044 = vmatprep.subr.mxu0 0.0
    %2045 = vmatpush1.msra.mxu0 0.0
    %2046 = vmatprep.subr.mxu0 0.0
    %2047 = vmatpush1.msra.mxu0 0.0
    %2048 = vmatprep.subr.mxu0 0.0
    %2049 = vmatpush1.msra.mxu0 0.0
    %2050 = vmatprep.subr.mxu0 0.0
    %2051 = vmatpush1.msra.mxu0 0.0
    %2052 = vmatprep.subr.mxu0 0.0
    %2053 = vmatpush1.msra.mxu0 0.0
    %2054 = vmatprep.subr.mxu0 0.0
    %2055 = vmatpush1.msra.mxu0 0.0
    %2056 = vmatprep.subr.mxu0 0.0
    %2057 = vmatpush1.msra.mxu0 0.0
    %2058 = vmatprep.subr.mxu0 0.0
    %2059 = vmatpush1.msra.mxu0 0.0
    %2060 = vmatprep.subr.mxu0 0.0
    %2061 = vmatpush1.msra.mxu0 0.0
    %2062 = vmatprep.subr.mxu0 0.0
    %2063 = vmatpush1.msra.mxu0 0.0
    %2064 = vmatprep.subr.mxu0 0.0
    %2065 = vmatpush1.msra.mxu0 0.0
    %2066 = vmatprep.subr.mxu0 0.0
    %2067 = vmatpush1.msra.mxu0 0.0
    %2068 = vmatprep.subr.mxu0 0.0
    %2069 = vmatpush1.msra.mxu0 0.0
    %2070 = vmatprep.subr.mxu0 0.0
    %2071 = vmatpush1.msra.mxu0 0.0
    %2072 = vmatprep.subr.mxu0 0.0
    %2073 = vmatpush1.msra.mxu0 0.0
    %2074 = vmatprep.subr.mxu0 0.0
    %2075 = vmatpush1.msra.mxu0 0.0
    %2076 = vmatprep.subr.mxu0 0.0
    %2077 = vmatpush1.msra.mxu0 0.0
    %2078 = vmatprep.subr.mxu0 0.0
    %2079 = vmatpush1.msra.mxu0 0.0
    %2080 = vmatprep.subr.mxu0 0.0
    %2081 = vmatpush1.msra.mxu0 0.0
    %2082 = vmatprep.subr.mxu0 0.0
    %2083 = vmatpush1.msra.mxu0 0.0
    %2084 = vmatprep.mubr.f32.mxu0 0.0
    %2085 = vmatmul.mubr.f32.gmra.mrb[0].mxu0 %v1960
    %v2086 = vpop.f32.mrb[0].mxu0
    %v2087 = vadd.f32 %v1812, %v2086
    %v2088 = vpop.f32.mrb[0].mxu0
    %2089 = vmatprep.mubr.f32.mxu0 0.0
    %2090 = vmatmul.mubr.f32.gmra.mrb[0].mxu0 %v1962
    %v2091 = vpop.f32.mrb[0].mxu0
    %v2092 = vadd.f32 %v1817, %v2091
    %v2093 = vpop.f32.mrb[0].mxu0
    %2094 = vmatprep.mubr.f32.mxu0 0.0
    %2095 = vmatmul.mubr.f32.gmra.mrb[0].mxu0 %v1964
    %v2096 = vpop.f32.mrb[0].mxu0
    %v2097 = vadd.f32 %v1822, %v2096
    %v2098 = vpop.f32.mrb[0].mxu0
    %2099 = vmatprep.mubr.f32.mxu0 0.0
    %2100 = vmatmul.mubr.f32.gmra.mrb[0].mxu0 %v1966
    %v2101 = vpop.f32.mrb[0].mxu0
    %v2102 = vadd.f32 %v1827, %v2101
    %v2103 = vpop.f32.mrb[0].mxu0
    %2104 = vmatprep.mubr.f32.mxu0 0.0
    %2105 = vmatmul.mubr.f32.gmra.mrb[0].mxu0 %v1968
    %v2106 = vpop.f32.mrb[0].mxu0
    %v2107 = vadd.f32 %v1832, %v2106
    %v2108 = vpop.f32.mrb[0].mxu0
    %2109 = vmatprep.mubr.f32.mxu0 0.0
    %2110 = vmatmul.mubr.f32.gmra.mrb[0].mxu0 %v1970
    %v2111 = vpop.f32.mrb[0].mxu0
    %v2112 = vadd.f32 %v1837, %v2111
    %v2113 = vpop.f32.mrb[0].mxu0
    %2114 = vmatprep.mubr.f32.mxu0 0.0
    %2115 = vmatmul.mubr.f32.gmra.mrb[0].mxu0 %v1972
    %v2116 = vpop.f32.mrb[0].mxu0
    %v2117 = vadd.f32 %v1842, %v2116
    %v2118 = vpop.f32.mrb[0].mxu0
    %2119 = vmatprep.mubr.f32.mxu0 0.0
    %2120 = vmatmul.mubr.f32.gmra.mrb[0].mxu0 %v1974
    %v2121 = vpop.f32.mrb[0].mxu0
    %v2122 = vadd.f32 %v1847, %v2121
    %v2123 = vpop.f32.mrb[0].mxu0
    %2124 = vmatprep.mubr.f32.mxu0 0.0
    %2125 = vmatmul.mubr.f32.gmra.mrb[0].mxu0 %v1976
    %v2126 = vpop.f32.mrb[0].mxu0
    %v2127 = vadd.f32 %v1852, %v2126
    %v2128 = vpop.f32.mrb[0].mxu0
    %2129 = vmatprep.mubr.f32.mxu0 0.0
    %2130 = vmatmul.mubr.f32.gmra.mrb[0].mxu0 %v1978
    %v2131 = vpop.f32.mrb[0].mxu0
    %v2132 = vadd.f32 %v1857, %v2131
    %v2133 = vpop.f32.mrb[0].mxu0
    %2134 = vmatprep.mubr.f32.mxu0 0.0
    %2135 = vmatmul.mubr.f32.gmra.mrb[0].mxu0 %v1980
    %v2136 = vpop.f32.mrb[0].mxu0
    %v2137 = vadd.f32 %v1862, %v2136
    %v2138 = vpop.f32.mrb[0].mxu0
    %2139 = vmatprep.mubr.f32.mxu0 0.0
    %2140 = vmatmul.mubr.f32.gmra.mrb[0].mxu0 %v1982
    %v2141 = vpop.f32.mrb[0].mxu0
    %v2142 = vadd.f32 %v1867, %v2141
    %v2143 = vpop.f32.mrb[0].mxu0
    %2144 = vmatprep.mubr.f32.mxu0 0.0
    %2145 = vmatmul.mubr.f32.gmra.mrb[0].mxu0 %v1984
    %v2146 = vpop.f32.mrb[0].mxu0
    %v2147 = vadd.f32 %v1872, %v2146
    %v2148 = vpop.f32.mrb[0].mxu0
    %2149 = vmatprep.mubr.f32.mxu0 0.0
    %2150 = vmatmul.mubr.f32.gmra.mrb[0].mxu0 %v1986
    %v2151 = vpop.f32.mrb[0].mxu0
    %v2152 = vadd.f32 %v1877, %v2151
    %v2153 = vpop.f32.mrb[0].mxu0
    %2154 = vmatprep.mubr.f32.mxu0 0.0
    %2155 = vmatmul.mubr.f32.gmra.mrb[0].mxu0 %v1988
    %v2156 = vpop.f32.mrb[0].mxu0
    %v2157 = vadd.f32 %v1882, %v2156
    %v2158 = vpop.f32.mrb[0].mxu0
    %2159 = vmatprep.mubr.f32.mxu0 0.0
    %2160 = vmatmul.mubr.f32.gmra.mrb[0].mxu0 %v1990
    %v2161 = vpop.f32.mrb[0].mxu0
    %v2162 = vadd.f32 %v1887, %v2161
    %v2163 = vpop.f32.mrb[0].mxu0
    %2164 = vmatprep.mubr.f32.mxu0 0.0
    %2165 = vmatmul.mubr.f32.gmra.mrb[0].mxu0 %v1992
    %v2166 = vpop.f32.mrb[0].mxu0
    %v2167 = vadd.f32 %v1892, %v2166
    %v2168 = vpop.f32.mrb[0].mxu0
    %2169 = vmatprep.mubr.f32.mxu0 0.0
    %2170 = vmatmul.mubr.f32.gmra.mrb[0].mxu0 %v1994
    %v2171 = vpop.f32.mrb[0].mxu0
    %v2172 = vadd.f32 %v1897, %v2171
    %v2173 = vpop.f32.mrb[0].mxu0
    %2174 = vmatprep.mubr.f32.mxu0 0.0
    %2175 = vmatmul.mubr.f32.gmra.mrb[0].mxu0 %v1996
    %v2176 = vpop.f32.mrb[0].mxu0
    %v2177 = vadd.f32 %v1902, %v2176
    %v2178 = vpop.f32.mrb[0].mxu0
    %2179 = vmatprep.mubr.f32.mxu0 0.0
    %2180 = vmatmul.mubr.f32.gmra.mrb[0].mxu0 %v1998
    %v2181 = vpop.f32.mrb[0].mxu0
    %v2182 = vadd.f32 %v1907, %v2181
    %v2183 = vpop.f32.mrb[0].mxu0
    %2184 = vmatprep.mubr.f32.mxu0 0.0
    %2185 = vmatmul.mubr.f32.gmra.mrb[0].mxu0 %v2000
    %v2186 = vpop.f32.mrb[0].mxu0
    %v2187 = vadd.f32 %v1912, %v2186
    %v2188 = vpop.f32.mrb[0].mxu0
    %2189 = vmatprep.mubr.f32.mxu0 0.0
    %2190 = vmatmul.mubr.f32.gmra.mrb[0].mxu0 %v2002
    %v2191 = vpop.f32.mrb[0].mxu0
    %v2192 = vadd.f32 %v1917, %v2191
    %v2193 = vpop.f32.mrb[0].mxu0
    %2194 = vmatprep.mubr.f32.mxu0 0.0
    %2195 = vmatmul.mubr.f32.gmra.mrb[0].mxu0 %v2004
    %v2196 = vpop.f32.mrb[0].mxu0
    %v2197 = vadd.f32 %v1922, %v2196
    %v2198 = vpop.f32.mrb[0].mxu0
    %2199 = vmatprep.mubr.f32.mxu0 0.0
    %2200 = vmatmul.mubr.f32.gmra.mrb[0].mxu0 %v2006
    %v2201 = vpop.f32.mrb[0].mxu0
    %v2202 = vadd.f32 %v1927, %v2201
    %v2203 = vpop.f32.mrb[0].mxu0
    %2204 = vmatprep.mubr.f32.mxu0 0.0
    %2205 = vmatmul.mubr.f32.gmra.mrb[0].mxu0 %v2008
    %v2206 = vpop.f32.mrb[0].mxu0
    %v2207 = vadd.f32 %v1932, %v2206
    %v2208 = vpop.f32.mrb[0].mxu0
    %2209 = vmatprep.mubr.f32.mxu0 0.0
    %2210 = vmatmul.mubr.f32.gmra.mrb[0].mxu0 %v2010
    %v2211 = vpop.f32.mrb[0].mxu0
    %v2212 = vadd.f32 %v1937, %v2211
    %v2213 = vpop.f32.mrb[0].mxu0
    %2214 = vmatprep.mubr.f32.mxu0 0.0
    %2215 = vmatmul.mubr.f32.gmra.mrb[0].mxu0 %v2012
    %v2216 = vpop.f32.mrb[0].mxu0
    %v2217 = vadd.f32 %v1942, %v2216
    %v2218 = vpop.f32.mrb[0].mxu0
    %2219 = vmatprep.mubr.f32.mxu0 0.0
    %2220 = vmatmul.mubr.f32.gmra.mrb[0].mxu0 %v2014
    %v2221 = vpop.f32.mrb[0].mxu0
    %v2222 = vadd.f32 %v1947, %v2221
    %v2223 = vpop.f32.mrb[0].mxu0
    %2224 = vmatprep.mubr.f32.mxu0 0.0
    %2225 = vmatmul.mubr.f32.gmra.mrb[0].mxu0 %v2016
    %v2226 = vpop.f32.mrb[0].mxu0
    %v2227 = vadd.f32 %v1952, %v2226
    %v2228 = vpop.f32.mrb[0].mxu0
    %2229 = vmatprep.mubr.f32.mxu0 0.0
    %2230 = vmatmul.mubr.f32.gmra.mrb[0].mxu0 %v2018
    %v2231 = vpop.f32.mrb[0].mxu0
    %v2232 = vadd.f32 %v1957, %v2231
    %v2233 = vpop.f32.mrb[0].mxu0
    %2234 = vdwg.mxu0
    %s2235 = scalar_lea.vmem %s4, 32
    %v2236 = vld [vmem:[%s2235] sm:$0xff]
    %v2237 = vld [vmem:[%s2235 + $0x8] sm:$0xff]
    %vm2238 = vcmask 1045504
    %v2239 = vrot.slane %v1553, 2
    %v2240 = vrot.slane %v1554, 2
    %v2241 = vsel %vm2238, %v2239, %v2240
    %v2242 = vrot.slane %v1555, 2
    %v2243 = vsel %vm2238, %v2240, %v2242
    %v2244 = vrot.slane %v1556, 2
    %v2245 = vsel %vm2238, %v2242, %v2244
    %v2246 = vrot.slane %v1557, 2
    %v2247 = vsel %vm2238, %v2244, %v2246
    %v2248 = vrot.slane %v1558, 2
    %v2249 = vsel %vm2238, %v2246, %v2248
    %v2250 = vrot.slane %v1559, 2
    %v2251 = vsel %vm2238, %v2248, %v2250
    %v2252 = vrot.slane %v1560, 2
    %v2253 = vsel %vm2238, %v2250, %v2252
    %v2254 = vrot.slane %v1561, 2
    %v2255 = vsel %vm2238, %v2252, %v2254
    %v2256 = vrot.slane %v1562, 2
    %v2257 = vsel %vm2238, %v2254, %v2256
    %v2258 = vrot.slane %v1563, 2
    %v2259 = vsel %vm2238, %v2256, %v2258
    %v2260 = vrot.slane %v1564, 2
    %v2261 = vsel %vm2238, %v2258, %v2260
    %v2262 = vrot.slane %v1565, 2
    %v2263 = vsel %vm2238, %v2260, %v2262
    %v2264 = vrot.slane %v1566, 2
    %v2265 = vsel %vm2238, %v2262, %v2264
    %v2266 = vrot.slane %v1567, 2
    %v2267 = vsel %vm2238, %v2264, %v2266
    %v2268 = vrot.slane %v1568, 2
    %v2269 = vsel %vm2238, %v2266, %v2268
    %v2270 = vrot.slane %v1569, 2
    %v2271 = vsel %vm2238, %v2268, %v2270
    %v2272 = vrot.slane %v1570, 2
    %v2273 = vsel %vm2238, %v2270, %v2272
    %v2274 = vrot.slane %v1571, 2
    %v2275 = vsel %vm2238, %v2272, %v2274
    %v2276 = vrot.slane %v1572, 2
    %v2277 = vsel %vm2238, %v2274, %v2276
    %v2278 = vrot.slane %v1573, 2
    %v2279 = vsel %vm2238, %v2276, %v2278
    %v2280 = vrot.slane %v1574, 2
    %v2281 = vsel %vm2238, %v2278, %v2280
    %v2282 = vrot.slane %v1575, 2
    %v2283 = vsel %vm2238, %v2280, %v2282
    %v2284 = vrot.slane %v1576, 2
    %v2285 = vsel %vm2238, %v2282, %v2284
    %v2286 = vrot.slane %v1577, 2
    %v2287 = vsel %vm2238, %v2284, %v2286
    %v2288 = vrot.slane %v1578, 2
    %v2289 = vsel %vm2238, %v2286, %v2288
    %v2290 = vrot.slane %v1579, 2
    %v2291 = vsel %vm2238, %v2288, %v2290
    %v2292 = vrot.slane %v1580, 2
    %v2293 = vsel %vm2238, %v2290, %v2292
    %v2294 = vrot.slane %v1581, 2
    %v2295 = vsel %vm2238, %v2292, %v2294
    %v2296 = vrot.slane %v1582, 2
    %v2297 = vsel %vm2238, %v2294, %v2296
    %v2298 = vsel %vm1684, %v2241, 0
    %v2300 = vsel %vm1684, %v2243, 0
    %v2302 = vsel %vm1684, %v2245, 0
    %v2304 = vsel %vm1684, %v2247, 0
    %v2306 = vsel %vm1684, %v2249, 0
    %v2308 = vsel %vm1684, %v2251, 0
    %v2310 = vsel %vm1684, %v2253, 0
    %v2312 = vsel %vm1684, %v2255, 0
    %v2314 = vsel %vm1684, %v2257, 0
    %v2316 = vsel %vm1684, %v2259, 0
    %v2318 = vsel %vm1684, %v2261, 0
    %v2320 = vsel %vm1684, %v2263, 0
    %v2322 = vsel %vm1684, %v2265, 0
    %v2324 = vsel %vm1684, %v2267, 0
    %v2326 = vsel %vm1684, %v2269, 0
    %v2328 = vsel %vm1684, %v2271, 0
    %v2330 = vsel %vm1684, %v2273, 0
    %v2332 = vsel %vm1684, %v2275, 0
    %v2334 = vsel %vm1684, %v2277, 0
    %v2336 = vsel %vm1684, %v2279, 0
    %v2338 = vsel %vm1684, %v2281, 0
    %v2340 = vsel %vm1684, %v2283, 0
    %v2342 = vsel %vm1684, %v2285, 0
    %v2344 = vsel %vm1684, %v2287, 0
    %v2346 = vsel %vm1684, %v2289, 0
    %v2348 = vsel %vm1684, %v2291, 0
    %v2350 = vsel %vm1684, %v2293, 0
    %v2352 = vsel %vm1684, %v2295, 0
    %v2354 = vsel %vm1684, %v2297, 0
    %v2356 = vsel %vm1684, %v2296, 0
    %2358 = vmatprep.subr.mxu0 0.0
    %2359 = vmatpush1.msra.mxu0 %v2236
    %2360 = vmatprep.subr.mxu0 0.0
    %2361 = vmatpush1.msra.mxu0 %v2237
    %2362 = vmatprep.subr.mxu0 0.0
    %2363 = vmatpush1.msra.mxu0 0.0
    %2364 = vmatprep.subr.mxu0 0.0
    %2365 = vmatpush1.msra.mxu0 0.0
    %2366 = vmatprep.subr.mxu0 0.0
    %2367 = vmatpush1.msra.mxu0 0.0
    %2368 = vmatprep.subr.mxu0 0.0
    %2369 = vmatpush1.msra.mxu0 0.0
    %2370 = vmatprep.subr.mxu0 0.0
    %2371 = vmatpush1.msra.mxu0 0.0
    %2372 = vmatprep.subr.mxu0 0.0
    %2373 = vmatpush1.msra.mxu0 0.0
    %2374 = vmatprep.subr.mxu0 0.0
    %2375 = vmatpush1.msra.mxu0 0.0
    %2376 = vmatprep.subr.mxu0 0.0
    %2377 = vmatpush1.msra.mxu0 0.0
    %2378 = vmatprep.subr.mxu0 0.0
    %2379 = vmatpush1.msra.mxu0 0.0
    %2380 = vmatprep.subr.mxu0 0.0
    %2381 = vmatpush1.msra.mxu0 0.0
    %2382 = vmatprep.subr.mxu0 0.0
    %2383 = vmatpush1.msra.mxu0 0.0
    %2384 = vmatprep.subr.mxu0 0.0
    %2385 = vmatpush1.msra.mxu0 0.0
    %2386 = vmatprep.subr.mxu0 0.0
    %2387 = vmatpush1.msra.mxu0 0.0
    %2388 = vmatprep.subr.mxu0 0.0
    %2389 = vmatpush1.msra.mxu0 0.0
    %2390 = vmatprep.subr.mxu0 0.0
    %2391 = vmatpush1.msra.mxu0 0.0
    %2392 = vmatprep.subr.mxu0 0.0
    %2393 = vmatpush1.msra.mxu0 0.0
    %2394 = vmatprep.subr.mxu0 0.0
    %2395 = vmatpush1.msra.mxu0 0.0
    %2396 = vmatprep.subr.mxu0 0.0
    %2397 = vmatpush1.msra.mxu0 0.0
    %2398 = vmatprep.subr.mxu0 0.0
    %2399 = vmatpush1.msra.mxu0 0.0
    %2400 = vmatprep.subr.mxu0 0.0
    %2401 = vmatpush1.msra.mxu0 0.0
    %2402 = vmatprep.subr.mxu0 0.0
    %2403 = vmatpush1.msra.mxu0 0.0
    %2404 = vmatprep.subr.mxu0 0.0
    %2405 = vmatpush1.msra.mxu0 0.0
    %2406 = vmatprep.subr.mxu0 0.0
    %2407 = vmatpush1.msra.mxu0 0.0
    %2408 = vmatprep.subr.mxu0 0.0
    %2409 = vmatpush1.msra.mxu0 0.0
    %2410 = vmatprep.subr.mxu0 0.0
    %2411 = vmatpush1.msra.mxu0 0.0
    %2412 = vmatprep.subr.mxu0 0.0
    %2413 = vmatpush1.msra.mxu0 0.0
    %2414 = vmatprep.subr.mxu0 0.0
    %2415 = vmatpush1.msra.mxu0 0.0
    %2416 = vmatprep.subr.mxu0 0.0
    %2417 = vmatpush1.msra.mxu0 0.0
    %2418 = vmatprep.subr.mxu0 0.0
    %2419 = vmatpush1.msra.mxu0 0.0
    %2420 = vmatprep.subr.mxu0 0.0
    %2421 = vmatpush1.msra.mxu0 0.0
    %2422 = vmatprep.mubr.f32.mxu0 0.0
    %2423 = vmatmul.mubr.f32.gmra.mrb[0].mxu0 %v2298
    %v2424 = vpop.f32.mrb[0].mxu0
    %v2425 = vadd.f32 0.0, %v2424
    %v2426 = vpop.f32.mrb[0].mxu0
    %2427 = vmatprep.mubr.f32.mxu0 0.0
    %2428 = vmatmul.mubr.f32.gmra.mrb[0].mxu0 %v2300
    %v2429 = vpop.f32.mrb[0].mxu0
    %v2430 = vadd.f32 0.0, %v2429
    %v2431 = vpop.f32.mrb[0].mxu0
    %2432 = vmatprep.mubr.f32.mxu0 0.0
    %2433 = vmatmul.mubr.f32.gmra.mrb[0].mxu0 %v2302
    %v2434 = vpop.f32.mrb[0].mxu0
    %v2435 = vadd.f32 0.0, %v2434
    %v2436 = vpop.f32.mrb[0].mxu0
    %2437 = vmatprep.mubr.f32.mxu0 0.0
    %2438 = vmatmul.mubr.f32.gmra.mrb[0].mxu0 %v2304
    %v2439 = vpop.f32.mrb[0].mxu0
    %v2440 = vadd.f32 0.0, %v2439
    %v2441 = vpop.f32.mrb[0].mxu0
    %2442 = vmatprep.mubr.f32.mxu0 0.0
    %2443 = vmatmul.mubr.f32.gmra.mrb[0].mxu0 %v2306
    %v2444 = vpop.f32.mrb[0].mxu0
    %v2445 = vadd.f32 0.0, %v2444
    %v2446 = vpop.f32.mrb[0].mxu0
    %2447 = vmatprep.mubr.f32.mxu0 0.0
    %2448 = vmatmul.mubr.f32.gmra.mrb[0].mxu0 %v2308
    %v2449 = vpop.f32.mrb[0].mxu0
    %v2450 = vadd.f32 0.0, %v2449
    %v2451 = vpop.f32.mrb[0].mxu0
    %2452 = vmatprep.mubr.f32.mxu0 0.0
    %2453 = vmatmul.mubr.f32.gmra.mrb[0].mxu0 %v2310
    %v2454 = vpop.f32.mrb[0].mxu0
    %v2455 = vadd.f32 0.0, %v2454
    %v2456 = vpop.f32.mrb[0].mxu0
    %2457 = vmatprep.mubr.f32.mxu0 0.0
    %2458 = vmatmul.mubr.f32.gmra.mrb[0].mxu0 %v2312
    %v2459 = vpop.f32.mrb[0].mxu0
    %v2460 = vadd.f32 0.0, %v2459
    %v2461 = vpop.f32.mrb[0].mxu0
    %2462 = vmatprep.mubr.f32.mxu0 0.0
    %2463 = vmatmul.mubr.f32.gmra.mrb[0].mxu0 %v2314
    %v2464 = vpop.f32.mrb[0].mxu0
    %v2465 = vadd.f32 0.0, %v2464
    %v2466 = vpop.f32.mrb[0].mxu0
    %2467 = vmatprep.mubr.f32.mxu0 0.0
    %2468 = vmatmul.mubr.f32.gmra.mrb[0].mxu0 %v2316
    %v2469 = vpop.f32.mrb[0].mxu0
    %v2470 = vadd.f32 0.0, %v2469
    %v2471 = vpop.f32.mrb[0].mxu0
    %2472 = vmatprep.mubr.f32.mxu0 0.0
    %2473 = vmatmul.mubr.f32.gmra.mrb[0].mxu0 %v2318
    %v2474 = vpop.f32.mrb[0].mxu0
    %v2475 = vadd.f32 0.0, %v2474
    %v2476 = vpop.f32.mrb[0].mxu0
    %2477 = vmatprep.mubr.f32.mxu0 0.0
    %2478 = vmatmul.mubr.f32.gmra.mrb[0].mxu0 %v2320
    %v2479 = vpop.f32.mrb[0].mxu0
    %v2480 = vadd.f32 0.0, %v2479
    %v2481 = vpop.f32.mrb[0].mxu0
    %2482 = vmatprep.mubr.f32.mxu0 0.0
    %2483 = vmatmul.mubr.f32.gmra.mrb[0].mxu0 %v2322
    %v2484 = vpop.f32.mrb[0].mxu0
    %v2485 = vadd.f32 0.0, %v2484
    %v2486 = vpop.f32.mrb[0].mxu0
    %2487 = vmatprep.mubr.f32.mxu0 0.0
    %2488 = vmatmul.mubr.f32.gmra.mrb[0].mxu0 %v2324
    %v2489 = vpop.f32.mrb[0].mxu0
    %v2490 = vadd.f32 0.0, %v2489
    %v2491 = vpop.f32.mrb[0].mxu0
    %2492 = vmatprep.mubr.f32.mxu0 0.0
    %2493 = vmatmul.mubr.f32.gmra.mrb[0].mxu0 %v2326
    %v2494 = vpop.f32.mrb[0].mxu0
    %v2495 = vadd.f32 0.0, %v2494
    %v2496 = vpop.f32.mrb[0].mxu0
    %2497 = vmatprep.mubr.f32.mxu0 0.0
    %2498 = vmatmul.mubr.f32.gmra.mrb[0].mxu0 %v2328
    %v2499 = vpop.f32.mrb[0].mxu0
    %v2500 = vadd.f32 0.0, %v2499
    %v2501 = vpop.f32.mrb[0].mxu0
    %2502 = vmatprep.mubr.f32.mxu0 0.0
    %2503 = vmatmul.mubr.f32.gmra.mrb[0].mxu0 %v2330
    %v2504 = vpop.f32.mrb[0].mxu0
    %v2505 = vadd.f32 0.0, %v2504
    %v2506 = vpop.f32.mrb[0].mxu0
    %2507 = vmatprep.mubr.f32.mxu0 0.0
    %2508 = vmatmul.mubr.f32.gmra.mrb[0].mxu0 %v2332
    %v2509 = vpop.f32.mrb[0].mxu0
    %v2510 = vadd.f32 0.0, %v2509
    %v2511 = vpop.f32.mrb[0].mxu0
    %2512 = vmatprep.mubr.f32.mxu0 0.0
    %2513 = vmatmul.mubr.f32.gmra.mrb[0].mxu0 %v2334
    %v2514 = vpop.f32.mrb[0].mxu0
    %v2515 = vadd.f32 0.0, %v2514
    %v2516 = vpop.f32.mrb[0].mxu0
    %2517 = vmatprep.mubr.f32.mxu0 0.0
    %2518 = vmatmul.mubr.f32.gmra.mrb[0].mxu0 %v2336
    %v2519 = vpop.f32.mrb[0].mxu0
    %v2520 = vadd.f32 0.0, %v2519
    %v2521 = vpop.f32.mrb[0].mxu0
    %2522 = vmatprep.mubr.f32.mxu0 0.0
    %2523 = vmatmul.mubr.f32.gmra.mrb[0].mxu0 %v2338
    %v2524 = vpop.f32.mrb[0].mxu0
    %v2525 = vadd.f32 0.0, %v2524
    %v2526 = vpop.f32.mrb[0].mxu0
    %2527 = vmatprep.mubr.f32.mxu0 0.0
    %2528 = vmatmul.mubr.f32.gmra.mrb[0].mxu0 %v2340
    %v2529 = vpop.f32.mrb[0].mxu0
    %v2530 = vadd.f32 0.0, %v2529
    %v2531 = vpop.f32.mrb[0].mxu0
    %2532 = vmatprep.mubr.f32.mxu0 0.0
    %2533 = vmatmul.mubr.f32.gmra.mrb[0].mxu0 %v2342
    %v2534 = vpop.f32.mrb[0].mxu0
    %v2535 = vadd.f32 0.0, %v2534
    %v2536 = vpop.f32.mrb[0].mxu0
    %2537 = vmatprep.mubr.f32.mxu0 0.0
    %2538 = vmatmul.mubr.f32.gmra.mrb[0].mxu0 %v2344
    %v2539 = vpop.f32.mrb[0].mxu0
    %v2540 = vadd.f32 0.0, %v2539
    %v2541 = vpop.f32.mrb[0].mxu0
    %2542 = vmatprep.mubr.f32.mxu0 0.0
    %2543 = vmatmul.mubr.f32.gmra.mrb[0].mxu0 %v2346
    %v2544 = vpop.f32.mrb[0].mxu0
    %v2545 = vadd.f32 0.0, %v2544
    %v2546 = vpop.f32.mrb[0].mxu0
    %2547 = vmatprep.mubr.f32.mxu0 0.0
    %2548 = vmatmul.mubr.f32.gmra.mrb[0].mxu0 %v2348
    %v2549 = vpop.f32.mrb[0].mxu0
    %v2550 = vadd.f32 0.0, %v2549
    %v2551 = vpop.f32.mrb[0].mxu0
    %2552 = vmatprep.mubr.f32.mxu0 0.0
    %2553 = vmatmul.mubr.f32.gmra.mrb[0].mxu0 %v2350
    %v2554 = vpop.f32.mrb[0].mxu0
    %v2555 = vadd.f32 0.0, %v2554
    %v2556 = vpop.f32.mrb[0].mxu0
    %2557 = vmatprep.mubr.f32.mxu0 0.0
    %2558 = vmatmul.mubr.f32.gmra.mrb[0].mxu0 %v2352
    %v2559 = vpop.f32.mrb[0].mxu0
    %v2560 = vadd.f32 0.0, %v2559
    %v2561 = vpop.f32.mrb[0].mxu0
    %2562 = vmatprep.mubr.f32.mxu0 0.0
    %2563 = vmatmul.mubr.f32.gmra.mrb[0].mxu0 %v2354
    %v2564 = vpop.f32.mrb[0].mxu0
    %v2565 = vadd.f32 0.0, %v2564
    %v2566 = vpop.f32.mrb[0].mxu0
    %2567 = vmatprep.mubr.f32.mxu0 0.0
    %2568 = vmatmul.mubr.f32.gmra.mrb[0].mxu0 %v2356
    %v2569 = vpop.f32.mrb[0].mxu0
    %v2570 = vadd.f32 0.0, %v2569
    %v2571 = vpop.f32.mrb[0].mxu0
    %2572 = vdwg.mxu0
    %v2573 = vadd.f32 %v2087, %v2425
    %v2574 = vadd.f32 %v2092, %v2430
    %v2575 = vadd.f32 %v2097, %v2435
    %v2576 = vadd.f32 %v2102, %v2440
    %v2577 = vadd.f32 %v2107, %v2445
    %v2578 = vadd.f32 %v2112, %v2450
    %v2579 = vadd.f32 %v2117, %v2455
    %v2580 = vadd.f32 %v2122, %v2460
    %v2581 = vadd.f32 %v2127, %v2465
    %v2582 = vadd.f32 %v2132, %v2470
    %v2583 = vadd.f32 %v2137, %v2475
    %v2584 = vadd.f32 %v2142, %v2480
    %v2585 = vadd.f32 %v2147, %v2485
    %v2586 = vadd.f32 %v2152, %v2490
    %v2587 = vadd.f32 %v2157, %v2495
    %v2588 = vadd.f32 %v2162, %v2500
    %v2589 = vadd.f32 %v2167, %v2505
    %v2590 = vadd.f32 %v2172, %v2510
    %v2591 = vadd.f32 %v2177, %v2515
    %v2592 = vadd.f32 %v2182, %v2520
    %v2593 = vadd.f32 %v2187, %v2525
    %v2594 = vadd.f32 %v2192, %v2530
    %v2595 = vadd.f32 %v2197, %v2535
    %v2596 = vadd.f32 %v2202, %v2540
    %v2597 = vadd.f32 %v2207, %v2545
    %v2598 = vadd.f32 %v2212, %v2550
    %v2599 = vadd.f32 %v2217, %v2555
    %v2600 = vadd.f32 %v2222, %v2560
    %v2601 = vadd.f32 %v2227, %v2565
    %v2602 = vadd.f32 %v2232, %v2570
    %s2603 = scalar_lea.vmem %s4, 48
    %v2604 = vld [vmem:[%s2603] sm:$0xff]
    %v2605 = vld [vmem:[%s2603 + $0x8] sm:$0xff]
    %vm2606 = vcmask 1044480
    %v2607 = vrot.slane %v1553, 3
    %v2608 = vrot.slane %v1554, 3
    %v2609 = vsel %vm2606, %v2607, %v2608
    %v2610 = vrot.slane %v1555, 3
    %v2611 = vsel %vm2606, %v2608, %v2610
    %v2612 = vrot.slane %v1556, 3
    %v2613 = vsel %vm2606, %v2610, %v2612
    %v2614 = vrot.slane %v1557, 3
    %v2615 = vsel %vm2606, %v2612, %v2614
    %v2616 = vrot.slane %v1558, 3
    %v2617 = vsel %vm2606, %v2614, %v2616
    %v2618 = vrot.slane %v1559, 3
    %v2619 = vsel %vm2606, %v2616, %v2618
    %v2620 = vrot.slane %v1560, 3
    %v2621 = vsel %vm2606, %v2618, %v2620
    %v2622 = vrot.slane %v1561, 3
    %v2623 = vsel %vm2606, %v2620, %v2622
    %v2624 = vrot.slane %v1562, 3
    %v2625 = vsel %vm2606, %v2622, %v2624
    %v2626 = vrot.slane %v1563, 3
    %v2627 = vsel %vm2606, %v2624, %v2626
    %v2628 = vrot.slane %v1564, 3
    %v2629 = vsel %vm2606, %v2626, %v2628
    %v2630 = vrot.slane %v1565, 3
    %v2631 = vsel %vm2606, %v2628, %v2630
    %v2632 = vrot.slane %v1566, 3
    %v2633 = vsel %vm2606, %v2630, %v2632
    %v2634 = vrot.slane %v1567, 3
    %v2635 = vsel %vm2606, %v2632, %v2634
    %v2636 = vrot.slane %v1568, 3
    %v2637 = vsel %vm2606, %v2634, %v2636
    %v2638 = vrot.slane %v1569, 3
    %v2639 = vsel %vm2606, %v2636, %v2638
    %v2640 = vrot.slane %v1570, 3
    %v2641 = vsel %vm2606, %v2638, %v2640
    %v2642 = vrot.slane %v1571, 3
    %v2643 = vsel %vm2606, %v2640, %v2642
    %v2644 = vrot.slane %v1572, 3
    %v2645 = vsel %vm2606, %v2642, %v2644
    %v2646 = vrot.slane %v1573, 3
    %v2647 = vsel %vm2606, %v2644, %v2646
    %v2648 = vrot.slane %v1574, 3
    %v2649 = vsel %vm2606, %v2646, %v2648
    %v2650 = vrot.slane %v1575, 3
    %v2651 = vsel %vm2606, %v2648, %v2650
    %v2652 = vrot.slane %v1576, 3
    %v2653 = vsel %vm2606, %v2650, %v2652
    %v2654 = vrot.slane %v1577, 3
    %v2655 = vsel %vm2606, %v2652, %v2654
    %v2656 = vrot.slane %v1578, 3
    %v2657 = vsel %vm2606, %v2654, %v2656
    %v2658 = vrot.slane %v1579, 3
    %v2659 = vsel %vm2606, %v2656, %v2658
    %v2660 = vrot.slane %v1580, 3
    %v2661 = vsel %vm2606, %v2658, %v2660
    %v2662 = vrot.slane %v1581, 3
    %v2663 = vsel %vm2606, %v2660, %v2662
    %v2664 = vrot.slane %v1582, 3
    %v2665 = vsel %vm2606, %v2662, %v2664
    %v2666 = vsel %vm1684, %v2609, 0
    %v2668 = vsel %vm1684, %v2611, 0
    %v2670 = vsel %vm1684, %v2613, 0
    %v2672 = vsel %vm1684, %v2615, 0
    %v2674 = vsel %vm1684, %v2617, 0
    %v2676 = vsel %vm1684, %v2619, 0
    %v2678 = vsel %vm1684, %v2621, 0
    %v2680 = vsel %vm1684, %v2623, 0
    %v2682 = vsel %vm1684, %v2625, 0
    %v2684 = vsel %vm1684, %v2627, 0
    %v2686 = vsel %vm1684, %v2629, 0
    %v2688 = vsel %vm1684, %v2631, 0
    %v2690 = vsel %vm1684, %v2633, 0
    %v2692 = vsel %vm1684, %v2635, 0
    %v2694 = vsel %vm1684, %v2637, 0
    %v2696 = vsel %vm1684, %v2639, 0
    %v2698 = vsel %vm1684, %v2641, 0
    %v2700 = vsel %vm1684, %v2643, 0
    %v2702 = vsel %vm1684, %v2645, 0
    %v2704 = vsel %vm1684, %v2647, 0
    %v2706 = vsel %vm1684, %v2649, 0
    %v2708 = vsel %vm1684, %v2651, 0
    %v2710 = vsel %vm1684, %v2653, 0
    %v2712 = vsel %vm1684, %v2655, 0
    %v2714 = vsel %vm1684, %v2657, 0
    %v2716 = vsel %vm1684, %v2659, 0
    %v2718 = vsel %vm1684, %v2661, 0
    %v2720 = vsel %vm1684, %v2663, 0
    %v2722 = vsel %vm1684, %v2665, 0
    %v2724 = vsel %vm1684, %v2664, 0
    %2726 = vmatprep.subr.mxu0 0.0
    %2727 = vmatpush1.msra.mxu0 %v2604
    %2728 = vmatprep.subr.mxu0 0.0
    %2729 = vmatpush1.msra.mxu0 %v2605
    %2730 = vmatprep.subr.mxu0 0.0
    %2731 = vmatpush1.msra.mxu0 0.0
    %2732 = vmatprep.subr.mxu0 0.0
    %2733 = vmatpush1.msra.mxu0 0.0
    %2734 = vmatprep.subr.mxu0 0.0
    %2735 = vmatpush1.msra.mxu0 0.0
    %2736 = vmatprep.subr.mxu0 0.0
    %2737 = vmatpush1.msra.mxu0 0.0
    %2738 = vmatprep.subr.mxu0 0.0
    %2739 = vmatpush1.msra.mxu0 0.0
    %2740 = vmatprep.subr.mxu0 0.0
    %2741 = vmatpush1.msra.mxu0 0.0
    %2742 = vmatprep.subr.mxu0 0.0
    %2743 = vmatpush1.msra.mxu0 0.0
    %2744 = vmatprep.subr.mxu0 0.0
    %2745 = vmatpush1.msra.mxu0 0.0
    %2746 = vmatprep.subr.mxu0 0.0
    %2747 = vmatpush1.msra.mxu0 0.0
    %2748 = vmatprep.subr.mxu0 0.0
    %2749 = vmatpush1.msra.mxu0 0.0
    %2750 = vmatprep.subr.mxu0 0.0
    %2751 = vmatpush1.msra.mxu0 0.0
    %2752 = vmatprep.subr.mxu0 0.0
    %2753 = vmatpush1.msra.mxu0 0.0
    %2754 = vmatprep.subr.mxu0 0.0
    %2755 = vmatpush1.msra.mxu0 0.0
    %2756 = vmatprep.subr.mxu0 0.0
    %2757 = vmatpush1.msra.mxu0 0.0
    %2758 = vmatprep.subr.mxu0 0.0
    %2759 = vmatpush1.msra.mxu0 0.0
    %2760 = vmatprep.subr.mxu0 0.0
    %2761 = vmatpush1.msra.mxu0 0.0
    %2762 = vmatprep.subr.mxu0 0.0
    %2763 = vmatpush1.msra.mxu0 0.0
    %2764 = vmatprep.subr.mxu0 0.0
    %2765 = vmatpush1.msra.mxu0 0.0
    %2766 = vmatprep.subr.mxu0 0.0
    %2767 = vmatpush1.msra.mxu0 0.0
    %2768 = vmatprep.subr.mxu0 0.0
    %2769 = vmatpush1.msra.mxu0 0.0
    %2770 = vmatprep.subr.mxu0 0.0
    %2771 = vmatpush1.msra.mxu0 0.0
    %2772 = vmatprep.subr.mxu0 0.0
    %2773 = vmatpush1.msra.mxu0 0.0
    %2774 = vmatprep.subr.mxu0 0.0
    %2775 = vmatpush1.msra.mxu0 0.0
    %2776 = vmatprep.subr.mxu0 0.0
    %2777 = vmatpush1.msra.mxu0 0.0
    %2778 = vmatprep.subr.mxu0 0.0
    %2779 = vmatpush1.msra.mxu0 0.0
    %2780 = vmatprep.subr.mxu0 0.0
    %2781 = vmatpush1.msra.mxu0 0.0
    %2782 = vmatprep.subr.mxu0 0.0
    %2783 = vmatpush1.msra.mxu0 0.0
    %2784 = vmatprep.subr.mxu0 0.0
    %2785 = vmatpush1.msra.mxu0 0.0
    %2786 = vmatprep.subr.mxu0 0.0
    %2787 = vmatpush1.msra.mxu0 0.0
    %2788 = vmatprep.subr.mxu0 0.0
    %2789 = vmatpush1.msra.mxu0 0.0
    %2790 = vmatprep.mubr.f32.mxu0 0.0
    %2791 = vmatmul.mubr.f32.gmra.mrb[0].mxu0 %v2666
    %v2792 = vpop.f32.mrb[0].mxu0
    %v2793 = vadd.f32 0.0, %v2792
    %v2794 = vpop.f32.mrb[0].mxu0
    %2795 = vmatprep.mubr.f32.mxu0 0.0
    %2796 = vmatmul.mubr.f32.gmra.mrb[0].mxu0 %v2668
    %v2797 = vpop.f32.mrb[0].mxu0
    %v2798 = vadd.f32 0.0, %v2797
    %v2799 = vpop.f32.mrb[0].mxu0
    %2800 = vmatprep.mubr.f32.mxu0 0.0
    %2801 = vmatmul.mubr.f32.gmra.mrb[0].mxu0 %v2670
    %v2802 = vpop.f32.mrb[0].mxu0
    %v2803 = vadd.f32 0.0, %v2802
    %v2804 = vpop.f32.mrb[0].mxu0
    %2805 = vmatprep.mubr.f32.mxu0 0.0
    %2806 = vmatmul.mubr.f32.gmra.mrb[0].mxu0 %v2672
    %v2807 = vpop.f32.mrb[0].mxu0
    %v2808 = vadd.f32 0.0, %v2807
    %v2809 = vpop.f32.mrb[0].mxu0
    %2810 = vmatprep.mubr.f32.mxu0 0.0
    %2811 = vmatmul.mubr.f32.gmra.mrb[0].mxu0 %v2674
    %v2812 = vpop.f32.mrb[0].mxu0
    %v2813 = vadd.f32 0.0, %v2812
    %v2814 = vpop.f32.mrb[0].mxu0
    %2815 = vmatprep.mubr.f32.mxu0 0.0
    %2816 = vmatmul.mubr.f32.gmra.mrb[0].mxu0 %v2676
    %v2817 = vpop.f32.mrb[0].mxu0
    %v2818 = vadd.f32 0.0, %v2817
    %v2819 = vpop.f32.mrb[0].mxu0
    %2820 = vmatprep.mubr.f32.mxu0 0.0
    %2821 = vmatmul.mubr.f32.gmra.mrb[0].mxu0 %v2678
    %v2822 = vpop.f32.mrb[0].mxu0
    %v2823 = vadd.f32 0.0, %v2822
    %v2824 = vpop.f32.mrb[0].mxu0
    %2825 = vmatprep.mubr.f32.mxu0 0.0
    %2826 = vmatmul.mubr.f32.gmra.mrb[0].mxu0 %v2680
    %v2827 = vpop.f32.mrb[0].mxu0
    %v2828 = vadd.f32 0.0, %v2827
    %v2829 = vpop.f32.mrb[0].mxu0
    %2830 = vmatprep.mubr.f32.mxu0 0.0
    %2831 = vmatmul.mubr.f32.gmra.mrb[0].mxu0 %v2682
    %v2832 = vpop.f32.mrb[0].mxu0
    %v2833 = vadd.f32 0.0, %v2832
    %v2834 = vpop.f32.mrb[0].mxu0
    %2835 = vmatprep.mubr.f32.mxu0 0.0
    %2836 = vmatmul.mubr.f32.gmra.mrb[0].mxu0 %v2684
    %v2837 = vpop.f32.mrb[0].mxu0
    %v2838 = vadd.f32 0.0, %v2837
    %v2839 = vpop.f32.mrb[0].mxu0
    %2840 = vmatprep.mubr.f32.mxu0 0.0
    %2841 = vmatmul.mubr.f32.gmra.mrb[0].mxu0 %v2686
    %v2842 = vpop.f32.mrb[0].mxu0
    %v2843 = vadd.f32 0.0, %v2842
    %v2844 = vpop.f32.mrb[0].mxu0
    %2845 = vmatprep.mubr.f32.mxu0 0.0
    %2846 = vmatmul.mubr.f32.gmra.mrb[0].mxu0 %v2688
    %v2847 = vpop.f32.mrb[0].mxu0
    %v2848 = vadd.f32 0.0, %v2847
    %v2849 = vpop.f32.mrb[0].mxu0
    %2850 = vmatprep.mubr.f32.mxu0 0.0
    %2851 = vmatmul.mubr.f32.gmra.mrb[0].mxu0 %v2690
    %v2852 = vpop.f32.mrb[0].mxu0
    %v2853 = vadd.f32 0.0, %v2852
    %v2854 = vpop.f32.mrb[0].mxu0
    %2855 = vmatprep.mubr.f32.mxu0 0.0
    %2856 = vmatmul.mubr.f32.gmra.mrb[0].mxu0 %v2692
    %v2857 = vpop.f32.mrb[0].mxu0
    %v2858 = vadd.f32 0.0, %v2857
    %v2859 = vpop.f32.mrb[0].mxu0
    %2860 = vmatprep.mubr.f32.mxu0 0.0
    %2861 = vmatmul.mubr.f32.gmra.mrb[0].mxu0 %v2694
    %v2862 = vpop.f32.mrb[0].mxu0
    %v2863 = vadd.f32 0.0, %v2862
    %v2864 = vpop.f32.mrb[0].mxu0
    %2865 = vmatprep.mubr.f32.mxu0 0.0
    %2866 = vmatmul.mubr.f32.gmra.mrb[0].mxu0 %v2696
    %v2867 = vpop.f32.mrb[0].mxu0
    %v2868 = vadd.f32 0.0, %v2867
    %v2869 = vpop.f32.mrb[0].mxu0
    %2870 = vmatprep.mubr.f32.mxu0 0.0
    %2871 = vmatmul.mubr.f32.gmra.mrb[0].mxu0 %v2698
    %v2872 = vpop.f32.mrb[0].mxu0
    %v2873 = vadd.f32 0.0, %v2872
    %v2874 = vpop.f32.mrb[0].mxu0
    %2875 = vmatprep.mubr.f32.mxu0 0.0
    %2876 = vmatmul.mubr.f32.gmra.mrb[0].mxu0 %v2700
    %v2877 = vpop.f32.mrb[0].mxu0
    %v2878 = vadd.f32 0.0, %v2877
    %v2879 = vpop.f32.mrb[0].mxu0
    %2880 = vmatprep.mubr.f32.mxu0 0.0
    %2881 = vmatmul.mubr.f32.gmra.mrb[0].mxu0 %v2702
    %v2882 = vpop.f32.mrb[0].mxu0
    %v2883 = vadd.f32 0.0, %v2882
    %v2884 = vpop.f32.mrb[0].mxu0
    %2885 = vmatprep.mubr.f32.mxu0 0.0
    %2886 = vmatmul.mubr.f32.gmra.mrb[0].mxu0 %v2704
    %v2887 = vpop.f32.mrb[0].mxu0
    %v2888 = vadd.f32 0.0, %v2887
    %v2889 = vpop.f32.mrb[0].mxu0
    %2890 = vmatprep.mubr.f32.mxu0 0.0
    %2891 = vmatmul.mubr.f32.gmra.mrb[0].mxu0 %v2706
    %v2892 = vpop.f32.mrb[0].mxu0
    %v2893 = vadd.f32 0.0, %v2892
    %v2894 = vpop.f32.mrb[0].mxu0
    %2895 = vmatprep.mubr.f32.mxu0 0.0
    %2896 = vmatmul.mubr.f32.gmra.mrb[0].mxu0 %v2708
    %v2897 = vpop.f32.mrb[0].mxu0
    %v2898 = vadd.f32 0.0, %v2897
    %v2899 = vpop.f32.mrb[0].mxu0
    %2900 = vmatprep.mubr.f32.mxu0 0.0
    %2901 = vmatmul.mubr.f32.gmra.mrb[0].mxu0 %v2710
    %v2902 = vpop.f32.mrb[0].mxu0
    %v2903 = vadd.f32 0.0, %v2902
    %v2904 = vpop.f32.mrb[0].mxu0
    %2905 = vmatprep.mubr.f32.mxu0 0.0
    %2906 = vmatmul.mubr.f32.gmra.mrb[0].mxu0 %v2712
    %v2907 = vpop.f32.mrb[0].mxu0
    %v2908 = vadd.f32 0.0, %v2907
    %v2909 = vpop.f32.mrb[0].mxu0
    %2910 = vmatprep.mubr.f32.mxu0 0.0
    %2911 = vmatmul.mubr.f32.gmra.mrb[0].mxu0 %v2714
    %v2912 = vpop.f32.mrb[0].mxu0
    %v2913 = vadd.f32 0.0, %v2912
    %v2914 = vpop.f32.mrb[0].mxu0
    %2915 = vmatprep.mubr.f32.mxu0 0.0
    %2916 = vmatmul.mubr.f32.gmra.mrb[0].mxu0 %v2716
    %v2917 = vpop.f32.mrb[0].mxu0
    %v2918 = vadd.f32 0.0, %v2917
    %v2919 = vpop.f32.mrb[0].mxu0
    %2920 = vmatprep.mubr.f32.mxu0 0.0
    %2921 = vmatmul.mubr.f32.gmra.mrb[0].mxu0 %v2718
    %v2922 = vpop.f32.mrb[0].mxu0
    %v2923 = vadd.f32 0.0, %v2922
    %v2924 = vpop.f32.mrb[0].mxu0
    %2925 = vmatprep.mubr.f32.mxu0 0.0
    %2926 = vmatmul.mubr.f32.gmra.mrb[0].mxu0 %v2720
    %v2927 = vpop.f32.mrb[0].mxu0
    %v2928 = vadd.f32 0.0, %v2927
    %v2929 = vpop.f32.mrb[0].mxu0
    %2930 = vmatprep.mubr.f32.mxu0 0.0
    %2931 = vmatmul.mubr.f32.gmra.mrb[0].mxu0 %v2722
    %v2932 = vpop.f32.mrb[0].mxu0
    %v2933 = vadd.f32 0.0, %v2932
    %v2934 = vpop.f32.mrb[0].mxu0
    %2935 = vmatprep.mubr.f32.mxu0 0.0
    %2936 = vmatmul.mubr.f32.gmra.mrb[0].mxu0 %v2724
    %v2937 = vpop.f32.mrb[0].mxu0
    %v2938 = vadd.f32 0.0, %v2937
    %v2939 = vpop.f32.mrb[0].mxu0
    %2940 = vdwg.mxu0
    %v2941 = vadd.f32 %v2573, %v2793
    %v2942 = vadd.f32 %v2574, %v2798
    %v2943 = vadd.f32 %v2575, %v2803
    %v2944 = vadd.f32 %v2576, %v2808
    %v2945 = vadd.f32 %v2577, %v2813
    %v2946 = vadd.f32 %v2578, %v2818
    %v2947 = vadd.f32 %v2579, %v2823
    %v2948 = vadd.f32 %v2580, %v2828
    %v2949 = vadd.f32 %v2581, %v2833
    %v2950 = vadd.f32 %v2582, %v2838
    %v2951 = vadd.f32 %v2583, %v2843
    %v2952 = vadd.f32 %v2584, %v2848
    %v2953 = vadd.f32 %v2585, %v2853
    %v2954 = vadd.f32 %v2586, %v2858
    %v2955 = vadd.f32 %v2587, %v2863
    %v2956 = vadd.f32 %v2588, %v2868
    %v2957 = vadd.f32 %v2589, %v2873
    %v2958 = vadd.f32 %v2590, %v2878
    %v2959 = vadd.f32 %v2591, %v2883
    %v2960 = vadd.f32 %v2592, %v2888
    %v2961 = vadd.f32 %v2593, %v2893
    %v2962 = vadd.f32 %v2594, %v2898
    %v2963 = vadd.f32 %v2595, %v2903
    %v2964 = vadd.f32 %v2596, %v2908
    %v2965 = vadd.f32 %v2597, %v2913
    %v2966 = vadd.f32 %v2598, %v2918
    %v2967 = vadd.f32 %v2599, %v2923
    %v2968 = vadd.f32 %v2600, %v2928
    %v2969 = vadd.f32 %v2601, %v2933
    %v2970 = vadd.f32 %v2602, %v2938
    %s2971 = scalar_lea.vmem %s4, 64
    %v2972 = vld [vmem:[%s2971] sm:$0xff]
    %v2973 = vld [vmem:[%s2971 + $0x8] sm:$0xff]
    %vm2974 = vcmask 1043456
    %v2975 = vrot.slane %v1553, 4
    %v2976 = vrot.slane %v1554, 4
    %v2977 = vsel %vm2974, %v2975, %v2976
    %v2978 = vrot.slane %v1555, 4
    %v2979 = vsel %vm2974, %v2976, %v2978
    %v2980 = vrot.slane %v1556, 4
    %v2981 = vsel %vm2974, %v2978, %v2980
    %v2982 = vrot.slane %v1557, 4
    %v2983 = vsel %vm2974, %v2980, %v2982
    %v2984 = vrot.slane %v1558, 4
    %v2985 = vsel %vm2974, %v2982, %v2984
    %v2986 = vrot.slane %v1559, 4
    %v2987 = vsel %vm2974, %v2984, %v2986
    %v2988 = vrot.slane %v1560, 4
    %v2989 = vsel %vm2974, %v2986, %v2988
    %v2990 = vrot.slane %v1561, 4
    %v2991 = vsel %vm2974, %v2988, %v2990
    %v2992 = vrot.slane %v1562, 4
    %v2993 = vsel %vm2974, %v2990, %v2992
    %v2994 = vrot.slane %v1563, 4
    %v2995 = vsel %vm2974, %v2992, %v2994
    %v2996 = vrot.slane %v1564, 4
    %v2997 = vsel %vm2974, %v2994, %v2996
    %v2998 = vrot.slane %v1565, 4
    %v2999 = vsel %vm2974, %v2996, %v2998
    %v3000 = vrot.slane %v1566, 4
    %v3001 = vsel %vm2974, %v2998, %v3000
    %v3002 = vrot.slane %v1567, 4
    %v3003 = vsel %vm2974, %v3000, %v3002
    %v3004 = vrot.slane %v1568, 4
    %v3005 = vsel %vm2974, %v3002, %v3004
    %v3006 = vrot.slane %v1569, 4
    %v3007 = vsel %vm2974, %v3004, %v3006
    %v3008 = vrot.slane %v1570, 4
    %v3009 = vsel %vm2974, %v3006, %v3008
    %v3010 = vrot.slane %v1571, 4
    %v3011 = vsel %vm2974, %v3008, %v3010
    %v3012 = vrot.slane %v1572, 4
    %v3013 = vsel %vm2974, %v3010, %v3012
    %v3014 = vrot.slane %v1573, 4
    %v3015 = vsel %vm2974, %v3012, %v3014
    %v3016 = vrot.slane %v1574, 4
    %v3017 = vsel %vm2974, %v3014, %v3016
    %v3018 = vrot.slane %v1575, 4
    %v3019 = vsel %vm2974, %v3016, %v3018
    %v3020 = vrot.slane %v1576, 4
    %v3021 = vsel %vm2974, %v3018, %v3020
    %v3022 = vrot.slane %v1577, 4
    %v3023 = vsel %vm2974, %v3020, %v3022
    %v3024 = vrot.slane %v1578, 4
    %v3025 = vsel %vm2974, %v3022, %v3024
    %v3026 = vrot.slane %v1579, 4
    %v3027 = vsel %vm2974, %v3024, %v3026
    %v3028 = vrot.slane %v1580, 4
    %v3029 = vsel %vm2974, %v3026, %v3028
    %v3030 = vrot.slane %v1581, 4
    %v3031 = vsel %vm2974, %v3028, %v3030
    %v3032 = vrot.slane %v1582, 4
    %v3033 = vsel %vm2974, %v3030, %v3032
    %v3034 = vsel %vm1684, %v2977, 0
    %v3036 = vsel %vm1684, %v2979, 0
    %v3038 = vsel %vm1684, %v2981, 0
    %v3040 = vsel %vm1684, %v2983, 0
    %v3042 = vsel %vm1684, %v2985, 0
    %v3044 = vsel %vm1684, %v2987, 0
    %v3046 = vsel %vm1684, %v2989, 0
    %v3048 = vsel %vm1684, %v2991, 0
    %v3050 = vsel %vm1684, %v2993, 0
    %v3052 = vsel %vm1684, %v2995, 0
    %v3054 = vsel %vm1684, %v2997, 0
    %v3056 = vsel %vm1684, %v2999, 0
    %v3058 = vsel %vm1684, %v3001, 0
    %v3060 = vsel %vm1684, %v3003, 0
    %v3062 = vsel %vm1684, %v3005, 0
    %v3064 = vsel %vm1684, %v3007, 0
    %v3066 = vsel %vm1684, %v3009, 0
    %v3068 = vsel %vm1684, %v3011, 0
    %v3070 = vsel %vm1684, %v3013, 0
    %v3072 = vsel %vm1684, %v3015, 0
    %v3074 = vsel %vm1684, %v3017, 0
    %v3076 = vsel %vm1684, %v3019, 0
    %v3078 = vsel %vm1684, %v3021, 0
    %v3080 = vsel %vm1684, %v3023, 0
    %v3082 = vsel %vm1684, %v3025, 0
    %v3084 = vsel %vm1684, %v3027, 0
    %v3086 = vsel %vm1684, %v3029, 0
    %v3088 = vsel %vm1684, %v3031, 0
    %v3090 = vsel %vm1684, %v3033, 0
    %v3092 = vsel %vm1684, %v3032, 0
    %3094 = vmatprep.subr.mxu0 0.0
    %3095 = vmatpush1.msra.mxu0 %v2972
    %3096 = vmatprep.subr.mxu0 0.0
    %3097 = vmatpush1.msra.mxu0 %v2973
    %3098 = vmatprep.subr.mxu0 0.0
    %3099 = vmatpush1.msra.mxu0 0.0
    %3100 = vmatprep.subr.mxu0 0.0
    %3101 = vmatpush1.msra.mxu0 0.0
    %3102 = vmatprep.subr.mxu0 0.0
    %3103 = vmatpush1.msra.mxu0 0.0
    %3104 = vmatprep.subr.mxu0 0.0
    %3105 = vmatpush1.msra.mxu0 0.0
    %3106 = vmatprep.subr.mxu0 0.0
    %3107 = vmatpush1.msra.mxu0 0.0
    %3108 = vmatprep.subr.mxu0 0.0
    %3109 = vmatpush1.msra.mxu0 0.0
    %3110 = vmatprep.subr.mxu0 0.0
    %3111 = vmatpush1.msra.mxu0 0.0
    %3112 = vmatprep.subr.mxu0 0.0
    %3113 = vmatpush1.msra.mxu0 0.0
    %3114 = vmatprep.subr.mxu0 0.0
    %3115 = vmatpush1.msra.mxu0 0.0
    %3116 = vmatprep.subr.mxu0 0.0
    %3117 = vmatpush1.msra.mxu0 0.0
    %3118 = vmatprep.subr.mxu0 0.0
    %3119 = vmatpush1.msra.mxu0 0.0
    %3120 = vmatprep.subr.mxu0 0.0
    %3121 = vmatpush1.msra.mxu0 0.0
    %3122 = vmatprep.subr.mxu0 0.0
    %3123 = vmatpush1.msra.mxu0 0.0
    %3124 = vmatprep.subr.mxu0 0.0
    %3125 = vmatpush1.msra.mxu0 0.0
    %3126 = vmatprep.subr.mxu0 0.0
    %3127 = vmatpush1.msra.mxu0 0.0
    %3128 = vmatprep.subr.mxu0 0.0
    %3129 = vmatpush1.msra.mxu0 0.0
    %3130 = vmatprep.subr.mxu0 0.0
    %3131 = vmatpush1.msra.mxu0 0.0
    %3132 = vmatprep.subr.mxu0 0.0
    %3133 = vmatpush1.msra.mxu0 0.0
    %3134 = vmatprep.subr.mxu0 0.0
    %3135 = vmatpush1.msra.mxu0 0.0
    %3136 = vmatprep.subr.mxu0 0.0
    %3137 = vmatpush1.msra.mxu0 0.0
    %3138 = vmatprep.subr.mxu0 0.0
    %3139 = vmatpush1.msra.mxu0 0.0
    %3140 = vmatprep.subr.mxu0 0.0
    %3141 = vmatpush1.msra.mxu0 0.0
    %3142 = vmatprep.subr.mxu0 0.0
    %3143 = vmatpush1.msra.mxu0 0.0
    %3144 = vmatprep.subr.mxu0 0.0
    %3145 = vmatpush1.msra.mxu0 0.0
    %3146 = vmatprep.subr.mxu0 0.0
    %3147 = vmatpush1.msra.mxu0 0.0
    %3148 = vmatprep.subr.mxu0 0.0
    %3149 = vmatpush1.msra.mxu0 0.0
    %3150 = vmatprep.subr.mxu0 0.0
    %3151 = vmatpush1.msra.mxu0 0.0
    %3152 = vmatprep.subr.mxu0 0.0
    %3153 = vmatpush1.msra.mxu0 0.0
    %3154 = vmatprep.subr.mxu0 0.0
    %3155 = vmatpush1.msra.mxu0 0.0
    %3156 = vmatprep.subr.mxu0 0.0
    %3157 = vmatpush1.msra.mxu0 0.0
    %3158 = vmatprep.mubr.f32.mxu0 0.0
    %3159 = vmatmul.mubr.f32.gmra.mrb[0].mxu0 %v3034
    %v3160 = vpop.f32.mrb[0].mxu0
    %v3161 = vadd.f32 0.0, %v3160
    %v3162 = vpop.f32.mrb[0].mxu0
    %3163 = vmatprep.mubr.f32.mxu0 0.0
    %3164 = vmatmul.mubr.f32.gmra.mrb[0].mxu0 %v3036
    %v3165 = vpop.f32.mrb[0].mxu0
    %v3166 = vadd.f32 0.0, %v3165
    %v3167 = vpop.f32.mrb[0].mxu0
    %3168 = vmatprep.mubr.f32.mxu0 0.0
    %3169 = vmatmul.mubr.f32.gmra.mrb[0].mxu0 %v3038
    %v3170 = vpop.f32.mrb[0].mxu0
    %v3171 = vadd.f32 0.0, %v3170
    %v3172 = vpop.f32.mrb[0].mxu0
    %3173 = vmatprep.mubr.f32.mxu0 0.0
    %3174 = vmatmul.mubr.f32.gmra.mrb[0].mxu0 %v3040
    %v3175 = vpop.f32.mrb[0].mxu0
    %v3176 = vadd.f32 0.0, %v3175
    %v3177 = vpop.f32.mrb[0].mxu0
    %3178 = vmatprep.mubr.f32.mxu0 0.0
    %3179 = vmatmul.mubr.f32.gmra.mrb[0].mxu0 %v3042
    %v3180 = vpop.f32.mrb[0].mxu0
    %v3181 = vadd.f32 0.0, %v3180
    %v3182 = vpop.f32.mrb[0].mxu0
    %3183 = vmatprep.mubr.f32.mxu0 0.0
    %3184 = vmatmul.mubr.f32.gmra.mrb[0].mxu0 %v3044
    %v3185 = vpop.f32.mrb[0].mxu0
    %v3186 = vadd.f32 0.0, %v3185
    %v3187 = vpop.f32.mrb[0].mxu0
    %3188 = vmatprep.mubr.f32.mxu0 0.0
    %3189 = vmatmul.mubr.f32.gmra.mrb[0].mxu0 %v3046
    %v3190 = vpop.f32.mrb[0].mxu0
    %v3191 = vadd.f32 0.0, %v3190
    %v3192 = vpop.f32.mrb[0].mxu0
    %3193 = vmatprep.mubr.f32.mxu0 0.0
    %3194 = vmatmul.mubr.f32.gmra.mrb[0].mxu0 %v3048
    %v3195 = vpop.f32.mrb[0].mxu0
    %v3196 = vadd.f32 0.0, %v3195
    %v3197 = vpop.f32.mrb[0].mxu0
    %3198 = vmatprep.mubr.f32.mxu0 0.0
    %3199 = vmatmul.mubr.f32.gmra.mrb[0].mxu0 %v3050
    %v3200 = vpop.f32.mrb[0].mxu0
    %v3201 = vadd.f32 0.0, %v3200
    %v3202 = vpop.f32.mrb[0].mxu0
    %3203 = vmatprep.mubr.f32.mxu0 0.0
    %3204 = vmatmul.mubr.f32.gmra.mrb[0].mxu0 %v3052
    %v3205 = vpop.f32.mrb[0].mxu0
    %v3206 = vadd.f32 0.0, %v3205
    %v3207 = vpop.f32.mrb[0].mxu0
    %3208 = vmatprep.mubr.f32.mxu0 0.0
    %3209 = vmatmul.mubr.f32.gmra.mrb[0].mxu0 %v3054
    %v3210 = vpop.f32.mrb[0].mxu0
    %v3211 = vadd.f32 0.0, %v3210
    %v3212 = vpop.f32.mrb[0].mxu0
    %3213 = vmatprep.mubr.f32.mxu0 0.0
    %3214 = vmatmul.mubr.f32.gmra.mrb[0].mxu0 %v3056
    %v3215 = vpop.f32.mrb[0].mxu0
    %v3216 = vadd.f32 0.0, %v3215
    %v3217 = vpop.f32.mrb[0].mxu0
    %3218 = vmatprep.mubr.f32.mxu0 0.0
    %3219 = vmatmul.mubr.f32.gmra.mrb[0].mxu0 %v3058
    %v3220 = vpop.f32.mrb[0].mxu0
    %v3221 = vadd.f32 0.0, %v3220
    %v3222 = vpop.f32.mrb[0].mxu0
    %3223 = vmatprep.mubr.f32.mxu0 0.0
    %3224 = vmatmul.mubr.f32.gmra.mrb[0].mxu0 %v3060
    %v3225 = vpop.f32.mrb[0].mxu0
    %v3226 = vadd.f32 0.0, %v3225
    %v3227 = vpop.f32.mrb[0].mxu0
    %3228 = vmatprep.mubr.f32.mxu0 0.0
    %3229 = vmatmul.mubr.f32.gmra.mrb[0].mxu0 %v3062
    %v3230 = vpop.f32.mrb[0].mxu0
    %v3231 = vadd.f32 0.0, %v3230
    %v3232 = vpop.f32.mrb[0].mxu0
    %3233 = vmatprep.mubr.f32.mxu0 0.0
    %3234 = vmatmul.mubr.f32.gmra.mrb[0].mxu0 %v3064
    %v3235 = vpop.f32.mrb[0].mxu0
    %v3236 = vadd.f32 0.0, %v3235
    %v3237 = vpop.f32.mrb[0].mxu0
    %3238 = vmatprep.mubr.f32.mxu0 0.0
    %3239 = vmatmul.mubr.f32.gmra.mrb[0].mxu0 %v3066
    %v3240 = vpop.f32.mrb[0].mxu0
    %v3241 = vadd.f32 0.0, %v3240
    %v3242 = vpop.f32.mrb[0].mxu0
    %3243 = vmatprep.mubr.f32.mxu0 0.0
    %3244 = vmatmul.mubr.f32.gmra.mrb[0].mxu0 %v3068
    %v3245 = vpop.f32.mrb[0].mxu0
    %v3246 = vadd.f32 0.0, %v3245
    %v3247 = vpop.f32.mrb[0].mxu0
    %3248 = vmatprep.mubr.f32.mxu0 0.0
    %3249 = vmatmul.mubr.f32.gmra.mrb[0].mxu0 %v3070
    %v3250 = vpop.f32.mrb[0].mxu0
    %v3251 = vadd.f32 0.0, %v3250
    %v3252 = vpop.f32.mrb[0].mxu0
    %3253 = vmatprep.mubr.f32.mxu0 0.0
    %3254 = vmatmul.mubr.f32.gmra.mrb[0].mxu0 %v3072
    %v3255 = vpop.f32.mrb[0].mxu0
    %v3256 = vadd.f32 0.0, %v3255
    %v3257 = vpop.f32.mrb[0].mxu0
    %3258 = vmatprep.mubr.f32.mxu0 0.0
    %3259 = vmatmul.mubr.f32.gmra.mrb[0].mxu0 %v3074
    %v3260 = vpop.f32.mrb[0].mxu0
    %v3261 = vadd.f32 0.0, %v3260
    %v3262 = vpop.f32.mrb[0].mxu0
    %3263 = vmatprep.mubr.f32.mxu0 0.0
    %3264 = vmatmul.mubr.f32.gmra.mrb[0].mxu0 %v3076
    %v3265 = vpop.f32.mrb[0].mxu0
    %v3266 = vadd.f32 0.0, %v3265
    %v3267 = vpop.f32.mrb[0].mxu0
    %3268 = vmatprep.mubr.f32.mxu0 0.0
    %3269 = vmatmul.mubr.f32.gmra.mrb[0].mxu0 %v3078
    %v3270 = vpop.f32.mrb[0].mxu0
    %v3271 = vadd.f32 0.0, %v3270
    %v3272 = vpop.f32.mrb[0].mxu0
    %3273 = vmatprep.mubr.f32.mxu0 0.0
    %3274 = vmatmul.mubr.f32.gmra.mrb[0].mxu0 %v3080
    %v3275 = vpop.f32.mrb[0].mxu0
    %v3276 = vadd.f32 0.0, %v3275
    %v3277 = vpop.f32.mrb[0].mxu0
    %3278 = vmatprep.mubr.f32.mxu0 0.0
    %3279 = vmatmul.mubr.f32.gmra.mrb[0].mxu0 %v3082
    %v3280 = vpop.f32.mrb[0].mxu0
    %v3281 = vadd.f32 0.0, %v3280
    %v3282 = vpop.f32.mrb[0].mxu0
    %3283 = vmatprep.mubr.f32.mxu0 0.0
    %3284 = vmatmul.mubr.f32.gmra.mrb[0].mxu0 %v3084
    %v3285 = vpop.f32.mrb[0].mxu0
    %v3286 = vadd.f32 0.0, %v3285
    %v3287 = vpop.f32.mrb[0].mxu0
    %3288 = vmatprep.mubr.f32.mxu0 0.0
    %3289 = vmatmul.mubr.f32.gmra.mrb[0].mxu0 %v3086
    %v3290 = vpop.f32.mrb[0].mxu0
    %v3291 = vadd.f32 0.0, %v3290
    %v3292 = vpop.f32.mrb[0].mxu0
    %3293 = vmatprep.mubr.f32.mxu0 0.0
    %3294 = vmatmul.mubr.f32.gmra.mrb[0].mxu0 %v3088
    %v3295 = vpop.f32.mrb[0].mxu0
    %v3296 = vadd.f32 0.0, %v3295
    %v3297 = vpop.f32.mrb[0].mxu0
    %3298 = vmatprep.mubr.f32.mxu0 0.0
    %3299 = vmatmul.mubr.f32.gmra.mrb[0].mxu0 %v3090
    %v3300 = vpop.f32.mrb[0].mxu0
    %v3301 = vadd.f32 0.0, %v3300
    %v3302 = vpop.f32.mrb[0].mxu0
    %3303 = vmatprep.mubr.f32.mxu0 0.0
    %3304 = vmatmul.mubr.f32.gmra.mrb[0].mxu0 %v3092
    %v3305 = vpop.f32.mrb[0].mxu0
    %v3306 = vadd.f32 0.0, %v3305
    %v3307 = vpop.f32.mrb[0].mxu0
    %3308 = vdwg.mxu0
    %v3309 = vadd.f32 %v2941, %v3161
    %v3310 = vadd.f32 %v2942, %v3166
    %v3311 = vadd.f32 %v2943, %v3171
    %v3312 = vadd.f32 %v2944, %v3176
    %v3313 = vadd.f32 %v2945, %v3181
    %v3314 = vadd.f32 %v2946, %v3186
    %v3315 = vadd.f32 %v2947, %v3191
    %v3316 = vadd.f32 %v2948, %v3196
    %v3317 = vadd.f32 %v2949, %v3201
    %v3318 = vadd.f32 %v2950, %v3206
    %v3319 = vadd.f32 %v2951, %v3211
    %v3320 = vadd.f32 %v2952, %v3216
    %v3321 = vadd.f32 %v2953, %v3221
    %v3322 = vadd.f32 %v2954, %v3226
    %v3323 = vadd.f32 %v2955, %v3231
    %v3324 = vadd.f32 %v2956, %v3236
    %v3325 = vadd.f32 %v2957, %v3241
    %v3326 = vadd.f32 %v2958, %v3246
    %v3327 = vadd.f32 %v2959, %v3251
    %v3328 = vadd.f32 %v2960, %v3256
    %v3329 = vadd.f32 %v2961, %v3261
    %v3330 = vadd.f32 %v2962, %v3266
    %v3331 = vadd.f32 %v2963, %v3271
    %v3332 = vadd.f32 %v2964, %v3276
    %v3333 = vadd.f32 %v2965, %v3281
    %v3334 = vadd.f32 %v2966, %v3286
    %v3335 = vadd.f32 %v2967, %v3291
    %v3336 = vadd.f32 %v2968, %v3296
    %v3337 = vadd.f32 %v2969, %v3301
    %v3338 = vadd.f32 %v2970, %v3306
    %s3339 = scalar_lea.vmem %s4, 80
    %v3340 = vld [vmem:[%s3339] sm:$0xff]
    %v3341 = vld [vmem:[%s3339 + $0x8] sm:$0xff]
    %v3343 = vrot.slane %v1583, 4
    %v3344 = vsel %vm2974, %v3032, %v3343
    %v3345 = vsel %vm1684, %v3344, 0
    %v3347 = vsel %vm1684, %v3343, 0
    %3349 = vmatprep.subr.mxu0 0.0
    %3350 = vmatpush1.msra.mxu0 %v3340
    %3351 = vmatprep.subr.mxu0 0.0
    %3352 = vmatpush1.msra.mxu0 %v3341
    %3353 = vmatprep.subr.mxu0 0.0
    %3354 = vmatpush1.msra.mxu0 0.0
    %3355 = vmatprep.subr.mxu0 0.0
    %3356 = vmatpush1.msra.mxu0 0.0
    %3357 = vmatprep.subr.mxu0 0.0
    %3358 = vmatpush1.msra.mxu0 0.0
    %3359 = vmatprep.subr.mxu0 0.0
    %3360 = vmatpush1.msra.mxu0 0.0
    %3361 = vmatprep.subr.mxu0 0.0
    %3362 = vmatpush1.msra.mxu0 0.0
    %3363 = vmatprep.subr.mxu0 0.0
    %3364 = vmatpush1.msra.mxu0 0.0
    %3365 = vmatprep.subr.mxu0 0.0
    %3366 = vmatpush1.msra.mxu0 0.0
    %3367 = vmatprep.subr.mxu0 0.0
    %3368 = vmatpush1.msra.mxu0 0.0
    %3369 = vmatprep.subr.mxu0 0.0
    %3370 = vmatpush1.msra.mxu0 0.0
    %3371 = vmatprep.subr.mxu0 0.0
    %3372 = vmatpush1.msra.mxu0 0.0
    %3373 = vmatprep.subr.mxu0 0.0
    %3374 = vmatpush1.msra.mxu0 0.0
    %3375 = vmatprep.subr.mxu0 0.0
    %3376 = vmatpush1.msra.mxu0 0.0
    %3377 = vmatprep.subr.mxu0 0.0
    %3378 = vmatpush1.msra.mxu0 0.0
    %3379 = vmatprep.subr.mxu0 0.0
    %3380 = vmatpush1.msra.mxu0 0.0
    %3381 = vmatprep.subr.mxu0 0.0
    %3382 = vmatpush1.msra.mxu0 0.0
    %3383 = vmatprep.subr.mxu0 0.0
    %3384 = vmatpush1.msra.mxu0 0.0
    %3385 = vmatprep.subr.mxu0 0.0
    %3386 = vmatpush1.msra.mxu0 0.0
    %3387 = vmatprep.subr.mxu0 0.0
    %3388 = vmatpush1.msra.mxu0 0.0
    %3389 = vmatprep.subr.mxu0 0.0
    %3390 = vmatpush1.msra.mxu0 0.0
    %3391 = vmatprep.subr.mxu0 0.0
    %3392 = vmatpush1.msra.mxu0 0.0
    %3393 = vmatprep.subr.mxu0 0.0
    %3394 = vmatpush1.msra.mxu0 0.0
    %3395 = vmatprep.subr.mxu0 0.0
    %3396 = vmatpush1.msra.mxu0 0.0
    %3397 = vmatprep.subr.mxu0 0.0
    %3398 = vmatpush1.msra.mxu0 0.0
    %3399 = vmatprep.subr.mxu0 0.0
    %3400 = vmatpush1.msra.mxu0 0.0
    %3401 = vmatprep.subr.mxu0 0.0
    %3402 = vmatpush1.msra.mxu0 0.0
    %3403 = vmatprep.subr.mxu0 0.0
    %3404 = vmatpush1.msra.mxu0 0.0
    %3405 = vmatprep.subr.mxu0 0.0
    %3406 = vmatpush1.msra.mxu0 0.0
    %3407 = vmatprep.subr.mxu0 0.0
    %3408 = vmatpush1.msra.mxu0 0.0
    %3409 = vmatprep.subr.mxu0 0.0
    %3410 = vmatpush1.msra.mxu0 0.0
    %3411 = vmatprep.subr.mxu0 0.0
    %3412 = vmatpush1.msra.mxu0 0.0
    %3413 = vmatprep.mubr.f32.mxu0 0.0
    %3414 = vmatmul.mubr.f32.gmra.mrb[0].mxu0 %v3036
    %v3415 = vpop.f32.mrb[0].mxu0
    %v3416 = vadd.f32 0.0, %v3415
    %v3417 = vpop.f32.mrb[0].mxu0
    %3418 = vmatprep.mubr.f32.mxu0 0.0
    %3419 = vmatmul.mubr.f32.gmra.mrb[0].mxu0 %v3038
    %v3420 = vpop.f32.mrb[0].mxu0
    %v3421 = vadd.f32 0.0, %v3420
    %v3422 = vpop.f32.mrb[0].mxu0
    %3423 = vmatprep.mubr.f32.mxu0 0.0
    %3424 = vmatmul.mubr.f32.gmra.mrb[0].mxu0 %v3040
    %v3425 = vpop.f32.mrb[0].mxu0
    %v3426 = vadd.f32 0.0, %v3425
    %v3427 = vpop.f32.mrb[0].mxu0
    %3428 = vmatprep.mubr.f32.mxu0 0.0
    %3429 = vmatmul.mubr.f32.gmra.mrb[0].mxu0 %v3042
    %v3430 = vpop.f32.mrb[0].mxu0
    %v3431 = vadd.f32 0.0, %v3430
    %v3432 = vpop.f32.mrb[0].mxu0
    %3433 = vmatprep.mubr.f32.mxu0 0.0
    %3434 = vmatmul.mubr.f32.gmra.mrb[0].mxu0 %v3044
    %v3435 = vpop.f32.mrb[0].mxu0
    %v3436 = vadd.f32 0.0, %v3435
    %v3437 = vpop.f32.mrb[0].mxu0
    %3438 = vmatprep.mubr.f32.mxu0 0.0
    %3439 = vmatmul.mubr.f32.gmra.mrb[0].mxu0 %v3046
    %v3440 = vpop.f32.mrb[0].mxu0
    %v3441 = vadd.f32 0.0, %v3440
    %v3442 = vpop.f32.mrb[0].mxu0
    %3443 = vmatprep.mubr.f32.mxu0 0.0
    %3444 = vmatmul.mubr.f32.gmra.mrb[0].mxu0 %v3048
    %v3445 = vpop.f32.mrb[0].mxu0
    %v3446 = vadd.f32 0.0, %v3445
    %v3447 = vpop.f32.mrb[0].mxu0
    %3448 = vmatprep.mubr.f32.mxu0 0.0
    %3449 = vmatmul.mubr.f32.gmra.mrb[0].mxu0 %v3050
    %v3450 = vpop.f32.mrb[0].mxu0
    %v3451 = vadd.f32 0.0, %v3450
    %v3452 = vpop.f32.mrb[0].mxu0
    %3453 = vmatprep.mubr.f32.mxu0 0.0
    %3454 = vmatmul.mubr.f32.gmra.mrb[0].mxu0 %v3052
    %v3455 = vpop.f32.mrb[0].mxu0
    %v3456 = vadd.f32 0.0, %v3455
    %v3457 = vpop.f32.mrb[0].mxu0
    %3458 = vmatprep.mubr.f32.mxu0 0.0
    %3459 = vmatmul.mubr.f32.gmra.mrb[0].mxu0 %v3054
    %v3460 = vpop.f32.mrb[0].mxu0
    %v3461 = vadd.f32 0.0, %v3460
    %v3462 = vpop.f32.mrb[0].mxu0
    %3463 = vmatprep.mubr.f32.mxu0 0.0
    %3464 = vmatmul.mubr.f32.gmra.mrb[0].mxu0 %v3056
    %v3465 = vpop.f32.mrb[0].mxu0
    %v3466 = vadd.f32 0.0, %v3465
    %v3467 = vpop.f32.mrb[0].mxu0
    %3468 = vmatprep.mubr.f32.mxu0 0.0
    %3469 = vmatmul.mubr.f32.gmra.mrb[0].mxu0 %v3058
    %v3470 = vpop.f32.mrb[0].mxu0
    %v3471 = vadd.f32 0.0, %v3470
    %v3472 = vpop.f32.mrb[0].mxu0
    %3473 = vmatprep.mubr.f32.mxu0 0.0
    %3474 = vmatmul.mubr.f32.gmra.mrb[0].mxu0 %v3060
    %v3475 = vpop.f32.mrb[0].mxu0
    %v3476 = vadd.f32 0.0, %v3475
    %v3477 = vpop.f32.mrb[0].mxu0
    %3478 = vmatprep.mubr.f32.mxu0 0.0
    %3479 = vmatmul.mubr.f32.gmra.mrb[0].mxu0 %v3062
    %v3480 = vpop.f32.mrb[0].mxu0
    %v3481 = vadd.f32 0.0, %v3480
    %v3482 = vpop.f32.mrb[0].mxu0
    %3483 = vmatprep.mubr.f32.mxu0 0.0
    %3484 = vmatmul.mubr.f32.gmra.mrb[0].mxu0 %v3064
    %v3485 = vpop.f32.mrb[0].mxu0
    %v3486 = vadd.f32 0.0, %v3485
    %v3487 = vpop.f32.mrb[0].mxu0
    %3488 = vmatprep.mubr.f32.mxu0 0.0
    %3489 = vmatmul.mubr.f32.gmra.mrb[0].mxu0 %v3066
    %v3490 = vpop.f32.mrb[0].mxu0
    %v3491 = vadd.f32 0.0, %v3490
    %v3492 = vpop.f32.mrb[0].mxu0
    %3493 = vmatprep.mubr.f32.mxu0 0.0
    %3494 = vmatmul.mubr.f32.gmra.mrb[0].mxu0 %v3068
    %v3495 = vpop.f32.mrb[0].mxu0
    %v3496 = vadd.f32 0.0, %v3495
    %v3497 = vpop.f32.mrb[0].mxu0
    %3498 = vmatprep.mubr.f32.mxu0 0.0
    %3499 = vmatmul.mubr.f32.gmra.mrb[0].mxu0 %v3070
    %v3500 = vpop.f32.mrb[0].mxu0
    %v3501 = vadd.f32 0.0, %v3500
    %v3502 = vpop.f32.mrb[0].mxu0
    %3503 = vmatprep.mubr.f32.mxu0 0.0
    %3504 = vmatmul.mubr.f32.gmra.mrb[0].mxu0 %v3072
    %v3505 = vpop.f32.mrb[0].mxu0
    %v3506 = vadd.f32 0.0, %v3505
    %v3507 = vpop.f32.mrb[0].mxu0
    %3508 = vmatprep.mubr.f32.mxu0 0.0
    %3509 = vmatmul.mubr.f32.gmra.mrb[0].mxu0 %v3074
    %v3510 = vpop.f32.mrb[0].mxu0
    %v3511 = vadd.f32 0.0, %v3510
    %v3512 = vpop.f32.mrb[0].mxu0
    %3513 = vmatprep.mubr.f32.mxu0 0.0
    %3514 = vmatmul.mubr.f32.gmra.mrb[0].mxu0 %v3076
    %v3515 = vpop.f32.mrb[0].mxu0
    %v3516 = vadd.f32 0.0, %v3515
    %v3517 = vpop.f32.mrb[0].mxu0
    %3518 = vmatprep.mubr.f32.mxu0 0.0
    %3519 = vmatmul.mubr.f32.gmra.mrb[0].mxu0 %v3078
    %v3520 = vpop.f32.mrb[0].mxu0
    %v3521 = vadd.f32 0.0, %v3520
    %v3522 = vpop.f32.mrb[0].mxu0
    %3523 = vmatprep.mubr.f32.mxu0 0.0
    %3524 = vmatmul.mubr.f32.gmra.mrb[0].mxu0 %v3080
    %v3525 = vpop.f32.mrb[0].mxu0
    %v3526 = vadd.f32 0.0, %v3525
    %v3527 = vpop.f32.mrb[0].mxu0
    %3528 = vmatprep.mubr.f32.mxu0 0.0
    %3529 = vmatmul.mubr.f32.gmra.mrb[0].mxu0 %v3082
    %v3530 = vpop.f32.mrb[0].mxu0
    %v3531 = vadd.f32 0.0, %v3530
    %v3532 = vpop.f32.mrb[0].mxu0
    %3533 = vmatprep.mubr.f32.mxu0 0.0
    %3534 = vmatmul.mubr.f32.gmra.mrb[0].mxu0 %v3084
    %v3535 = vpop.f32.mrb[0].mxu0
    %v3536 = vadd.f32 0.0, %v3535
    %v3537 = vpop.f32.mrb[0].mxu0
    %3538 = vmatprep.mubr.f32.mxu0 0.0
    %3539 = vmatmul.mubr.f32.gmra.mrb[0].mxu0 %v3086
    %v3540 = vpop.f32.mrb[0].mxu0
    %v3541 = vadd.f32 0.0, %v3540
    %v3542 = vpop.f32.mrb[0].mxu0
    %3543 = vmatprep.mubr.f32.mxu0 0.0
    %3544 = vmatmul.mubr.f32.gmra.mrb[0].mxu0 %v3088
    %v3545 = vpop.f32.mrb[0].mxu0
    %v3546 = vadd.f32 0.0, %v3545
    %v3547 = vpop.f32.mrb[0].mxu0
    %3548 = vmatprep.mubr.f32.mxu0 0.0
    %3549 = vmatmul.mubr.f32.gmra.mrb[0].mxu0 %v3090
    %v3550 = vpop.f32.mrb[0].mxu0
    %v3551 = vadd.f32 0.0, %v3550
    %v3552 = vpop.f32.mrb[0].mxu0
    %3553 = vmatprep.mubr.f32.mxu0 0.0
    %3554 = vmatmul.mubr.f32.gmra.mrb[0].mxu0 %v3345
    %v3555 = vpop.f32.mrb[0].mxu0
    %v3556 = vadd.f32 0.0, %v3555
    %v3557 = vpop.f32.mrb[0].mxu0
    %3558 = vmatprep.mubr.f32.mxu0 0.0
    %3559 = vmatmul.mubr.f32.gmra.mrb[0].mxu0 %v3347
    %v3560 = vpop.f32.mrb[0].mxu0
    %v3561 = vadd.f32 0.0, %v3560
    %v3562 = vpop.f32.mrb[0].mxu0
    %3563 = vdwg.mxu0
    %v3564 = vadd.f32 %v3309, %v3416
    %v3565 = vadd.f32 %v3310, %v3421
    %v3566 = vadd.f32 %v3311, %v3426
    %v3567 = vadd.f32 %v3312, %v3431
    %v3568 = vadd.f32 %v3313, %v3436
    %v3569 = vadd.f32 %v3314, %v3441
    %v3570 = vadd.f32 %v3315, %v3446
    %v3571 = vadd.f32 %v3316, %v3451
    %v3572 = vadd.f32 %v3317, %v3456
    %v3573 = vadd.f32 %v3318, %v3461
    %v3574 = vadd.f32 %v3319, %v3466
    %v3575 = vadd.f32 %v3320, %v3471
    %v3576 = vadd.f32 %v3321, %v3476
    %v3577 = vadd.f32 %v3322, %v3481
    %v3578 = vadd.f32 %v3323, %v3486
    %v3579 = vadd.f32 %v3324, %v3491
    %v3580 = vadd.f32 %v3325, %v3496
    %v3581 = vadd.f32 %v3326, %v3501
    %v3582 = vadd.f32 %v3327, %v3506
    %v3583 = vadd.f32 %v3328, %v3511
    %v3584 = vadd.f32 %v3329, %v3516
    %v3585 = vadd.f32 %v3330, %v3521
    %v3586 = vadd.f32 %v3331, %v3526
    %v3587 = vadd.f32 %v3332, %v3531
    %v3588 = vadd.f32 %v3333, %v3536
    %v3589 = vadd.f32 %v3334, %v3541
    %v3590 = vadd.f32 %v3335, %v3546
    %v3591 = vadd.f32 %v3336, %v3551
    %v3592 = vadd.f32 %v3337, %v3556
    %v3593 = vadd.f32 %v3338, %v3561
    %s3594 = scalar_lea.vmem %s4, 96
    %v3595 = vld [vmem:[%s3594] sm:$0xff]
    %v3596 = vld [vmem:[%s3594 + $0x8] sm:$0xff]
    %vm3598 = vcmask 1042432
    %v3599 = vrot.slane %v1554, 5
    %v3600 = vrot.slane %v1555, 5
    %v3601 = vsel %vm3598, %v3599, %v3600
    %v3602 = vrot.slane %v1556, 5
    %v3603 = vsel %vm3598, %v3600, %v3602
    %v3604 = vrot.slane %v1557, 5
    %v3605 = vsel %vm3598, %v3602, %v3604
    %v3606 = vrot.slane %v1558, 5
    %v3607 = vsel %vm3598, %v3604, %v3606
    %v3608 = vrot.slane %v1559, 5
    %v3609 = vsel %vm3598, %v3606, %v3608
    %v3610 = vrot.slane %v1560, 5
    %v3611 = vsel %vm3598, %v3608, %v3610
    %v3612 = vrot.slane %v1561, 5
    %v3613 = vsel %vm3598, %v3610, %v3612
    %v3614 = vrot.slane %v1562, 5
    %v3615 = vsel %vm3598, %v3612, %v3614
    %v3616 = vrot.slane %v1563, 5
    %v3617 = vsel %vm3598, %v3614, %v3616
    %v3618 = vrot.slane %v1564, 5
    %v3619 = vsel %vm3598, %v3616, %v3618
    %v3620 = vrot.slane %v1565, 5
    %v3621 = vsel %vm3598, %v3618, %v3620
    %v3622 = vrot.slane %v1566, 5
    %v3623 = vsel %vm3598, %v3620, %v3622
    %v3624 = vrot.slane %v1567, 5
    %v3625 = vsel %vm3598, %v3622, %v3624
    %v3626 = vrot.slane %v1568, 5
    %v3627 = vsel %vm3598, %v3624, %v3626
    %v3628 = vrot.slane %v1569, 5
    %v3629 = vsel %vm3598, %v3626, %v3628
    %v3630 = vrot.slane %v1570, 5
    %v3631 = vsel %vm3598, %v3628, %v3630
    %v3632 = vrot.slane %v1571, 5
    %v3633 = vsel %vm3598, %v3630, %v3632
    %v3634 = vrot.slane %v1572, 5
    %v3635 = vsel %vm3598, %v3632, %v3634
    %v3636 = vrot.slane %v1573, 5
    %v3637 = vsel %vm3598, %v3634, %v3636
    %v3638 = vrot.slane %v1574, 5
    %v3639 = vsel %vm3598, %v3636, %v3638
    %v3640 = vrot.slane %v1575, 5
    %v3641 = vsel %vm3598, %v3638, %v3640
    %v3642 = vrot.slane %v1576, 5
    %v3643 = vsel %vm3598, %v3640, %v3642
    %v3644 = vrot.slane %v1577, 5
    %v3645 = vsel %vm3598, %v3642, %v3644
    %v3646 = vrot.slane %v1578, 5
    %v3647 = vsel %vm3598, %v3644, %v3646
    %v3648 = vrot.slane %v1579, 5
    %v3649 = vsel %vm3598, %v3646, %v3648
    %v3650 = vrot.slane %v1580, 5
    %v3651 = vsel %vm3598, %v3648, %v3650
    %v3652 = vrot.slane %v1581, 5
    %v3653 = vsel %vm3598, %v3650, %v3652
    %v3654 = vrot.slane %v1582, 5
    %v3655 = vsel %vm3598, %v3652, %v3654
    %v3656 = vrot.slane %v1583, 5
    %v3657 = vsel %vm3598, %v3654, %v3656
    %v3658 = vrot.slane %v1584, 5
    %v3659 = vsel %vm3598, %v3656, %v3658
    %v3660 = vsel %vm1684, %v3601, 0
    %v3662 = vsel %vm1684, %v3603, 0
    %v3664 = vsel %vm1684, %v3605, 0
    %v3666 = vsel %vm1684, %v3607, 0
    %v3668 = vsel %vm1684, %v3609, 0
    %v3670 = vsel %vm1684, %v3611, 0
    %v3672 = vsel %vm1684, %v3613, 0
    %v3674 = vsel %vm1684, %v3615, 0
    %v3676 = vsel %vm1684, %v3617, 0
    %v3678 = vsel %vm1684, %v3619, 0
    %v3680 = vsel %vm1684, %v3621, 0
    %v3682 = vsel %vm1684, %v3623, 0
    %v3684 = vsel %vm1684, %v3625, 0
    %v3686 = vsel %vm1684, %v3627, 0
    %v3688 = vsel %vm1684, %v3629, 0
    %v3690 = vsel %vm1684, %v3631, 0
    %v3692 = vsel %vm1684, %v3633, 0
    %v3694 = vsel %vm1684, %v3635, 0
    %v3696 = vsel %vm1684, %v3637, 0
    %v3698 = vsel %vm1684, %v3639, 0
    %v3700 = vsel %vm1684, %v3641, 0
    %v3702 = vsel %vm1684, %v3643, 0
    %v3704 = vsel %vm1684, %v3645, 0
    %v3706 = vsel %vm1684, %v3647, 0
    %v3708 = vsel %vm1684, %v3649, 0
    %v3710 = vsel %vm1684, %v3651, 0
    %v3712 = vsel %vm1684, %v3653, 0
    %v3714 = vsel %vm1684, %v3655, 0
    %v3716 = vsel %vm1684, %v3657, 0
    %v3718 = vsel %vm1684, %v3659, 0
    %3720 = vmatprep.subr.mxu0 0.0
    %3721 = vmatpush1.msra.mxu0 %v3595
    %3722 = vmatprep.subr.mxu0 0.0
    %3723 = vmatpush1.msra.mxu0 %v3596
    %3724 = vmatprep.subr.mxu0 0.0
    %3725 = vmatpush1.msra.mxu0 0.0
    %3726 = vmatprep.subr.mxu0 0.0
    %3727 = vmatpush1.msra.mxu0 0.0
    %3728 = vmatprep.subr.mxu0 0.0
    %3729 = vmatpush1.msra.mxu0 0.0
    %3730 = vmatprep.subr.mxu0 0.0
    %3731 = vmatpush1.msra.mxu0 0.0
    %3732 = vmatprep.subr.mxu0 0.0
    %3733 = vmatpush1.msra.mxu0 0.0
    %3734 = vmatprep.subr.mxu0 0.0
    %3735 = vmatpush1.msra.mxu0 0.0
    %3736 = vmatprep.subr.mxu0 0.0
    %3737 = vmatpush1.msra.mxu0 0.0
    %3738 = vmatprep.subr.mxu0 0.0
    %3739 = vmatpush1.msra.mxu0 0.0
    %3740 = vmatprep.subr.mxu0 0.0
    %3741 = vmatpush1.msra.mxu0 0.0
    %3742 = vmatprep.subr.mxu0 0.0
    %3743 = vmatpush1.msra.mxu0 0.0
    %3744 = vmatprep.subr.mxu0 0.0
    %3745 = vmatpush1.msra.mxu0 0.0
    %3746 = vmatprep.subr.mxu0 0.0
    %3747 = vmatpush1.msra.mxu0 0.0
    %3748 = vmatprep.subr.mxu0 0.0
    %3749 = vmatpush1.msra.mxu0 0.0
    %3750 = vmatprep.subr.mxu0 0.0
    %3751 = vmatpush1.msra.mxu0 0.0
    %3752 = vmatprep.subr.mxu0 0.0
    %3753 = vmatpush1.msra.mxu0 0.0
    %3754 = vmatprep.subr.mxu0 0.0
    %3755 = vmatpush1.msra.mxu0 0.0
    %3756 = vmatprep.subr.mxu0 0.0
    %3757 = vmatpush1.msra.mxu0 0.0
    %3758 = vmatprep.subr.mxu0 0.0
    %3759 = vmatpush1.msra.mxu0 0.0
    %3760 = vmatprep.subr.mxu0 0.0
    %3761 = vmatpush1.msra.mxu0 0.0
    %3762 = vmatprep.subr.mxu0 0.0
    %3763 = vmatpush1.msra.mxu0 0.0
    %3764 = vmatprep.subr.mxu0 0.0
    %3765 = vmatpush1.msra.mxu0 0.0
    %3766 = vmatprep.subr.mxu0 0.0
    %3767 = vmatpush1.msra.mxu0 0.0
    %3768 = vmatprep.subr.mxu0 0.0
    %3769 = vmatpush1.msra.mxu0 0.0
    %3770 = vmatprep.subr.mxu0 0.0
    %3771 = vmatpush1.msra.mxu0 0.0
    %3772 = vmatprep.subr.mxu0 0.0
    %3773 = vmatpush1.msra.mxu0 0.0
    %3774 = vmatprep.subr.mxu0 0.0
    %3775 = vmatpush1.msra.mxu0 0.0
    %3776 = vmatprep.subr.mxu0 0.0
    %3777 = vmatpush1.msra.mxu0 0.0
    %3778 = vmatprep.subr.mxu0 0.0
    %3779 = vmatpush1.msra.mxu0 0.0
    %3780 = vmatprep.subr.mxu0 0.0
    %3781 = vmatpush1.msra.mxu0 0.0
    %3782 = vmatprep.subr.mxu0 0.0
    %3783 = vmatpush1.msra.mxu0 0.0
    %3784 = vmatprep.mubr.f32.mxu0 0.0
    %3785 = vmatmul.mubr.f32.gmra.mrb[0].mxu0 %v3660
    %v3786 = vpop.f32.mrb[0].mxu0
    %v3787 = vadd.f32 0.0, %v3786
    %v3788 = vpop.f32.mrb[0].mxu0
    %3789 = vmatprep.mubr.f32.mxu0 0.0
    %3790 = vmatmul.mubr.f32.gmra.mrb[0].mxu0 %v3662
    %v3791 = vpop.f32.mrb[0].mxu0
    %v3792 = vadd.f32 0.0, %v3791
    %v3793 = vpop.f32.mrb[0].mxu0
    %3794 = vmatprep.mubr.f32.mxu0 0.0
    %3795 = vmatmul.mubr.f32.gmra.mrb[0].mxu0 %v3664
    %v3796 = vpop.f32.mrb[0].mxu0
    %v3797 = vadd.f32 0.0, %v3796
    %v3798 = vpop.f32.mrb[0].mxu0
    %3799 = vmatprep.mubr.f32.mxu0 0.0
    %3800 = vmatmul.mubr.f32.gmra.mrb[0].mxu0 %v3666
    %v3801 = vpop.f32.mrb[0].mxu0
    %v3802 = vadd.f32 0.0, %v3801
    %v3803 = vpop.f32.mrb[0].mxu0
    %3804 = vmatprep.mubr.f32.mxu0 0.0
    %3805 = vmatmul.mubr.f32.gmra.mrb[0].mxu0 %v3668
    %v3806 = vpop.f32.mrb[0].mxu0
    %v3807 = vadd.f32 0.0, %v3806
    %v3808 = vpop.f32.mrb[0].mxu0
    %3809 = vmatprep.mubr.f32.mxu0 0.0
    %3810 = vmatmul.mubr.f32.gmra.mrb[0].mxu0 %v3670
    %v3811 = vpop.f32.mrb[0].mxu0
    %v3812 = vadd.f32 0.0, %v3811
    %v3813 = vpop.f32.mrb[0].mxu0
    %3814 = vmatprep.mubr.f32.mxu0 0.0
    %3815 = vmatmul.mubr.f32.gmra.mrb[0].mxu0 %v3672
    %v3816 = vpop.f32.mrb[0].mxu0
    %v3817 = vadd.f32 0.0, %v3816
    %v3818 = vpop.f32.mrb[0].mxu0
    %3819 = vmatprep.mubr.f32.mxu0 0.0
    %3820 = vmatmul.mubr.f32.gmra.mrb[0].mxu0 %v3674
    %v3821 = vpop.f32.mrb[0].mxu0
    %v3822 = vadd.f32 0.0, %v3821
    %v3823 = vpop.f32.mrb[0].mxu0
    %3824 = vmatprep.mubr.f32.mxu0 0.0
    %3825 = vmatmul.mubr.f32.gmra.mrb[0].mxu0 %v3676
    %v3826 = vpop.f32.mrb[0].mxu0
    %v3827 = vadd.f32 0.0, %v3826
    %v3828 = vpop.f32.mrb[0].mxu0
    %3829 = vmatprep.mubr.f32.mxu0 0.0
    %3830 = vmatmul.mubr.f32.gmra.mrb[0].mxu0 %v3678
    %v3831 = vpop.f32.mrb[0].mxu0
    %v3832 = vadd.f32 0.0, %v3831
    %v3833 = vpop.f32.mrb[0].mxu0
    %3834 = vmatprep.mubr.f32.mxu0 0.0
    %3835 = vmatmul.mubr.f32.gmra.mrb[0].mxu0 %v3680
    %v3836 = vpop.f32.mrb[0].mxu0
    %v3837 = vadd.f32 0.0, %v3836
    %v3838 = vpop.f32.mrb[0].mxu0
    %3839 = vmatprep.mubr.f32.mxu0 0.0
    %3840 = vmatmul.mubr.f32.gmra.mrb[0].mxu0 %v3682
    %v3841 = vpop.f32.mrb[0].mxu0
    %v3842 = vadd.f32 0.0, %v3841
    %v3843 = vpop.f32.mrb[0].mxu0
    %3844 = vmatprep.mubr.f32.mxu0 0.0
    %3845 = vmatmul.mubr.f32.gmra.mrb[0].mxu0 %v3684
    %v3846 = vpop.f32.mrb[0].mxu0
    %v3847 = vadd.f32 0.0, %v3846
    %v3848 = vpop.f32.mrb[0].mxu0
    %3849 = vmatprep.mubr.f32.mxu0 0.0
    %3850 = vmatmul.mubr.f32.gmra.mrb[0].mxu0 %v3686
    %v3851 = vpop.f32.mrb[0].mxu0
    %v3852 = vadd.f32 0.0, %v3851
    %v3853 = vpop.f32.mrb[0].mxu0
    %3854 = vmatprep.mubr.f32.mxu0 0.0
    %3855 = vmatmul.mubr.f32.gmra.mrb[0].mxu0 %v3688
    %v3856 = vpop.f32.mrb[0].mxu0
    %v3857 = vadd.f32 0.0, %v3856
    %v3858 = vpop.f32.mrb[0].mxu0
    %3859 = vmatprep.mubr.f32.mxu0 0.0
    %3860 = vmatmul.mubr.f32.gmra.mrb[0].mxu0 %v3690
    %v3861 = vpop.f32.mrb[0].mxu0
    %v3862 = vadd.f32 0.0, %v3861
    %v3863 = vpop.f32.mrb[0].mxu0
    %3864 = vmatprep.mubr.f32.mxu0 0.0
    %3865 = vmatmul.mubr.f32.gmra.mrb[0].mxu0 %v3692
    %v3866 = vpop.f32.mrb[0].mxu0
    %v3867 = vadd.f32 0.0, %v3866
    %v3868 = vpop.f32.mrb[0].mxu0
    %3869 = vmatprep.mubr.f32.mxu0 0.0
    %3870 = vmatmul.mubr.f32.gmra.mrb[0].mxu0 %v3694
    %v3871 = vpop.f32.mrb[0].mxu0
    %v3872 = vadd.f32 0.0, %v3871
    %v3873 = vpop.f32.mrb[0].mxu0
    %3874 = vmatprep.mubr.f32.mxu0 0.0
    %3875 = vmatmul.mubr.f32.gmra.mrb[0].mxu0 %v3696
    %v3876 = vpop.f32.mrb[0].mxu0
    %v3877 = vadd.f32 0.0, %v3876
    %v3878 = vpop.f32.mrb[0].mxu0
    %3879 = vmatprep.mubr.f32.mxu0 0.0
    %3880 = vmatmul.mubr.f32.gmra.mrb[0].mxu0 %v3698
    %v3881 = vpop.f32.mrb[0].mxu0
    %v3882 = vadd.f32 0.0, %v3881
    %v3883 = vpop.f32.mrb[0].mxu0
    %3884 = vmatprep.mubr.f32.mxu0 0.0
    %3885 = vmatmul.mubr.f32.gmra.mrb[0].mxu0 %v3700
    %v3886 = vpop.f32.mrb[0].mxu0
    %v3887 = vadd.f32 0.0, %v3886
    %v3888 = vpop.f32.mrb[0].mxu0
    %3889 = vmatprep.mubr.f32.mxu0 0.0
    %3890 = vmatmul.mubr.f32.gmra.mrb[0].mxu0 %v3702
    %v3891 = vpop.f32.mrb[0].mxu0
    %v3892 = vadd.f32 0.0, %v3891
    %v3893 = vpop.f32.mrb[0].mxu0
    %3894 = vmatprep.mubr.f32.mxu0 0.0
    %3895 = vmatmul.mubr.f32.gmra.mrb[0].mxu0 %v3704
    %v3896 = vpop.f32.mrb[0].mxu0
    %v3897 = vadd.f32 0.0, %v3896
    %v3898 = vpop.f32.mrb[0].mxu0
    %3899 = vmatprep.mubr.f32.mxu0 0.0
    %3900 = vmatmul.mubr.f32.gmra.mrb[0].mxu0 %v3706
    %v3901 = vpop.f32.mrb[0].mxu0
    %v3902 = vadd.f32 0.0, %v3901
    %v3903 = vpop.f32.mrb[0].mxu0
    %3904 = vmatprep.mubr.f32.mxu0 0.0
    %3905 = vmatmul.mubr.f32.gmra.mrb[0].mxu0 %v3708
    %v3906 = vpop.f32.mrb[0].mxu0
    %v3907 = vadd.f32 0.0, %v3906
    %v3908 = vpop.f32.mrb[0].mxu0
    %3909 = vmatprep.mubr.f32.mxu0 0.0
    %3910 = vmatmul.mubr.f32.gmra.mrb[0].mxu0 %v3710
    %v3911 = vpop.f32.mrb[0].mxu0
    %v3912 = vadd.f32 0.0, %v3911
    %v3913 = vpop.f32.mrb[0].mxu0
    %3914 = vmatprep.mubr.f32.mxu0 0.0
    %3915 = vmatmul.mubr.f32.gmra.mrb[0].mxu0 %v3712
    %v3916 = vpop.f32.mrb[0].mxu0
    %v3917 = vadd.f32 0.0, %v3916
    %v3918 = vpop.f32.mrb[0].mxu0
    %3919 = vmatprep.mubr.f32.mxu0 0.0
    %3920 = vmatmul.mubr.f32.gmra.mrb[0].mxu0 %v3714
    %v3921 = vpop.f32.mrb[0].mxu0
    %v3922 = vadd.f32 0.0, %v3921
    %v3923 = vpop.f32.mrb[0].mxu0
    %3924 = vmatprep.mubr.f32.mxu0 0.0
    %3925 = vmatmul.mubr.f32.gmra.mrb[0].mxu0 %v3716
    %v3926 = vpop.f32.mrb[0].mxu0
    %v3927 = vadd.f32 0.0, %v3926
    %v3928 = vpop.f32.mrb[0].mxu0
    %3929 = vmatprep.mubr.f32.mxu0 0.0
    %3930 = vmatmul.mubr.f32.gmra.mrb[0].mxu0 %v3718
    %v3931 = vpop.f32.mrb[0].mxu0
    %v3932 = vadd.f32 0.0, %v3931
    %v3933 = vpop.f32.mrb[0].mxu0
    %3934 = vdwg.mxu0
    %v3935 = vadd.f32 %v3564, %v3787
    %v3936 = vadd.f32 %v3565, %v3792
    %v3937 = vadd.f32 %v3566, %v3797
    %v3938 = vadd.f32 %v3567, %v3802
    %v3939 = vadd.f32 %v3568, %v3807
    %v3940 = vadd.f32 %v3569, %v3812
    %v3941 = vadd.f32 %v3570, %v3817
    %v3942 = vadd.f32 %v3571, %v3822
    %v3943 = vadd.f32 %v3572, %v3827
    %v3944 = vadd.f32 %v3573, %v3832
    %v3945 = vadd.f32 %v3574, %v3837
    %v3946 = vadd.f32 %v3575, %v3842
    %v3947 = vadd.f32 %v3576, %v3847
    %v3948 = vadd.f32 %v3577, %v3852
    %v3949 = vadd.f32 %v3578, %v3857
    %v3950 = vadd.f32 %v3579, %v3862
    %v3951 = vadd.f32 %v3580, %v3867
    %v3952 = vadd.f32 %v3581, %v3872
    %v3953 = vadd.f32 %v3582, %v3877
    %v3954 = vadd.f32 %v3583, %v3882
    %v3955 = vadd.f32 %v3584, %v3887
    %v3956 = vadd.f32 %v3585, %v3892
    %v3957 = vadd.f32 %v3586, %v3897
    %v3958 = vadd.f32 %v3587, %v3902
    %v3959 = vadd.f32 %v3588, %v3907
    %v3960 = vadd.f32 %v3589, %v3912
    %v3961 = vadd.f32 %v3590, %v3917
    %v3962 = vadd.f32 %v3591, %v3922
    %v3963 = vadd.f32 %v3592, %v3927
    %v3964 = vadd.f32 %v3593, %v3932
    %s3965 = scalar_lea.vmem %s4, 112
    %v3966 = vld [vmem:[%s3965] sm:$0xff]
    %v3967 = vld [vmem:[%s3965 + $0x8] sm:$0xff]
    %vm3968 = vcmask 1041408
    %v3969 = vrot.slane %v1554, 6
    %v3970 = vrot.slane %v1555, 6
    %v3971 = vsel %vm3968, %v3969, %v3970
    %v3972 = vrot.slane %v1556, 6
    %v3973 = vsel %vm3968, %v3970, %v3972
    %v3974 = vrot.slane %v1557, 6
    %v3975 = vsel %vm3968, %v3972, %v3974
    %v3976 = vrot.slane %v1558, 6
    %v3977 = vsel %vm3968, %v3974, %v3976
    %v3978 = vrot.slane %v1559, 6
    %v3979 = vsel %vm3968, %v3976, %v3978
    %v3980 = vrot.slane %v1560, 6
    %v3981 = vsel %vm3968, %v3978, %v3980
    %v3982 = vrot.slane %v1561, 6
    %v3983 = vsel %vm3968, %v3980, %v3982
    %v3984 = vrot.slane %v1562, 6
    %v3985 = vsel %vm3968, %v3982, %v3984
    %v3986 = vrot.slane %v1563, 6
    %v3987 = vsel %vm3968, %v3984, %v3986
    %v3988 = vrot.slane %v1564, 6
    %v3989 = vsel %vm3968, %v3986, %v3988
    %v3990 = vrot.slane %v1565, 6
    %v3991 = vsel %vm3968, %v3988, %v3990
    %v3992 = vrot.slane %v1566, 6
    %v3993 = vsel %vm3968, %v3990, %v3992
    %v3994 = vrot.slane %v1567, 6
    %v3995 = vsel %vm3968, %v3992, %v3994
    %v3996 = vrot.slane %v1568, 6
    %v3997 = vsel %vm3968, %v3994, %v3996
    %v3998 = vrot.slane %v1569, 6
    %v3999 = vsel %vm3968, %v3996, %v3998
    %v4000 = vrot.slane %v1570, 6
    %v4001 = vsel %vm3968, %v3998, %v4000
    %v4002 = vrot.slane %v1571, 6
    %v4003 = vsel %vm3968, %v4000, %v4002
    %v4004 = vrot.slane %v1572, 6
    %v4005 = vsel %vm3968, %v4002, %v4004
    %v4006 = vrot.slane %v1573, 6
    %v4007 = vsel %vm3968, %v4004, %v4006
    %v4008 = vrot.slane %v1574, 6
    %v4009 = vsel %vm3968, %v4006, %v4008
    %v4010 = vrot.slane %v1575, 6
    %v4011 = vsel %vm3968, %v4008, %v4010
    %v4012 = vrot.slane %v1576, 6
    %v4013 = vsel %vm3968, %v4010, %v4012
    %v4014 = vrot.slane %v1577, 6
    %v4015 = vsel %vm3968, %v4012, %v4014
    %v4016 = vrot.slane %v1578, 6
    %v4017 = vsel %vm3968, %v4014, %v4016
    %v4018 = vrot.slane %v1579, 6
    %v4019 = vsel %vm3968, %v4016, %v4018
    %v4020 = vrot.slane %v1580, 6
    %v4021 = vsel %vm3968, %v4018, %v4020
    %v4022 = vrot.slane %v1581, 6
    %v4023 = vsel %vm3968, %v4020, %v4022
    %v4024 = vrot.slane %v1582, 6
    %v4025 = vsel %vm3968, %v4022, %v4024
    %v4026 = vrot.slane %v1583, 6
    %v4027 = vsel %vm3968, %v4024, %v4026
    %v4028 = vrot.slane %v1584, 6
    %v4029 = vsel %vm3968, %v4026, %v4028
    %v4030 = vsel %vm1684, %v3971, 0
    %v4032 = vsel %vm1684, %v3973, 0
    %v4034 = vsel %vm1684, %v3975, 0
    %v4036 = vsel %vm1684, %v3977, 0
    %v4038 = vsel %vm1684, %v3979, 0
    %v4040 = vsel %vm1684, %v3981, 0
    %v4042 = vsel %vm1684, %v3983, 0
    %v4044 = vsel %vm1684, %v3985, 0
    %v4046 = vsel %vm1684, %v3987, 0
    %v4048 = vsel %vm1684, %v3989, 0
    %v4050 = vsel %vm1684, %v3991, 0
    %v4052 = vsel %vm1684, %v3993, 0
    %v4054 = vsel %vm1684, %v3995, 0
    %v4056 = vsel %vm1684, %v3997, 0
    %v4058 = vsel %vm1684, %v3999, 0
    %v4060 = vsel %vm1684, %v4001, 0
    %v4062 = vsel %vm1684, %v4003, 0
    %v4064 = vsel %vm1684, %v4005, 0
    %v4066 = vsel %vm1684, %v4007, 0
    %v4068 = vsel %vm1684, %v4009, 0
    %v4070 = vsel %vm1684, %v4011, 0
    %v4072 = vsel %vm1684, %v4013, 0
    %v4074 = vsel %vm1684, %v4015, 0
    %v4076 = vsel %vm1684, %v4017, 0
    %v4078 = vsel %vm1684, %v4019, 0
    %v4080 = vsel %vm1684, %v4021, 0
    %v4082 = vsel %vm1684, %v4023, 0
    %v4084 = vsel %vm1684, %v4025, 0
    %v4086 = vsel %vm1684, %v4027, 0
    %v4088 = vsel %vm1684, %v4029, 0
    %4090 = vmatprep.subr.mxu0 0.0
    %4091 = vmatpush1.msra.mxu0 %v3966
    %4092 = vmatprep.subr.mxu0 0.0
    %4093 = vmatpush1.msra.mxu0 %v3967
    %4094 = vmatprep.subr.mxu0 0.0
    %4095 = vmatpush1.msra.mxu0 0.0
    %4096 = vmatprep.subr.mxu0 0.0
    %4097 = vmatpush1.msra.mxu0 0.0
    %4098 = vmatprep.subr.mxu0 0.0
    %4099 = vmatpush1.msra.mxu0 0.0
    %4100 = vmatprep.subr.mxu0 0.0
    %4101 = vmatpush1.msra.mxu0 0.0
    %4102 = vmatprep.subr.mxu0 0.0
    %4103 = vmatpush1.msra.mxu0 0.0
    %4104 = vmatprep.subr.mxu0 0.0
    %4105 = vmatpush1.msra.mxu0 0.0
    %4106 = vmatprep.subr.mxu0 0.0
    %4107 = vmatpush1.msra.mxu0 0.0
    %4108 = vmatprep.subr.mxu0 0.0
    %4109 = vmatpush1.msra.mxu0 0.0
    %4110 = vmatprep.subr.mxu0 0.0
    %4111 = vmatpush1.msra.mxu0 0.0
    %4112 = vmatprep.subr.mxu0 0.0
    %4113 = vmatpush1.msra.mxu0 0.0
    %4114 = vmatprep.subr.mxu0 0.0
    %4115 = vmatpush1.msra.mxu0 0.0
    %4116 = vmatprep.subr.mxu0 0.0
    %4117 = vmatpush1.msra.mxu0 0.0
    %4118 = vmatprep.subr.mxu0 0.0
    %4119 = vmatpush1.msra.mxu0 0.0
    %4120 = vmatprep.subr.mxu0 0.0
    %4121 = vmatpush1.msra.mxu0 0.0
    %4122 = vmatprep.subr.mxu0 0.0
    %4123 = vmatpush1.msra.mxu0 0.0
    %4124 = vmatprep.subr.mxu0 0.0
    %4125 = vmatpush1.msra.mxu0 0.0
    %4126 = vmatprep.subr.mxu0 0.0
    %4127 = vmatpush1.msra.mxu0 0.0
    %4128 = vmatprep.subr.mxu0 0.0
    %4129 = vmatpush1.msra.mxu0 0.0
    %4130 = vmatprep.subr.mxu0 0.0
    %4131 = vmatpush1.msra.mxu0 0.0
    %4132 = vmatprep.subr.mxu0 0.0
    %4133 = vmatpush1.msra.mxu0 0.0
    %4134 = vmatprep.subr.mxu0 0.0
    %4135 = vmatpush1.msra.mxu0 0.0
    %4136 = vmatprep.subr.mxu0 0.0
    %4137 = vmatpush1.msra.mxu0 0.0
    %4138 = vmatprep.subr.mxu0 0.0
    %4139 = vmatpush1.msra.mxu0 0.0
    %4140 = vmatprep.subr.mxu0 0.0
    %4141 = vmatpush1.msra.mxu0 0.0
    %4142 = vmatprep.subr.mxu0 0.0
    %4143 = vmatpush1.msra.mxu0 0.0
    %4144 = vmatprep.subr.mxu0 0.0
    %4145 = vmatpush1.msra.mxu0 0.0
    %4146 = vmatprep.subr.mxu0 0.0
    %4147 = vmatpush1.msra.mxu0 0.0
    %4148 = vmatprep.subr.mxu0 0.0
    %4149 = vmatpush1.msra.mxu0 0.0
    %4150 = vmatprep.subr.mxu0 0.0
    %4151 = vmatpush1.msra.mxu0 0.0
    %4152 = vmatprep.subr.mxu0 0.0
    %4153 = vmatpush1.msra.mxu0 0.0
    %4154 = vmatprep.mubr.f32.mxu0 0.0
    %4155 = vmatmul.mubr.f32.gmra.mrb[0].mxu0 %v4030
    %v4156 = vpop.f32.mrb[0].mxu0
    %v4157 = vadd.f32 0.0, %v4156
    %v4158 = vpop.f32.mrb[0].mxu0
    %4159 = vmatprep.mubr.f32.mxu0 0.0
    %4160 = vmatmul.mubr.f32.gmra.mrb[0].mxu0 %v4032
    %v4161 = vpop.f32.mrb[0].mxu0
    %v4162 = vadd.f32 0.0, %v4161
    %v4163 = vpop.f32.mrb[0].mxu0
    %4164 = vmatprep.mubr.f32.mxu0 0.0
    %4165 = vmatmul.mubr.f32.gmra.mrb[0].mxu0 %v4034
    %v4166 = vpop.f32.mrb[0].mxu0
    %v4167 = vadd.f32 0.0, %v4166
    %v4168 = vpop.f32.mrb[0].mxu0
    %4169 = vmatprep.mubr.f32.mxu0 0.0
    %4170 = vmatmul.mubr.f32.gmra.mrb[0].mxu0 %v4036
    %v4171 = vpop.f32.mrb[0].mxu0
    %v4172 = vadd.f32 0.0, %v4171
    %v4173 = vpop.f32.mrb[0].mxu0
    %4174 = vmatprep.mubr.f32.mxu0 0.0
    %4175 = vmatmul.mubr.f32.gmra.mrb[0].mxu0 %v4038
    %v4176 = vpop.f32.mrb[0].mxu0
    %v4177 = vadd.f32 0.0, %v4176
    %v4178 = vpop.f32.mrb[0].mxu0
    %4179 = vmatprep.mubr.f32.mxu0 0.0
    %4180 = vmatmul.mubr.f32.gmra.mrb[0].mxu0 %v4040
    %v4181 = vpop.f32.mrb[0].mxu0
    %v4182 = vadd.f32 0.0, %v4181
    %v4183 = vpop.f32.mrb[0].mxu0
    %4184 = vmatprep.mubr.f32.mxu0 0.0
    %4185 = vmatmul.mubr.f32.gmra.mrb[0].mxu0 %v4042
    %v4186 = vpop.f32.mrb[0].mxu0
    %v4187 = vadd.f32 0.0, %v4186
    %v4188 = vpop.f32.mrb[0].mxu0
    %4189 = vmatprep.mubr.f32.mxu0 0.0
    %4190 = vmatmul.mubr.f32.gmra.mrb[0].mxu0 %v4044
    %v4191 = vpop.f32.mrb[0].mxu0
    %v4192 = vadd.f32 0.0, %v4191
    %v4193 = vpop.f32.mrb[0].mxu0
    %4194 = vmatprep.mubr.f32.mxu0 0.0
    %4195 = vmatmul.mubr.f32.gmra.mrb[0].mxu0 %v4046
    %v4196 = vpop.f32.mrb[0].mxu0
    %v4197 = vadd.f32 0.0, %v4196
    %v4198 = vpop.f32.mrb[0].mxu0
    %4199 = vmatprep.mubr.f32.mxu0 0.0
    %4200 = vmatmul.mubr.f32.gmra.mrb[0].mxu0 %v4048
    %v4201 = vpop.f32.mrb[0].mxu0
    %v4202 = vadd.f32 0.0, %v4201
    %v4203 = vpop.f32.mrb[0].mxu0
    %4204 = vmatprep.mubr.f32.mxu0 0.0
    %4205 = vmatmul.mubr.f32.gmra.mrb[0].mxu0 %v4050
    %v4206 = vpop.f32.mrb[0].mxu0
    %v4207 = vadd.f32 0.0, %v4206
    %v4208 = vpop.f32.mrb[0].mxu0
    %4209 = vmatprep.mubr.f32.mxu0 0.0
    %4210 = vmatmul.mubr.f32.gmra.mrb[0].mxu0 %v4052
    %v4211 = vpop.f32.mrb[0].mxu0
    %v4212 = vadd.f32 0.0, %v4211
    %v4213 = vpop.f32.mrb[0].mxu0
    %4214 = vmatprep.mubr.f32.mxu0 0.0
    %4215 = vmatmul.mubr.f32.gmra.mrb[0].mxu0 %v4054
    %v4216 = vpop.f32.mrb[0].mxu0
    %v4217 = vadd.f32 0.0, %v4216
    %v4218 = vpop.f32.mrb[0].mxu0
    %4219 = vmatprep.mubr.f32.mxu0 0.0
    %4220 = vmatmul.mubr.f32.gmra.mrb[0].mxu0 %v4056
    %v4221 = vpop.f32.mrb[0].mxu0
    %v4222 = vadd.f32 0.0, %v4221
    %v4223 = vpop.f32.mrb[0].mxu0
    %4224 = vmatprep.mubr.f32.mxu0 0.0
    %4225 = vmatmul.mubr.f32.gmra.mrb[0].mxu0 %v4058
    %v4226 = vpop.f32.mrb[0].mxu0
    %v4227 = vadd.f32 0.0, %v4226
    %v4228 = vpop.f32.mrb[0].mxu0
    %4229 = vmatprep.mubr.f32.mxu0 0.0
    %4230 = vmatmul.mubr.f32.gmra.mrb[0].mxu0 %v4060
    %v4231 = vpop.f32.mrb[0].mxu0
    %v4232 = vadd.f32 0.0, %v4231
    %v4233 = vpop.f32.mrb[0].mxu0
    %4234 = vmatprep.mubr.f32.mxu0 0.0
    %4235 = vmatmul.mubr.f32.gmra.mrb[0].mxu0 %v4062
    %v4236 = vpop.f32.mrb[0].mxu0
    %v4237 = vadd.f32 0.0, %v4236
    %v4238 = vpop.f32.mrb[0].mxu0
    %4239 = vmatprep.mubr.f32.mxu0 0.0
    %4240 = vmatmul.mubr.f32.gmra.mrb[0].mxu0 %v4064
    %v4241 = vpop.f32.mrb[0].mxu0
    %v4242 = vadd.f32 0.0, %v4241
    %v4243 = vpop.f32.mrb[0].mxu0
    %4244 = vmatprep.mubr.f32.mxu0 0.0
    %4245 = vmatmul.mubr.f32.gmra.mrb[0].mxu0 %v4066
    %v4246 = vpop.f32.mrb[0].mxu0
    %v4247 = vadd.f32 0.0, %v4246
    %v4248 = vpop.f32.mrb[0].mxu0
    %4249 = vmatprep.mubr.f32.mxu0 0.0
    %4250 = vmatmul.mubr.f32.gmra.mrb[0].mxu0 %v4068
    %v4251 = vpop.f32.mrb[0].mxu0
    %v4252 = vadd.f32 0.0, %v4251
    %v4253 = vpop.f32.mrb[0].mxu0
    %4254 = vmatprep.mubr.f32.mxu0 0.0
    %4255 = vmatmul.mubr.f32.gmra.mrb[0].mxu0 %v4070
    %v4256 = vpop.f32.mrb[0].mxu0
    %v4257 = vadd.f32 0.0, %v4256
    %v4258 = vpop.f32.mrb[0].mxu0
    %4259 = vmatprep.mubr.f32.mxu0 0.0
    %4260 = vmatmul.mubr.f32.gmra.mrb[0].mxu0 %v4072
    %v4261 = vpop.f32.mrb[0].mxu0
    %v4262 = vadd.f32 0.0, %v4261
    %v4263 = vpop.f32.mrb[0].mxu0
    %4264 = vmatprep.mubr.f32.mxu0 0.0
    %4265 = vmatmul.mubr.f32.gmra.mrb[0].mxu0 %v4074
    %v4266 = vpop.f32.mrb[0].mxu0
    %v4267 = vadd.f32 0.0, %v4266
    %v4268 = vpop.f32.mrb[0].mxu0
    %4269 = vmatprep.mubr.f32.mxu0 0.0
    %4270 = vmatmul.mubr.f32.gmra.mrb[0].mxu0 %v4076
    %v4271 = vpop.f32.mrb[0].mxu0
    %v4272 = vadd.f32 0.0, %v4271
    %v4273 = vpop.f32.mrb[0].mxu0
    %4274 = vmatprep.mubr.f32.mxu0 0.0
    %4275 = vmatmul.mubr.f32.gmra.mrb[0].mxu0 %v4078
    %v4276 = vpop.f32.mrb[0].mxu0
    %v4277 = vadd.f32 0.0, %v4276
    %v4278 = vpop.f32.mrb[0].mxu0
    %4279 = vmatprep.mubr.f32.mxu0 0.0
    %4280 = vmatmul.mubr.f32.gmra.mrb[0].mxu0 %v4080
    %v4281 = vpop.f32.mrb[0].mxu0
    %v4282 = vadd.f32 0.0, %v4281
    %v4283 = vpop.f32.mrb[0].mxu0
    %4284 = vmatprep.mubr.f32.mxu0 0.0
    %4285 = vmatmul.mubr.f32.gmra.mrb[0].mxu0 %v4082
    %v4286 = vpop.f32.mrb[0].mxu0
    %v4287 = vadd.f32 0.0, %v4286
    %v4288 = vpop.f32.mrb[0].mxu0
    %4289 = vmatprep.mubr.f32.mxu0 0.0
    %4290 = vmatmul.mubr.f32.gmra.mrb[0].mxu0 %v4084
    %v4291 = vpop.f32.mrb[0].mxu0
    %v4292 = vadd.f32 0.0, %v4291
    %v4293 = vpop.f32.mrb[0].mxu0
    %4294 = vmatprep.mubr.f32.mxu0 0.0
    %4295 = vmatmul.mubr.f32.gmra.mrb[0].mxu0 %v4086
    %v4296 = vpop.f32.mrb[0].mxu0
    %v4297 = vadd.f32 0.0, %v4296
    %v4298 = vpop.f32.mrb[0].mxu0
    %4299 = vmatprep.mubr.f32.mxu0 0.0
    %4300 = vmatmul.mubr.f32.gmra.mrb[0].mxu0 %v4088
    %v4301 = vpop.f32.mrb[0].mxu0
    %v4302 = vadd.f32 0.0, %v4301
    %v4303 = vpop.f32.mrb[0].mxu0
    %4304 = vdwg.mxu0
    %v4305 = vadd.f32 %v3935, %v4157
    %v4306 = vadd.f32 %v3936, %v4162
    %v4307 = vadd.f32 %v3937, %v4167
    %v4308 = vadd.f32 %v3938, %v4172
    %v4309 = vadd.f32 %v3939, %v4177
    %v4310 = vadd.f32 %v3940, %v4182
    %v4311 = vadd.f32 %v3941, %v4187
    %v4312 = vadd.f32 %v3942, %v4192
    %v4313 = vadd.f32 %v3943, %v4197
    %v4314 = vadd.f32 %v3944, %v4202
    %v4315 = vadd.f32 %v3945, %v4207
    %v4316 = vadd.f32 %v3946, %v4212
    %v4317 = vadd.f32 %v3947, %v4217
    %v4318 = vadd.f32 %v3948, %v4222
    %v4319 = vadd.f32 %v3949, %v4227
    %v4320 = vadd.f32 %v3950, %v4232
    %v4321 = vadd.f32 %v3951, %v4237
    %v4322 = vadd.f32 %v3952, %v4242
    %v4323 = vadd.f32 %v3953, %v4247
    %v4324 = vadd.f32 %v3954, %v4252
    %v4325 = vadd.f32 %v3955, %v4257
    %v4326 = vadd.f32 %v3956, %v4262
    %v4327 = vadd.f32 %v3957, %v4267
    %v4328 = vadd.f32 %v3958, %v4272
    %v4329 = vadd.f32 %v3959, %v4277
    %v4330 = vadd.f32 %v3960, %v4282
    %v4331 = vadd.f32 %v3961, %v4287
    %v4332 = vadd.f32 %v3962, %v4292
    %v4333 = vadd.f32 %v3963, %v4297
    %v4334 = vadd.f32 %v3964, %v4302
    %s4335 = scalar_lea.vmem %s4, 128
    %v4336 = vld [vmem:[%s4335] sm:$0xff]
    %v4337 = vld [vmem:[%s4335 + $0x8] sm:$0xff]
    %vm4338 = vcmask 1040384
    %v4339 = vrot.slane %v1554, 7
    %v4340 = vrot.slane %v1555, 7
    %v4341 = vsel %vm4338, %v4339, %v4340
    %v4342 = vrot.slane %v1556, 7
    %v4343 = vsel %vm4338, %v4340, %v4342
    %v4344 = vrot.slane %v1557, 7
    %v4345 = vsel %vm4338, %v4342, %v4344
    %v4346 = vrot.slane %v1558, 7
    %v4347 = vsel %vm4338, %v4344, %v4346
    %v4348 = vrot.slane %v1559, 7
    %v4349 = vsel %vm4338, %v4346, %v4348
    %v4350 = vrot.slane %v1560, 7
    %v4351 = vsel %vm4338, %v4348, %v4350
    %v4352 = vrot.slane %v1561, 7
    %v4353 = vsel %vm4338, %v4350, %v4352
    %v4354 = vrot.slane %v1562, 7
    %v4355 = vsel %vm4338, %v4352, %v4354
    %v4356 = vrot.slane %v1563, 7
    %v4357 = vsel %vm4338, %v4354, %v4356
    %v4358 = vrot.slane %v1564, 7
    %v4359 = vsel %vm4338, %v4356, %v4358
    %v4360 = vrot.slane %v1565, 7
    %v4361 = vsel %vm4338, %v4358, %v4360
    %v4362 = vrot.slane %v1566, 7
    %v4363 = vsel %vm4338, %v4360, %v4362
    %v4364 = vrot.slane %v1567, 7
    %v4365 = vsel %vm4338, %v4362, %v4364
    %v4366 = vrot.slane %v1568, 7
    %v4367 = vsel %vm4338, %v4364, %v4366
    %v4368 = vrot.slane %v1569, 7
    %v4369 = vsel %vm4338, %v4366, %v4368
    %v4370 = vrot.slane %v1570, 7
    %v4371 = vsel %vm4338, %v4368, %v4370
    %v4372 = vrot.slane %v1571, 7
    %v4373 = vsel %vm4338, %v4370, %v4372
    %v4374 = vrot.slane %v1572, 7
    %v4375 = vsel %vm4338, %v4372, %v4374
    %v4376 = vrot.slane %v1573, 7
    %v4377 = vsel %vm4338, %v4374, %v4376
    %v4378 = vrot.slane %v1574, 7
    %v4379 = vsel %vm4338, %v4376, %v4378
    %v4380 = vrot.slane %v1575, 7
    %v4381 = vsel %vm4338, %v4378, %v4380
    %v4382 = vrot.slane %v1576, 7
    %v4383 = vsel %vm4338, %v4380, %v4382
    %v4384 = vrot.slane %v1577, 7
    %v4385 = vsel %vm4338, %v4382, %v4384
    %v4386 = vrot.slane %v1578, 7
    %v4387 = vsel %vm4338, %v4384, %v4386
    %v4388 = vrot.slane %v1579, 7
    %v4389 = vsel %vm4338, %v4386, %v4388
    %v4390 = vrot.slane %v1580, 7
    %v4391 = vsel %vm4338, %v4388, %v4390
    %v4392 = vrot.slane %v1581, 7
    %v4393 = vsel %vm4338, %v4390, %v4392
    %v4394 = vrot.slane %v1582, 7
    %v4395 = vsel %vm4338, %v4392, %v4394
    %v4396 = vrot.slane %v1583, 7
    %v4397 = vsel %vm4338, %v4394, %v4396
    %v4398 = vrot.slane %v1584, 7
    %v4399 = vsel %vm4338, %v4396, %v4398
    %v4400 = vsel %vm1684, %v4341, 0
    %v4402 = vsel %vm1684, %v4343, 0
    %v4404 = vsel %vm1684, %v4345, 0
    %v4406 = vsel %vm1684, %v4347, 0
    %v4408 = vsel %vm1684, %v4349, 0
    %v4410 = vsel %vm1684, %v4351, 0
    %v4412 = vsel %vm1684, %v4353, 0
    %v4414 = vsel %vm1684, %v4355, 0
    %v4416 = vsel %vm1684, %v4357, 0
    %v4418 = vsel %vm1684, %v4359, 0
    %v4420 = vsel %vm1684, %v4361, 0
    %v4422 = vsel %vm1684, %v4363, 0
    %v4424 = vsel %vm1684, %v4365, 0
    %v4426 = vsel %vm1684, %v4367, 0
    %v4428 = vsel %vm1684, %v4369, 0
    %v4430 = vsel %vm1684, %v4371, 0
    %v4432 = vsel %vm1684, %v4373, 0
    %v4434 = vsel %vm1684, %v4375, 0
    %v4436 = vsel %vm1684, %v4377, 0
    %v4438 = vsel %vm1684, %v4379, 0
    %v4440 = vsel %vm1684, %v4381, 0
    %v4442 = vsel %vm1684, %v4383, 0
    %v4444 = vsel %vm1684, %v4385, 0
    %v4446 = vsel %vm1684, %v4387, 0
    %v4448 = vsel %vm1684, %v4389, 0
    %v4450 = vsel %vm1684, %v4391, 0
    %v4452 = vsel %vm1684, %v4393, 0
    %v4454 = vsel %vm1684, %v4395, 0
    %v4456 = vsel %vm1684, %v4397, 0
    %v4458 = vsel %vm1684, %v4399, 0
    %4460 = vmatprep.subr.mxu0 0.0
    %4461 = vmatpush1.msra.mxu0 %v4336
    %4462 = vmatprep.subr.mxu0 0.0
    %4463 = vmatpush1.msra.mxu0 %v4337
    %4464 = vmatprep.subr.mxu0 0.0
    %4465 = vmatpush1.msra.mxu0 0.0
    %4466 = vmatprep.subr.mxu0 0.0
    %4467 = vmatpush1.msra.mxu0 0.0
    %4468 = vmatprep.subr.mxu0 0.0
    %4469 = vmatpush1.msra.mxu0 0.0
    %4470 = vmatprep.subr.mxu0 0.0
    %4471 = vmatpush1.msra.mxu0 0.0
    %4472 = vmatprep.subr.mxu0 0.0
    %4473 = vmatpush1.msra.mxu0 0.0
    %4474 = vmatprep.subr.mxu0 0.0
    %4475 = vmatpush1.msra.mxu0 0.0
    %4476 = vmatprep.subr.mxu0 0.0
    %4477 = vmatpush1.msra.mxu0 0.0
    %4478 = vmatprep.subr.mxu0 0.0
    %4479 = vmatpush1.msra.mxu0 0.0
    %4480 = vmatprep.subr.mxu0 0.0
    %4481 = vmatpush1.msra.mxu0 0.0
    %4482 = vmatprep.subr.mxu0 0.0
    %4483 = vmatpush1.msra.mxu0 0.0
    %4484 = vmatprep.subr.mxu0 0.0
    %4485 = vmatpush1.msra.mxu0 0.0
    %4486 = vmatprep.subr.mxu0 0.0
    %4487 = vmatpush1.msra.mxu0 0.0
    %4488 = vmatprep.subr.mxu0 0.0
    %4489 = vmatpush1.msra.mxu0 0.0
    %4490 = vmatprep.subr.mxu0 0.0
    %4491 = vmatpush1.msra.mxu0 0.0
    %4492 = vmatprep.subr.mxu0 0.0
    %4493 = vmatpush1.msra.mxu0 0.0
    %4494 = vmatprep.subr.mxu0 0.0
    %4495 = vmatpush1.msra.mxu0 0.0
    %4496 = vmatprep.subr.mxu0 0.0
    %4497 = vmatpush1.msra.mxu0 0.0
    %4498 = vmatprep.subr.mxu0 0.0
    %4499 = vmatpush1.msra.mxu0 0.0
    %4500 = vmatprep.subr.mxu0 0.0
    %4501 = vmatpush1.msra.mxu0 0.0
    %4502 = vmatprep.subr.mxu0 0.0
    %4503 = vmatpush1.msra.mxu0 0.0
    %4504 = vmatprep.subr.mxu0 0.0
    %4505 = vmatpush1.msra.mxu0 0.0
    %4506 = vmatprep.subr.mxu0 0.0
    %4507 = vmatpush1.msra.mxu0 0.0
    %4508 = vmatprep.subr.mxu0 0.0
    %4509 = vmatpush1.msra.mxu0 0.0
    %4510 = vmatprep.subr.mxu0 0.0
    %4511 = vmatpush1.msra.mxu0 0.0
    %4512 = vmatprep.subr.mxu0 0.0
    %4513 = vmatpush1.msra.mxu0 0.0
    %4514 = vmatprep.subr.mxu0 0.0
    %4515 = vmatpush1.msra.mxu0 0.0
    %4516 = vmatprep.subr.mxu0 0.0
    %4517 = vmatpush1.msra.mxu0 0.0
    %4518 = vmatprep.subr.mxu0 0.0
    %4519 = vmatpush1.msra.mxu0 0.0
    %4520 = vmatprep.subr.mxu0 0.0
    %4521 = vmatpush1.msra.mxu0 0.0
    %4522 = vmatprep.subr.mxu0 0.0
    %4523 = vmatpush1.msra.mxu0 0.0
    %4524 = vmatprep.mubr.f32.mxu0 0.0
    %4525 = vmatmul.mubr.f32.gmra.mrb[0].mxu0 %v4400
    %v4526 = vpop.f32.mrb[0].mxu0
    %v4527 = vadd.f32 0.0, %v4526
    %v4528 = vpop.f32.mrb[0].mxu0
    %4529 = vmatprep.mubr.f32.mxu0 0.0
    %4530 = vmatmul.mubr.f32.gmra.mrb[0].mxu0 %v4402
    %v4531 = vpop.f32.mrb[0].mxu0
    %v4532 = vadd.f32 0.0, %v4531
    %v4533 = vpop.f32.mrb[0].mxu0
    %4534 = vmatprep.mubr.f32.mxu0 0.0
    %4535 = vmatmul.mubr.f32.gmra.mrb[0].mxu0 %v4404
    %v4536 = vpop.f32.mrb[0].mxu0
    %v4537 = vadd.f32 0.0, %v4536
    %v4538 = vpop.f32.mrb[0].mxu0
    %4539 = vmatprep.mubr.f32.mxu0 0.0
    %4540 = vmatmul.mubr.f32.gmra.mrb[0].mxu0 %v4406
    %v4541 = vpop.f32.mrb[0].mxu0
    %v4542 = vadd.f32 0.0, %v4541
    %v4543 = vpop.f32.mrb[0].mxu0
    %4544 = vmatprep.mubr.f32.mxu0 0.0
    %4545 = vmatmul.mubr.f32.gmra.mrb[0].mxu0 %v4408
    %v4546 = vpop.f32.mrb[0].mxu0
    %v4547 = vadd.f32 0.0, %v4546
    %v4548 = vpop.f32.mrb[0].mxu0
    %4549 = vmatprep.mubr.f32.mxu0 0.0
    %4550 = vmatmul.mubr.f32.gmra.mrb[0].mxu0 %v4410
    %v4551 = vpop.f32.mrb[0].mxu0
    %v4552 = vadd.f32 0.0, %v4551
    %v4553 = vpop.f32.mrb[0].mxu0
    %4554 = vmatprep.mubr.f32.mxu0 0.0
    %4555 = vmatmul.mubr.f32.gmra.mrb[0].mxu0 %v4412
    %v4556 = vpop.f32.mrb[0].mxu0
    %v4557 = vadd.f32 0.0, %v4556
    %v4558 = vpop.f32.mrb[0].mxu0
    %4559 = vmatprep.mubr.f32.mxu0 0.0
    %4560 = vmatmul.mubr.f32.gmra.mrb[0].mxu0 %v4414
    %v4561 = vpop.f32.mrb[0].mxu0
    %v4562 = vadd.f32 0.0, %v4561
    %v4563 = vpop.f32.mrb[0].mxu0
    %4564 = vmatprep.mubr.f32.mxu0 0.0
    %4565 = vmatmul.mubr.f32.gmra.mrb[0].mxu0 %v4416
    %v4566 = vpop.f32.mrb[0].mxu0
    %v4567 = vadd.f32 0.0, %v4566
    %v4568 = vpop.f32.mrb[0].mxu0
    %4569 = vmatprep.mubr.f32.mxu0 0.0
    %4570 = vmatmul.mubr.f32.gmra.mrb[0].mxu0 %v4418
    %v4571 = vpop.f32.mrb[0].mxu0
    %v4572 = vadd.f32 0.0, %v4571
    %v4573 = vpop.f32.mrb[0].mxu0
    %4574 = vmatprep.mubr.f32.mxu0 0.0
    %4575 = vmatmul.mubr.f32.gmra.mrb[0].mxu0 %v4420
    %v4576 = vpop.f32.mrb[0].mxu0
    %v4577 = vadd.f32 0.0, %v4576
    %v4578 = vpop.f32.mrb[0].mxu0
    %4579 = vmatprep.mubr.f32.mxu0 0.0
    %4580 = vmatmul.mubr.f32.gmra.mrb[0].mxu0 %v4422
    %v4581 = vpop.f32.mrb[0].mxu0
    %v4582 = vadd.f32 0.0, %v4581
    %v4583 = vpop.f32.mrb[0].mxu0
    %4584 = vmatprep.mubr.f32.mxu0 0.0
    %4585 = vmatmul.mubr.f32.gmra.mrb[0].mxu0 %v4424
    %v4586 = vpop.f32.mrb[0].mxu0
    %v4587 = vadd.f32 0.0, %v4586
    %v4588 = vpop.f32.mrb[0].mxu0
    %4589 = vmatprep.mubr.f32.mxu0 0.0
    %4590 = vmatmul.mubr.f32.gmra.mrb[0].mxu0 %v4426
    %v4591 = vpop.f32.mrb[0].mxu0
    %v4592 = vadd.f32 0.0, %v4591
    %v4593 = vpop.f32.mrb[0].mxu0
    %4594 = vmatprep.mubr.f32.mxu0 0.0
    %4595 = vmatmul.mubr.f32.gmra.mrb[0].mxu0 %v4428
    %v4596 = vpop.f32.mrb[0].mxu0
    %v4597 = vadd.f32 0.0, %v4596
    %v4598 = vpop.f32.mrb[0].mxu0
    %4599 = vmatprep.mubr.f32.mxu0 0.0
    %4600 = vmatmul.mubr.f32.gmra.mrb[0].mxu0 %v4430
    %v4601 = vpop.f32.mrb[0].mxu0
    %v4602 = vadd.f32 0.0, %v4601
    %v4603 = vpop.f32.mrb[0].mxu0
    %4604 = vmatprep.mubr.f32.mxu0 0.0
    %4605 = vmatmul.mubr.f32.gmra.mrb[0].mxu0 %v4432
    %v4606 = vpop.f32.mrb[0].mxu0
    %v4607 = vadd.f32 0.0, %v4606
    %v4608 = vpop.f32.mrb[0].mxu0
    %4609 = vmatprep.mubr.f32.mxu0 0.0
    %4610 = vmatmul.mubr.f32.gmra.mrb[0].mxu0 %v4434
    %v4611 = vpop.f32.mrb[0].mxu0
    %v4612 = vadd.f32 0.0, %v4611
    %v4613 = vpop.f32.mrb[0].mxu0
    %4614 = vmatprep.mubr.f32.mxu0 0.0
    %4615 = vmatmul.mubr.f32.gmra.mrb[0].mxu0 %v4436
    %v4616 = vpop.f32.mrb[0].mxu0
    %v4617 = vadd.f32 0.0, %v4616
    %v4618 = vpop.f32.mrb[0].mxu0
    %4619 = vmatprep.mubr.f32.mxu0 0.0
    %4620 = vmatmul.mubr.f32.gmra.mrb[0].mxu0 %v4438
    %v4621 = vpop.f32.mrb[0].mxu0
    %v4622 = vadd.f32 0.0, %v4621
    %v4623 = vpop.f32.mrb[0].mxu0
    %4624 = vmatprep.mubr.f32.mxu0 0.0
    %4625 = vmatmul.mubr.f32.gmra.mrb[0].mxu0 %v4440
    %v4626 = vpop.f32.mrb[0].mxu0
    %v4627 = vadd.f32 0.0, %v4626
    %v4628 = vpop.f32.mrb[0].mxu0
    %4629 = vmatprep.mubr.f32.mxu0 0.0
    %4630 = vmatmul.mubr.f32.gmra.mrb[0].mxu0 %v4442
    %v4631 = vpop.f32.mrb[0].mxu0
    %v4632 = vadd.f32 0.0, %v4631
    %v4633 = vpop.f32.mrb[0].mxu0
    %4634 = vmatprep.mubr.f32.mxu0 0.0
    %4635 = vmatmul.mubr.f32.gmra.mrb[0].mxu0 %v4444
    %v4636 = vpop.f32.mrb[0].mxu0
    %v4637 = vadd.f32 0.0, %v4636
    %v4638 = vpop.f32.mrb[0].mxu0
    %4639 = vmatprep.mubr.f32.mxu0 0.0
    %4640 = vmatmul.mubr.f32.gmra.mrb[0].mxu0 %v4446
    %v4641 = vpop.f32.mrb[0].mxu0
    %v4642 = vadd.f32 0.0, %v4641
    %v4643 = vpop.f32.mrb[0].mxu0
    %4644 = vmatprep.mubr.f32.mxu0 0.0
    %4645 = vmatmul.mubr.f32.gmra.mrb[0].mxu0 %v4448
    %v4646 = vpop.f32.mrb[0].mxu0
    %v4647 = vadd.f32 0.0, %v4646
    %v4648 = vpop.f32.mrb[0].mxu0
    %4649 = vmatprep.mubr.f32.mxu0 0.0
    %4650 = vmatmul.mubr.f32.gmra.mrb[0].mxu0 %v4450
    %v4651 = vpop.f32.mrb[0].mxu0
    %v4652 = vadd.f32 0.0, %v4651
    %v4653 = vpop.f32.mrb[0].mxu0
    %4654 = vmatprep.mubr.f32.mxu0 0.0
    %4655 = vmatmul.mubr.f32.gmra.mrb[0].mxu0 %v4452
    %v4656 = vpop.f32.mrb[0].mxu0
    %v4657 = vadd.f32 0.0, %v4656
    %v4658 = vpop.f32.mrb[0].mxu0
    %4659 = vmatprep.mubr.f32.mxu0 0.0
    %4660 = vmatmul.mubr.f32.gmra.mrb[0].mxu0 %v4454
    %v4661 = vpop.f32.mrb[0].mxu0
    %v4662 = vadd.f32 0.0, %v4661
    %v4663 = vpop.f32.mrb[0].mxu0
    %4664 = vmatprep.mubr.f32.mxu0 0.0
    %4665 = vmatmul.mubr.f32.gmra.mrb[0].mxu0 %v4456
    %v4666 = vpop.f32.mrb[0].mxu0
    %v4667 = vadd.f32 0.0, %v4666
    %v4668 = vpop.f32.mrb[0].mxu0
    %4669 = vmatprep.mubr.f32.mxu0 0.0
    %4670 = vmatmul.mubr.f32.gmra.mrb[0].mxu0 %v4458
    %v4671 = vpop.f32.mrb[0].mxu0
    %v4672 = vadd.f32 0.0, %v4671
    %v4673 = vpop.f32.mrb[0].mxu0
    %4674 = vdwg.mxu0
    %v4675 = vadd.f32 %v4305, %v4527
    %v4676 = vadd.f32 %v4306, %v4532
    %v4677 = vadd.f32 %v4307, %v4537
    %v4678 = vadd.f32 %v4308, %v4542
    %v4679 = vadd.f32 %v4309, %v4547
    %v4680 = vadd.f32 %v4310, %v4552
    %v4681 = vadd.f32 %v4311, %v4557
    %v4682 = vadd.f32 %v4312, %v4562
    %v4683 = vadd.f32 %v4313, %v4567
    %v4684 = vadd.f32 %v4314, %v4572
    %v4685 = vadd.f32 %v4315, %v4577
    %v4686 = vadd.f32 %v4316, %v4582
    %v4687 = vadd.f32 %v4317, %v4587
    %v4688 = vadd.f32 %v4318, %v4592
    %v4689 = vadd.f32 %v4319, %v4597
    %v4690 = vadd.f32 %v4320, %v4602
    %v4691 = vadd.f32 %v4321, %v4607
    %v4692 = vadd.f32 %v4322, %v4612
    %v4693 = vadd.f32 %v4323, %v4617
    %v4694 = vadd.f32 %v4324, %v4622
    %v4695 = vadd.f32 %v4325, %v4627
    %v4696 = vadd.f32 %v4326, %v4632
    %v4697 = vadd.f32 %v4327, %v4637
    %v4698 = vadd.f32 %v4328, %v4642
    %v4699 = vadd.f32 %v4329, %v4647
    %v4700 = vadd.f32 %v4330, %v4652
    %v4701 = vadd.f32 %v4331, %v4657
    %v4702 = vadd.f32 %v4332, %v4662
    %v4703 = vadd.f32 %v4333, %v4667
    %v4704 = vadd.f32 %v4334, %v4672
    %s4705 = scalar_lea.vmem %s4, 144
    %v4706 = vld [vmem:[%s4705] sm:$0xff]
    %v4707 = vld [vmem:[%s4705 + $0x8] sm:$0xff]
    %v4708 = vsel %vm1684, %v1583, 0
    %v4710 = vsel %vm1684, %v1584, 0
    %4712 = vmatprep.subr.mxu0 0.0
    %4713 = vmatpush1.msra.mxu0 %v4706
    %4714 = vmatprep.subr.mxu0 0.0
    %4715 = vmatpush1.msra.mxu0 %v4707
    %4716 = vmatprep.subr.mxu0 0.0
    %4717 = vmatpush1.msra.mxu0 0.0
    %4718 = vmatprep.subr.mxu0 0.0
    %4719 = vmatpush1.msra.mxu0 0.0
    %4720 = vmatprep.subr.mxu0 0.0
    %4721 = vmatpush1.msra.mxu0 0.0
    %4722 = vmatprep.subr.mxu0 0.0
    %4723 = vmatpush1.msra.mxu0 0.0
    %4724 = vmatprep.subr.mxu0 0.0
    %4725 = vmatpush1.msra.mxu0 0.0
    %4726 = vmatprep.subr.mxu0 0.0
    %4727 = vmatpush1.msra.mxu0 0.0
    %4728 = vmatprep.subr.mxu0 0.0
    %4729 = vmatpush1.msra.mxu0 0.0
    %4730 = vmatprep.subr.mxu0 0.0
    %4731 = vmatpush1.msra.mxu0 0.0
    %4732 = vmatprep.subr.mxu0 0.0
    %4733 = vmatpush1.msra.mxu0 0.0
    %4734 = vmatprep.subr.mxu0 0.0
    %4735 = vmatpush1.msra.mxu0 0.0
    %4736 = vmatprep.subr.mxu0 0.0
    %4737 = vmatpush1.msra.mxu0 0.0
    %4738 = vmatprep.subr.mxu0 0.0
    %4739 = vmatpush1.msra.mxu0 0.0
    %4740 = vmatprep.subr.mxu0 0.0
    %4741 = vmatpush1.msra.mxu0 0.0
    %4742 = vmatprep.subr.mxu0 0.0
    %4743 = vmatpush1.msra.mxu0 0.0
    %4744 = vmatprep.subr.mxu0 0.0
    %4745 = vmatpush1.msra.mxu0 0.0
    %4746 = vmatprep.subr.mxu0 0.0
    %4747 = vmatpush1.msra.mxu0 0.0
    %4748 = vmatprep.subr.mxu0 0.0
    %4749 = vmatpush1.msra.mxu0 0.0
    %4750 = vmatprep.subr.mxu0 0.0
    %4751 = vmatpush1.msra.mxu0 0.0
    %4752 = vmatprep.subr.mxu0 0.0
    %4753 = vmatpush1.msra.mxu0 0.0
    %4754 = vmatprep.subr.mxu0 0.0
    %4755 = vmatpush1.msra.mxu0 0.0
    %4756 = vmatprep.subr.mxu0 0.0
    %4757 = vmatpush1.msra.mxu0 0.0
    %4758 = vmatprep.subr.mxu0 0.0
    %4759 = vmatpush1.msra.mxu0 0.0
    %4760 = vmatprep.subr.mxu0 0.0
    %4761 = vmatpush1.msra.mxu0 0.0
    %4762 = vmatprep.subr.mxu0 0.0
    %4763 = vmatpush1.msra.mxu0 0.0
    %4764 = vmatprep.subr.mxu0 0.0
    %4765 = vmatpush1.msra.mxu0 0.0
    %4766 = vmatprep.subr.mxu0 0.0
    %4767 = vmatpush1.msra.mxu0 0.0
    %4768 = vmatprep.subr.mxu0 0.0
    %4769 = vmatpush1.msra.mxu0 0.0
    %4770 = vmatprep.subr.mxu0 0.0
    %4771 = vmatpush1.msra.mxu0 0.0
    %4772 = vmatprep.subr.mxu0 0.0
    %4773 = vmatpush1.msra.mxu0 0.0
    %4774 = vmatprep.subr.mxu0 0.0
    %4775 = vmatpush1.msra.mxu0 0.0
    %4776 = vmatprep.mubr.f32.mxu0 0.0
    %4777 = vmatmul.mubr.f32.gmra.mrb[0].mxu0 %v1964
    %v4778 = vpop.f32.mrb[0].mxu0
    %v4779 = vadd.f32 0.0, %v4778
    %v4780 = vpop.f32.mrb[0].mxu0
    %4781 = vmatprep.mubr.f32.mxu0 0.0
    %4782 = vmatmul.mubr.f32.gmra.mrb[0].mxu0 %v1966
    %v4783 = vpop.f32.mrb[0].mxu0
    %v4784 = vadd.f32 0.0, %v4783
    %v4785 = vpop.f32.mrb[0].mxu0
    %4786 = vmatprep.mubr.f32.mxu0 0.0
    %4787 = vmatmul.mubr.f32.gmra.mrb[0].mxu0 %v1968
    %v4788 = vpop.f32.mrb[0].mxu0
    %v4789 = vadd.f32 0.0, %v4788
    %v4790 = vpop.f32.mrb[0].mxu0
    %4791 = vmatprep.mubr.f32.mxu0 0.0
    %4792 = vmatmul.mubr.f32.gmra.mrb[0].mxu0 %v1970
    %v4793 = vpop.f32.mrb[0].mxu0
    %v4794 = vadd.f32 0.0, %v4793
    %v4795 = vpop.f32.mrb[0].mxu0
    %4796 = vmatprep.mubr.f32.mxu0 0.0
    %4797 = vmatmul.mubr.f32.gmra.mrb[0].mxu0 %v1972
    %v4798 = vpop.f32.mrb[0].mxu0
    %v4799 = vadd.f32 0.0, %v4798
    %v4800 = vpop.f32.mrb[0].mxu0
    %4801 = vmatprep.mubr.f32.mxu0 0.0
    %4802 = vmatmul.mubr.f32.gmra.mrb[0].mxu0 %v1974
    %v4803 = vpop.f32.mrb[0].mxu0
    %v4804 = vadd.f32 0.0, %v4803
    %v4805 = vpop.f32.mrb[0].mxu0
    %4806 = vmatprep.mubr.f32.mxu0 0.0
    %4807 = vmatmul.mubr.f32.gmra.mrb[0].mxu0 %v1976
    %v4808 = vpop.f32.mrb[0].mxu0
    %v4809 = vadd.f32 0.0, %v4808
    %v4810 = vpop.f32.mrb[0].mxu0
    %4811 = vmatprep.mubr.f32.mxu0 0.0
    %4812 = vmatmul.mubr.f32.gmra.mrb[0].mxu0 %v1978
    %v4813 = vpop.f32.mrb[0].mxu0
    %v4814 = vadd.f32 0.0, %v4813
    %v4815 = vpop.f32.mrb[0].mxu0
    %4816 = vmatprep.mubr.f32.mxu0 0.0
    %4817 = vmatmul.mubr.f32.gmra.mrb[0].mxu0 %v1980
    %v4818 = vpop.f32.mrb[0].mxu0
    %v4819 = vadd.f32 0.0, %v4818
    %v4820 = vpop.f32.mrb[0].mxu0
    %4821 = vmatprep.mubr.f32.mxu0 0.0
    %4822 = vmatmul.mubr.f32.gmra.mrb[0].mxu0 %v1982
    %v4823 = vpop.f32.mrb[0].mxu0
    %v4824 = vadd.f32 0.0, %v4823
    %v4825 = vpop.f32.mrb[0].mxu0
    %4826 = vmatprep.mubr.f32.mxu0 0.0
    %4827 = vmatmul.mubr.f32.gmra.mrb[0].mxu0 %v1984
    %v4828 = vpop.f32.mrb[0].mxu0
    %v4829 = vadd.f32 0.0, %v4828
    %v4830 = vpop.f32.mrb[0].mxu0
    %4831 = vmatprep.mubr.f32.mxu0 0.0
    %4832 = vmatmul.mubr.f32.gmra.mrb[0].mxu0 %v1986
    %v4833 = vpop.f32.mrb[0].mxu0
    %v4834 = vadd.f32 0.0, %v4833
    %v4835 = vpop.f32.mrb[0].mxu0
    %4836 = vmatprep.mubr.f32.mxu0 0.0
    %4837 = vmatmul.mubr.f32.gmra.mrb[0].mxu0 %v1988
    %v4838 = vpop.f32.mrb[0].mxu0
    %v4839 = vadd.f32 0.0, %v4838
    %v4840 = vpop.f32.mrb[0].mxu0
    %4841 = vmatprep.mubr.f32.mxu0 0.0
    %4842 = vmatmul.mubr.f32.gmra.mrb[0].mxu0 %v1990
    %v4843 = vpop.f32.mrb[0].mxu0
    %v4844 = vadd.f32 0.0, %v4843
    %v4845 = vpop.f32.mrb[0].mxu0
    %4846 = vmatprep.mubr.f32.mxu0 0.0
    %4847 = vmatmul.mubr.f32.gmra.mrb[0].mxu0 %v1992
    %v4848 = vpop.f32.mrb[0].mxu0
    %v4849 = vadd.f32 0.0, %v4848
    %v4850 = vpop.f32.mrb[0].mxu0
    %4851 = vmatprep.mubr.f32.mxu0 0.0
    %4852 = vmatmul.mubr.f32.gmra.mrb[0].mxu0 %v1994
    %v4853 = vpop.f32.mrb[0].mxu0
    %v4854 = vadd.f32 0.0, %v4853
    %v4855 = vpop.f32.mrb[0].mxu0
    %4856 = vmatprep.mubr.f32.mxu0 0.0
    %4857 = vmatmul.mubr.f32.gmra.mrb[0].mxu0 %v1996
    %v4858 = vpop.f32.mrb[0].mxu0
    %v4859 = vadd.f32 0.0, %v4858
    %v4860 = vpop.f32.mrb[0].mxu0
    %4861 = vmatprep.mubr.f32.mxu0 0.0
    %4862 = vmatmul.mubr.f32.gmra.mrb[0].mxu0 %v1998
    %v4863 = vpop.f32.mrb[0].mxu0
    %v4864 = vadd.f32 0.0, %v4863
    %v4865 = vpop.f32.mrb[0].mxu0
    %4866 = vmatprep.mubr.f32.mxu0 0.0
    %4867 = vmatmul.mubr.f32.gmra.mrb[0].mxu0 %v2000
    %v4868 = vpop.f32.mrb[0].mxu0
    %v4869 = vadd.f32 0.0, %v4868
    %v4870 = vpop.f32.mrb[0].mxu0
    %4871 = vmatprep.mubr.f32.mxu0 0.0
    %4872 = vmatmul.mubr.f32.gmra.mrb[0].mxu0 %v2002
    %v4873 = vpop.f32.mrb[0].mxu0
    %v4874 = vadd.f32 0.0, %v4873
    %v4875 = vpop.f32.mrb[0].mxu0
    %4876 = vmatprep.mubr.f32.mxu0 0.0
    %4877 = vmatmul.mubr.f32.gmra.mrb[0].mxu0 %v2004
    %v4878 = vpop.f32.mrb[0].mxu0
    %v4879 = vadd.f32 0.0, %v4878
    %v4880 = vpop.f32.mrb[0].mxu0
    %4881 = vmatprep.mubr.f32.mxu0 0.0
    %4882 = vmatmul.mubr.f32.gmra.mrb[0].mxu0 %v2006
    %v4883 = vpop.f32.mrb[0].mxu0
    %v4884 = vadd.f32 0.0, %v4883
    %v4885 = vpop.f32.mrb[0].mxu0
    %4886 = vmatprep.mubr.f32.mxu0 0.0
    %4887 = vmatmul.mubr.f32.gmra.mrb[0].mxu0 %v2008
    %v4888 = vpop.f32.mrb[0].mxu0
    %v4889 = vadd.f32 0.0, %v4888
    %v4890 = vpop.f32.mrb[0].mxu0
    %4891 = vmatprep.mubr.f32.mxu0 0.0
    %4892 = vmatmul.mubr.f32.gmra.mrb[0].mxu0 %v2010
    %v4893 = vpop.f32.mrb[0].mxu0
    %v4894 = vadd.f32 0.0, %v4893
    %v4895 = vpop.f32.mrb[0].mxu0
    %4896 = vmatprep.mubr.f32.mxu0 0.0
    %4897 = vmatmul.mubr.f32.gmra.mrb[0].mxu0 %v2012
    %v4898 = vpop.f32.mrb[0].mxu0
    %v4899 = vadd.f32 0.0, %v4898
    %v4900 = vpop.f32.mrb[0].mxu0
    %4901 = vmatprep.mubr.f32.mxu0 0.0
    %4902 = vmatmul.mubr.f32.gmra.mrb[0].mxu0 %v2014
    %v4903 = vpop.f32.mrb[0].mxu0
    %v4904 = vadd.f32 0.0, %v4903
    %v4905 = vpop.f32.mrb[0].mxu0
    %4906 = vmatprep.mubr.f32.mxu0 0.0
    %4907 = vmatmul.mubr.f32.gmra.mrb[0].mxu0 %v2016
    %v4908 = vpop.f32.mrb[0].mxu0
    %v4909 = vadd.f32 0.0, %v4908
    %v4910 = vpop.f32.mrb[0].mxu0
    %4911 = vmatprep.mubr.f32.mxu0 0.0
    %4912 = vmatmul.mubr.f32.gmra.mrb[0].mxu0 %v2018
    %v4913 = vpop.f32.mrb[0].mxu0
    %v4914 = vadd.f32 0.0, %v4913
    %v4915 = vpop.f32.mrb[0].mxu0
    %4916 = vmatprep.mubr.f32.mxu0 0.0
    %4917 = vmatmul.mubr.f32.gmra.mrb[0].mxu0 %v4708
    %v4918 = vpop.f32.mrb[0].mxu0
    %v4919 = vadd.f32 0.0, %v4918
    %v4920 = vpop.f32.mrb[0].mxu0
    %4921 = vmatprep.mubr.f32.mxu0 0.0
    %4922 = vmatmul.mubr.f32.gmra.mrb[0].mxu0 %v4710
    %v4923 = vpop.f32.mrb[0].mxu0
    %v4924 = vadd.f32 0.0, %v4923
    %v4925 = vpop.f32.mrb[0].mxu0
    %4926 = vdwg.mxu0
    %v4927 = vadd.f32 %v4675, %v4779
    %v4928 = vadd.f32 %v4676, %v4784
    %v4929 = vadd.f32 %v4677, %v4789
    %v4930 = vadd.f32 %v4678, %v4794
    %v4931 = vadd.f32 %v4679, %v4799
    %v4932 = vadd.f32 %v4680, %v4804
    %v4933 = vadd.f32 %v4681, %v4809
    %v4934 = vadd.f32 %v4682, %v4814
    %v4935 = vadd.f32 %v4683, %v4819
    %v4936 = vadd.f32 %v4684, %v4824
    %v4937 = vadd.f32 %v4685, %v4829
    %v4938 = vadd.f32 %v4686, %v4834
    %v4939 = vadd.f32 %v4687, %v4839
    %v4940 = vadd.f32 %v4688, %v4844
    %v4941 = vadd.f32 %v4689, %v4849
    %v4942 = vadd.f32 %v4690, %v4854
    %v4943 = vadd.f32 %v4691, %v4859
    %v4944 = vadd.f32 %v4692, %v4864
    %v4945 = vadd.f32 %v4693, %v4869
    %v4946 = vadd.f32 %v4694, %v4874
    %v4947 = vadd.f32 %v4695, %v4879
    %v4948 = vadd.f32 %v4696, %v4884
    %v4949 = vadd.f32 %v4697, %v4889
    %v4950 = vadd.f32 %v4698, %v4894
    %v4951 = vadd.f32 %v4699, %v4899
    %v4952 = vadd.f32 %v4700, %v4904
    %v4953 = vadd.f32 %v4701, %v4909
    %v4954 = vadd.f32 %v4702, %v4914
    %v4955 = vadd.f32 %v4703, %v4919
    %v4956 = vadd.f32 %v4704, %v4924
    %s4957 = scalar_lea.vmem %s4, 160
    %v4958 = vld [vmem:[%s4957] sm:$0xff]
    %v4959 = vld [vmem:[%s4957 + $0x8] sm:$0xff]
    %v4961 = vsel %vm1684, %v1585, 0
    %4963 = vmatprep.subr.mxu0 0.0
    %4964 = vmatpush1.msra.mxu0 %v4958
    %4965 = vmatprep.subr.mxu0 0.0
    %4966 = vmatpush1.msra.mxu0 %v4959
    %4967 = vmatprep.subr.mxu0 0.0
    %4968 = vmatpush1.msra.mxu0 0.0
    %4969 = vmatprep.subr.mxu0 0.0
    %4970 = vmatpush1.msra.mxu0 0.0
    %4971 = vmatprep.subr.mxu0 0.0
    %4972 = vmatpush1.msra.mxu0 0.0
    %4973 = vmatprep.subr.mxu0 0.0
    %4974 = vmatpush1.msra.mxu0 0.0
    %4975 = vmatprep.subr.mxu0 0.0
    %4976 = vmatpush1.msra.mxu0 0.0
    %4977 = vmatprep.subr.mxu0 0.0
    %4978 = vmatpush1.msra.mxu0 0.0
    %4979 = vmatprep.subr.mxu0 0.0
    %4980 = vmatpush1.msra.mxu0 0.0
    %4981 = vmatprep.subr.mxu0 0.0
    %4982 = vmatpush1.msra.mxu0 0.0
    %4983 = vmatprep.subr.mxu0 0.0
    %4984 = vmatpush1.msra.mxu0 0.0
    %4985 = vmatprep.subr.mxu0 0.0
    %4986 = vmatpush1.msra.mxu0 0.0
    %4987 = vmatprep.subr.mxu0 0.0
    %4988 = vmatpush1.msra.mxu0 0.0
    %4989 = vmatprep.subr.mxu0 0.0
    %4990 = vmatpush1.msra.mxu0 0.0
    %4991 = vmatprep.subr.mxu0 0.0
    %4992 = vmatpush1.msra.mxu0 0.0
    %4993 = vmatprep.subr.mxu0 0.0
    %4994 = vmatpush1.msra.mxu0 0.0
    %4995 = vmatprep.subr.mxu0 0.0
    %4996 = vmatpush1.msra.mxu0 0.0
    %4997 = vmatprep.subr.mxu0 0.0
    %4998 = vmatpush1.msra.mxu0 0.0
    %4999 = vmatprep.subr.mxu0 0.0
    %5000 = vmatpush1.msra.mxu0 0.0
    %5001 = vmatprep.subr.mxu0 0.0
    %5002 = vmatpush1.msra.mxu0 0.0
    %5003 = vmatprep.subr.mxu0 0.0
    %5004 = vmatpush1.msra.mxu0 0.0
    %5005 = vmatprep.subr.mxu0 0.0
    %5006 = vmatpush1.msra.mxu0 0.0
    %5007 = vmatprep.subr.mxu0 0.0
    %5008 = vmatpush1.msra.mxu0 0.0
    %5009 = vmatprep.subr.mxu0 0.0
    %5010 = vmatpush1.msra.mxu0 0.0
    %5011 = vmatprep.subr.mxu0 0.0
    %5012 = vmatpush1.msra.mxu0 0.0
    %5013 = vmatprep.subr.mxu0 0.0
    %5014 = vmatpush1.msra.mxu0 0.0
    %5015 = vmatprep.subr.mxu0 0.0
    %5016 = vmatpush1.msra.mxu0 0.0
    %5017 = vmatprep.subr.mxu0 0.0
    %5018 = vmatpush1.msra.mxu0 0.0
    %5019 = vmatprep.subr.mxu0 0.0
    %5020 = vmatpush1.msra.mxu0 0.0
    %5021 = vmatprep.subr.mxu0 0.0
    %5022 = vmatpush1.msra.mxu0 0.0
    %5023 = vmatprep.subr.mxu0 0.0
    %5024 = vmatpush1.msra.mxu0 0.0
    %5025 = vmatprep.subr.mxu0 0.0
    %5026 = vmatpush1.msra.mxu0 0.0
    %5027 = vmatprep.mubr.f32.mxu0 0.0
    %5028 = vmatmul.mubr.f32.gmra.mrb[0].mxu0 %v1966
    %v5029 = vpop.f32.mrb[0].mxu0
    %v5030 = vadd.f32 0.0, %v5029
    %v5031 = vpop.f32.mrb[0].mxu0
    %5032 = vmatprep.mubr.f32.mxu0 0.0
    %5033 = vmatmul.mubr.f32.gmra.mrb[0].mxu0 %v1968
    %v5034 = vpop.f32.mrb[0].mxu0
    %v5035 = vadd.f32 0.0, %v5034
    %v5036 = vpop.f32.mrb[0].mxu0
    %5037 = vmatprep.mubr.f32.mxu0 0.0
    %5038 = vmatmul.mubr.f32.gmra.mrb[0].mxu0 %v1970
    %v5039 = vpop.f32.mrb[0].mxu0
    %v5040 = vadd.f32 0.0, %v5039
    %v5041 = vpop.f32.mrb[0].mxu0
    %5042 = vmatprep.mubr.f32.mxu0 0.0
    %5043 = vmatmul.mubr.f32.gmra.mrb[0].mxu0 %v1972
    %v5044 = vpop.f32.mrb[0].mxu0
    %v5045 = vadd.f32 0.0, %v5044
    %v5046 = vpop.f32.mrb[0].mxu0
    %5047 = vmatprep.mubr.f32.mxu0 0.0
    %5048 = vmatmul.mubr.f32.gmra.mrb[0].mxu0 %v1974
    %v5049 = vpop.f32.mrb[0].mxu0
    %v5050 = vadd.f32 0.0, %v5049
    %v5051 = vpop.f32.mrb[0].mxu0
    %5052 = vmatprep.mubr.f32.mxu0 0.0
    %5053 = vmatmul.mubr.f32.gmra.mrb[0].mxu0 %v1976
    %v5054 = vpop.f32.mrb[0].mxu0
    %v5055 = vadd.f32 0.0, %v5054
    %v5056 = vpop.f32.mrb[0].mxu0
    %5057 = vmatprep.mubr.f32.mxu0 0.0
    %5058 = vmatmul.mubr.f32.gmra.mrb[0].mxu0 %v1978
    %v5059 = vpop.f32.mrb[0].mxu0
    %v5060 = vadd.f32 0.0, %v5059
    %v5061 = vpop.f32.mrb[0].mxu0
    %5062 = vmatprep.mubr.f32.mxu0 0.0
    %5063 = vmatmul.mubr.f32.gmra.mrb[0].mxu0 %v1980
    %v5064 = vpop.f32.mrb[0].mxu0
    %v5065 = vadd.f32 0.0, %v5064
    %v5066 = vpop.f32.mrb[0].mxu0
    %5067 = vmatprep.mubr.f32.mxu0 0.0
    %5068 = vmatmul.mubr.f32.gmra.mrb[0].mxu0 %v1982
    %v5069 = vpop.f32.mrb[0].mxu0
    %v5070 = vadd.f32 0.0, %v5069
    %v5071 = vpop.f32.mrb[0].mxu0
    %5072 = vmatprep.mubr.f32.mxu0 0.0
    %5073 = vmatmul.mubr.f32.gmra.mrb[0].mxu0 %v1984
    %v5074 = vpop.f32.mrb[0].mxu0
    %v5075 = vadd.f32 0.0, %v5074
    %v5076 = vpop.f32.mrb[0].mxu0
    %5077 = vmatprep.mubr.f32.mxu0 0.0
    %5078 = vmatmul.mubr.f32.gmra.mrb[0].mxu0 %v1986
    %v5079 = vpop.f32.mrb[0].mxu0
    %v5080 = vadd.f32 0.0, %v5079
    %v5081 = vpop.f32.mrb[0].mxu0
    %5082 = vmatprep.mubr.f32.mxu0 0.0
    %5083 = vmatmul.mubr.f32.gmra.mrb[0].mxu0 %v1988
    %v5084 = vpop.f32.mrb[0].mxu0
    %v5085 = vadd.f32 0.0, %v5084
    %v5086 = vpop.f32.mrb[0].mxu0
    %5087 = vmatprep.mubr.f32.mxu0 0.0
    %5088 = vmatmul.mubr.f32.gmra.mrb[0].mxu0 %v1990
    %v5089 = vpop.f32.mrb[0].mxu0
    %v5090 = vadd.f32 0.0, %v5089
    %v5091 = vpop.f32.mrb[0].mxu0
    %5092 = vmatprep.mubr.f32.mxu0 0.0
    %5093 = vmatmul.mubr.f32.gmra.mrb[0].mxu0 %v1992
    %v5094 = vpop.f32.mrb[0].mxu0
    %v5095 = vadd.f32 0.0, %v5094
    %v5096 = vpop.f32.mrb[0].mxu0
    %5097 = vmatprep.mubr.f32.mxu0 0.0
    %5098 = vmatmul.mubr.f32.gmra.mrb[0].mxu0 %v1994
    %v5099 = vpop.f32.mrb[0].mxu0
    %v5100 = vadd.f32 0.0, %v5099
    %v5101 = vpop.f32.mrb[0].mxu0
    %5102 = vmatprep.mubr.f32.mxu0 0.0
    %5103 = vmatmul.mubr.f32.gmra.mrb[0].mxu0 %v1996
    %v5104 = vpop.f32.mrb[0].mxu0
    %v5105 = vadd.f32 0.0, %v5104
    %v5106 = vpop.f32.mrb[0].mxu0
    %5107 = vmatprep.mubr.f32.mxu0 0.0
    %5108 = vmatmul.mubr.f32.gmra.mrb[0].mxu0 %v1998
    %v5109 = vpop.f32.mrb[0].mxu0
    %v5110 = vadd.f32 0.0, %v5109
    %v5111 = vpop.f32.mrb[0].mxu0
    %5112 = vmatprep.mubr.f32.mxu0 0.0
    %5113 = vmatmul.mubr.f32.gmra.mrb[0].mxu0 %v2000
    %v5114 = vpop.f32.mrb[0].mxu0
    %v5115 = vadd.f32 0.0, %v5114
    %v5116 = vpop.f32.mrb[0].mxu0
    %5117 = vmatprep.mubr.f32.mxu0 0.0
    %5118 = vmatmul.mubr.f32.gmra.mrb[0].mxu0 %v2002
    %v5119 = vpop.f32.mrb[0].mxu0
    %v5120 = vadd.f32 0.0, %v5119
    %v5121 = vpop.f32.mrb[0].mxu0
    %5122 = vmatprep.mubr.f32.mxu0 0.0
    %5123 = vmatmul.mubr.f32.gmra.mrb[0].mxu0 %v2004
    %v5124 = vpop.f32.mrb[0].mxu0
    %v5125 = vadd.f32 0.0, %v5124
    %v5126 = vpop.f32.mrb[0].mxu0
    %5127 = vmatprep.mubr.f32.mxu0 0.0
    %5128 = vmatmul.mubr.f32.gmra.mrb[0].mxu0 %v2006
    %v5129 = vpop.f32.mrb[0].mxu0
    %v5130 = vadd.f32 0.0, %v5129
    %v5131 = vpop.f32.mrb[0].mxu0
    %5132 = vmatprep.mubr.f32.mxu0 0.0
    %5133 = vmatmul.mubr.f32.gmra.mrb[0].mxu0 %v2008
    %v5134 = vpop.f32.mrb[0].mxu0
    %v5135 = vadd.f32 0.0, %v5134
    %v5136 = vpop.f32.mrb[0].mxu0
    %5137 = vmatprep.mubr.f32.mxu0 0.0
    %5138 = vmatmul.mubr.f32.gmra.mrb[0].mxu0 %v2010
    %v5139 = vpop.f32.mrb[0].mxu0
    %v5140 = vadd.f32 0.0, %v5139
    %v5141 = vpop.f32.mrb[0].mxu0
    %5142 = vmatprep.mubr.f32.mxu0 0.0
    %5143 = vmatmul.mubr.f32.gmra.mrb[0].mxu0 %v2012
    %v5144 = vpop.f32.mrb[0].mxu0
    %v5145 = vadd.f32 0.0, %v5144
    %v5146 = vpop.f32.mrb[0].mxu0
    %5147 = vmatprep.mubr.f32.mxu0 0.0
    %5148 = vmatmul.mubr.f32.gmra.mrb[0].mxu0 %v2014
    %v5149 = vpop.f32.mrb[0].mxu0
    %v5150 = vadd.f32 0.0, %v5149
    %v5151 = vpop.f32.mrb[0].mxu0
    %5152 = vmatprep.mubr.f32.mxu0 0.0
    %5153 = vmatmul.mubr.f32.gmra.mrb[0].mxu0 %v2016
    %v5154 = vpop.f32.mrb[0].mxu0
    %v5155 = vadd.f32 0.0, %v5154
    %v5156 = vpop.f32.mrb[0].mxu0
    %5157 = vmatprep.mubr.f32.mxu0 0.0
    %5158 = vmatmul.mubr.f32.gmra.mrb[0].mxu0 %v2018
    %v5159 = vpop.f32.mrb[0].mxu0
    %v5160 = vadd.f32 0.0, %v5159
    %v5161 = vpop.f32.mrb[0].mxu0
    %5162 = vmatprep.mubr.f32.mxu0 0.0
    %5163 = vmatmul.mubr.f32.gmra.mrb[0].mxu0 %v4708
    %v5164 = vpop.f32.mrb[0].mxu0
    %v5165 = vadd.f32 0.0, %v5164
    %v5166 = vpop.f32.mrb[0].mxu0
    %5167 = vmatprep.mubr.f32.mxu0 0.0
    %5168 = vmatmul.mubr.f32.gmra.mrb[0].mxu0 %v4710
    %v5169 = vpop.f32.mrb[0].mxu0
    %v5170 = vadd.f32 0.0, %v5169
    %v5171 = vpop.f32.mrb[0].mxu0
    %5172 = vmatprep.mubr.f32.mxu0 0.0
    %5173 = vmatmul.mubr.f32.gmra.mrb[0].mxu0 %v4961
    %v5174 = vpop.f32.mrb[0].mxu0
    %v5175 = vadd.f32 0.0, %v5174
    %v5176 = vpop.f32.mrb[0].mxu0
    %5177 = vdwg.mxu0
    %v5178 = vadd.f32 %v4927, %v5030
    %v5179 = vadd.f32 %v4928, %v5035
    %v5180 = vadd.f32 %v4929, %v5040
    %v5181 = vadd.f32 %v4930, %v5045
    %v5182 = vadd.f32 %v4931, %v5050
    %v5183 = vadd.f32 %v4932, %v5055
    %v5184 = vadd.f32 %v4933, %v5060
    %v5185 = vadd.f32 %v4934, %v5065
    %v5186 = vadd.f32 %v4935, %v5070
    %v5187 = vadd.f32 %v4936, %v5075
    %v5188 = vadd.f32 %v4937, %v5080
    %v5189 = vadd.f32 %v4938, %v5085
    %v5190 = vadd.f32 %v4939, %v5090
    %v5191 = vadd.f32 %v4940, %v5095
    %v5192 = vadd.f32 %v4941, %v5100
    %v5193 = vadd.f32 %v4942, %v5105
    %v5194 = vadd.f32 %v4943, %v5110
    %v5195 = vadd.f32 %v4944, %v5115
    %v5196 = vadd.f32 %v4945, %v5120
    %v5197 = vadd.f32 %v4946, %v5125
    %v5198 = vadd.f32 %v4947, %v5130
    %v5199 = vadd.f32 %v4948, %v5135
    %v5200 = vadd.f32 %v4949, %v5140
    %v5201 = vadd.f32 %v4950, %v5145
    %v5202 = vadd.f32 %v4951, %v5150
    %v5203 = vadd.f32 %v4952, %v5155
    %v5204 = vadd.f32 %v4953, %v5160
    %v5205 = vadd.f32 %v4954, %v5165
    %v5206 = vadd.f32 %v4955, %v5170
    %v5207 = vadd.f32 %v4956, %v5175
    %s5208 = scalar_lea.vmem %s4, 176
    %v5209 = vld [vmem:[%s5208] sm:$0xff]
    %v5210 = vld [vmem:[%s5208 + $0x8] sm:$0xff]
    %v5211 = vrot.slane %v1583, 1
    %v5212 = vsel %vm1624, %v1682, %v5211
    %v5213 = vrot.slane %v1584, 1
    %v5214 = vsel %vm1624, %v5211, %v5213
    %v5215 = vrot.slane %v1585, 1
    %v5216 = vsel %vm1624, %v5213, %v5215
    %v5217 = vsel %vm1684, %v5212, 0
    %v5219 = vsel %vm1684, %v5214, 0
    %v5221 = vsel %vm1684, %v5216, 0
    %v5223 = vsel %vm1684, %v5215, 0
    %5225 = vmatprep.subr.mxu0 0.0
    %5226 = vmatpush1.msra.mxu0 %v5209
    %5227 = vmatprep.subr.mxu0 0.0
    %5228 = vmatpush1.msra.mxu0 %v5210
    %5229 = vmatprep.subr.mxu0 0.0
    %5230 = vmatpush1.msra.mxu0 0.0
    %5231 = vmatprep.subr.mxu0 0.0
    %5232 = vmatpush1.msra.mxu0 0.0
    %5233 = vmatprep.subr.mxu0 0.0
    %5234 = vmatpush1.msra.mxu0 0.0
    %5235 = vmatprep.subr.mxu0 0.0
    %5236 = vmatpush1.msra.mxu0 0.0
    %5237 = vmatprep.subr.mxu0 0.0
    %5238 = vmatpush1.msra.mxu0 0.0
    %5239 = vmatprep.subr.mxu0 0.0
    %5240 = vmatpush1.msra.mxu0 0.0
    %5241 = vmatprep.subr.mxu0 0.0
    %5242 = vmatpush1.msra.mxu0 0.0
    %5243 = vmatprep.subr.mxu0 0.0
    %5244 = vmatpush1.msra.mxu0 0.0
    %5245 = vmatprep.subr.mxu0 0.0
    %5246 = vmatpush1.msra.mxu0 0.0
    %5247 = vmatprep.subr.mxu0 0.0
    %5248 = vmatpush1.msra.mxu0 0.0
    %5249 = vmatprep.subr.mxu0 0.0
    %5250 = vmatpush1.msra.mxu0 0.0
    %5251 = vmatprep.subr.mxu0 0.0
    %5252 = vmatpush1.msra.mxu0 0.0
    %5253 = vmatprep.subr.mxu0 0.0
    %5254 = vmatpush1.msra.mxu0 0.0
    %5255 = vmatprep.subr.mxu0 0.0
    %5256 = vmatpush1.msra.mxu0 0.0
    %5257 = vmatprep.subr.mxu0 0.0
    %5258 = vmatpush1.msra.mxu0 0.0
    %5259 = vmatprep.subr.mxu0 0.0
    %5260 = vmatpush1.msra.mxu0 0.0
    %5261 = vmatprep.subr.mxu0 0.0
    %5262 = vmatpush1.msra.mxu0 0.0
    %5263 = vmatprep.subr.mxu0 0.0
    %5264 = vmatpush1.msra.mxu0 0.0
    %5265 = vmatprep.subr.mxu0 0.0
    %5266 = vmatpush1.msra.mxu0 0.0
    %5267 = vmatprep.subr.mxu0 0.0
    %5268 = vmatpush1.msra.mxu0 0.0
    %5269 = vmatprep.subr.mxu0 0.0
    %5270 = vmatpush1.msra.mxu0 0.0
    %5271 = vmatprep.subr.mxu0 0.0
    %5272 = vmatpush1.msra.mxu0 0.0
    %5273 = vmatprep.subr.mxu0 0.0
    %5274 = vmatpush1.msra.mxu0 0.0
    %5275 = vmatprep.subr.mxu0 0.0
    %5276 = vmatpush1.msra.mxu0 0.0
    %5277 = vmatprep.subr.mxu0 0.0
    %5278 = vmatpush1.msra.mxu0 0.0
    %5279 = vmatprep.subr.mxu0 0.0
    %5280 = vmatpush1.msra.mxu0 0.0
    %5281 = vmatprep.subr.mxu0 0.0
    %5282 = vmatpush1.msra.mxu0 0.0
    %5283 = vmatprep.subr.mxu0 0.0
    %5284 = vmatpush1.msra.mxu0 0.0
    %5285 = vmatprep.subr.mxu0 0.0
    %5286 = vmatpush1.msra.mxu0 0.0
    %5287 = vmatprep.subr.mxu0 0.0
    %5288 = vmatpush1.msra.mxu0 0.0
    %5289 = vmatprep.mubr.f32.mxu0 0.0
    %5290 = vmatmul.mubr.f32.gmra.mrb[0].mxu0 %v1691
    %v5291 = vpop.f32.mrb[0].mxu0
    %v5292 = vadd.f32 0.0, %v5291
    %v5293 = vpop.f32.mrb[0].mxu0
    %5294 = vmatprep.mubr.f32.mxu0 0.0
    %5295 = vmatmul.mubr.f32.gmra.mrb[0].mxu0 %v1693
    %v5296 = vpop.f32.mrb[0].mxu0
    %v5297 = vadd.f32 0.0, %v5296
    %v5298 = vpop.f32.mrb[0].mxu0
    %5299 = vmatprep.mubr.f32.mxu0 0.0
    %5300 = vmatmul.mubr.f32.gmra.mrb[0].mxu0 %v1695
    %v5301 = vpop.f32.mrb[0].mxu0
    %v5302 = vadd.f32 0.0, %v5301
    %v5303 = vpop.f32.mrb[0].mxu0
    %5304 = vmatprep.mubr.f32.mxu0 0.0
    %5305 = vmatmul.mubr.f32.gmra.mrb[0].mxu0 %v1697
    %v5306 = vpop.f32.mrb[0].mxu0
    %v5307 = vadd.f32 0.0, %v5306
    %v5308 = vpop.f32.mrb[0].mxu0
    %5309 = vmatprep.mubr.f32.mxu0 0.0
    %5310 = vmatmul.mubr.f32.gmra.mrb[0].mxu0 %v1699
    %v5311 = vpop.f32.mrb[0].mxu0
    %v5312 = vadd.f32 0.0, %v5311
    %v5313 = vpop.f32.mrb[0].mxu0
    %5314 = vmatprep.mubr.f32.mxu0 0.0
    %5315 = vmatmul.mubr.f32.gmra.mrb[0].mxu0 %v1701
    %v5316 = vpop.f32.mrb[0].mxu0
    %v5317 = vadd.f32 0.0, %v5316
    %v5318 = vpop.f32.mrb[0].mxu0
    %5319 = vmatprep.mubr.f32.mxu0 0.0
    %5320 = vmatmul.mubr.f32.gmra.mrb[0].mxu0 %v1703
    %v5321 = vpop.f32.mrb[0].mxu0
    %v5322 = vadd.f32 0.0, %v5321
    %v5323 = vpop.f32.mrb[0].mxu0
    %5324 = vmatprep.mubr.f32.mxu0 0.0
    %5325 = vmatmul.mubr.f32.gmra.mrb[0].mxu0 %v1705
    %v5326 = vpop.f32.mrb[0].mxu0
    %v5327 = vadd.f32 0.0, %v5326
    %v5328 = vpop.f32.mrb[0].mxu0
    %5329 = vmatprep.mubr.f32.mxu0 0.0
    %5330 = vmatmul.mubr.f32.gmra.mrb[0].mxu0 %v1707
    %v5331 = vpop.f32.mrb[0].mxu0
    %v5332 = vadd.f32 0.0, %v5331
    %v5333 = vpop.f32.mrb[0].mxu0
    %5334 = vmatprep.mubr.f32.mxu0 0.0
    %5335 = vmatmul.mubr.f32.gmra.mrb[0].mxu0 %v1709
    %v5336 = vpop.f32.mrb[0].mxu0
    %v5337 = vadd.f32 0.0, %v5336
    %v5338 = vpop.f32.mrb[0].mxu0
    %5339 = vmatprep.mubr.f32.mxu0 0.0
    %5340 = vmatmul.mubr.f32.gmra.mrb[0].mxu0 %v1711
    %v5341 = vpop.f32.mrb[0].mxu0
    %v5342 = vadd.f32 0.0, %v5341
    %v5343 = vpop.f32.mrb[0].mxu0
    %5344 = vmatprep.mubr.f32.mxu0 0.0
    %5345 = vmatmul.mubr.f32.gmra.mrb[0].mxu0 %v1713
    %v5346 = vpop.f32.mrb[0].mxu0
    %v5347 = vadd.f32 0.0, %v5346
    %v5348 = vpop.f32.mrb[0].mxu0
    %5349 = vmatprep.mubr.f32.mxu0 0.0
    %5350 = vmatmul.mubr.f32.gmra.mrb[0].mxu0 %v1715
    %v5351 = vpop.f32.mrb[0].mxu0
    %v5352 = vadd.f32 0.0, %v5351
    %v5353 = vpop.f32.mrb[0].mxu0
    %5354 = vmatprep.mubr.f32.mxu0 0.0
    %5355 = vmatmul.mubr.f32.gmra.mrb[0].mxu0 %v1717
    %v5356 = vpop.f32.mrb[0].mxu0
    %v5357 = vadd.f32 0.0, %v5356
    %v5358 = vpop.f32.mrb[0].mxu0
    %5359 = vmatprep.mubr.f32.mxu0 0.0
    %5360 = vmatmul.mubr.f32.gmra.mrb[0].mxu0 %v1719
    %v5361 = vpop.f32.mrb[0].mxu0
    %v5362 = vadd.f32 0.0, %v5361
    %v5363 = vpop.f32.mrb[0].mxu0
    %5364 = vmatprep.mubr.f32.mxu0 0.0
    %5365 = vmatmul.mubr.f32.gmra.mrb[0].mxu0 %v1721
    %v5366 = vpop.f32.mrb[0].mxu0
    %v5367 = vadd.f32 0.0, %v5366
    %v5368 = vpop.f32.mrb[0].mxu0
    %5369 = vmatprep.mubr.f32.mxu0 0.0
    %5370 = vmatmul.mubr.f32.gmra.mrb[0].mxu0 %v1723
    %v5371 = vpop.f32.mrb[0].mxu0
    %v5372 = vadd.f32 0.0, %v5371
    %v5373 = vpop.f32.mrb[0].mxu0
    %5374 = vmatprep.mubr.f32.mxu0 0.0
    %5375 = vmatmul.mubr.f32.gmra.mrb[0].mxu0 %v1725
    %v5376 = vpop.f32.mrb[0].mxu0
    %v5377 = vadd.f32 0.0, %v5376
    %v5378 = vpop.f32.mrb[0].mxu0
    %5379 = vmatprep.mubr.f32.mxu0 0.0
    %5380 = vmatmul.mubr.f32.gmra.mrb[0].mxu0 %v1727
    %v5381 = vpop.f32.mrb[0].mxu0
    %v5382 = vadd.f32 0.0, %v5381
    %v5383 = vpop.f32.mrb[0].mxu0
    %5384 = vmatprep.mubr.f32.mxu0 0.0
    %5385 = vmatmul.mubr.f32.gmra.mrb[0].mxu0 %v1729
    %v5386 = vpop.f32.mrb[0].mxu0
    %v5387 = vadd.f32 0.0, %v5386
    %v5388 = vpop.f32.mrb[0].mxu0
    %5389 = vmatprep.mubr.f32.mxu0 0.0
    %5390 = vmatmul.mubr.f32.gmra.mrb[0].mxu0 %v1731
    %v5391 = vpop.f32.mrb[0].mxu0
    %v5392 = vadd.f32 0.0, %v5391
    %v5393 = vpop.f32.mrb[0].mxu0
    %5394 = vmatprep.mubr.f32.mxu0 0.0
    %5395 = vmatmul.mubr.f32.gmra.mrb[0].mxu0 %v1733
    %v5396 = vpop.f32.mrb[0].mxu0
    %v5397 = vadd.f32 0.0, %v5396
    %v5398 = vpop.f32.mrb[0].mxu0
    %5399 = vmatprep.mubr.f32.mxu0 0.0
    %5400 = vmatmul.mubr.f32.gmra.mrb[0].mxu0 %v1735
    %v5401 = vpop.f32.mrb[0].mxu0
    %v5402 = vadd.f32 0.0, %v5401
    %v5403 = vpop.f32.mrb[0].mxu0
    %5404 = vmatprep.mubr.f32.mxu0 0.0
    %5405 = vmatmul.mubr.f32.gmra.mrb[0].mxu0 %v1737
    %v5406 = vpop.f32.mrb[0].mxu0
    %v5407 = vadd.f32 0.0, %v5406
    %v5408 = vpop.f32.mrb[0].mxu0
    %5409 = vmatprep.mubr.f32.mxu0 0.0
    %5410 = vmatmul.mubr.f32.gmra.mrb[0].mxu0 %v1739
    %v5411 = vpop.f32.mrb[0].mxu0
    %v5412 = vadd.f32 0.0, %v5411
    %v5413 = vpop.f32.mrb[0].mxu0
    %5414 = vmatprep.mubr.f32.mxu0 0.0
    %5415 = vmatmul.mubr.f32.gmra.mrb[0].mxu0 %v1741
    %v5416 = vpop.f32.mrb[0].mxu0
    %v5417 = vadd.f32 0.0, %v5416
    %v5418 = vpop.f32.mrb[0].mxu0
    %5419 = vmatprep.mubr.f32.mxu0 0.0
    %5420 = vmatmul.mubr.f32.gmra.mrb[0].mxu0 %v5217
    %v5421 = vpop.f32.mrb[0].mxu0
    %v5422 = vadd.f32 0.0, %v5421
    %v5423 = vpop.f32.mrb[0].mxu0
    %5424 = vmatprep.mubr.f32.mxu0 0.0
    %5425 = vmatmul.mubr.f32.gmra.mrb[0].mxu0 %v5219
    %v5426 = vpop.f32.mrb[0].mxu0
    %v5427 = vadd.f32 0.0, %v5426
    %v5428 = vpop.f32.mrb[0].mxu0
    %5429 = vmatprep.mubr.f32.mxu0 0.0
    %5430 = vmatmul.mubr.f32.gmra.mrb[0].mxu0 %v5221
    %v5431 = vpop.f32.mrb[0].mxu0
    %v5432 = vadd.f32 0.0, %v5431
    %v5433 = vpop.f32.mrb[0].mxu0
    %5434 = vmatprep.mubr.f32.mxu0 0.0
    %5435 = vmatmul.mubr.f32.gmra.mrb[0].mxu0 %v5223
    %v5436 = vpop.f32.mrb[0].mxu0
    %v5437 = vadd.f32 0.0, %v5436
    %v5438 = vpop.f32.mrb[0].mxu0
    %5439 = vdwg.mxu0
    %v5440 = vadd.f32 %v5178, %v5292
    %v5441 = vadd.f32 %v5179, %v5297
    %v5442 = vadd.f32 %v5180, %v5302
    %v5443 = vadd.f32 %v5181, %v5307
    %v5444 = vadd.f32 %v5182, %v5312
    %v5445 = vadd.f32 %v5183, %v5317
    %v5446 = vadd.f32 %v5184, %v5322
    %v5447 = vadd.f32 %v5185, %v5327
    %v5448 = vadd.f32 %v5186, %v5332
    %v5449 = vadd.f32 %v5187, %v5337
    %v5450 = vadd.f32 %v5188, %v5342
    %v5451 = vadd.f32 %v5189, %v5347
    %v5452 = vadd.f32 %v5190, %v5352
    %v5453 = vadd.f32 %v5191, %v5357
    %v5454 = vadd.f32 %v5192, %v5362
    %v5455 = vadd.f32 %v5193, %v5367
    %v5456 = vadd.f32 %v5194, %v5372
    %v5457 = vadd.f32 %v5195, %v5377
    %v5458 = vadd.f32 %v5196, %v5382
    %v5459 = vadd.f32 %v5197, %v5387
    %v5460 = vadd.f32 %v5198, %v5392
    %v5461 = vadd.f32 %v5199, %v5397
    %v5462 = vadd.f32 %v5200, %v5402
    %v5463 = vadd.f32 %v5201, %v5407
    %v5464 = vadd.f32 %v5202, %v5412
    %v5465 = vadd.f32 %v5203, %v5417
    %v5466 = vadd.f32 %v5204, %v5422
    %v5467 = vadd.f32 %v5205, %v5427
    %v5468 = vadd.f32 %v5206, %v5432
    %v5469 = vadd.f32 %v5207, %v5437
    %s5470 = scalar_lea.vmem %s4, 192
    %v5471 = vld [vmem:[%s5470] sm:$0xff]
    %v5472 = vld [vmem:[%s5470 + $0x8] sm:$0xff]
    %v5473 = vrot.slane %v1583, 2
    %v5474 = vsel %vm2238, %v2296, %v5473
    %v5475 = vrot.slane %v1584, 2
    %v5476 = vsel %vm2238, %v5473, %v5475
    %v5477 = vrot.slane %v1585, 2
    %v5478 = vsel %vm2238, %v5475, %v5477
    %v5479 = vsel %vm1684, %v5474, 0
    %v5481 = vsel %vm1684, %v5476, 0
    %v5483 = vsel %vm1684, %v5478, 0
    %v5485 = vsel %vm1684, %v5477, 0
    %5487 = vmatprep.subr.mxu0 0.0
    %5488 = vmatpush1.msra.mxu0 %v5471
    %5489 = vmatprep.subr.mxu0 0.0
    %5490 = vmatpush1.msra.mxu0 %v5472
    %5491 = vmatprep.subr.mxu0 0.0
    %5492 = vmatpush1.msra.mxu0 0.0
    %5493 = vmatprep.subr.mxu0 0.0
    %5494 = vmatpush1.msra.mxu0 0.0
    %5495 = vmatprep.subr.mxu0 0.0
    %5496 = vmatpush1.msra.mxu0 0.0
    %5497 = vmatprep.subr.mxu0 0.0
    %5498 = vmatpush1.msra.mxu0 0.0
    %5499 = vmatprep.subr.mxu0 0.0
    %5500 = vmatpush1.msra.mxu0 0.0
    %5501 = vmatprep.subr.mxu0 0.0
    %5502 = vmatpush1.msra.mxu0 0.0
    %5503 = vmatprep.subr.mxu0 0.0
    %5504 = vmatpush1.msra.mxu0 0.0
    %5505 = vmatprep.subr.mxu0 0.0
    %5506 = vmatpush1.msra.mxu0 0.0
    %5507 = vmatprep.subr.mxu0 0.0
    %5508 = vmatpush1.msra.mxu0 0.0
    %5509 = vmatprep.subr.mxu0 0.0
    %5510 = vmatpush1.msra.mxu0 0.0
    %5511 = vmatprep.subr.mxu0 0.0
    %5512 = vmatpush1.msra.mxu0 0.0
    %5513 = vmatprep.subr.mxu0 0.0
    %5514 = vmatpush1.msra.mxu0 0.0
    %5515 = vmatprep.subr.mxu0 0.0
    %5516 = vmatpush1.msra.mxu0 0.0
    %5517 = vmatprep.subr.mxu0 0.0
    %5518 = vmatpush1.msra.mxu0 0.0
    %5519 = vmatprep.subr.mxu0 0.0
    %5520 = vmatpush1.msra.mxu0 0.0
    %5521 = vmatprep.subr.mxu0 0.0
    %5522 = vmatpush1.msra.mxu0 0.0
    %5523 = vmatprep.subr.mxu0 0.0
    %5524 = vmatpush1.msra.mxu0 0.0
    %5525 = vmatprep.subr.mxu0 0.0
    %5526 = vmatpush1.msra.mxu0 0.0
    %5527 = vmatprep.subr.mxu0 0.0
    %5528 = vmatpush1.msra.mxu0 0.0
    %5529 = vmatprep.subr.mxu0 0.0
    %5530 = vmatpush1.msra.mxu0 0.0
    %5531 = vmatprep.subr.mxu0 0.0
    %5532 = vmatpush1.msra.mxu0 0.0
    %5533 = vmatprep.subr.mxu0 0.0
    %5534 = vmatpush1.msra.mxu0 0.0
    %5535 = vmatprep.subr.mxu0 0.0
    %5536 = vmatpush1.msra.mxu0 0.0
    %5537 = vmatprep.subr.mxu0 0.0
    %5538 = vmatpush1.msra.mxu0 0.0
    %5539 = vmatprep.subr.mxu0 0.0
    %5540 = vmatpush1.msra.mxu0 0.0
    %5541 = vmatprep.subr.mxu0 0.0
    %5542 = vmatpush1.msra.mxu0 0.0
    %5543 = vmatprep.subr.mxu0 0.0
    %5544 = vmatpush1.msra.mxu0 0.0
    %5545 = vmatprep.subr.mxu0 0.0
    %5546 = vmatpush1.msra.mxu0 0.0
    %5547 = vmatprep.subr.mxu0 0.0
    %5548 = vmatpush1.msra.mxu0 0.0
    %5549 = vmatprep.subr.mxu0 0.0
    %5550 = vmatpush1.msra.mxu0 0.0
    %5551 = vmatprep.mubr.f32.mxu0 0.0
    %5552 = vmatmul.mubr.f32.gmra.mrb[0].mxu0 %v2304
    %v5553 = vpop.f32.mrb[0].mxu0
    %v5554 = vadd.f32 0.0, %v5553
    %v5555 = vpop.f32.mrb[0].mxu0
    %5556 = vmatprep.mubr.f32.mxu0 0.0
    %5557 = vmatmul.mubr.f32.gmra.mrb[0].mxu0 %v2306
    %v5558 = vpop.f32.mrb[0].mxu0
    %v5559 = vadd.f32 0.0, %v5558
    %v5560 = vpop.f32.mrb[0].mxu0
    %5561 = vmatprep.mubr.f32.mxu0 0.0
    %5562 = vmatmul.mubr.f32.gmra.mrb[0].mxu0 %v2308
    %v5563 = vpop.f32.mrb[0].mxu0
    %v5564 = vadd.f32 0.0, %v5563
    %v5565 = vpop.f32.mrb[0].mxu0
    %5566 = vmatprep.mubr.f32.mxu0 0.0
    %5567 = vmatmul.mubr.f32.gmra.mrb[0].mxu0 %v2310
    %v5568 = vpop.f32.mrb[0].mxu0
    %v5569 = vadd.f32 0.0, %v5568
    %v5570 = vpop.f32.mrb[0].mxu0
    %5571 = vmatprep.mubr.f32.mxu0 0.0
    %5572 = vmatmul.mubr.f32.gmra.mrb[0].mxu0 %v2312
    %v5573 = vpop.f32.mrb[0].mxu0
    %v5574 = vadd.f32 0.0, %v5573
    %v5575 = vpop.f32.mrb[0].mxu0
    %5576 = vmatprep.mubr.f32.mxu0 0.0
    %5577 = vmatmul.mubr.f32.gmra.mrb[0].mxu0 %v2314
    %v5578 = vpop.f32.mrb[0].mxu0
    %v5579 = vadd.f32 0.0, %v5578
    %v5580 = vpop.f32.mrb[0].mxu0
    %5581 = vmatprep.mubr.f32.mxu0 0.0
    %5582 = vmatmul.mubr.f32.gmra.mrb[0].mxu0 %v2316
    %v5583 = vpop.f32.mrb[0].mxu0
    %v5584 = vadd.f32 0.0, %v5583
    %v5585 = vpop.f32.mrb[0].mxu0
    %5586 = vmatprep.mubr.f32.mxu0 0.0
    %5587 = vmatmul.mubr.f32.gmra.mrb[0].mxu0 %v2318
    %v5588 = vpop.f32.mrb[0].mxu0
    %v5589 = vadd.f32 0.0, %v5588
    %v5590 = vpop.f32.mrb[0].mxu0
    %5591 = vmatprep.mubr.f32.mxu0 0.0
    %5592 = vmatmul.mubr.f32.gmra.mrb[0].mxu0 %v2320
    %v5593 = vpop.f32.mrb[0].mxu0
    %v5594 = vadd.f32 0.0, %v5593
    %v5595 = vpop.f32.mrb[0].mxu0
    %5596 = vmatprep.mubr.f32.mxu0 0.0
    %5597 = vmatmul.mubr.f32.gmra.mrb[0].mxu0 %v2322
    %v5598 = vpop.f32.mrb[0].mxu0
    %v5599 = vadd.f32 0.0, %v5598
    %v5600 = vpop.f32.mrb[0].mxu0
    %5601 = vmatprep.mubr.f32.mxu0 0.0
    %5602 = vmatmul.mubr.f32.gmra.mrb[0].mxu0 %v2324
    %v5603 = vpop.f32.mrb[0].mxu0
    %v5604 = vadd.f32 0.0, %v5603
    %v5605 = vpop.f32.mrb[0].mxu0
    %5606 = vmatprep.mubr.f32.mxu0 0.0
    %5607 = vmatmul.mubr.f32.gmra.mrb[0].mxu0 %v2326
    %v5608 = vpop.f32.mrb[0].mxu0
    %v5609 = vadd.f32 0.0, %v5608
    %v5610 = vpop.f32.mrb[0].mxu0
    %5611 = vmatprep.mubr.f32.mxu0 0.0
    %5612 = vmatmul.mubr.f32.gmra.mrb[0].mxu0 %v2328
    %v5613 = vpop.f32.mrb[0].mxu0
    %v5614 = vadd.f32 0.0, %v5613
    %v5615 = vpop.f32.mrb[0].mxu0
    %5616 = vmatprep.mubr.f32.mxu0 0.0
    %5617 = vmatmul.mubr.f32.gmra.mrb[0].mxu0 %v2330
    %v5618 = vpop.f32.mrb[0].mxu0
    %v5619 = vadd.f32 0.0, %v5618
    %v5620 = vpop.f32.mrb[0].mxu0
    %5621 = vmatprep.mubr.f32.mxu0 0.0
    %5622 = vmatmul.mubr.f32.gmra.mrb[0].mxu0 %v2332
    %v5623 = vpop.f32.mrb[0].mxu0
    %v5624 = vadd.f32 0.0, %v5623
    %v5625 = vpop.f32.mrb[0].mxu0
    %5626 = vmatprep.mubr.f32.mxu0 0.0
    %5627 = vmatmul.mubr.f32.gmra.mrb[0].mxu0 %v2334
    %v5628 = vpop.f32.mrb[0].mxu0
    %v5629 = vadd.f32 0.0, %v5628
    %v5630 = vpop.f32.mrb[0].mxu0
    %5631 = vmatprep.mubr.f32.mxu0 0.0
    %5632 = vmatmul.mubr.f32.gmra.mrb[0].mxu0 %v2336
    %v5633 = vpop.f32.mrb[0].mxu0
    %v5634 = vadd.f32 0.0, %v5633
    %v5635 = vpop.f32.mrb[0].mxu0
    %5636 = vmatprep.mubr.f32.mxu0 0.0
    %5637 = vmatmul.mubr.f32.gmra.mrb[0].mxu0 %v2338
    %v5638 = vpop.f32.mrb[0].mxu0
    %v5639 = vadd.f32 0.0, %v5638
    %v5640 = vpop.f32.mrb[0].mxu0
    %5641 = vmatprep.mubr.f32.mxu0 0.0
    %5642 = vmatmul.mubr.f32.gmra.mrb[0].mxu0 %v2340
    %v5643 = vpop.f32.mrb[0].mxu0
    %v5644 = vadd.f32 0.0, %v5643
    %v5645 = vpop.f32.mrb[0].mxu0
    %5646 = vmatprep.mubr.f32.mxu0 0.0
    %5647 = vmatmul.mubr.f32.gmra.mrb[0].mxu0 %v2342
    %v5648 = vpop.f32.mrb[0].mxu0
    %v5649 = vadd.f32 0.0, %v5648
    %v5650 = vpop.f32.mrb[0].mxu0
    %5651 = vmatprep.mubr.f32.mxu0 0.0
    %5652 = vmatmul.mubr.f32.gmra.mrb[0].mxu0 %v2344
    %v5653 = vpop.f32.mrb[0].mxu0
    %v5654 = vadd.f32 0.0, %v5653
    %v5655 = vpop.f32.mrb[0].mxu0
    %5656 = vmatprep.mubr.f32.mxu0 0.0
    %5657 = vmatmul.mubr.f32.gmra.mrb[0].mxu0 %v2346
    %v5658 = vpop.f32.mrb[0].mxu0
    %v5659 = vadd.f32 0.0, %v5658
    %v5660 = vpop.f32.mrb[0].mxu0
    %5661 = vmatprep.mubr.f32.mxu0 0.0
    %5662 = vmatmul.mubr.f32.gmra.mrb[0].mxu0 %v2348
    %v5663 = vpop.f32.mrb[0].mxu0
    %v5664 = vadd.f32 0.0, %v5663
    %v5665 = vpop.f32.mrb[0].mxu0
    %5666 = vmatprep.mubr.f32.mxu0 0.0
    %5667 = vmatmul.mubr.f32.gmra.mrb[0].mxu0 %v2350
    %v5668 = vpop.f32.mrb[0].mxu0
    %v5669 = vadd.f32 0.0, %v5668
    %v5670 = vpop.f32.mrb[0].mxu0
    %5671 = vmatprep.mubr.f32.mxu0 0.0
    %5672 = vmatmul.mubr.f32.gmra.mrb[0].mxu0 %v2352
    %v5673 = vpop.f32.mrb[0].mxu0
    %v5674 = vadd.f32 0.0, %v5673
    %v5675 = vpop.f32.mrb[0].mxu0
    %5676 = vmatprep.mubr.f32.mxu0 0.0
    %5677 = vmatmul.mubr.f32.gmra.mrb[0].mxu0 %v2354
    %v5678 = vpop.f32.mrb[0].mxu0
    %v5679 = vadd.f32 0.0, %v5678
    %v5680 = vpop.f32.mrb[0].mxu0
    %5681 = vmatprep.mubr.f32.mxu0 0.0
    %5682 = vmatmul.mubr.f32.gmra.mrb[0].mxu0 %v5479
    %v5683 = vpop.f32.mrb[0].mxu0
    %v5684 = vadd.f32 0.0, %v5683
    %v5685 = vpop.f32.mrb[0].mxu0
    %5686 = vmatprep.mubr.f32.mxu0 0.0
    %5687 = vmatmul.mubr.f32.gmra.mrb[0].mxu0 %v5481
    %v5688 = vpop.f32.mrb[0].mxu0
    %v5689 = vadd.f32 0.0, %v5688
    %v5690 = vpop.f32.mrb[0].mxu0
    %5691 = vmatprep.mubr.f32.mxu0 0.0
    %5692 = vmatmul.mubr.f32.gmra.mrb[0].mxu0 %v5483
    %v5693 = vpop.f32.mrb[0].mxu0
    %v5694 = vadd.f32 0.0, %v5693
    %v5695 = vpop.f32.mrb[0].mxu0
    %5696 = vmatprep.mubr.f32.mxu0 0.0
    %5697 = vmatmul.mubr.f32.gmra.mrb[0].mxu0 %v5485
    %v5698 = vpop.f32.mrb[0].mxu0
    %v5699 = vadd.f32 0.0, %v5698
    %v5700 = vpop.f32.mrb[0].mxu0
    %5701 = vdwg.mxu0
    %v5702 = vadd.f32 %v5440, %v5554
    %v5703 = vadd.f32 %v5441, %v5559
    %v5704 = vadd.f32 %v5442, %v5564
    %v5705 = vadd.f32 %v5443, %v5569
    %v5706 = vadd.f32 %v5444, %v5574
    %v5707 = vadd.f32 %v5445, %v5579
    %v5708 = vadd.f32 %v5446, %v5584
    %v5709 = vadd.f32 %v5447, %v5589
    %v5710 = vadd.f32 %v5448, %v5594
    %v5711 = vadd.f32 %v5449, %v5599
    %v5712 = vadd.f32 %v5450, %v5604
    %v5713 = vadd.f32 %v5451, %v5609
    %v5714 = vadd.f32 %v5452, %v5614
    %v5715 = vadd.f32 %v5453, %v5619
    %v5716 = vadd.f32 %v5454, %v5624
    %v5717 = vadd.f32 %v5455, %v5629
    %v5718 = vadd.f32 %v5456, %v5634
    %v5719 = vadd.f32 %v5457, %v5639
    %v5720 = vadd.f32 %v5458, %v5644
    %v5721 = vadd.f32 %v5459, %v5649
    %v5722 = vadd.f32 %v5460, %v5654
    %v5723 = vadd.f32 %v5461, %v5659
    %v5724 = vadd.f32 %v5462, %v5664
    %v5725 = vadd.f32 %v5463, %v5669
    %v5726 = vadd.f32 %v5464, %v5674
    %v5727 = vadd.f32 %v5465, %v5679
    %v5728 = vadd.f32 %v5466, %v5684
    %v5729 = vadd.f32 %v5467, %v5689
    %v5730 = vadd.f32 %v5468, %v5694
    %v5731 = vadd.f32 %v5469, %v5699
    %s5732 = scalar_lea.vmem %s4, 208
    %v5733 = vld [vmem:[%s5732] sm:$0xff]
    %v5734 = vld [vmem:[%s5732 + $0x8] sm:$0xff]
    %v5735 = vrot.slane %v1583, 3
    %v5736 = vsel %vm2606, %v2664, %v5735
    %v5737 = vrot.slane %v1584, 3
    %v5738 = vsel %vm2606, %v5735, %v5737
    %v5739 = vrot.slane %v1585, 3
    %v5740 = vsel %vm2606, %v5737, %v5739
    %v5741 = vsel %vm1684, %v5736, 0
    %v5743 = vsel %vm1684, %v5738, 0
    %v5745 = vsel %vm1684, %v5740, 0
    %v5747 = vsel %vm1684, %v5739, 0
    %5749 = vmatprep.subr.mxu0 0.0
    %5750 = vmatpush1.msra.mxu0 %v5733
    %5751 = vmatprep.subr.mxu0 0.0
    %5752 = vmatpush1.msra.mxu0 %v5734
    %5753 = vmatprep.subr.mxu0 0.0
    %5754 = vmatpush1.msra.mxu0 0.0
    %5755 = vmatprep.subr.mxu0 0.0
    %5756 = vmatpush1.msra.mxu0 0.0
    %5757 = vmatprep.subr.mxu0 0.0
    %5758 = vmatpush1.msra.mxu0 0.0
    %5759 = vmatprep.subr.mxu0 0.0
    %5760 = vmatpush1.msra.mxu0 0.0
    %5761 = vmatprep.subr.mxu0 0.0
    %5762 = vmatpush1.msra.mxu0 0.0
    %5763 = vmatprep.subr.mxu0 0.0
    %5764 = vmatpush1.msra.mxu0 0.0
    %5765 = vmatprep.subr.mxu0 0.0
    %5766 = vmatpush1.msra.mxu0 0.0
    %5767 = vmatprep.subr.mxu0 0.0
    %5768 = vmatpush1.msra.mxu0 0.0
    %5769 = vmatprep.subr.mxu0 0.0
    %5770 = vmatpush1.msra.mxu0 0.0
    %5771 = vmatprep.subr.mxu0 0.0
    %5772 = vmatpush1.msra.mxu0 0.0
    %5773 = vmatprep.subr.mxu0 0.0
    %5774 = vmatpush1.msra.mxu0 0.0
    %5775 = vmatprep.subr.mxu0 0.0
    %5776 = vmatpush1.msra.mxu0 0.0
    %5777 = vmatprep.subr.mxu0 0.0
    %5778 = vmatpush1.msra.mxu0 0.0
    %5779 = vmatprep.subr.mxu0 0.0
    %5780 = vmatpush1.msra.mxu0 0.0
    %5781 = vmatprep.subr.mxu0 0.0
    %5782 = vmatpush1.msra.mxu0 0.0
    %5783 = vmatprep.subr.mxu0 0.0
    %5784 = vmatpush1.msra.mxu0 0.0
    %5785 = vmatprep.subr.mxu0 0.0
    %5786 = vmatpush1.msra.mxu0 0.0
    %5787 = vmatprep.subr.mxu0 0.0
    %5788 = vmatpush1.msra.mxu0 0.0
    %5789 = vmatprep.subr.mxu0 0.0
    %5790 = vmatpush1.msra.mxu0 0.0
    %5791 = vmatprep.subr.mxu0 0.0
    %5792 = vmatpush1.msra.mxu0 0.0
    %5793 = vmatprep.subr.mxu0 0.0
    %5794 = vmatpush1.msra.mxu0 0.0
    %5795 = vmatprep.subr.mxu0 0.0
    %5796 = vmatpush1.msra.mxu0 0.0
    %5797 = vmatprep.subr.mxu0 0.0
    %5798 = vmatpush1.msra.mxu0 0.0
    %5799 = vmatprep.subr.mxu0 0.0
    %5800 = vmatpush1.msra.mxu0 0.0
    %5801 = vmatprep.subr.mxu0 0.0
    %5802 = vmatpush1.msra.mxu0 0.0
    %5803 = vmatprep.subr.mxu0 0.0
    %5804 = vmatpush1.msra.mxu0 0.0
    %5805 = vmatprep.subr.mxu0 0.0
    %5806 = vmatpush1.msra.mxu0 0.0
    %5807 = vmatprep.subr.mxu0 0.0
    %5808 = vmatpush1.msra.mxu0 0.0
    %5809 = vmatprep.subr.mxu0 0.0
    %5810 = vmatpush1.msra.mxu0 0.0
    %5811 = vmatprep.subr.mxu0 0.0
    %5812 = vmatpush1.msra.mxu0 0.0
    %5813 = vmatprep.mubr.f32.mxu0 0.0
    %5814 = vmatmul.mubr.f32.gmra.mrb[0].mxu0 %v2672
    %v5815 = vpop.f32.mrb[0].mxu0
    %v5816 = vadd.f32 0.0, %v5815
    %v5817 = vpop.f32.mrb[0].mxu0
    %5818 = vmatprep.mubr.f32.mxu0 0.0
    %5819 = vmatmul.mubr.f32.gmra.mrb[0].mxu0 %v2674
    %v5820 = vpop.f32.mrb[0].mxu0
    %v5821 = vadd.f32 0.0, %v5820
    %v5822 = vpop.f32.mrb[0].mxu0
    %5823 = vmatprep.mubr.f32.mxu0 0.0
    %5824 = vmatmul.mubr.f32.gmra.mrb[0].mxu0 %v2676
    %v5825 = vpop.f32.mrb[0].mxu0
    %v5826 = vadd.f32 0.0, %v5825
    %v5827 = vpop.f32.mrb[0].mxu0
    %5828 = vmatprep.mubr.f32.mxu0 0.0
    %5829 = vmatmul.mubr.f32.gmra.mrb[0].mxu0 %v2678
    %v5830 = vpop.f32.mrb[0].mxu0
    %v5831 = vadd.f32 0.0, %v5830
    %v5832 = vpop.f32.mrb[0].mxu0
    %5833 = vmatprep.mubr.f32.mxu0 0.0
    %5834 = vmatmul.mubr.f32.gmra.mrb[0].mxu0 %v2680
    %v5835 = vpop.f32.mrb[0].mxu0
    %v5836 = vadd.f32 0.0, %v5835
    %v5837 = vpop.f32.mrb[0].mxu0
    %5838 = vmatprep.mubr.f32.mxu0 0.0
    %5839 = vmatmul.mubr.f32.gmra.mrb[0].mxu0 %v2682
    %v5840 = vpop.f32.mrb[0].mxu0
    %v5841 = vadd.f32 0.0, %v5840
    %v5842 = vpop.f32.mrb[0].mxu0
    %5843 = vmatprep.mubr.f32.mxu0 0.0
    %5844 = vmatmul.mubr.f32.gmra.mrb[0].mxu0 %v2684
    %v5845 = vpop.f32.mrb[0].mxu0
    %v5846 = vadd.f32 0.0, %v5845
    %v5847 = vpop.f32.mrb[0].mxu0
    %5848 = vmatprep.mubr.f32.mxu0 0.0
    %5849 = vmatmul.mubr.f32.gmra.mrb[0].mxu0 %v2686
    %v5850 = vpop.f32.mrb[0].mxu0
    %v5851 = vadd.f32 0.0, %v5850
    %v5852 = vpop.f32.mrb[0].mxu0
    %5853 = vmatprep.mubr.f32.mxu0 0.0
    %5854 = vmatmul.mubr.f32.gmra.mrb[0].mxu0 %v2688
    %v5855 = vpop.f32.mrb[0].mxu0
    %v5856 = vadd.f32 0.0, %v5855
    %v5857 = vpop.f32.mrb[0].mxu0
    %5858 = vmatprep.mubr.f32.mxu0 0.0
    %5859 = vmatmul.mubr.f32.gmra.mrb[0].mxu0 %v2690
    %v5860 = vpop.f32.mrb[0].mxu0
    %v5861 = vadd.f32 0.0, %v5860
    %v5862 = vpop.f32.mrb[0].mxu0
    %5863 = vmatprep.mubr.f32.mxu0 0.0
    %5864 = vmatmul.mubr.f32.gmra.mrb[0].mxu0 %v2692
    %v5865 = vpop.f32.mrb[0].mxu0
    %v5866 = vadd.f32 0.0, %v5865
    %v5867 = vpop.f32.mrb[0].mxu0
    %5868 = vmatprep.mubr.f32.mxu0 0.0
    %5869 = vmatmul.mubr.f32.gmra.mrb[0].mxu0 %v2694
    %v5870 = vpop.f32.mrb[0].mxu0
    %v5871 = vadd.f32 0.0, %v5870
    %v5872 = vpop.f32.mrb[0].mxu0
    %5873 = vmatprep.mubr.f32.mxu0 0.0
    %5874 = vmatmul.mubr.f32.gmra.mrb[0].mxu0 %v2696
    %v5875 = vpop.f32.mrb[0].mxu0
    %v5876 = vadd.f32 0.0, %v5875
    %v5877 = vpop.f32.mrb[0].mxu0
    %5878 = vmatprep.mubr.f32.mxu0 0.0
    %5879 = vmatmul.mubr.f32.gmra.mrb[0].mxu0 %v2698
    %v5880 = vpop.f32.mrb[0].mxu0
    %v5881 = vadd.f32 0.0, %v5880
    %v5882 = vpop.f32.mrb[0].mxu0
    %5883 = vmatprep.mubr.f32.mxu0 0.0
    %5884 = vmatmul.mubr.f32.gmra.mrb[0].mxu0 %v2700
    %v5885 = vpop.f32.mrb[0].mxu0
    %v5886 = vadd.f32 0.0, %v5885
    %v5887 = vpop.f32.mrb[0].mxu0
    %5888 = vmatprep.mubr.f32.mxu0 0.0
    %5889 = vmatmul.mubr.f32.gmra.mrb[0].mxu0 %v2702
    %v5890 = vpop.f32.mrb[0].mxu0
    %v5891 = vadd.f32 0.0, %v5890
    %v5892 = vpop.f32.mrb[0].mxu0
    %5893 = vmatprep.mubr.f32.mxu0 0.0
    %5894 = vmatmul.mubr.f32.gmra.mrb[0].mxu0 %v2704
    %v5895 = vpop.f32.mrb[0].mxu0
    %v5896 = vadd.f32 0.0, %v5895
    %v5897 = vpop.f32.mrb[0].mxu0
    %5898 = vmatprep.mubr.f32.mxu0 0.0
    %5899 = vmatmul.mubr.f32.gmra.mrb[0].mxu0 %v2706
    %v5900 = vpop.f32.mrb[0].mxu0
    %v5901 = vadd.f32 0.0, %v5900
    %v5902 = vpop.f32.mrb[0].mxu0
    %5903 = vmatprep.mubr.f32.mxu0 0.0
    %5904 = vmatmul.mubr.f32.gmra.mrb[0].mxu0 %v2708
    %v5905 = vpop.f32.mrb[0].mxu0
    %v5906 = vadd.f32 0.0, %v5905
    %v5907 = vpop.f32.mrb[0].mxu0
    %5908 = vmatprep.mubr.f32.mxu0 0.0
    %5909 = vmatmul.mubr.f32.gmra.mrb[0].mxu0 %v2710
    %v5910 = vpop.f32.mrb[0].mxu0
    %v5911 = vadd.f32 0.0, %v5910
    %v5912 = vpop.f32.mrb[0].mxu0
    %5913 = vmatprep.mubr.f32.mxu0 0.0
    %5914 = vmatmul.mubr.f32.gmra.mrb[0].mxu0 %v2712
    %v5915 = vpop.f32.mrb[0].mxu0
    %v5916 = vadd.f32 0.0, %v5915
    %v5917 = vpop.f32.mrb[0].mxu0
    %5918 = vmatprep.mubr.f32.mxu0 0.0
    %5919 = vmatmul.mubr.f32.gmra.mrb[0].mxu0 %v2714
    %v5920 = vpop.f32.mrb[0].mxu0
    %v5921 = vadd.f32 0.0, %v5920
    %v5922 = vpop.f32.mrb[0].mxu0
    %5923 = vmatprep.mubr.f32.mxu0 0.0
    %5924 = vmatmul.mubr.f32.gmra.mrb[0].mxu0 %v2716
    %v5925 = vpop.f32.mrb[0].mxu0
    %v5926 = vadd.f32 0.0, %v5925
    %v5927 = vpop.f32.mrb[0].mxu0
    %5928 = vmatprep.mubr.f32.mxu0 0.0
    %5929 = vmatmul.mubr.f32.gmra.mrb[0].mxu0 %v2718
    %v5930 = vpop.f32.mrb[0].mxu0
    %v5931 = vadd.f32 0.0, %v5930
    %v5932 = vpop.f32.mrb[0].mxu0
    %5933 = vmatprep.mubr.f32.mxu0 0.0
    %5934 = vmatmul.mubr.f32.gmra.mrb[0].mxu0 %v2720
    %v5935 = vpop.f32.mrb[0].mxu0
    %v5936 = vadd.f32 0.0, %v5935
    %v5937 = vpop.f32.mrb[0].mxu0
    %5938 = vmatprep.mubr.f32.mxu0 0.0
    %5939 = vmatmul.mubr.f32.gmra.mrb[0].mxu0 %v2722
    %v5940 = vpop.f32.mrb[0].mxu0
    %v5941 = vadd.f32 0.0, %v5940
    %v5942 = vpop.f32.mrb[0].mxu0
    %5943 = vmatprep.mubr.f32.mxu0 0.0
    %5944 = vmatmul.mubr.f32.gmra.mrb[0].mxu0 %v5741
    %v5945 = vpop.f32.mrb[0].mxu0
    %v5946 = vadd.f32 0.0, %v5945
    %v5947 = vpop.f32.mrb[0].mxu0
    %5948 = vmatprep.mubr.f32.mxu0 0.0
    %5949 = vmatmul.mubr.f32.gmra.mrb[0].mxu0 %v5743
    %v5950 = vpop.f32.mrb[0].mxu0
    %v5951 = vadd.f32 0.0, %v5950
    %v5952 = vpop.f32.mrb[0].mxu0
    %5953 = vmatprep.mubr.f32.mxu0 0.0
    %5954 = vmatmul.mubr.f32.gmra.mrb[0].mxu0 %v5745
    %v5955 = vpop.f32.mrb[0].mxu0
    %v5956 = vadd.f32 0.0, %v5955
    %v5957 = vpop.f32.mrb[0].mxu0
    %5958 = vmatprep.mubr.f32.mxu0 0.0
    %5959 = vmatmul.mubr.f32.gmra.mrb[0].mxu0 %v5747
    %v5960 = vpop.f32.mrb[0].mxu0
    %v5961 = vadd.f32 0.0, %v5960
    %v5962 = vpop.f32.mrb[0].mxu0
    %5963 = vdwg.mxu0
    %v5964 = vadd.f32 %v5702, %v5816
    %v5965 = vadd.f32 %v5703, %v5821
    %v5966 = vadd.f32 %v5704, %v5826
    %v5967 = vadd.f32 %v5705, %v5831
    %v5968 = vadd.f32 %v5706, %v5836
    %v5969 = vadd.f32 %v5707, %v5841
    %v5970 = vadd.f32 %v5708, %v5846
    %v5971 = vadd.f32 %v5709, %v5851
    %v5972 = vadd.f32 %v5710, %v5856
    %v5973 = vadd.f32 %v5711, %v5861
    %v5974 = vadd.f32 %v5712, %v5866
    %v5975 = vadd.f32 %v5713, %v5871
    %v5976 = vadd.f32 %v5714, %v5876
    %v5977 = vadd.f32 %v5715, %v5881
    %v5978 = vadd.f32 %v5716, %v5886
    %v5979 = vadd.f32 %v5717, %v5891
    %v5980 = vadd.f32 %v5718, %v5896
    %v5981 = vadd.f32 %v5719, %v5901
    %v5982 = vadd.f32 %v5720, %v5906
    %v5983 = vadd.f32 %v5721, %v5911
    %v5984 = vadd.f32 %v5722, %v5916
    %v5985 = vadd.f32 %v5723, %v5921
    %v5986 = vadd.f32 %v5724, %v5926
    %v5987 = vadd.f32 %v5725, %v5931
    %v5988 = vadd.f32 %v5726, %v5936
    %v5989 = vadd.f32 %v5727, %v5941
    %v5990 = vadd.f32 %v5728, %v5946
    %v5991 = vadd.f32 %v5729, %v5951
    %v5992 = vadd.f32 %v5730, %v5956
    %v5993 = vadd.f32 %v5731, %v5961
    %s5994 = scalar_lea.vmem %s4, 224
    %v5995 = vld [vmem:[%s5994] sm:$0xff]
    %v5996 = vld [vmem:[%s5994 + $0x8] sm:$0xff]
    %v5997 = vrot.slane %v1584, 4
    %v5998 = vsel %vm2974, %v3343, %v5997
    %v5999 = vrot.slane %v1585, 4
    %v6000 = vsel %vm2974, %v5997, %v5999
    %v6001 = vsel %vm1684, %v5998, 0
    %v6003 = vsel %vm1684, %v6000, 0
    %v6005 = vsel %vm1684, %v5999, 0
    %6007 = vmatprep.subr.mxu0 0.0
    %6008 = vmatpush1.msra.mxu0 %v5995
    %6009 = vmatprep.subr.mxu0 0.0
    %6010 = vmatpush1.msra.mxu0 %v5996
    %6011 = vmatprep.subr.mxu0 0.0
    %6012 = vmatpush1.msra.mxu0 0.0
    %6013 = vmatprep.subr.mxu0 0.0
    %6014 = vmatpush1.msra.mxu0 0.0
    %6015 = vmatprep.subr.mxu0 0.0
    %6016 = vmatpush1.msra.mxu0 0.0
    %6017 = vmatprep.subr.mxu0 0.0
    %6018 = vmatpush1.msra.mxu0 0.0
    %6019 = vmatprep.subr.mxu0 0.0
    %6020 = vmatpush1.msra.mxu0 0.0
    %6021 = vmatprep.subr.mxu0 0.0
    %6022 = vmatpush1.msra.mxu0 0.0
    %6023 = vmatprep.subr.mxu0 0.0
    %6024 = vmatpush1.msra.mxu0 0.0
    %6025 = vmatprep.subr.mxu0 0.0
    %6026 = vmatpush1.msra.mxu0 0.0
    %6027 = vmatprep.subr.mxu0 0.0
    %6028 = vmatpush1.msra.mxu0 0.0
    %6029 = vmatprep.subr.mxu0 0.0
    %6030 = vmatpush1.msra.mxu0 0.0
    %6031 = vmatprep.subr.mxu0 0.0
    %6032 = vmatpush1.msra.mxu0 0.0
    %6033 = vmatprep.subr.mxu0 0.0
    %6034 = vmatpush1.msra.mxu0 0.0
    %6035 = vmatprep.subr.mxu0 0.0
    %6036 = vmatpush1.msra.mxu0 0.0
    %6037 = vmatprep.subr.mxu0 0.0
    %6038 = vmatpush1.msra.mxu0 0.0
    %6039 = vmatprep.subr.mxu0 0.0
    %6040 = vmatpush1.msra.mxu0 0.0
    %6041 = vmatprep.subr.mxu0 0.0
    %6042 = vmatpush1.msra.mxu0 0.0
    %6043 = vmatprep.subr.mxu0 0.0
    %6044 = vmatpush1.msra.mxu0 0.0
    %6045 = vmatprep.subr.mxu0 0.0
    %6046 = vmatpush1.msra.mxu0 0.0
    %6047 = vmatprep.subr.mxu0 0.0
    %6048 = vmatpush1.msra.mxu0 0.0
    %6049 = vmatprep.subr.mxu0 0.0
    %6050 = vmatpush1.msra.mxu0 0.0
    %6051 = vmatprep.subr.mxu0 0.0
    %6052 = vmatpush1.msra.mxu0 0.0
    %6053 = vmatprep.subr.mxu0 0.0
    %6054 = vmatpush1.msra.mxu0 0.0
    %6055 = vmatprep.subr.mxu0 0.0
    %6056 = vmatpush1.msra.mxu0 0.0
    %6057 = vmatprep.subr.mxu0 0.0
    %6058 = vmatpush1.msra.mxu0 0.0
    %6059 = vmatprep.subr.mxu0 0.0
    %6060 = vmatpush1.msra.mxu0 0.0
    %6061 = vmatprep.subr.mxu0 0.0
    %6062 = vmatpush1.msra.mxu0 0.0
    %6063 = vmatprep.subr.mxu0 0.0
    %6064 = vmatpush1.msra.mxu0 0.0
    %6065 = vmatprep.subr.mxu0 0.0
    %6066 = vmatpush1.msra.mxu0 0.0
    %6067 = vmatprep.subr.mxu0 0.0
    %6068 = vmatpush1.msra.mxu0 0.0
    %6069 = vmatprep.subr.mxu0 0.0
    %6070 = vmatpush1.msra.mxu0 0.0
    %6071 = vmatprep.mubr.f32.mxu0 0.0
    %6072 = vmatmul.mubr.f32.gmra.mrb[0].mxu0 %v3040
    %v6073 = vpop.f32.mrb[0].mxu0
    %v6074 = vadd.f32 0.0, %v6073
    %v6075 = vpop.f32.mrb[0].mxu0
    %6076 = vmatprep.mubr.f32.mxu0 0.0
    %6077 = vmatmul.mubr.f32.gmra.mrb[0].mxu0 %v3042
    %v6078 = vpop.f32.mrb[0].mxu0
    %v6079 = vadd.f32 0.0, %v6078
    %v6080 = vpop.f32.mrb[0].mxu0
    %6081 = vmatprep.mubr.f32.mxu0 0.0
    %6082 = vmatmul.mubr.f32.gmra.mrb[0].mxu0 %v3044
    %v6083 = vpop.f32.mrb[0].mxu0
    %v6084 = vadd.f32 0.0, %v6083
    %v6085 = vpop.f32.mrb[0].mxu0
    %6086 = vmatprep.mubr.f32.mxu0 0.0
    %6087 = vmatmul.mubr.f32.gmra.mrb[0].mxu0 %v3046
    %v6088 = vpop.f32.mrb[0].mxu0
    %v6089 = vadd.f32 0.0, %v6088
    %v6090 = vpop.f32.mrb[0].mxu0
    %6091 = vmatprep.mubr.f32.mxu0 0.0
    %6092 = vmatmul.mubr.f32.gmra.mrb[0].mxu0 %v3048
    %v6093 = vpop.f32.mrb[0].mxu0
    %v6094 = vadd.f32 0.0, %v6093
    %v6095 = vpop.f32.mrb[0].mxu0
    %6096 = vmatprep.mubr.f32.mxu0 0.0
    %6097 = vmatmul.mubr.f32.gmra.mrb[0].mxu0 %v3050
    %v6098 = vpop.f32.mrb[0].mxu0
    %v6099 = vadd.f32 0.0, %v6098
    %v6100 = vpop.f32.mrb[0].mxu0
    %6101 = vmatprep.mubr.f32.mxu0 0.0
    %6102 = vmatmul.mubr.f32.gmra.mrb[0].mxu0 %v3052
    %v6103 = vpop.f32.mrb[0].mxu0
    %v6104 = vadd.f32 0.0, %v6103
    %v6105 = vpop.f32.mrb[0].mxu0
    %6106 = vmatprep.mubr.f32.mxu0 0.0
    %6107 = vmatmul.mubr.f32.gmra.mrb[0].mxu0 %v3054
    %v6108 = vpop.f32.mrb[0].mxu0
    %v6109 = vadd.f32 0.0, %v6108
    %v6110 = vpop.f32.mrb[0].mxu0
    %6111 = vmatprep.mubr.f32.mxu0 0.0
    %6112 = vmatmul.mubr.f32.gmra.mrb[0].mxu0 %v3056
    %v6113 = vpop.f32.mrb[0].mxu0
    %v6114 = vadd.f32 0.0, %v6113
    %v6115 = vpop.f32.mrb[0].mxu0
    %6116 = vmatprep.mubr.f32.mxu0 0.0
    %6117 = vmatmul.mubr.f32.gmra.mrb[0].mxu0 %v3058
    %v6118 = vpop.f32.mrb[0].mxu0
    %v6119 = vadd.f32 0.0, %v6118
    %v6120 = vpop.f32.mrb[0].mxu0
    %6121 = vmatprep.mubr.f32.mxu0 0.0
    %6122 = vmatmul.mubr.f32.gmra.mrb[0].mxu0 %v3060
    %v6123 = vpop.f32.mrb[0].mxu0
    %v6124 = vadd.f32 0.0, %v6123
    %v6125 = vpop.f32.mrb[0].mxu0
    %6126 = vmatprep.mubr.f32.mxu0 0.0
    %6127 = vmatmul.mubr.f32.gmra.mrb[0].mxu0 %v3062
    %v6128 = vpop.f32.mrb[0].mxu0
    %v6129 = vadd.f32 0.0, %v6128
    %v6130 = vpop.f32.mrb[0].mxu0
    %6131 = vmatprep.mubr.f32.mxu0 0.0
    %6132 = vmatmul.mubr.f32.gmra.mrb[0].mxu0 %v3064
    %v6133 = vpop.f32.mrb[0].mxu0
    %v6134 = vadd.f32 0.0, %v6133
    %v6135 = vpop.f32.mrb[0].mxu0
    %6136 = vmatprep.mubr.f32.mxu0 0.0
    %6137 = vmatmul.mubr.f32.gmra.mrb[0].mxu0 %v3066
    %v6138 = vpop.f32.mrb[0].mxu0
    %v6139 = vadd.f32 0.0, %v6138
    %v6140 = vpop.f32.mrb[0].mxu0
    %6141 = vmatprep.mubr.f32.mxu0 0.0
    %6142 = vmatmul.mubr.f32.gmra.mrb[0].mxu0 %v3068
    %v6143 = vpop.f32.mrb[0].mxu0
    %v6144 = vadd.f32 0.0, %v6143
    %v6145 = vpop.f32.mrb[0].mxu0
    %6146 = vmatprep.mubr.f32.mxu0 0.0
    %6147 = vmatmul.mubr.f32.gmra.mrb[0].mxu0 %v3070
    %v6148 = vpop.f32.mrb[0].mxu0
    %v6149 = vadd.f32 0.0, %v6148
    %v6150 = vpop.f32.mrb[0].mxu0
    %6151 = vmatprep.mubr.f32.mxu0 0.0
    %6152 = vmatmul.mubr.f32.gmra.mrb[0].mxu0 %v3072
    %v6153 = vpop.f32.mrb[0].mxu0
    %v6154 = vadd.f32 0.0, %v6153
    %v6155 = vpop.f32.mrb[0].mxu0
    %6156 = vmatprep.mubr.f32.mxu0 0.0
    %6157 = vmatmul.mubr.f32.gmra.mrb[0].mxu0 %v3074
    %v6158 = vpop.f32.mrb[0].mxu0
    %v6159 = vadd.f32 0.0, %v6158
    %v6160 = vpop.f32.mrb[0].mxu0
    %6161 = vmatprep.mubr.f32.mxu0 0.0
    %6162 = vmatmul.mubr.f32.gmra.mrb[0].mxu0 %v3076
    %v6163 = vpop.f32.mrb[0].mxu0
    %v6164 = vadd.f32 0.0, %v6163
    %v6165 = vpop.f32.mrb[0].mxu0
    %6166 = vmatprep.mubr.f32.mxu0 0.0
    %6167 = vmatmul.mubr.f32.gmra.mrb[0].mxu0 %v3078
    %v6168 = vpop.f32.mrb[0].mxu0
    %v6169 = vadd.f32 0.0, %v6168
    %v6170 = vpop.f32.mrb[0].mxu0
    %6171 = vmatprep.mubr.f32.mxu0 0.0
    %6172 = vmatmul.mubr.f32.gmra.mrb[0].mxu0 %v3080
    %v6173 = vpop.f32.mrb[0].mxu0
    %v6174 = vadd.f32 0.0, %v6173
    %v6175 = vpop.f32.mrb[0].mxu0
    %6176 = vmatprep.mubr.f32.mxu0 0.0
    %6177 = vmatmul.mubr.f32.gmra.mrb[0].mxu0 %v3082
    %v6178 = vpop.f32.mrb[0].mxu0
    %v6179 = vadd.f32 0.0, %v6178
    %v6180 = vpop.f32.mrb[0].mxu0
    %6181 = vmatprep.mubr.f32.mxu0 0.0
    %6182 = vmatmul.mubr.f32.gmra.mrb[0].mxu0 %v3084
    %v6183 = vpop.f32.mrb[0].mxu0
    %v6184 = vadd.f32 0.0, %v6183
    %v6185 = vpop.f32.mrb[0].mxu0
    %6186 = vmatprep.mubr.f32.mxu0 0.0
    %6187 = vmatmul.mubr.f32.gmra.mrb[0].mxu0 %v3086
    %v6188 = vpop.f32.mrb[0].mxu0
    %v6189 = vadd.f32 0.0, %v6188
    %v6190 = vpop.f32.mrb[0].mxu0
    %6191 = vmatprep.mubr.f32.mxu0 0.0
    %6192 = vmatmul.mubr.f32.gmra.mrb[0].mxu0 %v3088
    %v6193 = vpop.f32.mrb[0].mxu0
    %v6194 = vadd.f32 0.0, %v6193
    %v6195 = vpop.f32.mrb[0].mxu0
    %6196 = vmatprep.mubr.f32.mxu0 0.0
    %6197 = vmatmul.mubr.f32.gmra.mrb[0].mxu0 %v3090
    %v6198 = vpop.f32.mrb[0].mxu0
    %v6199 = vadd.f32 0.0, %v6198
    %v6200 = vpop.f32.mrb[0].mxu0
    %6201 = vmatprep.mubr.f32.mxu0 0.0
    %6202 = vmatmul.mubr.f32.gmra.mrb[0].mxu0 %v3345
    %v6203 = vpop.f32.mrb[0].mxu0
    %v6204 = vadd.f32 0.0, %v6203
    %v6205 = vpop.f32.mrb[0].mxu0
    %6206 = vmatprep.mubr.f32.mxu0 0.0
    %6207 = vmatmul.mubr.f32.gmra.mrb[0].mxu0 %v6001
    %v6208 = vpop.f32.mrb[0].mxu0
    %v6209 = vadd.f32 0.0, %v6208
    %v6210 = vpop.f32.mrb[0].mxu0
    %6211 = vmatprep.mubr.f32.mxu0 0.0
    %6212 = vmatmul.mubr.f32.gmra.mrb[0].mxu0 %v6003
    %v6213 = vpop.f32.mrb[0].mxu0
    %v6214 = vadd.f32 0.0, %v6213
    %v6215 = vpop.f32.mrb[0].mxu0
    %6216 = vmatprep.mubr.f32.mxu0 0.0
    %6217 = vmatmul.mubr.f32.gmra.mrb[0].mxu0 %v6005
    %v6218 = vpop.f32.mrb[0].mxu0
    %v6219 = vadd.f32 0.0, %v6218
    %v6220 = vpop.f32.mrb[0].mxu0
    %6221 = vdwg.mxu0
    %v6222 = vadd.f32 %v5964, %v6074
    %v6223 = vadd.f32 %v5965, %v6079
    %v6224 = vadd.f32 %v5966, %v6084
    %v6225 = vadd.f32 %v5967, %v6089
    %v6226 = vadd.f32 %v5968, %v6094
    %v6227 = vadd.f32 %v5969, %v6099
    %v6228 = vadd.f32 %v5970, %v6104
    %v6229 = vadd.f32 %v5971, %v6109
    %v6230 = vadd.f32 %v5972, %v6114
    %v6231 = vadd.f32 %v5973, %v6119
    %v6232 = vadd.f32 %v5974, %v6124
    %v6233 = vadd.f32 %v5975, %v6129
    %v6234 = vadd.f32 %v5976, %v6134
    %v6235 = vadd.f32 %v5977, %v6139
    %v6236 = vadd.f32 %v5978, %v6144
    %v6237 = vadd.f32 %v5979, %v6149
    %v6238 = vadd.f32 %v5980, %v6154
    %v6239 = vadd.f32 %v5981, %v6159
    %v6240 = vadd.f32 %v5982, %v6164
    %v6241 = vadd.f32 %v5983, %v6169
    %v6242 = vadd.f32 %v5984, %v6174
    %v6243 = vadd.f32 %v5985, %v6179
    %v6244 = vadd.f32 %v5986, %v6184
    %v6245 = vadd.f32 %v5987, %v6189
    %v6246 = vadd.f32 %v5988, %v6194
    %v6247 = vadd.f32 %v5989, %v6199
    %v6248 = vadd.f32 %v5990, %v6204
    %v6249 = vadd.f32 %v5991, %v6209
    %v6250 = vadd.f32 %v5992, %v6214
    %v6251 = vadd.f32 %v5993, %v6219
    %s6252 = scalar_lea.vmem %s4, 240
    %v6253 = vld [vmem:[%s6252] sm:$0xff]
    %v6254 = vld [vmem:[%s6252 + $0x8] sm:$0xff]
    %v6256 = vrot.slane %v1586, 4
    %v6257 = vsel %vm2974, %v5999, %v6256
    %v6258 = vsel %vm1684, %v6257, 0
    %v6260 = vsel %vm1684, %v6256, 0
    %6262 = vmatprep.subr.mxu0 0.0
    %6263 = vmatpush1.msra.mxu0 %v6253
    %6264 = vmatprep.subr.mxu0 0.0
    %6265 = vmatpush1.msra.mxu0 %v6254
    %6266 = vmatprep.subr.mxu0 0.0
    %6267 = vmatpush1.msra.mxu0 0.0
    %6268 = vmatprep.subr.mxu0 0.0
    %6269 = vmatpush1.msra.mxu0 0.0
    %6270 = vmatprep.subr.mxu0 0.0
    %6271 = vmatpush1.msra.mxu0 0.0
    %6272 = vmatprep.subr.mxu0 0.0
    %6273 = vmatpush1.msra.mxu0 0.0
    %6274 = vmatprep.subr.mxu0 0.0
    %6275 = vmatpush1.msra.mxu0 0.0
    %6276 = vmatprep.subr.mxu0 0.0
    %6277 = vmatpush1.msra.mxu0 0.0
    %6278 = vmatprep.subr.mxu0 0.0
    %6279 = vmatpush1.msra.mxu0 0.0
    %6280 = vmatprep.subr.mxu0 0.0
    %6281 = vmatpush1.msra.mxu0 0.0
    %6282 = vmatprep.subr.mxu0 0.0
    %6283 = vmatpush1.msra.mxu0 0.0
    %6284 = vmatprep.subr.mxu0 0.0
    %6285 = vmatpush1.msra.mxu0 0.0
    %6286 = vmatprep.subr.mxu0 0.0
    %6287 = vmatpush1.msra.mxu0 0.0
    %6288 = vmatprep.subr.mxu0 0.0
    %6289 = vmatpush1.msra.mxu0 0.0
    %6290 = vmatprep.subr.mxu0 0.0
    %6291 = vmatpush1.msra.mxu0 0.0
    %6292 = vmatprep.subr.mxu0 0.0
    %6293 = vmatpush1.msra.mxu0 0.0
    %6294 = vmatprep.subr.mxu0 0.0
    %6295 = vmatpush1.msra.mxu0 0.0
    %6296 = vmatprep.subr.mxu0 0.0
    %6297 = vmatpush1.msra.mxu0 0.0
    %6298 = vmatprep.subr.mxu0 0.0
    %6299 = vmatpush1.msra.mxu0 0.0
    %6300 = vmatprep.subr.mxu0 0.0
    %6301 = vmatpush1.msra.mxu0 0.0
    %6302 = vmatprep.subr.mxu0 0.0
    %6303 = vmatpush1.msra.mxu0 0.0
    %6304 = vmatprep.subr.mxu0 0.0
    %6305 = vmatpush1.msra.mxu0 0.0
    %6306 = vmatprep.subr.mxu0 0.0
    %6307 = vmatpush1.msra.mxu0 0.0
    %6308 = vmatprep.subr.mxu0 0.0
    %6309 = vmatpush1.msra.mxu0 0.0
    %6310 = vmatprep.subr.mxu0 0.0
    %6311 = vmatpush1.msra.mxu0 0.0
    %6312 = vmatprep.subr.mxu0 0.0
    %6313 = vmatpush1.msra.mxu0 0.0
    %6314 = vmatprep.subr.mxu0 0.0
    %6315 = vmatpush1.msra.mxu0 0.0
    %6316 = vmatprep.subr.mxu0 0.0
    %6317 = vmatpush1.msra.mxu0 0.0
    %6318 = vmatprep.subr.mxu0 0.0
    %6319 = vmatpush1.msra.mxu0 0.0
    %6320 = vmatprep.subr.mxu0 0.0
    %6321 = vmatpush1.msra.mxu0 0.0
    %6322 = vmatprep.subr.mxu0 0.0
    %6323 = vmatpush1.msra.mxu0 0.0
    %6324 = vmatprep.subr.mxu0 0.0
    %6325 = vmatpush1.msra.mxu0 0.0
    %6326 = vmatprep.mubr.f32.mxu0 0.0
    %6327 = vmatmul.mubr.f32.gmra.mrb[0].mxu0 %v3042
    %v6328 = vpop.f32.mrb[0].mxu0
    %v6329 = vadd.f32 0.0, %v6328
    %v6330 = vpop.f32.mrb[0].mxu0
    %6331 = vmatprep.mubr.f32.mxu0 0.0
    %6332 = vmatmul.mubr.f32.gmra.mrb[0].mxu0 %v3044
    %v6333 = vpop.f32.mrb[0].mxu0
    %v6334 = vadd.f32 0.0, %v6333
    %v6335 = vpop.f32.mrb[0].mxu0
    %6336 = vmatprep.mubr.f32.mxu0 0.0
    %6337 = vmatmul.mubr.f32.gmra.mrb[0].mxu0 %v3046
    %v6338 = vpop.f32.mrb[0].mxu0
    %v6339 = vadd.f32 0.0, %v6338
    %v6340 = vpop.f32.mrb[0].mxu0
    %6341 = vmatprep.mubr.f32.mxu0 0.0
    %6342 = vmatmul.mubr.f32.gmra.mrb[0].mxu0 %v3048
    %v6343 = vpop.f32.mrb[0].mxu0
    %v6344 = vadd.f32 0.0, %v6343
    %v6345 = vpop.f32.mrb[0].mxu0
    %6346 = vmatprep.mubr.f32.mxu0 0.0
    %6347 = vmatmul.mubr.f32.gmra.mrb[0].mxu0 %v3050
    %v6348 = vpop.f32.mrb[0].mxu0
    %v6349 = vadd.f32 0.0, %v6348
    %v6350 = vpop.f32.mrb[0].mxu0
    %6351 = vmatprep.mubr.f32.mxu0 0.0
    %6352 = vmatmul.mubr.f32.gmra.mrb[0].mxu0 %v3052
    %v6353 = vpop.f32.mrb[0].mxu0
    %v6354 = vadd.f32 0.0, %v6353
    %v6355 = vpop.f32.mrb[0].mxu0
    %6356 = vmatprep.mubr.f32.mxu0 0.0
    %6357 = vmatmul.mubr.f32.gmra.mrb[0].mxu0 %v3054
    %v6358 = vpop.f32.mrb[0].mxu0
    %v6359 = vadd.f32 0.0, %v6358
    %v6360 = vpop.f32.mrb[0].mxu0
    %6361 = vmatprep.mubr.f32.mxu0 0.0
    %6362 = vmatmul.mubr.f32.gmra.mrb[0].mxu0 %v3056
    %v6363 = vpop.f32.mrb[0].mxu0
    %v6364 = vadd.f32 0.0, %v6363
    %v6365 = vpop.f32.mrb[0].mxu0
    %6366 = vmatprep.mubr.f32.mxu0 0.0
    %6367 = vmatmul.mubr.f32.gmra.mrb[0].mxu0 %v3058
    %v6368 = vpop.f32.mrb[0].mxu0
    %v6369 = vadd.f32 0.0, %v6368
    %v6370 = vpop.f32.mrb[0].mxu0
    %6371 = vmatprep.mubr.f32.mxu0 0.0
    %6372 = vmatmul.mubr.f32.gmra.mrb[0].mxu0 %v3060
    %v6373 = vpop.f32.mrb[0].mxu0
    %v6374 = vadd.f32 0.0, %v6373
    %v6375 = vpop.f32.mrb[0].mxu0
    %6376 = vmatprep.mubr.f32.mxu0 0.0
    %6377 = vmatmul.mubr.f32.gmra.mrb[0].mxu0 %v3062
    %v6378 = vpop.f32.mrb[0].mxu0
    %v6379 = vadd.f32 0.0, %v6378
    %v6380 = vpop.f32.mrb[0].mxu0
    %6381 = vmatprep.mubr.f32.mxu0 0.0
    %6382 = vmatmul.mubr.f32.gmra.mrb[0].mxu0 %v3064
    %v6383 = vpop.f32.mrb[0].mxu0
    %v6384 = vadd.f32 0.0, %v6383
    %v6385 = vpop.f32.mrb[0].mxu0
    %6386 = vmatprep.mubr.f32.mxu0 0.0
    %6387 = vmatmul.mubr.f32.gmra.mrb[0].mxu0 %v3066
    %v6388 = vpop.f32.mrb[0].mxu0
    %v6389 = vadd.f32 0.0, %v6388
    %v6390 = vpop.f32.mrb[0].mxu0
    %6391 = vmatprep.mubr.f32.mxu0 0.0
    %6392 = vmatmul.mubr.f32.gmra.mrb[0].mxu0 %v3068
    %v6393 = vpop.f32.mrb[0].mxu0
    %v6394 = vadd.f32 0.0, %v6393
    %v6395 = vpop.f32.mrb[0].mxu0
    %6396 = vmatprep.mubr.f32.mxu0 0.0
    %6397 = vmatmul.mubr.f32.gmra.mrb[0].mxu0 %v3070
    %v6398 = vpop.f32.mrb[0].mxu0
    %v6399 = vadd.f32 0.0, %v6398
    %v6400 = vpop.f32.mrb[0].mxu0
    %6401 = vmatprep.mubr.f32.mxu0 0.0
    %6402 = vmatmul.mubr.f32.gmra.mrb[0].mxu0 %v3072
    %v6403 = vpop.f32.mrb[0].mxu0
    %v6404 = vadd.f32 0.0, %v6403
    %v6405 = vpop.f32.mrb[0].mxu0
    %6406 = vmatprep.mubr.f32.mxu0 0.0
    %6407 = vmatmul.mubr.f32.gmra.mrb[0].mxu0 %v3074
    %v6408 = vpop.f32.mrb[0].mxu0
    %v6409 = vadd.f32 0.0, %v6408
    %v6410 = vpop.f32.mrb[0].mxu0
    %6411 = vmatprep.mubr.f32.mxu0 0.0
    %6412 = vmatmul.mubr.f32.gmra.mrb[0].mxu0 %v3076
    %v6413 = vpop.f32.mrb[0].mxu0
    %v6414 = vadd.f32 0.0, %v6413
    %v6415 = vpop.f32.mrb[0].mxu0
    %6416 = vmatprep.mubr.f32.mxu0 0.0
    %6417 = vmatmul.mubr.f32.gmra.mrb[0].mxu0 %v3078
    %v6418 = vpop.f32.mrb[0].mxu0
    %v6419 = vadd.f32 0.0, %v6418
    %v6420 = vpop.f32.mrb[0].mxu0
    %6421 = vmatprep.mubr.f32.mxu0 0.0
    %6422 = vmatmul.mubr.f32.gmra.mrb[0].mxu0 %v3080
    %v6423 = vpop.f32.mrb[0].mxu0
    %v6424 = vadd.f32 0.0, %v6423
    %v6425 = vpop.f32.mrb[0].mxu0
    %6426 = vmatprep.mubr.f32.mxu0 0.0
    %6427 = vmatmul.mubr.f32.gmra.mrb[0].mxu0 %v3082
    %v6428 = vpop.f32.mrb[0].mxu0
    %v6429 = vadd.f32 0.0, %v6428
    %v6430 = vpop.f32.mrb[0].mxu0
    %6431 = vmatprep.mubr.f32.mxu0 0.0
    %6432 = vmatmul.mubr.f32.gmra.mrb[0].mxu0 %v3084
    %v6433 = vpop.f32.mrb[0].mxu0
    %v6434 = vadd.f32 0.0, %v6433
    %v6435 = vpop.f32.mrb[0].mxu0
    %6436 = vmatprep.mubr.f32.mxu0 0.0
    %6437 = vmatmul.mubr.f32.gmra.mrb[0].mxu0 %v3086
    %v6438 = vpop.f32.mrb[0].mxu0
    %v6439 = vadd.f32 0.0, %v6438
    %v6440 = vpop.f32.mrb[0].mxu0
    %6441 = vmatprep.mubr.f32.mxu0 0.0
    %6442 = vmatmul.mubr.f32.gmra.mrb[0].mxu0 %v3088
    %v6443 = vpop.f32.mrb[0].mxu0
    %v6444 = vadd.f32 0.0, %v6443
    %v6445 = vpop.f32.mrb[0].mxu0
    %6446 = vmatprep.mubr.f32.mxu0 0.0
    %6447 = vmatmul.mubr.f32.gmra.mrb[0].mxu0 %v3090
    %v6448 = vpop.f32.mrb[0].mxu0
    %v6449 = vadd.f32 0.0, %v6448
    %v6450 = vpop.f32.mrb[0].mxu0
    %6451 = vmatprep.mubr.f32.mxu0 0.0
    %6452 = vmatmul.mubr.f32.gmra.mrb[0].mxu0 %v3345
    %v6453 = vpop.f32.mrb[0].mxu0
    %v6454 = vadd.f32 0.0, %v6453
    %v6455 = vpop.f32.mrb[0].mxu0
    %6456 = vmatprep.mubr.f32.mxu0 0.0
    %6457 = vmatmul.mubr.f32.gmra.mrb[0].mxu0 %v6001
    %v6458 = vpop.f32.mrb[0].mxu0
    %v6459 = vadd.f32 0.0, %v6458
    %v6460 = vpop.f32.mrb[0].mxu0
    %6461 = vmatprep.mubr.f32.mxu0 0.0
    %6462 = vmatmul.mubr.f32.gmra.mrb[0].mxu0 %v6003
    %v6463 = vpop.f32.mrb[0].mxu0
    %v6464 = vadd.f32 0.0, %v6463
    %v6465 = vpop.f32.mrb[0].mxu0
    %6466 = vmatprep.mubr.f32.mxu0 0.0
    %6467 = vmatmul.mubr.f32.gmra.mrb[0].mxu0 %v6258
    %v6468 = vpop.f32.mrb[0].mxu0
    %v6469 = vadd.f32 0.0, %v6468
    %v6470 = vpop.f32.mrb[0].mxu0
    %6471 = vmatprep.mubr.f32.mxu0 0.0
    %6472 = vmatmul.mubr.f32.gmra.mrb[0].mxu0 %v6260
    %v6473 = vpop.f32.mrb[0].mxu0
    %v6474 = vadd.f32 0.0, %v6473
    %v6475 = vpop.f32.mrb[0].mxu0
    %6476 = vdwg.mxu0
    %v6477 = vadd.f32 %v6222, %v6329
    %v6478 = vadd.f32 %v6223, %v6334
    %v6479 = vadd.f32 %v6224, %v6339
    %v6480 = vadd.f32 %v6225, %v6344
    %v6481 = vadd.f32 %v6226, %v6349
    %v6482 = vadd.f32 %v6227, %v6354
    %v6483 = vadd.f32 %v6228, %v6359
    %v6484 = vadd.f32 %v6229, %v6364
    %v6485 = vadd.f32 %v6230, %v6369
    %v6486 = vadd.f32 %v6231, %v6374
    %v6487 = vadd.f32 %v6232, %v6379
    %v6488 = vadd.f32 %v6233, %v6384
    %v6489 = vadd.f32 %v6234, %v6389
    %v6490 = vadd.f32 %v6235, %v6394
    %v6491 = vadd.f32 %v6236, %v6399
    %v6492 = vadd.f32 %v6237, %v6404
    %v6493 = vadd.f32 %v6238, %v6409
    %v6494 = vadd.f32 %v6239, %v6414
    %v6495 = vadd.f32 %v6240, %v6419
    %v6496 = vadd.f32 %v6241, %v6424
    %v6497 = vadd.f32 %v6242, %v6429
    %v6498 = vadd.f32 %v6243, %v6434
    %v6499 = vadd.f32 %v6244, %v6439
    %v6500 = vadd.f32 %v6245, %v6444
    %v6501 = vadd.f32 %v6246, %v6449
    %v6502 = vadd.f32 %v6247, %v6454
    %v6503 = vadd.f32 %v6248, %v6459
    %v6504 = vadd.f32 %v6249, %v6464
    %v6505 = vadd.f32 %v6250, %v6469
    %v6506 = vadd.f32 %v6251, %v6474
    %s6507 = scalar_lea.vmem %s4, 256
    %v6508 = vld [vmem:[%s6507] sm:$0xff]
    %v6509 = vld [vmem:[%s6507 + $0x8] sm:$0xff]
    %v6511 = vrot.slane %v1585, 5
    %v6512 = vsel %vm3598, %v3658, %v6511
    %v6513 = vrot.slane %v1586, 5
    %v6514 = vsel %vm3598, %v6511, %v6513
    %v6515 = vrot.slane %v1587, 5
    %v6516 = vsel %vm3598, %v6513, %v6515
    %v6517 = vsel %vm1684, %v6512, 0
    %v6519 = vsel %vm1684, %v6514, 0
    %v6521 = vsel %vm1684, %v6516, 0
    %6523 = vmatprep.subr.mxu0 0.0
    %6524 = vmatpush1.msra.mxu0 %v6508
    %6525 = vmatprep.subr.mxu0 0.0
    %6526 = vmatpush1.msra.mxu0 %v6509
    %6527 = vmatprep.subr.mxu0 0.0
    %6528 = vmatpush1.msra.mxu0 0.0
    %6529 = vmatprep.subr.mxu0 0.0
    %6530 = vmatpush1.msra.mxu0 0.0
    %6531 = vmatprep.subr.mxu0 0.0
    %6532 = vmatpush1.msra.mxu0 0.0
    %6533 = vmatprep.subr.mxu0 0.0
    %6534 = vmatpush1.msra.mxu0 0.0
    %6535 = vmatprep.subr.mxu0 0.0
    %6536 = vmatpush1.msra.mxu0 0.0
    %6537 = vmatprep.subr.mxu0 0.0
    %6538 = vmatpush1.msra.mxu0 0.0
    %6539 = vmatprep.subr.mxu0 0.0
    %6540 = vmatpush1.msra.mxu0 0.0
    %6541 = vmatprep.subr.mxu0 0.0
    %6542 = vmatpush1.msra.mxu0 0.0
    %6543 = vmatprep.subr.mxu0 0.0
    %6544 = vmatpush1.msra.mxu0 0.0
    %6545 = vmatprep.subr.mxu0 0.0
    %6546 = vmatpush1.msra.mxu0 0.0
    %6547 = vmatprep.subr.mxu0 0.0
    %6548 = vmatpush1.msra.mxu0 0.0
    %6549 = vmatprep.subr.mxu0 0.0
    %6550 = vmatpush1.msra.mxu0 0.0
    %6551 = vmatprep.subr.mxu0 0.0
    %6552 = vmatpush1.msra.mxu0 0.0
    %6553 = vmatprep.subr.mxu0 0.0
    %6554 = vmatpush1.msra.mxu0 0.0
    %6555 = vmatprep.subr.mxu0 0.0
    %6556 = vmatpush1.msra.mxu0 0.0
    %6557 = vmatprep.subr.mxu0 0.0
    %6558 = vmatpush1.msra.mxu0 0.0
    %6559 = vmatprep.subr.mxu0 0.0
    %6560 = vmatpush1.msra.mxu0 0.0
    %6561 = vmatprep.subr.mxu0 0.0
    %6562 = vmatpush1.msra.mxu0 0.0
    %6563 = vmatprep.subr.mxu0 0.0
    %6564 = vmatpush1.msra.mxu0 0.0
    %6565 = vmatprep.subr.mxu0 0.0
    %6566 = vmatpush1.msra.mxu0 0.0
    %6567 = vmatprep.subr.mxu0 0.0
    %6568 = vmatpush1.msra.mxu0 0.0
    %6569 = vmatprep.subr.mxu0 0.0
    %6570 = vmatpush1.msra.mxu0 0.0
    %6571 = vmatprep.subr.mxu0 0.0
    %6572 = vmatpush1.msra.mxu0 0.0
    %6573 = vmatprep.subr.mxu0 0.0
    %6574 = vmatpush1.msra.mxu0 0.0
    %6575 = vmatprep.subr.mxu0 0.0
    %6576 = vmatpush1.msra.mxu0 0.0
    %6577 = vmatprep.subr.mxu0 0.0
    %6578 = vmatpush1.msra.mxu0 0.0
    %6579 = vmatprep.subr.mxu0 0.0
    %6580 = vmatpush1.msra.mxu0 0.0
    %6581 = vmatprep.subr.mxu0 0.0
    %6582 = vmatpush1.msra.mxu0 0.0
    %6583 = vmatprep.subr.mxu0 0.0
    %6584 = vmatpush1.msra.mxu0 0.0
    %6585 = vmatprep.subr.mxu0 0.0
    %6586 = vmatpush1.msra.mxu0 0.0
    %6587 = vmatprep.mubr.f32.mxu0 0.0
    %6588 = vmatmul.mubr.f32.gmra.mrb[0].mxu0 %v3666
    %v6589 = vpop.f32.mrb[0].mxu0
    %v6590 = vadd.f32 0.0, %v6589
    %v6591 = vpop.f32.mrb[0].mxu0
    %6592 = vmatprep.mubr.f32.mxu0 0.0
    %6593 = vmatmul.mubr.f32.gmra.mrb[0].mxu0 %v3668
    %v6594 = vpop.f32.mrb[0].mxu0
    %v6595 = vadd.f32 0.0, %v6594
    %v6596 = vpop.f32.mrb[0].mxu0
    %6597 = vmatprep.mubr.f32.mxu0 0.0
    %6598 = vmatmul.mubr.f32.gmra.mrb[0].mxu0 %v3670
    %v6599 = vpop.f32.mrb[0].mxu0
    %v6600 = vadd.f32 0.0, %v6599
    %v6601 = vpop.f32.mrb[0].mxu0
    %6602 = vmatprep.mubr.f32.mxu0 0.0
    %6603 = vmatmul.mubr.f32.gmra.mrb[0].mxu0 %v3672
    %v6604 = vpop.f32.mrb[0].mxu0
    %v6605 = vadd.f32 0.0, %v6604
    %v6606 = vpop.f32.mrb[0].mxu0
    %6607 = vmatprep.mubr.f32.mxu0 0.0
    %6608 = vmatmul.mubr.f32.gmra.mrb[0].mxu0 %v3674
    %v6609 = vpop.f32.mrb[0].mxu0
    %v6610 = vadd.f32 0.0, %v6609
    %v6611 = vpop.f32.mrb[0].mxu0
    %6612 = vmatprep.mubr.f32.mxu0 0.0
    %6613 = vmatmul.mubr.f32.gmra.mrb[0].mxu0 %v3676
    %v6614 = vpop.f32.mrb[0].mxu0
    %v6615 = vadd.f32 0.0, %v6614
    %v6616 = vpop.f32.mrb[0].mxu0
    %6617 = vmatprep.mubr.f32.mxu0 0.0
    %6618 = vmatmul.mubr.f32.gmra.mrb[0].mxu0 %v3678
    %v6619 = vpop.f32.mrb[0].mxu0
    %v6620 = vadd.f32 0.0, %v6619
    %v6621 = vpop.f32.mrb[0].mxu0
    %6622 = vmatprep.mubr.f32.mxu0 0.0
    %6623 = vmatmul.mubr.f32.gmra.mrb[0].mxu0 %v3680
    %v6624 = vpop.f32.mrb[0].mxu0
    %v6625 = vadd.f32 0.0, %v6624
    %v6626 = vpop.f32.mrb[0].mxu0
    %6627 = vmatprep.mubr.f32.mxu0 0.0
    %6628 = vmatmul.mubr.f32.gmra.mrb[0].mxu0 %v3682
    %v6629 = vpop.f32.mrb[0].mxu0
    %v6630 = vadd.f32 0.0, %v6629
    %v6631 = vpop.f32.mrb[0].mxu0
    %6632 = vmatprep.mubr.f32.mxu0 0.0
    %6633 = vmatmul.mubr.f32.gmra.mrb[0].mxu0 %v3684
    %v6634 = vpop.f32.mrb[0].mxu0
    %v6635 = vadd.f32 0.0, %v6634
    %v6636 = vpop.f32.mrb[0].mxu0
    %6637 = vmatprep.mubr.f32.mxu0 0.0
    %6638 = vmatmul.mubr.f32.gmra.mrb[0].mxu0 %v3686
    %v6639 = vpop.f32.mrb[0].mxu0
    %v6640 = vadd.f32 0.0, %v6639
    %v6641 = vpop.f32.mrb[0].mxu0
    %6642 = vmatprep.mubr.f32.mxu0 0.0
    %6643 = vmatmul.mubr.f32.gmra.mrb[0].mxu0 %v3688
    %v6644 = vpop.f32.mrb[0].mxu0
    %v6645 = vadd.f32 0.0, %v6644
    %v6646 = vpop.f32.mrb[0].mxu0
    %6647 = vmatprep.mubr.f32.mxu0 0.0
    %6648 = vmatmul.mubr.f32.gmra.mrb[0].mxu0 %v3690
    %v6649 = vpop.f32.mrb[0].mxu0
    %v6650 = vadd.f32 0.0, %v6649
    %v6651 = vpop.f32.mrb[0].mxu0
    %6652 = vmatprep.mubr.f32.mxu0 0.0
    %6653 = vmatmul.mubr.f32.gmra.mrb[0].mxu0 %v3692
    %v6654 = vpop.f32.mrb[0].mxu0
    %v6655 = vadd.f32 0.0, %v6654
    %v6656 = vpop.f32.mrb[0].mxu0
    %6657 = vmatprep.mubr.f32.mxu0 0.0
    %6658 = vmatmul.mubr.f32.gmra.mrb[0].mxu0 %v3694
    %v6659 = vpop.f32.mrb[0].mxu0
    %v6660 = vadd.f32 0.0, %v6659
    %v6661 = vpop.f32.mrb[0].mxu0
    %6662 = vmatprep.mubr.f32.mxu0 0.0
    %6663 = vmatmul.mubr.f32.gmra.mrb[0].mxu0 %v3696
    %v6664 = vpop.f32.mrb[0].mxu0
    %v6665 = vadd.f32 0.0, %v6664
    %v6666 = vpop.f32.mrb[0].mxu0
    %6667 = vmatprep.mubr.f32.mxu0 0.0
    %6668 = vmatmul.mubr.f32.gmra.mrb[0].mxu0 %v3698
    %v6669 = vpop.f32.mrb[0].mxu0
    %v6670 = vadd.f32 0.0, %v6669
    %v6671 = vpop.f32.mrb[0].mxu0
    %6672 = vmatprep.mubr.f32.mxu0 0.0
    %6673 = vmatmul.mubr.f32.gmra.mrb[0].mxu0 %v3700
    %v6674 = vpop.f32.mrb[0].mxu0
    %v6675 = vadd.f32 0.0, %v6674
    %v6676 = vpop.f32.mrb[0].mxu0
    %6677 = vmatprep.mubr.f32.mxu0 0.0
    %6678 = vmatmul.mubr.f32.gmra.mrb[0].mxu0 %v3702
    %v6679 = vpop.f32.mrb[0].mxu0
    %v6680 = vadd.f32 0.0, %v6679
    %v6681 = vpop.f32.mrb[0].mxu0
    %6682 = vmatprep.mubr.f32.mxu0 0.0
    %6683 = vmatmul.mubr.f32.gmra.mrb[0].mxu0 %v3704
    %v6684 = vpop.f32.mrb[0].mxu0
    %v6685 = vadd.f32 0.0, %v6684
    %v6686 = vpop.f32.mrb[0].mxu0
    %6687 = vmatprep.mubr.f32.mxu0 0.0
    %6688 = vmatmul.mubr.f32.gmra.mrb[0].mxu0 %v3706
    %v6689 = vpop.f32.mrb[0].mxu0
    %v6690 = vadd.f32 0.0, %v6689
    %v6691 = vpop.f32.mrb[0].mxu0
    %6692 = vmatprep.mubr.f32.mxu0 0.0
    %6693 = vmatmul.mubr.f32.gmra.mrb[0].mxu0 %v3708
    %v6694 = vpop.f32.mrb[0].mxu0
    %v6695 = vadd.f32 0.0, %v6694
    %v6696 = vpop.f32.mrb[0].mxu0
    %6697 = vmatprep.mubr.f32.mxu0 0.0
    %6698 = vmatmul.mubr.f32.gmra.mrb[0].mxu0 %v3710
    %v6699 = vpop.f32.mrb[0].mxu0
    %v6700 = vadd.f32 0.0, %v6699
    %v6701 = vpop.f32.mrb[0].mxu0
    %6702 = vmatprep.mubr.f32.mxu0 0.0
    %6703 = vmatmul.mubr.f32.gmra.mrb[0].mxu0 %v3712
    %v6704 = vpop.f32.mrb[0].mxu0
    %v6705 = vadd.f32 0.0, %v6704
    %v6706 = vpop.f32.mrb[0].mxu0
    %6707 = vmatprep.mubr.f32.mxu0 0.0
    %6708 = vmatmul.mubr.f32.gmra.mrb[0].mxu0 %v3714
    %v6709 = vpop.f32.mrb[0].mxu0
    %v6710 = vadd.f32 0.0, %v6709
    %v6711 = vpop.f32.mrb[0].mxu0
    %6712 = vmatprep.mubr.f32.mxu0 0.0
    %6713 = vmatmul.mubr.f32.gmra.mrb[0].mxu0 %v3716
    %v6714 = vpop.f32.mrb[0].mxu0
    %v6715 = vadd.f32 0.0, %v6714
    %v6716 = vpop.f32.mrb[0].mxu0
    %6717 = vmatprep.mubr.f32.mxu0 0.0
    %6718 = vmatmul.mubr.f32.gmra.mrb[0].mxu0 %v3718
    %v6719 = vpop.f32.mrb[0].mxu0
    %v6720 = vadd.f32 0.0, %v6719
    %v6721 = vpop.f32.mrb[0].mxu0
    %6722 = vmatprep.mubr.f32.mxu0 0.0
    %6723 = vmatmul.mubr.f32.gmra.mrb[0].mxu0 %v6517
    %v6724 = vpop.f32.mrb[0].mxu0
    %v6725 = vadd.f32 0.0, %v6724
    %v6726 = vpop.f32.mrb[0].mxu0
    %6727 = vmatprep.mubr.f32.mxu0 0.0
    %6728 = vmatmul.mubr.f32.gmra.mrb[0].mxu0 %v6519
    %v6729 = vpop.f32.mrb[0].mxu0
    %v6730 = vadd.f32 0.0, %v6729
    %v6731 = vpop.f32.mrb[0].mxu0
    %6732 = vmatprep.mubr.f32.mxu0 0.0
    %6733 = vmatmul.mubr.f32.gmra.mrb[0].mxu0 %v6521
    %v6734 = vpop.f32.mrb[0].mxu0
    %v6735 = vadd.f32 0.0, %v6734
    %v6736 = vpop.f32.mrb[0].mxu0
    %6737 = vdwg.mxu0
    %v6738 = vadd.f32 %v6477, %v6590
    %v6739 = vadd.f32 %v6478, %v6595
    %v6740 = vadd.f32 %v6479, %v6600
    %v6741 = vadd.f32 %v6480, %v6605
    %v6742 = vadd.f32 %v6481, %v6610
    %v6743 = vadd.f32 %v6482, %v6615
    %v6744 = vadd.f32 %v6483, %v6620
    %v6745 = vadd.f32 %v6484, %v6625
    %v6746 = vadd.f32 %v6485, %v6630
    %v6747 = vadd.f32 %v6486, %v6635
    %v6748 = vadd.f32 %v6487, %v6640
    %v6749 = vadd.f32 %v6488, %v6645
    %v6750 = vadd.f32 %v6489, %v6650
    %v6751 = vadd.f32 %v6490, %v6655
    %v6752 = vadd.f32 %v6491, %v6660
    %v6753 = vadd.f32 %v6492, %v6665
    %v6754 = vadd.f32 %v6493, %v6670
    %v6755 = vadd.f32 %v6494, %v6675
    %v6756 = vadd.f32 %v6495, %v6680
    %v6757 = vadd.f32 %v6496, %v6685
    %v6758 = vadd.f32 %v6497, %v6690
    %v6759 = vadd.f32 %v6498, %v6695
    %v6760 = vadd.f32 %v6499, %v6700
    %v6761 = vadd.f32 %v6500, %v6705
    %v6762 = vadd.f32 %v6501, %v6710
    %v6763 = vadd.f32 %v6502, %v6715
    %v6764 = vadd.f32 %v6503, %v6720
    %v6765 = vadd.f32 %v6504, %v6725
    %v6766 = vadd.f32 %v6505, %v6730
    %v6767 = vadd.f32 %v6506, %v6735
    %s6768 = scalar_lea.vmem %s4, 272
    %v6769 = vld [vmem:[%s6768] sm:$0xff]
    %v6770 = vld [vmem:[%s6768 + $0x8] sm:$0xff]
    %v6771 = vrot.slane %v1585, 6
    %v6772 = vsel %vm3968, %v4028, %v6771
    %v6773 = vrot.slane %v1586, 6
    %v6774 = vsel %vm3968, %v6771, %v6773
    %v6775 = vrot.slane %v1587, 6
    %v6776 = vsel %vm3968, %v6773, %v6775
    %v6777 = vsel %vm1684, %v6772, 0
    %v6779 = vsel %vm1684, %v6774, 0
    %v6781 = vsel %vm1684, %v6776, 0
    %6783 = vmatprep.subr.mxu0 0.0
    %6784 = vmatpush1.msra.mxu0 %v6769
    %6785 = vmatprep.subr.mxu0 0.0
    %6786 = vmatpush1.msra.mxu0 %v6770
    %6787 = vmatprep.subr.mxu0 0.0
    %6788 = vmatpush1.msra.mxu0 0.0
    %6789 = vmatprep.subr.mxu0 0.0
    %6790 = vmatpush1.msra.mxu0 0.0
    %6791 = vmatprep.subr.mxu0 0.0
    %6792 = vmatpush1.msra.mxu0 0.0
    %6793 = vmatprep.subr.mxu0 0.0
    %6794 = vmatpush1.msra.mxu0 0.0
    %6795 = vmatprep.subr.mxu0 0.0
    %6796 = vmatpush1.msra.mxu0 0.0
    %6797 = vmatprep.subr.mxu0 0.0
    %6798 = vmatpush1.msra.mxu0 0.0
    %6799 = vmatprep.subr.mxu0 0.0
    %6800 = vmatpush1.msra.mxu0 0.0
    %6801 = vmatprep.subr.mxu0 0.0
    %6802 = vmatpush1.msra.mxu0 0.0
    %6803 = vmatprep.subr.mxu0 0.0
    %6804 = vmatpush1.msra.mxu0 0.0
    %6805 = vmatprep.subr.mxu0 0.0
    %6806 = vmatpush1.msra.mxu0 0.0
    %6807 = vmatprep.subr.mxu0 0.0
    %6808 = vmatpush1.msra.mxu0 0.0
    %6809 = vmatprep.subr.mxu0 0.0
    %6810 = vmatpush1.msra.mxu0 0.0
    %6811 = vmatprep.subr.mxu0 0.0
    %6812 = vmatpush1.msra.mxu0 0.0
    %6813 = vmatprep.subr.mxu0 0.0
    %6814 = vmatpush1.msra.mxu0 0.0
    %6815 = vmatprep.subr.mxu0 0.0
    %6816 = vmatpush1.msra.mxu0 0.0
    %6817 = vmatprep.subr.mxu0 0.0
    %6818 = vmatpush1.msra.mxu0 0.0
    %6819 = vmatprep.subr.mxu0 0.0
    %6820 = vmatpush1.msra.mxu0 0.0
    %6821 = vmatprep.subr.mxu0 0.0
    %6822 = vmatpush1.msra.mxu0 0.0
    %6823 = vmatprep.subr.mxu0 0.0
    %6824 = vmatpush1.msra.mxu0 0.0
    %6825 = vmatprep.subr.mxu0 0.0
    %6826 = vmatpush1.msra.mxu0 0.0
    %6827 = vmatprep.subr.mxu0 0.0
    %6828 = vmatpush1.msra.mxu0 0.0
    %6829 = vmatprep.subr.mxu0 0.0
    %6830 = vmatpush1.msra.mxu0 0.0
    %6831 = vmatprep.subr.mxu0 0.0
    %6832 = vmatpush1.msra.mxu0 0.0
    %6833 = vmatprep.subr.mxu0 0.0
    %6834 = vmatpush1.msra.mxu0 0.0
    %6835 = vmatprep.subr.mxu0 0.0
    %6836 = vmatpush1.msra.mxu0 0.0
    %6837 = vmatprep.subr.mxu0 0.0
    %6838 = vmatpush1.msra.mxu0 0.0
    %6839 = vmatprep.subr.mxu0 0.0
    %6840 = vmatpush1.msra.mxu0 0.0
    %6841 = vmatprep.subr.mxu0 0.0
    %6842 = vmatpush1.msra.mxu0 0.0
    %6843 = vmatprep.subr.mxu0 0.0
    %6844 = vmatpush1.msra.mxu0 0.0
    %6845 = vmatprep.subr.mxu0 0.0
    %6846 = vmatpush1.msra.mxu0 0.0
    %6847 = vmatprep.mubr.f32.mxu0 0.0
    %6848 = vmatmul.mubr.f32.gmra.mrb[0].mxu0 %v4036
    %v6849 = vpop.f32.mrb[0].mxu0
    %v6850 = vadd.f32 0.0, %v6849
    %v6851 = vpop.f32.mrb[0].mxu0
    %6852 = vmatprep.mubr.f32.mxu0 0.0
    %6853 = vmatmul.mubr.f32.gmra.mrb[0].mxu0 %v4038
    %v6854 = vpop.f32.mrb[0].mxu0
    %v6855 = vadd.f32 0.0, %v6854
    %v6856 = vpop.f32.mrb[0].mxu0
    %6857 = vmatprep.mubr.f32.mxu0 0.0
    %6858 = vmatmul.mubr.f32.gmra.mrb[0].mxu0 %v4040
    %v6859 = vpop.f32.mrb[0].mxu0
    %v6860 = vadd.f32 0.0, %v6859
    %v6861 = vpop.f32.mrb[0].mxu0
    %6862 = vmatprep.mubr.f32.mxu0 0.0
    %6863 = vmatmul.mubr.f32.gmra.mrb[0].mxu0 %v4042
    %v6864 = vpop.f32.mrb[0].mxu0
    %v6865 = vadd.f32 0.0, %v6864
    %v6866 = vpop.f32.mrb[0].mxu0
    %6867 = vmatprep.mubr.f32.mxu0 0.0
    %6868 = vmatmul.mubr.f32.gmra.mrb[0].mxu0 %v4044
    %v6869 = vpop.f32.mrb[0].mxu0
    %v6870 = vadd.f32 0.0, %v6869
    %v6871 = vpop.f32.mrb[0].mxu0
    %6872 = vmatprep.mubr.f32.mxu0 0.0
    %6873 = vmatmul.mubr.f32.gmra.mrb[0].mxu0 %v4046
    %v6874 = vpop.f32.mrb[0].mxu0
    %v6875 = vadd.f32 0.0, %v6874
    %v6876 = vpop.f32.mrb[0].mxu0
    %6877 = vmatprep.mubr.f32.mxu0 0.0
    %6878 = vmatmul.mubr.f32.gmra.mrb[0].mxu0 %v4048
    %v6879 = vpop.f32.mrb[0].mxu0
    %v6880 = vadd.f32 0.0, %v6879
    %v6881 = vpop.f32.mrb[0].mxu0
    %6882 = vmatprep.mubr.f32.mxu0 0.0
    %6883 = vmatmul.mubr.f32.gmra.mrb[0].mxu0 %v4050
    %v6884 = vpop.f32.mrb[0].mxu0
    %v6885 = vadd.f32 0.0, %v6884
    %v6886 = vpop.f32.mrb[0].mxu0
    %6887 = vmatprep.mubr.f32.mxu0 0.0
    %6888 = vmatmul.mubr.f32.gmra.mrb[0].mxu0 %v4052
    %v6889 = vpop.f32.mrb[0].mxu0
    %v6890 = vadd.f32 0.0, %v6889
    %v6891 = vpop.f32.mrb[0].mxu0
    %6892 = vmatprep.mubr.f32.mxu0 0.0
    %6893 = vmatmul.mubr.f32.gmra.mrb[0].mxu0 %v4054
    %v6894 = vpop.f32.mrb[0].mxu0
    %v6895 = vadd.f32 0.0, %v6894
    %v6896 = vpop.f32.mrb[0].mxu0
    %6897 = vmatprep.mubr.f32.mxu0 0.0
    %6898 = vmatmul.mubr.f32.gmra.mrb[0].mxu0 %v4056
    %v6899 = vpop.f32.mrb[0].mxu0
    %v6900 = vadd.f32 0.0, %v6899
    %v6901 = vpop.f32.mrb[0].mxu0
    %6902 = vmatprep.mubr.f32.mxu0 0.0
    %6903 = vmatmul.mubr.f32.gmra.mrb[0].mxu0 %v4058
    %v6904 = vpop.f32.mrb[0].mxu0
    %v6905 = vadd.f32 0.0, %v6904
    %v6906 = vpop.f32.mrb[0].mxu0
    %6907 = vmatprep.mubr.f32.mxu0 0.0
    %6908 = vmatmul.mubr.f32.gmra.mrb[0].mxu0 %v4060
    %v6909 = vpop.f32.mrb[0].mxu0
    %v6910 = vadd.f32 0.0, %v6909
    %v6911 = vpop.f32.mrb[0].mxu0
    %6912 = vmatprep.mubr.f32.mxu0 0.0
    %6913 = vmatmul.mubr.f32.gmra.mrb[0].mxu0 %v4062
    %v6914 = vpop.f32.mrb[0].mxu0
    %v6915 = vadd.f32 0.0, %v6914
    %v6916 = vpop.f32.mrb[0].mxu0
    %6917 = vmatprep.mubr.f32.mxu0 0.0
    %6918 = vmatmul.mubr.f32.gmra.mrb[0].mxu0 %v4064
    %v6919 = vpop.f32.mrb[0].mxu0
    %v6920 = vadd.f32 0.0, %v6919
    %v6921 = vpop.f32.mrb[0].mxu0
    %6922 = vmatprep.mubr.f32.mxu0 0.0
    %6923 = vmatmul.mubr.f32.gmra.mrb[0].mxu0 %v4066
    %v6924 = vpop.f32.mrb[0].mxu0
    %v6925 = vadd.f32 0.0, %v6924
    %v6926 = vpop.f32.mrb[0].mxu0
    %6927 = vmatprep.mubr.f32.mxu0 0.0
    %6928 = vmatmul.mubr.f32.gmra.mrb[0].mxu0 %v4068
    %v6929 = vpop.f32.mrb[0].mxu0
    %v6930 = vadd.f32 0.0, %v6929
    %v6931 = vpop.f32.mrb[0].mxu0
    %6932 = vmatprep.mubr.f32.mxu0 0.0
    %6933 = vmatmul.mubr.f32.gmra.mrb[0].mxu0 %v4070
    %v6934 = vpop.f32.mrb[0].mxu0
    %v6935 = vadd.f32 0.0, %v6934
    %v6936 = vpop.f32.mrb[0].mxu0
    %6937 = vmatprep.mubr.f32.mxu0 0.0
    %6938 = vmatmul.mubr.f32.gmra.mrb[0].mxu0 %v4072
    %v6939 = vpop.f32.mrb[0].mxu0
    %v6940 = vadd.f32 0.0, %v6939
    %v6941 = vpop.f32.mrb[0].mxu0
    %6942 = vmatprep.mubr.f32.mxu0 0.0
    %6943 = vmatmul.mubr.f32.gmra.mrb[0].mxu0 %v4074
    %v6944 = vpop.f32.mrb[0].mxu0
    %v6945 = vadd.f32 0.0, %v6944
    %v6946 = vpop.f32.mrb[0].mxu0
    %6947 = vmatprep.mubr.f32.mxu0 0.0
    %6948 = vmatmul.mubr.f32.gmra.mrb[0].mxu0 %v4076
    %v6949 = vpop.f32.mrb[0].mxu0
    %v6950 = vadd.f32 0.0, %v6949
    %v6951 = vpop.f32.mrb[0].mxu0
    %6952 = vmatprep.mubr.f32.mxu0 0.0
    %6953 = vmatmul.mubr.f32.gmra.mrb[0].mxu0 %v4078
    %v6954 = vpop.f32.mrb[0].mxu0
    %v6955 = vadd.f32 0.0, %v6954
    %v6956 = vpop.f32.mrb[0].mxu0
    %6957 = vmatprep.mubr.f32.mxu0 0.0
    %6958 = vmatmul.mubr.f32.gmra.mrb[0].mxu0 %v4080
    %v6959 = vpop.f32.mrb[0].mxu0
    %v6960 = vadd.f32 0.0, %v6959
    %v6961 = vpop.f32.mrb[0].mxu0
    %6962 = vmatprep.mubr.f32.mxu0 0.0
    %6963 = vmatmul.mubr.f32.gmra.mrb[0].mxu0 %v4082
    %v6964 = vpop.f32.mrb[0].mxu0
    %v6965 = vadd.f32 0.0, %v6964
    %v6966 = vpop.f32.mrb[0].mxu0
    %6967 = vmatprep.mubr.f32.mxu0 0.0
    %6968 = vmatmul.mubr.f32.gmra.mrb[0].mxu0 %v4084
    %v6969 = vpop.f32.mrb[0].mxu0
    %v6970 = vadd.f32 0.0, %v6969
    %v6971 = vpop.f32.mrb[0].mxu0
    %6972 = vmatprep.mubr.f32.mxu0 0.0
    %6973 = vmatmul.mubr.f32.gmra.mrb[0].mxu0 %v4086
    %v6974 = vpop.f32.mrb[0].mxu0
    %v6975 = vadd.f32 0.0, %v6974
    %v6976 = vpop.f32.mrb[0].mxu0
    %6977 = vmatprep.mubr.f32.mxu0 0.0
    %6978 = vmatmul.mubr.f32.gmra.mrb[0].mxu0 %v4088
    %v6979 = vpop.f32.mrb[0].mxu0
    %v6980 = vadd.f32 0.0, %v6979
    %v6981 = vpop.f32.mrb[0].mxu0
    %6982 = vmatprep.mubr.f32.mxu0 0.0
    %6983 = vmatmul.mubr.f32.gmra.mrb[0].mxu0 %v6777
    %v6984 = vpop.f32.mrb[0].mxu0
    %v6985 = vadd.f32 0.0, %v6984
    %v6986 = vpop.f32.mrb[0].mxu0
    %6987 = vmatprep.mubr.f32.mxu0 0.0
    %6988 = vmatmul.mubr.f32.gmra.mrb[0].mxu0 %v6779
    %v6989 = vpop.f32.mrb[0].mxu0
    %v6990 = vadd.f32 0.0, %v6989
    %v6991 = vpop.f32.mrb[0].mxu0
    %6992 = vmatprep.mubr.f32.mxu0 0.0
    %6993 = vmatmul.mubr.f32.gmra.mrb[0].mxu0 %v6781
    %v6994 = vpop.f32.mrb[0].mxu0
    %v6995 = vadd.f32 0.0, %v6994
    %v6996 = vpop.f32.mrb[0].mxu0
    %6997 = vdwg.mxu0
    %v6998 = vadd.f32 %v6738, %v6850
    %v6999 = vadd.f32 %v6739, %v6855
    %v7000 = vadd.f32 %v6740, %v6860
    %v7001 = vadd.f32 %v6741, %v6865
    %v7002 = vadd.f32 %v6742, %v6870
    %v7003 = vadd.f32 %v6743, %v6875
    %v7004 = vadd.f32 %v6744, %v6880
    %v7005 = vadd.f32 %v6745, %v6885
    %v7006 = vadd.f32 %v6746, %v6890
    %v7007 = vadd.f32 %v6747, %v6895
    %v7008 = vadd.f32 %v6748, %v6900
    %v7009 = vadd.f32 %v6749, %v6905
    %v7010 = vadd.f32 %v6750, %v6910
    %v7011 = vadd.f32 %v6751, %v6915
    %v7012 = vadd.f32 %v6752, %v6920
    %v7013 = vadd.f32 %v6753, %v6925
    %v7014 = vadd.f32 %v6754, %v6930
    %v7015 = vadd.f32 %v6755, %v6935
    %v7016 = vadd.f32 %v6756, %v6940
    %v7017 = vadd.f32 %v6757, %v6945
    %v7018 = vadd.f32 %v6758, %v6950
    %v7019 = vadd.f32 %v6759, %v6955
    %v7020 = vadd.f32 %v6760, %v6960
    %v7021 = vadd.f32 %v6761, %v6965
    %v7022 = vadd.f32 %v6762, %v6970
    %v7023 = vadd.f32 %v6763, %v6975
    %v7024 = vadd.f32 %v6764, %v6980
    %v7025 = vadd.f32 %v6765, %v6985
    %v7026 = vadd.f32 %v6766, %v6990
    %v7027 = vadd.f32 %v6767, %v6995
    %s7028 = scalar_lea.vmem %s4, 288
    %v7029 = vld [vmem:[%s7028] sm:$0xff]
    %v7030 = vld [vmem:[%s7028 + $0x8] sm:$0xff]
    %v7031 = vrot.slane %v1585, 7
    %v7032 = vsel %vm4338, %v4398, %v7031
    %v7033 = vrot.slane %v1586, 7
    %v7034 = vsel %vm4338, %v7031, %v7033
    %v7035 = vrot.slane %v1587, 7
    %v7036 = vsel %vm4338, %v7033, %v7035
    %v7037 = vsel %vm1684, %v7032, 0
    %v7039 = vsel %vm1684, %v7034, 0
    %v7041 = vsel %vm1684, %v7036, 0
    %7043 = vmatprep.subr.mxu0 0.0
    %7044 = vmatpush1.msra.mxu0 %v7029
    %7045 = vmatprep.subr.mxu0 0.0
    %7046 = vmatpush1.msra.mxu0 %v7030
    %7047 = vmatprep.subr.mxu0 0.0
    %7048 = vmatpush1.msra.mxu0 0.0
    %7049 = vmatprep.subr.mxu0 0.0
    %7050 = vmatpush1.msra.mxu0 0.0
    %7051 = vmatprep.subr.mxu0 0.0
    %7052 = vmatpush1.msra.mxu0 0.0
    %7053 = vmatprep.subr.mxu0 0.0
    %7054 = vmatpush1.msra.mxu0 0.0
    %7055 = vmatprep.subr.mxu0 0.0
    %7056 = vmatpush1.msra.mxu0 0.0
    %7057 = vmatprep.subr.mxu0 0.0
    %7058 = vmatpush1.msra.mxu0 0.0
    %7059 = vmatprep.subr.mxu0 0.0
    %7060 = vmatpush1.msra.mxu0 0.0
    %7061 = vmatprep.subr.mxu0 0.0
    %7062 = vmatpush1.msra.mxu0 0.0
    %7063 = vmatprep.subr.mxu0 0.0
    %7064 = vmatpush1.msra.mxu0 0.0
    %7065 = vmatprep.subr.mxu0 0.0
    %7066 = vmatpush1.msra.mxu0 0.0
    %7067 = vmatprep.subr.mxu0 0.0
    %7068 = vmatpush1.msra.mxu0 0.0
    %7069 = vmatprep.subr.mxu0 0.0
    %7070 = vmatpush1.msra.mxu0 0.0
    %7071 = vmatprep.subr.mxu0 0.0
    %7072 = vmatpush1.msra.mxu0 0.0
    %7073 = vmatprep.subr.mxu0 0.0
    %7074 = vmatpush1.msra.mxu0 0.0
    %7075 = vmatprep.subr.mxu0 0.0
    %7076 = vmatpush1.msra.mxu0 0.0
    %7077 = vmatprep.subr.mxu0 0.0
    %7078 = vmatpush1.msra.mxu0 0.0
    %7079 = vmatprep.subr.mxu0 0.0
    %7080 = vmatpush1.msra.mxu0 0.0
    %7081 = vmatprep.subr.mxu0 0.0
    %7082 = vmatpush1.msra.mxu0 0.0
    %7083 = vmatprep.subr.mxu0 0.0
    %7084 = vmatpush1.msra.mxu0 0.0
    %7085 = vmatprep.subr.mxu0 0.0
    %7086 = vmatpush1.msra.mxu0 0.0
    %7087 = vmatprep.subr.mxu0 0.0
    %7088 = vmatpush1.msra.mxu0 0.0
    %7089 = vmatprep.subr.mxu0 0.0
    %7090 = vmatpush1.msra.mxu0 0.0
    %7091 = vmatprep.subr.mxu0 0.0
    %7092 = vmatpush1.msra.mxu0 0.0
    %7093 = vmatprep.subr.mxu0 0.0
    %7094 = vmatpush1.msra.mxu0 0.0
    %7095 = vmatprep.subr.mxu0 0.0
    %7096 = vmatpush1.msra.mxu0 0.0
    %7097 = vmatprep.subr.mxu0 0.0
    %7098 = vmatpush1.msra.mxu0 0.0
    %7099 = vmatprep.subr.mxu0 0.0
    %7100 = vmatpush1.msra.mxu0 0.0
    %7101 = vmatprep.subr.mxu0 0.0
    %7102 = vmatpush1.msra.mxu0 0.0
    %7103 = vmatprep.subr.mxu0 0.0
    %7104 = vmatpush1.msra.mxu0 0.0
    %7105 = vmatprep.subr.mxu0 0.0
    %7106 = vmatpush1.msra.mxu0 0.0
    %7107 = vmatprep.mubr.f32.mxu0 0.0
    %7108 = vmatmul.mubr.f32.gmra.mrb[0].mxu0 %v4406
    %v7109 = vpop.f32.mrb[0].mxu0
    %v7110 = vadd.f32 0.0, %v7109
    %v7111 = vpop.f32.mrb[0].mxu0
    %7112 = vmatprep.mubr.f32.mxu0 0.0
    %7113 = vmatmul.mubr.f32.gmra.mrb[0].mxu0 %v4408
    %v7114 = vpop.f32.mrb[0].mxu0
    %v7115 = vadd.f32 0.0, %v7114
    %v7116 = vpop.f32.mrb[0].mxu0
    %7117 = vmatprep.mubr.f32.mxu0 0.0
    %7118 = vmatmul.mubr.f32.gmra.mrb[0].mxu0 %v4410
    %v7119 = vpop.f32.mrb[0].mxu0
    %v7120 = vadd.f32 0.0, %v7119
    %v7121 = vpop.f32.mrb[0].mxu0
    %7122 = vmatprep.mubr.f32.mxu0 0.0
    %7123 = vmatmul.mubr.f32.gmra.mrb[0].mxu0 %v4412
    %v7124 = vpop.f32.mrb[0].mxu0
    %v7125 = vadd.f32 0.0, %v7124
    %v7126 = vpop.f32.mrb[0].mxu0
    %7127 = vmatprep.mubr.f32.mxu0 0.0
    %7128 = vmatmul.mubr.f32.gmra.mrb[0].mxu0 %v4414
    %v7129 = vpop.f32.mrb[0].mxu0
    %v7130 = vadd.f32 0.0, %v7129
    %v7131 = vpop.f32.mrb[0].mxu0
    %7132 = vmatprep.mubr.f32.mxu0 0.0
    %7133 = vmatmul.mubr.f32.gmra.mrb[0].mxu0 %v4416
    %v7134 = vpop.f32.mrb[0].mxu0
    %v7135 = vadd.f32 0.0, %v7134
    %v7136 = vpop.f32.mrb[0].mxu0
    %7137 = vmatprep.mubr.f32.mxu0 0.0
    %7138 = vmatmul.mubr.f32.gmra.mrb[0].mxu0 %v4418
    %v7139 = vpop.f32.mrb[0].mxu0
    %v7140 = vadd.f32 0.0, %v7139
    %v7141 = vpop.f32.mrb[0].mxu0
    %7142 = vmatprep.mubr.f32.mxu0 0.0
    %7143 = vmatmul.mubr.f32.gmra.mrb[0].mxu0 %v4420
    %v7144 = vpop.f32.mrb[0].mxu0
    %v7145 = vadd.f32 0.0, %v7144
    %v7146 = vpop.f32.mrb[0].mxu0
    %7147 = vmatprep.mubr.f32.mxu0 0.0
    %7148 = vmatmul.mubr.f32.gmra.mrb[0].mxu0 %v4422
    %v7149 = vpop.f32.mrb[0].mxu0
    %v7150 = vadd.f32 0.0, %v7149
    %v7151 = vpop.f32.mrb[0].mxu0
    %7152 = vmatprep.mubr.f32.mxu0 0.0
    %7153 = vmatmul.mubr.f32.gmra.mrb[0].mxu0 %v4424
    %v7154 = vpop.f32.mrb[0].mxu0
    %v7155 = vadd.f32 0.0, %v7154
    %v7156 = vpop.f32.mrb[0].mxu0
    %7157 = vmatprep.mubr.f32.mxu0 0.0
    %7158 = vmatmul.mubr.f32.gmra.mrb[0].mxu0 %v4426
    %v7159 = vpop.f32.mrb[0].mxu0
    %v7160 = vadd.f32 0.0, %v7159
    %v7161 = vpop.f32.mrb[0].mxu0
    %7162 = vmatprep.mubr.f32.mxu0 0.0
    %7163 = vmatmul.mubr.f32.gmra.mrb[0].mxu0 %v4428
    %v7164 = vpop.f32.mrb[0].mxu0
    %v7165 = vadd.f32 0.0, %v7164
    %v7166 = vpop.f32.mrb[0].mxu0
    %7167 = vmatprep.mubr.f32.mxu0 0.0
    %7168 = vmatmul.mubr.f32.gmra.mrb[0].mxu0 %v4430
    %v7169 = vpop.f32.mrb[0].mxu0
    %v7170 = vadd.f32 0.0, %v7169
    %v7171 = vpop.f32.mrb[0].mxu0
    %7172 = vmatprep.mubr.f32.mxu0 0.0
    %7173 = vmatmul.mubr.f32.gmra.mrb[0].mxu0 %v4432
    %v7174 = vpop.f32.mrb[0].mxu0
    %v7175 = vadd.f32 0.0, %v7174
    %v7176 = vpop.f32.mrb[0].mxu0
    %7177 = vmatprep.mubr.f32.mxu0 0.0
    %7178 = vmatmul.mubr.f32.gmra.mrb[0].mxu0 %v4434
    %v7179 = vpop.f32.mrb[0].mxu0
    %v7180 = vadd.f32 0.0, %v7179
    %v7181 = vpop.f32.mrb[0].mxu0
    %7182 = vmatprep.mubr.f32.mxu0 0.0
    %7183 = vmatmul.mubr.f32.gmra.mrb[0].mxu0 %v4436
    %v7184 = vpop.f32.mrb[0].mxu0
    %v7185 = vadd.f32 0.0, %v7184
    %v7186 = vpop.f32.mrb[0].mxu0
    %7187 = vmatprep.mubr.f32.mxu0 0.0
    %7188 = vmatmul.mubr.f32.gmra.mrb[0].mxu0 %v4438
    %v7189 = vpop.f32.mrb[0].mxu0
    %v7190 = vadd.f32 0.0, %v7189
    %v7191 = vpop.f32.mrb[0].mxu0
    %7192 = vmatprep.mubr.f32.mxu0 0.0
    %7193 = vmatmul.mubr.f32.gmra.mrb[0].mxu0 %v4440
    %v7194 = vpop.f32.mrb[0].mxu0
    %v7195 = vadd.f32 0.0, %v7194
    %v7196 = vpop.f32.mrb[0].mxu0
    %7197 = vmatprep.mubr.f32.mxu0 0.0
    %7198 = vmatmul.mubr.f32.gmra.mrb[0].mxu0 %v4442
    %v7199 = vpop.f32.mrb[0].mxu0
    %v7200 = vadd.f32 0.0, %v7199
    %v7201 = vpop.f32.mrb[0].mxu0
    %7202 = vmatprep.mubr.f32.mxu0 0.0
    %7203 = vmatmul.mubr.f32.gmra.mrb[0].mxu0 %v4444
    %v7204 = vpop.f32.mrb[0].mxu0
    %v7205 = vadd.f32 0.0, %v7204
    %v7206 = vpop.f32.mrb[0].mxu0
    %7207 = vmatprep.mubr.f32.mxu0 0.0
    %7208 = vmatmul.mubr.f32.gmra.mrb[0].mxu0 %v4446
    %v7209 = vpop.f32.mrb[0].mxu0
    %v7210 = vadd.f32 0.0, %v7209
    %v7211 = vpop.f32.mrb[0].mxu0
    %7212 = vmatprep.mubr.f32.mxu0 0.0
    %7213 = vmatmul.mubr.f32.gmra.mrb[0].mxu0 %v4448
    %v7214 = vpop.f32.mrb[0].mxu0
    %v7215 = vadd.f32 0.0, %v7214
    %v7216 = vpop.f32.mrb[0].mxu0
    %7217 = vmatprep.mubr.f32.mxu0 0.0
    %7218 = vmatmul.mubr.f32.gmra.mrb[0].mxu0 %v4450
    %v7219 = vpop.f32.mrb[0].mxu0
    %v7220 = vadd.f32 0.0, %v7219
    %v7221 = vpop.f32.mrb[0].mxu0
    %7222 = vmatprep.mubr.f32.mxu0 0.0
    %7223 = vmatmul.mubr.f32.gmra.mrb[0].mxu0 %v4452
    %v7224 = vpop.f32.mrb[0].mxu0
    %v7225 = vadd.f32 0.0, %v7224
    %v7226 = vpop.f32.mrb[0].mxu0
    %7227 = vmatprep.mubr.f32.mxu0 0.0
    %7228 = vmatmul.mubr.f32.gmra.mrb[0].mxu0 %v4454
    %v7229 = vpop.f32.mrb[0].mxu0
    %v7230 = vadd.f32 0.0, %v7229
    %v7231 = vpop.f32.mrb[0].mxu0
    %7232 = vmatprep.mubr.f32.mxu0 0.0
    %7233 = vmatmul.mubr.f32.gmra.mrb[0].mxu0 %v4456
    %v7234 = vpop.f32.mrb[0].mxu0
    %v7235 = vadd.f32 0.0, %v7234
    %v7236 = vpop.f32.mrb[0].mxu0
    %7237 = vmatprep.mubr.f32.mxu0 0.0
    %7238 = vmatmul.mubr.f32.gmra.mrb[0].mxu0 %v4458
    %v7239 = vpop.f32.mrb[0].mxu0
    %v7240 = vadd.f32 0.0, %v7239
    %v7241 = vpop.f32.mrb[0].mxu0
    %7242 = vmatprep.mubr.f32.mxu0 0.0
    %7243 = vmatmul.mubr.f32.gmra.mrb[0].mxu0 %v7037
    %v7244 = vpop.f32.mrb[0].mxu0
    %v7245 = vadd.f32 0.0, %v7244
    %v7246 = vpop.f32.mrb[0].mxu0
    %7247 = vmatprep.mubr.f32.mxu0 0.0
    %7248 = vmatmul.mubr.f32.gmra.mrb[0].mxu0 %v7039
    %v7249 = vpop.f32.mrb[0].mxu0
    %v7250 = vadd.f32 0.0, %v7249
    %v7251 = vpop.f32.mrb[0].mxu0
    %7252 = vmatprep.mubr.f32.mxu0 0.0
    %7253 = vmatmul.mubr.f32.gmra.mrb[0].mxu0 %v7041
    %v7254 = vpop.f32.mrb[0].mxu0
    %v7255 = vadd.f32 0.0, %v7254
    %v7256 = vpop.f32.mrb[0].mxu0
    %7257 = vdwg.mxu0
    %v7258 = vadd.f32 %v6998, %v7110
    %v7259 = vadd.f32 %v6999, %v7115
    %v7260 = vadd.f32 %v7000, %v7120
    %v7261 = vadd.f32 %v7001, %v7125
    %v7262 = vadd.f32 %v7002, %v7130
    %v7263 = vadd.f32 %v7003, %v7135
    %v7264 = vadd.f32 %v7004, %v7140
    %v7265 = vadd.f32 %v7005, %v7145
    %v7266 = vadd.f32 %v7006, %v7150
    %v7267 = vadd.f32 %v7007, %v7155
    %v7268 = vadd.f32 %v7008, %v7160
    %v7269 = vadd.f32 %v7009, %v7165
    %v7270 = vadd.f32 %v7010, %v7170
    %v7271 = vadd.f32 %v7011, %v7175
    %v7272 = vadd.f32 %v7012, %v7180
    %v7273 = vadd.f32 %v7013, %v7185
    %v7274 = vadd.f32 %v7014, %v7190
    %v7275 = vadd.f32 %v7015, %v7195
    %v7276 = vadd.f32 %v7016, %v7200
    %v7277 = vadd.f32 %v7017, %v7205
    %v7278 = vadd.f32 %v7018, %v7210
    %v7279 = vadd.f32 %v7019, %v7215
    %v7280 = vadd.f32 %v7020, %v7220
    %v7281 = vadd.f32 %v7021, %v7225
    %v7282 = vadd.f32 %v7022, %v7230
    %v7283 = vadd.f32 %v7023, %v7235
    %v7284 = vadd.f32 %v7024, %v7240
    %v7285 = vadd.f32 %v7025, %v7245
    %v7286 = vadd.f32 %v7026, %v7250
    %v7287 = vadd.f32 %v7027, %v7255
    %s7288 = scalar_lea.vmem %s4, 304
    %v7289 = vld [vmem:[%s7288] sm:$0xff]
    %v7290 = vld [vmem:[%s7288 + $0x8] sm:$0xff]
    %v7291 = vsel %vm1684, %v1586, 0
    %v7293 = vsel %vm1684, %v1587, 0
    %7295 = vmatprep.subr.mxu0 0.0
    %7296 = vmatpush1.msra.mxu0 %v7289
    %7297 = vmatprep.subr.mxu0 0.0
    %7298 = vmatpush1.msra.mxu0 %v7290
    %7299 = vmatprep.subr.mxu0 0.0
    %7300 = vmatpush1.msra.mxu0 0.0
    %7301 = vmatprep.subr.mxu0 0.0
    %7302 = vmatpush1.msra.mxu0 0.0
    %7303 = vmatprep.subr.mxu0 0.0
    %7304 = vmatpush1.msra.mxu0 0.0
    %7305 = vmatprep.subr.mxu0 0.0
    %7306 = vmatpush1.msra.mxu0 0.0
    %7307 = vmatprep.subr.mxu0 0.0
    %7308 = vmatpush1.msra.mxu0 0.0
    %7309 = vmatprep.subr.mxu0 0.0
    %7310 = vmatpush1.msra.mxu0 0.0
    %7311 = vmatprep.subr.mxu0 0.0
    %7312 = vmatpush1.msra.mxu0 0.0
    %7313 = vmatprep.subr.mxu0 0.0
    %7314 = vmatpush1.msra.mxu0 0.0
    %7315 = vmatprep.subr.mxu0 0.0
    %7316 = vmatpush1.msra.mxu0 0.0
    %7317 = vmatprep.subr.mxu0 0.0
    %7318 = vmatpush1.msra.mxu0 0.0
    %7319 = vmatprep.subr.mxu0 0.0
    %7320 = vmatpush1.msra.mxu0 0.0
    %7321 = vmatprep.subr.mxu0 0.0
    %7322 = vmatpush1.msra.mxu0 0.0
    %7323 = vmatprep.subr.mxu0 0.0
    %7324 = vmatpush1.msra.mxu0 0.0
    %7325 = vmatprep.subr.mxu0 0.0
    %7326 = vmatpush1.msra.mxu0 0.0
    %7327 = vmatprep.subr.mxu0 0.0
    %7328 = vmatpush1.msra.mxu0 0.0
    %7329 = vmatprep.subr.mxu0 0.0
    %7330 = vmatpush1.msra.mxu0 0.0
    %7331 = vmatprep.subr.mxu0 0.0
    %7332 = vmatpush1.msra.mxu0 0.0
    %7333 = vmatprep.subr.mxu0 0.0
    %7334 = vmatpush1.msra.mxu0 0.0
    %7335 = vmatprep.subr.mxu0 0.0
    %7336 = vmatpush1.msra.mxu0 0.0
    %7337 = vmatprep.subr.mxu0 0.0
    %7338 = vmatpush1.msra.mxu0 0.0
    %7339 = vmatprep.subr.mxu0 0.0
    %7340 = vmatpush1.msra.mxu0 0.0
    %7341 = vmatprep.subr.mxu0 0.0
    %7342 = vmatpush1.msra.mxu0 0.0
    %7343 = vmatprep.subr.mxu0 0.0
    %7344 = vmatpush1.msra.mxu0 0.0
    %7345 = vmatprep.subr.mxu0 0.0
    %7346 = vmatpush1.msra.mxu0 0.0
    %7347 = vmatprep.subr.mxu0 0.0
    %7348 = vmatpush1.msra.mxu0 0.0
    %7349 = vmatprep.subr.mxu0 0.0
    %7350 = vmatpush1.msra.mxu0 0.0
    %7351 = vmatprep.subr.mxu0 0.0
    %7352 = vmatpush1.msra.mxu0 0.0
    %7353 = vmatprep.subr.mxu0 0.0
    %7354 = vmatpush1.msra.mxu0 0.0
    %7355 = vmatprep.subr.mxu0 0.0
    %7356 = vmatpush1.msra.mxu0 0.0
    %7357 = vmatprep.subr.mxu0 0.0
    %7358 = vmatpush1.msra.mxu0 0.0
    %7359 = vmatprep.mubr.f32.mxu0 0.0
    %7360 = vmatmul.mubr.f32.gmra.mrb[0].mxu0 %v1970
    %v7361 = vpop.f32.mrb[0].mxu0
    %v7362 = vadd.f32 0.0, %v7361
    %v7363 = vpop.f32.mrb[0].mxu0
    %7364 = vmatprep.mubr.f32.mxu0 0.0
    %7365 = vmatmul.mubr.f32.gmra.mrb[0].mxu0 %v1972
    %v7366 = vpop.f32.mrb[0].mxu0
    %v7367 = vadd.f32 0.0, %v7366
    %v7368 = vpop.f32.mrb[0].mxu0
    %7369 = vmatprep.mubr.f32.mxu0 0.0
    %7370 = vmatmul.mubr.f32.gmra.mrb[0].mxu0 %v1974
    %v7371 = vpop.f32.mrb[0].mxu0
    %v7372 = vadd.f32 0.0, %v7371
    %v7373 = vpop.f32.mrb[0].mxu0
    %7374 = vmatprep.mubr.f32.mxu0 0.0
    %7375 = vmatmul.mubr.f32.gmra.mrb[0].mxu0 %v1976
    %v7376 = vpop.f32.mrb[0].mxu0
    %v7377 = vadd.f32 0.0, %v7376
    %v7378 = vpop.f32.mrb[0].mxu0
    %7379 = vmatprep.mubr.f32.mxu0 0.0
    %7380 = vmatmul.mubr.f32.gmra.mrb[0].mxu0 %v1978
    %v7381 = vpop.f32.mrb[0].mxu0
    %v7382 = vadd.f32 0.0, %v7381
    %v7383 = vpop.f32.mrb[0].mxu0
    %7384 = vmatprep.mubr.f32.mxu0 0.0
    %7385 = vmatmul.mubr.f32.gmra.mrb[0].mxu0 %v1980
    %v7386 = vpop.f32.mrb[0].mxu0
    %v7387 = vadd.f32 0.0, %v7386
    %v7388 = vpop.f32.mrb[0].mxu0
    %7389 = vmatprep.mubr.f32.mxu0 0.0
    %7390 = vmatmul.mubr.f32.gmra.mrb[0].mxu0 %v1982
    %v7391 = vpop.f32.mrb[0].mxu0
    %v7392 = vadd.f32 0.0, %v7391
    %v7393 = vpop.f32.mrb[0].mxu0
    %7394 = vmatprep.mubr.f32.mxu0 0.0
    %7395 = vmatmul.mubr.f32.gmra.mrb[0].mxu0 %v1984
    %v7396 = vpop.f32.mrb[0].mxu0
    %v7397 = vadd.f32 0.0, %v7396
    %v7398 = vpop.f32.mrb[0].mxu0
    %7399 = vmatprep.mubr.f32.mxu0 0.0
    %7400 = vmatmul.mubr.f32.gmra.mrb[0].mxu0 %v1986
    %v7401 = vpop.f32.mrb[0].mxu0
    %v7402 = vadd.f32 0.0, %v7401
    %v7403 = vpop.f32.mrb[0].mxu0
    %7404 = vmatprep.mubr.f32.mxu0 0.0
    %7405 = vmatmul.mubr.f32.gmra.mrb[0].mxu0 %v1988
    %v7406 = vpop.f32.mrb[0].mxu0
    %v7407 = vadd.f32 0.0, %v7406
    %v7408 = vpop.f32.mrb[0].mxu0
    %7409 = vmatprep.mubr.f32.mxu0 0.0
    %7410 = vmatmul.mubr.f32.gmra.mrb[0].mxu0 %v1990
    %v7411 = vpop.f32.mrb[0].mxu0
    %v7412 = vadd.f32 0.0, %v7411
    %v7413 = vpop.f32.mrb[0].mxu0
    %7414 = vmatprep.mubr.f32.mxu0 0.0
    %7415 = vmatmul.mubr.f32.gmra.mrb[0].mxu0 %v1992
    %v7416 = vpop.f32.mrb[0].mxu0
    %v7417 = vadd.f32 0.0, %v7416
    %v7418 = vpop.f32.mrb[0].mxu0
    %7419 = vmatprep.mubr.f32.mxu0 0.0
    %7420 = vmatmul.mubr.f32.gmra.mrb[0].mxu0 %v1994
    %v7421 = vpop.f32.mrb[0].mxu0
    %v7422 = vadd.f32 0.0, %v7421
    %v7423 = vpop.f32.mrb[0].mxu0
    %7424 = vmatprep.mubr.f32.mxu0 0.0
    %7425 = vmatmul.mubr.f32.gmra.mrb[0].mxu0 %v1996
    %v7426 = vpop.f32.mrb[0].mxu0
    %v7427 = vadd.f32 0.0, %v7426
    %v7428 = vpop.f32.mrb[0].mxu0
    %7429 = vmatprep.mubr.f32.mxu0 0.0
    %7430 = vmatmul.mubr.f32.gmra.mrb[0].mxu0 %v1998
    %v7431 = vpop.f32.mrb[0].mxu0
    %v7432 = vadd.f32 0.0, %v7431
    %v7433 = vpop.f32.mrb[0].mxu0
    %7434 = vmatprep.mubr.f32.mxu0 0.0
    %7435 = vmatmul.mubr.f32.gmra.mrb[0].mxu0 %v2000
    %v7436 = vpop.f32.mrb[0].mxu0
    %v7437 = vadd.f32 0.0, %v7436
    %v7438 = vpop.f32.mrb[0].mxu0
    %7439 = vmatprep.mubr.f32.mxu0 0.0
    %7440 = vmatmul.mubr.f32.gmra.mrb[0].mxu0 %v2002
    %v7441 = vpop.f32.mrb[0].mxu0
    %v7442 = vadd.f32 0.0, %v7441
    %v7443 = vpop.f32.mrb[0].mxu0
    %7444 = vmatprep.mubr.f32.mxu0 0.0
    %7445 = vmatmul.mubr.f32.gmra.mrb[0].mxu0 %v2004
    %v7446 = vpop.f32.mrb[0].mxu0
    %v7447 = vadd.f32 0.0, %v7446
    %v7448 = vpop.f32.mrb[0].mxu0
    %7449 = vmatprep.mubr.f32.mxu0 0.0
    %7450 = vmatmul.mubr.f32.gmra.mrb[0].mxu0 %v2006
    %v7451 = vpop.f32.mrb[0].mxu0
    %v7452 = vadd.f32 0.0, %v7451
    %v7453 = vpop.f32.mrb[0].mxu0
    %7454 = vmatprep.mubr.f32.mxu0 0.0
    %7455 = vmatmul.mubr.f32.gmra.mrb[0].mxu0 %v2008
    %v7456 = vpop.f32.mrb[0].mxu0
    %v7457 = vadd.f32 0.0, %v7456
    %v7458 = vpop.f32.mrb[0].mxu0
    %7459 = vmatprep.mubr.f32.mxu0 0.0
    %7460 = vmatmul.mubr.f32.gmra.mrb[0].mxu0 %v2010
    %v7461 = vpop.f32.mrb[0].mxu0
    %v7462 = vadd.f32 0.0, %v7461
    %v7463 = vpop.f32.mrb[0].mxu0
    %7464 = vmatprep.mubr.f32.mxu0 0.0
    %7465 = vmatmul.mubr.f32.gmra.mrb[0].mxu0 %v2012
    %v7466 = vpop.f32.mrb[0].mxu0
    %v7467 = vadd.f32 0.0, %v7466
    %v7468 = vpop.f32.mrb[0].mxu0
    %7469 = vmatprep.mubr.f32.mxu0 0.0
    %7470 = vmatmul.mubr.f32.gmra.mrb[0].mxu0 %v2014
    %v7471 = vpop.f32.mrb[0].mxu0
    %v7472 = vadd.f32 0.0, %v7471
    %v7473 = vpop.f32.mrb[0].mxu0
    %7474 = vmatprep.mubr.f32.mxu0 0.0
    %7475 = vmatmul.mubr.f32.gmra.mrb[0].mxu0 %v2016
    %v7476 = vpop.f32.mrb[0].mxu0
    %v7477 = vadd.f32 0.0, %v7476
    %v7478 = vpop.f32.mrb[0].mxu0
    %7479 = vmatprep.mubr.f32.mxu0 0.0
    %7480 = vmatmul.mubr.f32.gmra.mrb[0].mxu0 %v2018
    %v7481 = vpop.f32.mrb[0].mxu0
    %v7482 = vadd.f32 0.0, %v7481
    %v7483 = vpop.f32.mrb[0].mxu0
    %7484 = vmatprep.mubr.f32.mxu0 0.0
    %7485 = vmatmul.mubr.f32.gmra.mrb[0].mxu0 %v4708
    %v7486 = vpop.f32.mrb[0].mxu0
    %v7487 = vadd.f32 0.0, %v7486
    %v7488 = vpop.f32.mrb[0].mxu0
    %7489 = vmatprep.mubr.f32.mxu0 0.0
    %7490 = vmatmul.mubr.f32.gmra.mrb[0].mxu0 %v4710
    %v7491 = vpop.f32.mrb[0].mxu0
    %v7492 = vadd.f32 0.0, %v7491
    %v7493 = vpop.f32.mrb[0].mxu0
    %7494 = vmatprep.mubr.f32.mxu0 0.0
    %7495 = vmatmul.mubr.f32.gmra.mrb[0].mxu0 %v4961
    %v7496 = vpop.f32.mrb[0].mxu0
    %v7497 = vadd.f32 0.0, %v7496
    %v7498 = vpop.f32.mrb[0].mxu0
    %7499 = vmatprep.mubr.f32.mxu0 0.0
    %7500 = vmatmul.mubr.f32.gmra.mrb[0].mxu0 %v7291
    %v7501 = vpop.f32.mrb[0].mxu0
    %v7502 = vadd.f32 0.0, %v7501
    %v7503 = vpop.f32.mrb[0].mxu0
    %7504 = vmatprep.mubr.f32.mxu0 0.0
    %7505 = vmatmul.mubr.f32.gmra.mrb[0].mxu0 %v7293
    %v7506 = vpop.f32.mrb[0].mxu0
    %v7507 = vadd.f32 0.0, %v7506
    %v7508 = vpop.f32.mrb[0].mxu0
    %7509 = vdwg.mxu0
    %v7510 = vadd.f32 %v7258, %v7362
    %v7511 = vadd.f32 %v7259, %v7367
    %v7512 = vadd.f32 %v7260, %v7372
    %v7513 = vadd.f32 %v7261, %v7377
    %v7514 = vadd.f32 %v7262, %v7382
    %v7515 = vadd.f32 %v7263, %v7387
    %v7516 = vadd.f32 %v7264, %v7392
    %v7517 = vadd.f32 %v7265, %v7397
    %v7518 = vadd.f32 %v7266, %v7402
    %v7519 = vadd.f32 %v7267, %v7407
    %v7520 = vadd.f32 %v7268, %v7412
    %v7521 = vadd.f32 %v7269, %v7417
    %v7522 = vadd.f32 %v7270, %v7422
    %v7523 = vadd.f32 %v7271, %v7427
    %v7524 = vadd.f32 %v7272, %v7432
    %v7525 = vadd.f32 %v7273, %v7437
    %v7526 = vadd.f32 %v7274, %v7442
    %v7527 = vadd.f32 %v7275, %v7447
    %v7528 = vadd.f32 %v7276, %v7452
    %v7529 = vadd.f32 %v7277, %v7457
    %v7530 = vadd.f32 %v7278, %v7462
    %v7531 = vadd.f32 %v7279, %v7467
    %v7532 = vadd.f32 %v7280, %v7472
    %v7533 = vadd.f32 %v7281, %v7477
    %v7534 = vadd.f32 %v7282, %v7482
    %v7535 = vadd.f32 %v7283, %v7487
    %v7536 = vadd.f32 %v7284, %v7492
    %v7537 = vadd.f32 %v7285, %v7497
    %v7538 = vadd.f32 %v7286, %v7502
    %v7539 = vadd.f32 %v7287, %v7507
    %s7540 = scalar_lea.vmem %s4, 320
    %v7541 = vld [vmem:[%s7540] sm:$0xff]
    %v7542 = vld [vmem:[%s7540 + $0x8] sm:$0xff]
    %v7544 = vsel %vm1684, %v1588, 0
    %7546 = vmatprep.subr.mxu0 0.0
    %7547 = vmatpush1.msra.mxu0 %v7541
    %7548 = vmatprep.subr.mxu0 0.0
    %7549 = vmatpush1.msra.mxu0 %v7542
    %7550 = vmatprep.subr.mxu0 0.0
    %7551 = vmatpush1.msra.mxu0 0.0
    %7552 = vmatprep.subr.mxu0 0.0
    %7553 = vmatpush1.msra.mxu0 0.0
    %7554 = vmatprep.subr.mxu0 0.0
    %7555 = vmatpush1.msra.mxu0 0.0
    %7556 = vmatprep.subr.mxu0 0.0
    %7557 = vmatpush1.msra.mxu0 0.0
    %7558 = vmatprep.subr.mxu0 0.0
    %7559 = vmatpush1.msra.mxu0 0.0
    %7560 = vmatprep.subr.mxu0 0.0
    %7561 = vmatpush1.msra.mxu0 0.0
    %7562 = vmatprep.subr.mxu0 0.0
    %7563 = vmatpush1.msra.mxu0 0.0
    %7564 = vmatprep.subr.mxu0 0.0
    %7565 = vmatpush1.msra.mxu0 0.0
    %7566 = vmatprep.subr.mxu0 0.0
    %7567 = vmatpush1.msra.mxu0 0.0
    %7568 = vmatprep.subr.mxu0 0.0
    %7569 = vmatpush1.msra.mxu0 0.0
    %7570 = vmatprep.subr.mxu0 0.0
    %7571 = vmatpush1.msra.mxu0 0.0
    %7572 = vmatprep.subr.mxu0 0.0
    %7573 = vmatpush1.msra.mxu0 0.0
    %7574 = vmatprep.subr.mxu0 0.0
    %7575 = vmatpush1.msra.mxu0 0.0
    %7576 = vmatprep.subr.mxu0 0.0
    %7577 = vmatpush1.msra.mxu0 0.0
    %7578 = vmatprep.subr.mxu0 0.0
    %7579 = vmatpush1.msra.mxu0 0.0
    %7580 = vmatprep.subr.mxu0 0.0
    %7581 = vmatpush1.msra.mxu0 0.0
    %7582 = vmatprep.subr.mxu0 0.0
    %7583 = vmatpush1.msra.mxu0 0.0
    %7584 = vmatprep.subr.mxu0 0.0
    %7585 = vmatpush1.msra.mxu0 0.0
    %7586 = vmatprep.subr.mxu0 0.0
    %7587 = vmatpush1.msra.mxu0 0.0
    %7588 = vmatprep.subr.mxu0 0.0
    %7589 = vmatpush1.msra.mxu0 0.0
    %7590 = vmatprep.subr.mxu0 0.0
    %7591 = vmatpush1.msra.mxu0 0.0
    %7592 = vmatprep.subr.mxu0 0.0
    %7593 = vmatpush1.msra.mxu0 0.0
    %7594 = vmatprep.subr.mxu0 0.0
    %7595 = vmatpush1.msra.mxu0 0.0
    %7596 = vmatprep.subr.mxu0 0.0
    %7597 = vmatpush1.msra.mxu0 0.0
    %7598 = vmatprep.subr.mxu0 0.0
    %7599 = vmatpush1.msra.mxu0 0.0
    %7600 = vmatprep.subr.mxu0 0.0
    %7601 = vmatpush1.msra.mxu0 0.0
    %7602 = vmatprep.subr.mxu0 0.0
    %7603 = vmatpush1.msra.mxu0 0.0
    %7604 = vmatprep.subr.mxu0 0.0
    %7605 = vmatpush1.msra.mxu0 0.0
    %7606 = vmatprep.subr.mxu0 0.0
    %7607 = vmatpush1.msra.mxu0 0.0
    %7608 = vmatprep.subr.mxu0 0.0
    %7609 = vmatpush1.msra.mxu0 0.0
    %7610 = vmatprep.mubr.f32.mxu0 0.0
    %7611 = vmatmul.mubr.f32.gmra.mrb[0].mxu0 %v1972
    %v7612 = vpop.f32.mrb[0].mxu0
    %v7613 = vadd.f32 0.0, %v7612
    %v7614 = vpop.f32.mrb[0].mxu0
    %7615 = vmatprep.mubr.f32.mxu0 0.0
    %7616 = vmatmul.mubr.f32.gmra.mrb[0].mxu0 %v1974
    %v7617 = vpop.f32.mrb[0].mxu0
    %v7618 = vadd.f32 0.0, %v7617
    %v7619 = vpop.f32.mrb[0].mxu0
    %7620 = vmatprep.mubr.f32.mxu0 0.0
    %7621 = vmatmul.mubr.f32.gmra.mrb[0].mxu0 %v1976
    %v7622 = vpop.f32.mrb[0].mxu0
    %v7623 = vadd.f32 0.0, %v7622
    %v7624 = vpop.f32.mrb[0].mxu0
    %7625 = vmatprep.mubr.f32.mxu0 0.0
    %7626 = vmatmul.mubr.f32.gmra.mrb[0].mxu0 %v1978
    %v7627 = vpop.f32.mrb[0].mxu0
    %v7628 = vadd.f32 0.0, %v7627
    %v7629 = vpop.f32.mrb[0].mxu0
    %7630 = vmatprep.mubr.f32.mxu0 0.0
    %7631 = vmatmul.mubr.f32.gmra.mrb[0].mxu0 %v1980
    %v7632 = vpop.f32.mrb[0].mxu0
    %v7633 = vadd.f32 0.0, %v7632
    %v7634 = vpop.f32.mrb[0].mxu0
    %7635 = vmatprep.mubr.f32.mxu0 0.0
    %7636 = vmatmul.mubr.f32.gmra.mrb[0].mxu0 %v1982
    %v7637 = vpop.f32.mrb[0].mxu0
    %v7638 = vadd.f32 0.0, %v7637
    %v7639 = vpop.f32.mrb[0].mxu0
    %7640 = vmatprep.mubr.f32.mxu0 0.0
    %7641 = vmatmul.mubr.f32.gmra.mrb[0].mxu0 %v1984
    %v7642 = vpop.f32.mrb[0].mxu0
    %v7643 = vadd.f32 0.0, %v7642
    %v7644 = vpop.f32.mrb[0].mxu0
    %7645 = vmatprep.mubr.f32.mxu0 0.0
    %7646 = vmatmul.mubr.f32.gmra.mrb[0].mxu0 %v1986
    %v7647 = vpop.f32.mrb[0].mxu0
    %v7648 = vadd.f32 0.0, %v7647
    %v7649 = vpop.f32.mrb[0].mxu0
    %7650 = vmatprep.mubr.f32.mxu0 0.0
    %7651 = vmatmul.mubr.f32.gmra.mrb[0].mxu0 %v1988
    %v7652 = vpop.f32.mrb[0].mxu0
    %v7653 = vadd.f32 0.0, %v7652
    %v7654 = vpop.f32.mrb[0].mxu0
    %7655 = vmatprep.mubr.f32.mxu0 0.0
    %7656 = vmatmul.mubr.f32.gmra.mrb[0].mxu0 %v1990
    %v7657 = vpop.f32.mrb[0].mxu0
    %v7658 = vadd.f32 0.0, %v7657
    %v7659 = vpop.f32.mrb[0].mxu0
    %7660 = vmatprep.mubr.f32.mxu0 0.0
    %7661 = vmatmul.mubr.f32.gmra.mrb[0].mxu0 %v1992
    %v7662 = vpop.f32.mrb[0].mxu0
    %v7663 = vadd.f32 0.0, %v7662
    %v7664 = vpop.f32.mrb[0].mxu0
    %7665 = vmatprep.mubr.f32.mxu0 0.0
    %7666 = vmatmul.mubr.f32.gmra.mrb[0].mxu0 %v1994
    %v7667 = vpop.f32.mrb[0].mxu0
    %v7668 = vadd.f32 0.0, %v7667
    %v7669 = vpop.f32.mrb[0].mxu0
    %7670 = vmatprep.mubr.f32.mxu0 0.0
    %7671 = vmatmul.mubr.f32.gmra.mrb[0].mxu0 %v1996
    %v7672 = vpop.f32.mrb[0].mxu0
    %v7673 = vadd.f32 0.0, %v7672
    %v7674 = vpop.f32.mrb[0].mxu0
    %7675 = vmatprep.mubr.f32.mxu0 0.0
    %7676 = vmatmul.mubr.f32.gmra.mrb[0].mxu0 %v1998
    %v7677 = vpop.f32.mrb[0].mxu0
    %v7678 = vadd.f32 0.0, %v7677
    %v7679 = vpop.f32.mrb[0].mxu0
    %7680 = vmatprep.mubr.f32.mxu0 0.0
    %7681 = vmatmul.mubr.f32.gmra.mrb[0].mxu0 %v2000
    %v7682 = vpop.f32.mrb[0].mxu0
    %v7683 = vadd.f32 0.0, %v7682
    %v7684 = vpop.f32.mrb[0].mxu0
    %7685 = vmatprep.mubr.f32.mxu0 0.0
    %7686 = vmatmul.mubr.f32.gmra.mrb[0].mxu0 %v2002
    %v7687 = vpop.f32.mrb[0].mxu0
    %v7688 = vadd.f32 0.0, %v7687
    %v7689 = vpop.f32.mrb[0].mxu0
    %7690 = vmatprep.mubr.f32.mxu0 0.0
    %7691 = vmatmul.mubr.f32.gmra.mrb[0].mxu0 %v2004
    %v7692 = vpop.f32.mrb[0].mxu0
    %v7693 = vadd.f32 0.0, %v7692
    %v7694 = vpop.f32.mrb[0].mxu0
    %7695 = vmatprep.mubr.f32.mxu0 0.0
    %7696 = vmatmul.mubr.f32.gmra.mrb[0].mxu0 %v2006
    %v7697 = vpop.f32.mrb[0].mxu0
    %v7698 = vadd.f32 0.0, %v7697
    %v7699 = vpop.f32.mrb[0].mxu0
    %7700 = vmatprep.mubr.f32.mxu0 0.0
    %7701 = vmatmul.mubr.f32.gmra.mrb[0].mxu0 %v2008
    %v7702 = vpop.f32.mrb[0].mxu0
    %v7703 = vadd.f32 0.0, %v7702
    %v7704 = vpop.f32.mrb[0].mxu0
    %7705 = vmatprep.mubr.f32.mxu0 0.0
    %7706 = vmatmul.mubr.f32.gmra.mrb[0].mxu0 %v2010
    %v7707 = vpop.f32.mrb[0].mxu0
    %v7708 = vadd.f32 0.0, %v7707
    %v7709 = vpop.f32.mrb[0].mxu0
    %7710 = vmatprep.mubr.f32.mxu0 0.0
    %7711 = vmatmul.mubr.f32.gmra.mrb[0].mxu0 %v2012
    %v7712 = vpop.f32.mrb[0].mxu0
    %v7713 = vadd.f32 0.0, %v7712
    %v7714 = vpop.f32.mrb[0].mxu0
    %7715 = vmatprep.mubr.f32.mxu0 0.0
    %7716 = vmatmul.mubr.f32.gmra.mrb[0].mxu0 %v2014
    %v7717 = vpop.f32.mrb[0].mxu0
    %v7718 = vadd.f32 0.0, %v7717
    %v7719 = vpop.f32.mrb[0].mxu0
    %7720 = vmatprep.mubr.f32.mxu0 0.0
    %7721 = vmatmul.mubr.f32.gmra.mrb[0].mxu0 %v2016
    %v7722 = vpop.f32.mrb[0].mxu0
    %v7723 = vadd.f32 0.0, %v7722
    %v7724 = vpop.f32.mrb[0].mxu0
    %7725 = vmatprep.mubr.f32.mxu0 0.0
    %7726 = vmatmul.mubr.f32.gmra.mrb[0].mxu0 %v2018
    %v7727 = vpop.f32.mrb[0].mxu0
    %v7728 = vadd.f32 0.0, %v7727
    %v7729 = vpop.f32.mrb[0].mxu0
    %7730 = vmatprep.mubr.f32.mxu0 0.0
    %7731 = vmatmul.mubr.f32.gmra.mrb[0].mxu0 %v4708
    %v7732 = vpop.f32.mrb[0].mxu0
    %v7733 = vadd.f32 0.0, %v7732
    %v7734 = vpop.f32.mrb[0].mxu0
    %7735 = vmatprep.mubr.f32.mxu0 0.0
    %7736 = vmatmul.mubr.f32.gmra.mrb[0].mxu0 %v4710
    %v7737 = vpop.f32.mrb[0].mxu0
    %v7738 = vadd.f32 0.0, %v7737
    %v7739 = vpop.f32.mrb[0].mxu0
    %7740 = vmatprep.mubr.f32.mxu0 0.0
    %7741 = vmatmul.mubr.f32.gmra.mrb[0].mxu0 %v4961
    %v7742 = vpop.f32.mrb[0].mxu0
    %v7743 = vadd.f32 0.0, %v7742
    %v7744 = vpop.f32.mrb[0].mxu0
    %7745 = vmatprep.mubr.f32.mxu0 0.0
    %7746 = vmatmul.mubr.f32.gmra.mrb[0].mxu0 %v7291
    %v7747 = vpop.f32.mrb[0].mxu0
    %v7748 = vadd.f32 0.0, %v7747
    %v7749 = vpop.f32.mrb[0].mxu0
    %7750 = vmatprep.mubr.f32.mxu0 0.0
    %7751 = vmatmul.mubr.f32.gmra.mrb[0].mxu0 %v7293
    %v7752 = vpop.f32.mrb[0].mxu0
    %v7753 = vadd.f32 0.0, %v7752
    %v7754 = vpop.f32.mrb[0].mxu0
    %7755 = vmatprep.mubr.f32.mxu0 0.0
    %7756 = vmatmul.mubr.f32.gmra.mrb[0].mxu0 %v7544
    %v7757 = vpop.f32.mrb[0].mxu0
    %v7758 = vadd.f32 0.0, %v7757
    %v7759 = vpop.f32.mrb[0].mxu0
    %7760 = vdwg.mxu0
    %v7761 = vadd.f32 %v7510, %v7613
    %v7762 = vadd.f32 %v7511, %v7618
    %v7763 = vadd.f32 %v7512, %v7623
    %v7764 = vadd.f32 %v7513, %v7628
    %v7765 = vadd.f32 %v7514, %v7633
    %v7766 = vadd.f32 %v7515, %v7638
    %v7767 = vadd.f32 %v7516, %v7643
    %v7768 = vadd.f32 %v7517, %v7648
    %v7769 = vadd.f32 %v7518, %v7653
    %v7770 = vadd.f32 %v7519, %v7658
    %v7771 = vadd.f32 %v7520, %v7663
    %v7772 = vadd.f32 %v7521, %v7668
    %v7773 = vadd.f32 %v7522, %v7673
    %v7774 = vadd.f32 %v7523, %v7678
    %v7775 = vadd.f32 %v7524, %v7683
    %v7776 = vadd.f32 %v7525, %v7688
    %v7777 = vadd.f32 %v7526, %v7693
    %v7778 = vadd.f32 %v7527, %v7698
    %v7779 = vadd.f32 %v7528, %v7703
    %v7780 = vadd.f32 %v7529, %v7708
    %v7781 = vadd.f32 %v7530, %v7713
    %v7782 = vadd.f32 %v7531, %v7718
    %v7783 = vadd.f32 %v7532, %v7723
    %v7784 = vadd.f32 %v7533, %v7728
    %v7785 = vadd.f32 %v7534, %v7733
    %v7786 = vadd.f32 %v7535, %v7738
    %v7787 = vadd.f32 %v7536, %v7743
    %v7788 = vadd.f32 %v7537, %v7748
    %v7789 = vadd.f32 %v7538, %v7753
    %v7790 = vadd.f32 %v7539, %v7758
    %s7791 = scalar_lea.vmem %s4, 336
    %v7792 = vld [vmem:[%s7791] sm:$0xff]
    %v7793 = vld [vmem:[%s7791 + $0x8] sm:$0xff]
    %v7794 = vrot.slane %v1586, 1
    %v7795 = vsel %vm1624, %v5215, %v7794
    %v7796 = vrot.slane %v1587, 1
    %v7797 = vsel %vm1624, %v7794, %v7796
    %v7798 = vrot.slane %v1588, 1
    %v7799 = vsel %vm1624, %v7796, %v7798
    %v7800 = vsel %vm1684, %v7795, 0
    %v7802 = vsel %vm1684, %v7797, 0
    %v7804 = vsel %vm1684, %v7799, 0
    %v7806 = vsel %vm1684, %v7798, 0
    %7808 = vmatprep.subr.mxu0 0.0
    %7809 = vmatpush1.msra.mxu0 %v7792
    %7810 = vmatprep.subr.mxu0 0.0
    %7811 = vmatpush1.msra.mxu0 %v7793
    %7812 = vmatprep.subr.mxu0 0.0
    %7813 = vmatpush1.msra.mxu0 0.0
    %7814 = vmatprep.subr.mxu0 0.0
    %7815 = vmatpush1.msra.mxu0 0.0
    %7816 = vmatprep.subr.mxu0 0.0
    %7817 = vmatpush1.msra.mxu0 0.0
    %7818 = vmatprep.subr.mxu0 0.0
    %7819 = vmatpush1.msra.mxu0 0.0
    %7820 = vmatprep.subr.mxu0 0.0
    %7821 = vmatpush1.msra.mxu0 0.0
    %7822 = vmatprep.subr.mxu0 0.0
    %7823 = vmatpush1.msra.mxu0 0.0
    %7824 = vmatprep.subr.mxu0 0.0
    %7825 = vmatpush1.msra.mxu0 0.0
    %7826 = vmatprep.subr.mxu0 0.0
    %7827 = vmatpush1.msra.mxu0 0.0
    %7828 = vmatprep.subr.mxu0 0.0
    %7829 = vmatpush1.msra.mxu0 0.0
    %7830 = vmatprep.subr.mxu0 0.0
    %7831 = vmatpush1.msra.mxu0 0.0
    %7832 = vmatprep.subr.mxu0 0.0
    %7833 = vmatpush1.msra.mxu0 0.0
    %7834 = vmatprep.subr.mxu0 0.0
    %7835 = vmatpush1.msra.mxu0 0.0
    %7836 = vmatprep.subr.mxu0 0.0
    %7837 = vmatpush1.msra.mxu0 0.0
    %7838 = vmatprep.subr.mxu0 0.0
    %7839 = vmatpush1.msra.mxu0 0.0
    %7840 = vmatprep.subr.mxu0 0.0
    %7841 = vmatpush1.msra.mxu0 0.0
    %7842 = vmatprep.subr.mxu0 0.0
    %7843 = vmatpush1.msra.mxu0 0.0
    %7844 = vmatprep.subr.mxu0 0.0
    %7845 = vmatpush1.msra.mxu0 0.0
    %7846 = vmatprep.subr.mxu0 0.0
    %7847 = vmatpush1.msra.mxu0 0.0
    %7848 = vmatprep.subr.mxu0 0.0
    %7849 = vmatpush1.msra.mxu0 0.0
    %7850 = vmatprep.subr.mxu0 0.0
    %7851 = vmatpush1.msra.mxu0 0.0
    %7852 = vmatprep.subr.mxu0 0.0
    %7853 = vmatpush1.msra.mxu0 0.0
    %7854 = vmatprep.subr.mxu0 0.0
    %7855 = vmatpush1.msra.mxu0 0.0
    %7856 = vmatprep.subr.mxu0 0.0
    %7857 = vmatpush1.msra.mxu0 0.0
    %7858 = vmatprep.subr.mxu0 0.0
    %7859 = vmatpush1.msra.mxu0 0.0
    %7860 = vmatprep.subr.mxu0 0.0
    %7861 = vmatpush1.msra.mxu0 0.0
    %7862 = vmatprep.subr.mxu0 0.0
    %7863 = vmatpush1.msra.mxu0 0.0
    %7864 = vmatprep.subr.mxu0 0.0
    %7865 = vmatpush1.msra.mxu0 0.0
    %7866 = vmatprep.subr.mxu0 0.0
    %7867 = vmatpush1.msra.mxu0 0.0
    %7868 = vmatprep.subr.mxu0 0.0
    %7869 = vmatpush1.msra.mxu0 0.0
    %7870 = vmatprep.subr.mxu0 0.0
    %7871 = vmatpush1.msra.mxu0 0.0
    %7872 = vmatprep.mubr.f32.mxu0 0.0
    %7873 = vmatmul.mubr.f32.gmra.mrb[0].mxu0 %v1697
    %v7874 = vpop.f32.mrb[0].mxu0
    %v7875 = vadd.f32 0.0, %v7874
    %v7876 = vpop.f32.mrb[0].mxu0
    %7877 = vmatprep.mubr.f32.mxu0 0.0
    %7878 = vmatmul.mubr.f32.gmra.mrb[0].mxu0 %v1699
    %v7879 = vpop.f32.mrb[0].mxu0
    %v7880 = vadd.f32 0.0, %v7879
    %v7881 = vpop.f32.mrb[0].mxu0
    %7882 = vmatprep.mubr.f32.mxu0 0.0
    %7883 = vmatmul.mubr.f32.gmra.mrb[0].mxu0 %v1701
    %v7884 = vpop.f32.mrb[0].mxu0
    %v7885 = vadd.f32 0.0, %v7884
    %v7886 = vpop.f32.mrb[0].mxu0
    %7887 = vmatprep.mubr.f32.mxu0 0.0
    %7888 = vmatmul.mubr.f32.gmra.mrb[0].mxu0 %v1703
    %v7889 = vpop.f32.mrb[0].mxu0
    %v7890 = vadd.f32 0.0, %v7889
    %v7891 = vpop.f32.mrb[0].mxu0
    %7892 = vmatprep.mubr.f32.mxu0 0.0
    %7893 = vmatmul.mubr.f32.gmra.mrb[0].mxu0 %v1705
    %v7894 = vpop.f32.mrb[0].mxu0
    %v7895 = vadd.f32 0.0, %v7894
    %v7896 = vpop.f32.mrb[0].mxu0
    %7897 = vmatprep.mubr.f32.mxu0 0.0
    %7898 = vmatmul.mubr.f32.gmra.mrb[0].mxu0 %v1707
    %v7899 = vpop.f32.mrb[0].mxu0
    %v7900 = vadd.f32 0.0, %v7899
    %v7901 = vpop.f32.mrb[0].mxu0
    %7902 = vmatprep.mubr.f32.mxu0 0.0
    %7903 = vmatmul.mubr.f32.gmra.mrb[0].mxu0 %v1709
    %v7904 = vpop.f32.mrb[0].mxu0
    %v7905 = vadd.f32 0.0, %v7904
    %v7906 = vpop.f32.mrb[0].mxu0
    %7907 = vmatprep.mubr.f32.mxu0 0.0
    %7908 = vmatmul.mubr.f32.gmra.mrb[0].mxu0 %v1711
    %v7909 = vpop.f32.mrb[0].mxu0
    %v7910 = vadd.f32 0.0, %v7909
    %v7911 = vpop.f32.mrb[0].mxu0
    %7912 = vmatprep.mubr.f32.mxu0 0.0
    %7913 = vmatmul.mubr.f32.gmra.mrb[0].mxu0 %v1713
    %v7914 = vpop.f32.mrb[0].mxu0
    %v7915 = vadd.f32 0.0, %v7914
    %v7916 = vpop.f32.mrb[0].mxu0
    %7917 = vmatprep.mubr.f32.mxu0 0.0
    %7918 = vmatmul.mubr.f32.gmra.mrb[0].mxu0 %v1715
    %v7919 = vpop.f32.mrb[0].mxu0
    %v7920 = vadd.f32 0.0, %v7919
    %v7921 = vpop.f32.mrb[0].mxu0
    %7922 = vmatprep.mubr.f32.mxu0 0.0
    %7923 = vmatmul.mubr.f32.gmra.mrb[0].mxu0 %v1717
    %v7924 = vpop.f32.mrb[0].mxu0
    %v7925 = vadd.f32 0.0, %v7924
    %v7926 = vpop.f32.mrb[0].mxu0
    %7927 = vmatprep.mubr.f32.mxu0 0.0
    %7928 = vmatmul.mubr.f32.gmra.mrb[0].mxu0 %v1719
    %v7929 = vpop.f32.mrb[0].mxu0
    %v7930 = vadd.f32 0.0, %v7929
    %v7931 = vpop.f32.mrb[0].mxu0
    %7932 = vmatprep.mubr.f32.mxu0 0.0
    %7933 = vmatmul.mubr.f32.gmra.mrb[0].mxu0 %v1721
    %v7934 = vpop.f32.mrb[0].mxu0
    %v7935 = vadd.f32 0.0, %v7934
    %v7936 = vpop.f32.mrb[0].mxu0
    %7937 = vmatprep.mubr.f32.mxu0 0.0
    %7938 = vmatmul.mubr.f32.gmra.mrb[0].mxu0 %v1723
    %v7939 = vpop.f32.mrb[0].mxu0
    %v7940 = vadd.f32 0.0, %v7939
    %v7941 = vpop.f32.mrb[0].mxu0
    %7942 = vmatprep.mubr.f32.mxu0 0.0
    %7943 = vmatmul.mubr.f32.gmra.mrb[0].mxu0 %v1725
    %v7944 = vpop.f32.mrb[0].mxu0
    %v7945 = vadd.f32 0.0, %v7944
    %v7946 = vpop.f32.mrb[0].mxu0
    %7947 = vmatprep.mubr.f32.mxu0 0.0
    %7948 = vmatmul.mubr.f32.gmra.mrb[0].mxu0 %v1727
    %v7949 = vpop.f32.mrb[0].mxu0
    %v7950 = vadd.f32 0.0, %v7949
    %v7951 = vpop.f32.mrb[0].mxu0
    %7952 = vmatprep.mubr.f32.mxu0 0.0
    %7953 = vmatmul.mubr.f32.gmra.mrb[0].mxu0 %v1729
    %v7954 = vpop.f32.mrb[0].mxu0
    %v7955 = vadd.f32 0.0, %v7954
    %v7956 = vpop.f32.mrb[0].mxu0
    %7957 = vmatprep.mubr.f32.mxu0 0.0
    %7958 = vmatmul.mubr.f32.gmra.mrb[0].mxu0 %v1731
    %v7959 = vpop.f32.mrb[0].mxu0
    %v7960 = vadd.f32 0.0, %v7959
    %v7961 = vpop.f32.mrb[0].mxu0
    %7962 = vmatprep.mubr.f32.mxu0 0.0
    %7963 = vmatmul.mubr.f32.gmra.mrb[0].mxu0 %v1733
    %v7964 = vpop.f32.mrb[0].mxu0
    %v7965 = vadd.f32 0.0, %v7964
    %v7966 = vpop.f32.mrb[0].mxu0
    %7967 = vmatprep.mubr.f32.mxu0 0.0
    %7968 = vmatmul.mubr.f32.gmra.mrb[0].mxu0 %v1735
    %v7969 = vpop.f32.mrb[0].mxu0
    %v7970 = vadd.f32 0.0, %v7969
    %v7971 = vpop.f32.mrb[0].mxu0
    %7972 = vmatprep.mubr.f32.mxu0 0.0
    %7973 = vmatmul.mubr.f32.gmra.mrb[0].mxu0 %v1737
    %v7974 = vpop.f32.mrb[0].mxu0
    %v7975 = vadd.f32 0.0, %v7974
    %v7976 = vpop.f32.mrb[0].mxu0
    %7977 = vmatprep.mubr.f32.mxu0 0.0
    %7978 = vmatmul.mubr.f32.gmra.mrb[0].mxu0 %v1739
    %v7979 = vpop.f32.mrb[0].mxu0
    %v7980 = vadd.f32 0.0, %v7979
    %v7981 = vpop.f32.mrb[0].mxu0
    %7982 = vmatprep.mubr.f32.mxu0 0.0
    %7983 = vmatmul.mubr.f32.gmra.mrb[0].mxu0 %v1741
    %v7984 = vpop.f32.mrb[0].mxu0
    %v7985 = vadd.f32 0.0, %v7984
    %v7986 = vpop.f32.mrb[0].mxu0
    %7987 = vmatprep.mubr.f32.mxu0 0.0
    %7988 = vmatmul.mubr.f32.gmra.mrb[0].mxu0 %v5217
    %v7989 = vpop.f32.mrb[0].mxu0
    %v7990 = vadd.f32 0.0, %v7989
    %v7991 = vpop.f32.mrb[0].mxu0
    %7992 = vmatprep.mubr.f32.mxu0 0.0
    %7993 = vmatmul.mubr.f32.gmra.mrb[0].mxu0 %v5219
    %v7994 = vpop.f32.mrb[0].mxu0
    %v7995 = vadd.f32 0.0, %v7994
    %v7996 = vpop.f32.mrb[0].mxu0
    %7997 = vmatprep.mubr.f32.mxu0 0.0
    %7998 = vmatmul.mubr.f32.gmra.mrb[0].mxu0 %v5221
    %v7999 = vpop.f32.mrb[0].mxu0
    %v8000 = vadd.f32 0.0, %v7999
    %v8001 = vpop.f32.mrb[0].mxu0
    %8002 = vmatprep.mubr.f32.mxu0 0.0
    %8003 = vmatmul.mubr.f32.gmra.mrb[0].mxu0 %v7800
    %v8004 = vpop.f32.mrb[0].mxu0
    %v8005 = vadd.f32 0.0, %v8004
    %v8006 = vpop.f32.mrb[0].mxu0
    %8007 = vmatprep.mubr.f32.mxu0 0.0
    %8008 = vmatmul.mubr.f32.gmra.mrb[0].mxu0 %v7802
    %v8009 = vpop.f32.mrb[0].mxu0
    %v8010 = vadd.f32 0.0, %v8009
    %v8011 = vpop.f32.mrb[0].mxu0
    %8012 = vmatprep.mubr.f32.mxu0 0.0
    %8013 = vmatmul.mubr.f32.gmra.mrb[0].mxu0 %v7804
    %v8014 = vpop.f32.mrb[0].mxu0
    %v8015 = vadd.f32 0.0, %v8014
    %v8016 = vpop.f32.mrb[0].mxu0
    %8017 = vmatprep.mubr.f32.mxu0 0.0
    %8018 = vmatmul.mubr.f32.gmra.mrb[0].mxu0 %v7806
    %v8019 = vpop.f32.mrb[0].mxu0
    %v8020 = vadd.f32 0.0, %v8019
    %v8021 = vpop.f32.mrb[0].mxu0
    %8022 = vdwg.mxu0
    %v8023 = vadd.f32 %v7761, %v7875
    %v8024 = vadd.f32 %v7762, %v7880
    %v8025 = vadd.f32 %v7763, %v7885
    %v8026 = vadd.f32 %v7764, %v7890
    %v8027 = vadd.f32 %v7765, %v7895
    %v8028 = vadd.f32 %v7766, %v7900
    %v8029 = vadd.f32 %v7767, %v7905
    %v8030 = vadd.f32 %v7768, %v7910
    %v8031 = vadd.f32 %v7769, %v7915
    %v8032 = vadd.f32 %v7770, %v7920
    %v8033 = vadd.f32 %v7771, %v7925
    %v8034 = vadd.f32 %v7772, %v7930
    %v8035 = vadd.f32 %v7773, %v7935
    %v8036 = vadd.f32 %v7774, %v7940
    %v8037 = vadd.f32 %v7775, %v7945
    %v8038 = vadd.f32 %v7776, %v7950
    %v8039 = vadd.f32 %v7777, %v7955
    %v8040 = vadd.f32 %v7778, %v7960
    %v8041 = vadd.f32 %v7779, %v7965
    %v8042 = vadd.f32 %v7780, %v7970
    %v8043 = vadd.f32 %v7781, %v7975
    %v8044 = vadd.f32 %v7782, %v7980
    %v8045 = vadd.f32 %v7783, %v7985
    %v8046 = vadd.f32 %v7784, %v7990
    %v8047 = vadd.f32 %v7785, %v7995
    %v8048 = vadd.f32 %v7786, %v8000
    %v8049 = vadd.f32 %v7787, %v8005
    %v8050 = vadd.f32 %v7788, %v8010
    %v8051 = vadd.f32 %v7789, %v8015
    %v8052 = vadd.f32 %v7790, %v8020
    %s8053 = scalar_lea.vmem %s4, 352
    %v8054 = vld [vmem:[%s8053] sm:$0xff]
    %v8055 = vld [vmem:[%s8053 + $0x8] sm:$0xff]
    %v8056 = vrot.slane %v1586, 2
    %v8057 = vsel %vm2238, %v5477, %v8056
    %v8058 = vrot.slane %v1587, 2
    %v8059 = vsel %vm2238, %v8056, %v8058
    %v8060 = vrot.slane %v1588, 2
    %v8061 = vsel %vm2238, %v8058, %v8060
    %v8062 = vsel %vm1684, %v8057, 0
    %v8064 = vsel %vm1684, %v8059, 0
    %v8066 = vsel %vm1684, %v8061, 0
    %v8068 = vsel %vm1684, %v8060, 0
    %8070 = vmatprep.subr.mxu0 0.0
    %8071 = vmatpush1.msra.mxu0 %v8054
    %8072 = vmatprep.subr.mxu0 0.0
    %8073 = vmatpush1.msra.mxu0 %v8055
    %8074 = vmatprep.subr.mxu0 0.0
    %8075 = vmatpush1.msra.mxu0 0.0
    %8076 = vmatprep.subr.mxu0 0.0
    %8077 = vmatpush1.msra.mxu0 0.0
    %8078 = vmatprep.subr.mxu0 0.0
    %8079 = vmatpush1.msra.mxu0 0.0
    %8080 = vmatprep.subr.mxu0 0.0
    %8081 = vmatpush1.msra.mxu0 0.0
    %8082 = vmatprep.subr.mxu0 0.0
    %8083 = vmatpush1.msra.mxu0 0.0
    %8084 = vmatprep.subr.mxu0 0.0
    %8085 = vmatpush1.msra.mxu0 0.0
    %8086 = vmatprep.subr.mxu0 0.0
    %8087 = vmatpush1.msra.mxu0 0.0
    %8088 = vmatprep.subr.mxu0 0.0
    %8089 = vmatpush1.msra.mxu0 0.0
    %8090 = vmatprep.subr.mxu0 0.0
    %8091 = vmatpush1.msra.mxu0 0.0
    %8092 = vmatprep.subr.mxu0 0.0
    %8093 = vmatpush1.msra.mxu0 0.0
    %8094 = vmatprep.subr.mxu0 0.0
    %8095 = vmatpush1.msra.mxu0 0.0
    %8096 = vmatprep.subr.mxu0 0.0
    %8097 = vmatpush1.msra.mxu0 0.0
    %8098 = vmatprep.subr.mxu0 0.0
    %8099 = vmatpush1.msra.mxu0 0.0
    %8100 = vmatprep.subr.mxu0 0.0
    %8101 = vmatpush1.msra.mxu0 0.0
    %8102 = vmatprep.subr.mxu0 0.0
    %8103 = vmatpush1.msra.mxu0 0.0
    %8104 = vmatprep.subr.mxu0 0.0
    %8105 = vmatpush1.msra.mxu0 0.0
    %8106 = vmatprep.subr.mxu0 0.0
    %8107 = vmatpush1.msra.mxu0 0.0
    %8108 = vmatprep.subr.mxu0 0.0
    %8109 = vmatpush1.msra.mxu0 0.0
    %8110 = vmatprep.subr.mxu0 0.0
    %8111 = vmatpush1.msra.mxu0 0.0
    %8112 = vmatprep.subr.mxu0 0.0
    %8113 = vmatpush1.msra.mxu0 0.0
    %8114 = vmatprep.subr.mxu0 0.0
    %8115 = vmatpush1.msra.mxu0 0.0
    %8116 = vmatprep.subr.mxu0 0.0
    %8117 = vmatpush1.msra.mxu0 0.0
    %8118 = vmatprep.subr.mxu0 0.0
    %8119 = vmatpush1.msra.mxu0 0.0
    %8120 = vmatprep.subr.mxu0 0.0
    %8121 = vmatpush1.msra.mxu0 0.0
    %8122 = vmatprep.subr.mxu0 0.0
    %8123 = vmatpush1.msra.mxu0 0.0
    %8124 = vmatprep.subr.mxu0 0.0
    %8125 = vmatpush1.msra.mxu0 0.0
    %8126 = vmatprep.subr.mxu0 0.0
    %8127 = vmatpush1.msra.mxu0 0.0
    %8128 = vmatprep.subr.mxu0 0.0
    %8129 = vmatpush1.msra.mxu0 0.0
    %8130 = vmatprep.subr.mxu0 0.0
    %8131 = vmatpush1.msra.mxu0 0.0
    %8132 = vmatprep.subr.mxu0 0.0
    %8133 = vmatpush1.msra.mxu0 0.0
    %8134 = vmatprep.mubr.f32.mxu0 0.0
    %8135 = vmatmul.mubr.f32.gmra.mrb[0].mxu0 %v2310
    %v8136 = vpop.f32.mrb[0].mxu0
    %v8137 = vadd.f32 0.0, %v8136
    %v8138 = vpop.f32.mrb[0].mxu0
    %8139 = vmatprep.mubr.f32.mxu0 0.0
    %8140 = vmatmul.mubr.f32.gmra.mrb[0].mxu0 %v2312
    %v8141 = vpop.f32.mrb[0].mxu0
    %v8142 = vadd.f32 0.0, %v8141
    %v8143 = vpop.f32.mrb[0].mxu0
    %8144 = vmatprep.mubr.f32.mxu0 0.0
    %8145 = vmatmul.mubr.f32.gmra.mrb[0].mxu0 %v2314
    %v8146 = vpop.f32.mrb[0].mxu0
    %v8147 = vadd.f32 0.0, %v8146
    %v8148 = vpop.f32.mrb[0].mxu0
    %8149 = vmatprep.mubr.f32.mxu0 0.0
    %8150 = vmatmul.mubr.f32.gmra.mrb[0].mxu0 %v2316
    %v8151 = vpop.f32.mrb[0].mxu0
    %v8152 = vadd.f32 0.0, %v8151
    %v8153 = vpop.f32.mrb[0].mxu0
    %8154 = vmatprep.mubr.f32.mxu0 0.0
    %8155 = vmatmul.mubr.f32.gmra.mrb[0].mxu0 %v2318
    %v8156 = vpop.f32.mrb[0].mxu0
    %v8157 = vadd.f32 0.0, %v8156
    %v8158 = vpop.f32.mrb[0].mxu0
    %8159 = vmatprep.mubr.f32.mxu0 0.0
    %8160 = vmatmul.mubr.f32.gmra.mrb[0].mxu0 %v2320
    %v8161 = vpop.f32.mrb[0].mxu0
    %v8162 = vadd.f32 0.0, %v8161
    %v8163 = vpop.f32.mrb[0].mxu0
    %8164 = vmatprep.mubr.f32.mxu0 0.0
    %8165 = vmatmul.mubr.f32.gmra.mrb[0].mxu0 %v2322
    %v8166 = vpop.f32.mrb[0].mxu0
    %v8167 = vadd.f32 0.0, %v8166
    %v8168 = vpop.f32.mrb[0].mxu0
    %8169 = vmatprep.mubr.f32.mxu0 0.0
    %8170 = vmatmul.mubr.f32.gmra.mrb[0].mxu0 %v2324
    %v8171 = vpop.f32.mrb[0].mxu0
    %v8172 = vadd.f32 0.0, %v8171
    %v8173 = vpop.f32.mrb[0].mxu0
    %8174 = vmatprep.mubr.f32.mxu0 0.0
    %8175 = vmatmul.mubr.f32.gmra.mrb[0].mxu0 %v2326
    %v8176 = vpop.f32.mrb[0].mxu0
    %v8177 = vadd.f32 0.0, %v8176
    %v8178 = vpop.f32.mrb[0].mxu0
    %8179 = vmatprep.mubr.f32.mxu0 0.0
    %8180 = vmatmul.mubr.f32.gmra.mrb[0].mxu0 %v2328
    %v8181 = vpop.f32.mrb[0].mxu0
    %v8182 = vadd.f32 0.0, %v8181
    %v8183 = vpop.f32.mrb[0].mxu0
    %8184 = vmatprep.mubr.f32.mxu0 0.0
    %8185 = vmatmul.mubr.f32.gmra.mrb[0].mxu0 %v2330
    %v8186 = vpop.f32.mrb[0].mxu0
    %v8187 = vadd.f32 0.0, %v8186
    %v8188 = vpop.f32.mrb[0].mxu0
    %8189 = vmatprep.mubr.f32.mxu0 0.0
    %8190 = vmatmul.mubr.f32.gmra.mrb[0].mxu0 %v2332
    %v8191 = vpop.f32.mrb[0].mxu0
    %v8192 = vadd.f32 0.0, %v8191
    %v8193 = vpop.f32.mrb[0].mxu0
    %8194 = vmatprep.mubr.f32.mxu0 0.0
    %8195 = vmatmul.mubr.f32.gmra.mrb[0].mxu0 %v2334
    %v8196 = vpop.f32.mrb[0].mxu0
    %v8197 = vadd.f32 0.0, %v8196
    %v8198 = vpop.f32.mrb[0].mxu0
    %8199 = vmatprep.mubr.f32.mxu0 0.0
    %8200 = vmatmul.mubr.f32.gmra.mrb[0].mxu0 %v2336
    %v8201 = vpop.f32.mrb[0].mxu0
    %v8202 = vadd.f32 0.0, %v8201
    %v8203 = vpop.f32.mrb[0].mxu0
    %8204 = vmatprep.mubr.f32.mxu0 0.0
    %8205 = vmatmul.mubr.f32.gmra.mrb[0].mxu0 %v2338
    %v8206 = vpop.f32.mrb[0].mxu0
    %v8207 = vadd.f32 0.0, %v8206
    %v8208 = vpop.f32.mrb[0].mxu0
    %8209 = vmatprep.mubr.f32.mxu0 0.0
    %8210 = vmatmul.mubr.f32.gmra.mrb[0].mxu0 %v2340
    %v8211 = vpop.f32.mrb[0].mxu0
    %v8212 = vadd.f32 0.0, %v8211
    %v8213 = vpop.f32.mrb[0].mxu0
    %8214 = vmatprep.mubr.f32.mxu0 0.0
    %8215 = vmatmul.mubr.f32.gmra.mrb[0].mxu0 %v2342
    %v8216 = vpop.f32.mrb[0].mxu0
    %v8217 = vadd.f32 0.0, %v8216
    %v8218 = vpop.f32.mrb[0].mxu0
    %8219 = vmatprep.mubr.f32.mxu0 0.0
    %8220 = vmatmul.mubr.f32.gmra.mrb[0].mxu0 %v2344
    %v8221 = vpop.f32.mrb[0].mxu0
    %v8222 = vadd.f32 0.0, %v8221
    %v8223 = vpop.f32.mrb[0].mxu0
    %8224 = vmatprep.mubr.f32.mxu0 0.0
    %8225 = vmatmul.mubr.f32.gmra.mrb[0].mxu0 %v2346
    %v8226 = vpop.f32.mrb[0].mxu0
    %v8227 = vadd.f32 0.0, %v8226
    %v8228 = vpop.f32.mrb[0].mxu0
    %8229 = vmatprep.mubr.f32.mxu0 0.0
    %8230 = vmatmul.mubr.f32.gmra.mrb[0].mxu0 %v2348
    %v8231 = vpop.f32.mrb[0].mxu0
    %v8232 = vadd.f32 0.0, %v8231
    %v8233 = vpop.f32.mrb[0].mxu0
    %8234 = vmatprep.mubr.f32.mxu0 0.0
    %8235 = vmatmul.mubr.f32.gmra.mrb[0].mxu0 %v2350
    %v8236 = vpop.f32.mrb[0].mxu0
    %v8237 = vadd.f32 0.0, %v8236
    %v8238 = vpop.f32.mrb[0].mxu0
    %8239 = vmatprep.mubr.f32.mxu0 0.0
    %8240 = vmatmul.mubr.f32.gmra.mrb[0].mxu0 %v2352
    %v8241 = vpop.f32.mrb[0].mxu0
    %v8242 = vadd.f32 0.0, %v8241
    %v8243 = vpop.f32.mrb[0].mxu0
    %8244 = vmatprep.mubr.f32.mxu0 0.0
    %8245 = vmatmul.mubr.f32.gmra.mrb[0].mxu0 %v2354
    %v8246 = vpop.f32.mrb[0].mxu0
    %v8247 = vadd.f32 0.0, %v8246
    %v8248 = vpop.f32.mrb[0].mxu0
    %8249 = vmatprep.mubr.f32.mxu0 0.0
    %8250 = vmatmul.mubr.f32.gmra.mrb[0].mxu0 %v5479
    %v8251 = vpop.f32.mrb[0].mxu0
    %v8252 = vadd.f32 0.0, %v8251
    %v8253 = vpop.f32.mrb[0].mxu0
    %8254 = vmatprep.mubr.f32.mxu0 0.0
    %8255 = vmatmul.mubr.f32.gmra.mrb[0].mxu0 %v5481
    %v8256 = vpop.f32.mrb[0].mxu0
    %v8257 = vadd.f32 0.0, %v8256
    %v8258 = vpop.f32.mrb[0].mxu0
    %8259 = vmatprep.mubr.f32.mxu0 0.0
    %8260 = vmatmul.mubr.f32.gmra.mrb[0].mxu0 %v5483
    %v8261 = vpop.f32.mrb[0].mxu0
    %v8262 = vadd.f32 0.0, %v8261
    %v8263 = vpop.f32.mrb[0].mxu0
    %8264 = vmatprep.mubr.f32.mxu0 0.0
    %8265 = vmatmul.mubr.f32.gmra.mrb[0].mxu0 %v8062
    %v8266 = vpop.f32.mrb[0].mxu0
    %v8267 = vadd.f32 0.0, %v8266
    %v8268 = vpop.f32.mrb[0].mxu0
    %8269 = vmatprep.mubr.f32.mxu0 0.0
    %8270 = vmatmul.mubr.f32.gmra.mrb[0].mxu0 %v8064
    %v8271 = vpop.f32.mrb[0].mxu0
    %v8272 = vadd.f32 0.0, %v8271
    %v8273 = vpop.f32.mrb[0].mxu0
    %8274 = vmatprep.mubr.f32.mxu0 0.0
    %8275 = vmatmul.mubr.f32.gmra.mrb[0].mxu0 %v8066
    %v8276 = vpop.f32.mrb[0].mxu0
    %v8277 = vadd.f32 0.0, %v8276
    %v8278 = vpop.f32.mrb[0].mxu0
    %8279 = vmatprep.mubr.f32.mxu0 0.0
    %8280 = vmatmul.mubr.f32.gmra.mrb[0].mxu0 %v8068
    %v8281 = vpop.f32.mrb[0].mxu0
    %v8282 = vadd.f32 0.0, %v8281
    %v8283 = vpop.f32.mrb[0].mxu0
    %8284 = vdwg.mxu0
    %v8285 = vadd.f32 %v8023, %v8137
    %v8286 = vadd.f32 %v8024, %v8142
    %v8287 = vadd.f32 %v8025, %v8147
    %v8288 = vadd.f32 %v8026, %v8152
    %v8289 = vadd.f32 %v8027, %v8157
    %v8290 = vadd.f32 %v8028, %v8162
    %v8291 = vadd.f32 %v8029, %v8167
    %v8292 = vadd.f32 %v8030, %v8172
    %v8293 = vadd.f32 %v8031, %v8177
    %v8294 = vadd.f32 %v8032, %v8182
    %v8295 = vadd.f32 %v8033, %v8187
    %v8296 = vadd.f32 %v8034, %v8192
    %v8297 = vadd.f32 %v8035, %v8197
    %v8298 = vadd.f32 %v8036, %v8202
    %v8299 = vadd.f32 %v8037, %v8207
    %v8300 = vadd.f32 %v8038, %v8212
    %v8301 = vadd.f32 %v8039, %v8217
    %v8302 = vadd.f32 %v8040, %v8222
    %v8303 = vadd.f32 %v8041, %v8227
    %v8304 = vadd.f32 %v8042, %v8232
    %v8305 = vadd.f32 %v8043, %v8237
    %v8306 = vadd.f32 %v8044, %v8242
    %v8307 = vadd.f32 %v8045, %v8247
    %v8308 = vadd.f32 %v8046, %v8252
    %v8309 = vadd.f32 %v8047, %v8257
    %v8310 = vadd.f32 %v8048, %v8262
    %v8311 = vadd.f32 %v8049, %v8267
    %v8312 = vadd.f32 %v8050, %v8272
    %v8313 = vadd.f32 %v8051, %v8277
    %v8314 = vadd.f32 %v8052, %v8282
    %s8315 = scalar_lea.vmem %s4, 368
    %v8316 = vld [vmem:[%s8315] sm:$0xff]
    %v8317 = vld [vmem:[%s8315 + $0x8] sm:$0xff]
    %v8318 = vrot.slane %v1586, 3
    %v8319 = vsel %vm2606, %v5739, %v8318
    %v8320 = vrot.slane %v1587, 3
    %v8321 = vsel %vm2606, %v8318, %v8320
    %v8322 = vrot.slane %v1588, 3
    %v8323 = vsel %vm2606, %v8320, %v8322
    %v8324 = vsel %vm1684, %v8319, 0
    %v8326 = vsel %vm1684, %v8321, 0
    %v8328 = vsel %vm1684, %v8323, 0
    %v8330 = vsel %vm1684, %v8322, 0
    %8332 = vmatprep.subr.mxu0 0.0
    %8333 = vmatpush1.msra.mxu0 %v8316
    %8334 = vmatprep.subr.mxu0 0.0
    %8335 = vmatpush1.msra.mxu0 %v8317
    %8336 = vmatprep.subr.mxu0 0.0
    %8337 = vmatpush1.msra.mxu0 0.0
    %8338 = vmatprep.subr.mxu0 0.0
    %8339 = vmatpush1.msra.mxu0 0.0
    %8340 = vmatprep.subr.mxu0 0.0
    %8341 = vmatpush1.msra.mxu0 0.0
    %8342 = vmatprep.subr.mxu0 0.0
    %8343 = vmatpush1.msra.mxu0 0.0
    %8344 = vmatprep.subr.mxu0 0.0
    %8345 = vmatpush1.msra.mxu0 0.0
    %8346 = vmatprep.subr.mxu0 0.0
    %8347 = vmatpush1.msra.mxu0 0.0
    %8348 = vmatprep.subr.mxu0 0.0
    %8349 = vmatpush1.msra.mxu0 0.0
    %8350 = vmatprep.subr.mxu0 0.0
    %8351 = vmatpush1.msra.mxu0 0.0
    %8352 = vmatprep.subr.mxu0 0.0
    %8353 = vmatpush1.msra.mxu0 0.0
    %8354 = vmatprep.subr.mxu0 0.0
    %8355 = vmatpush1.msra.mxu0 0.0
    %8356 = vmatprep.subr.mxu0 0.0
    %8357 = vmatpush1.msra.mxu0 0.0
    %8358 = vmatprep.subr.mxu0 0.0
    %8359 = vmatpush1.msra.mxu0 0.0
    %8360 = vmatprep.subr.mxu0 0.0
    %8361 = vmatpush1.msra.mxu0 0.0
    %8362 = vmatprep.subr.mxu0 0.0
    %8363 = vmatpush1.msra.mxu0 0.0
    %8364 = vmatprep.subr.mxu0 0.0
    %8365 = vmatpush1.msra.mxu0 0.0
    %8366 = vmatprep.subr.mxu0 0.0
    %8367 = vmatpush1.msra.mxu0 0.0
    %8368 = vmatprep.subr.mxu0 0.0
    %8369 = vmatpush1.msra.mxu0 0.0
    %8370 = vmatprep.subr.mxu0 0.0
    %8371 = vmatpush1.msra.mxu0 0.0
    %8372 = vmatprep.subr.mxu0 0.0
    %8373 = vmatpush1.msra.mxu0 0.0
    %8374 = vmatprep.subr.mxu0 0.0
    %8375 = vmatpush1.msra.mxu0 0.0
    %8376 = vmatprep.subr.mxu0 0.0
    %8377 = vmatpush1.msra.mxu0 0.0
    %8378 = vmatprep.subr.mxu0 0.0
    %8379 = vmatpush1.msra.mxu0 0.0
    %8380 = vmatprep.subr.mxu0 0.0
    %8381 = vmatpush1.msra.mxu0 0.0
    %8382 = vmatprep.subr.mxu0 0.0
    %8383 = vmatpush1.msra.mxu0 0.0
    %8384 = vmatprep.subr.mxu0 0.0
    %8385 = vmatpush1.msra.mxu0 0.0
    %8386 = vmatprep.subr.mxu0 0.0
    %8387 = vmatpush1.msra.mxu0 0.0
    %8388 = vmatprep.subr.mxu0 0.0
    %8389 = vmatpush1.msra.mxu0 0.0
    %8390 = vmatprep.subr.mxu0 0.0
    %8391 = vmatpush1.msra.mxu0 0.0
    %8392 = vmatprep.subr.mxu0 0.0
    %8393 = vmatpush1.msra.mxu0 0.0
    %8394 = vmatprep.subr.mxu0 0.0
    %8395 = vmatpush1.msra.mxu0 0.0
    %8396 = vmatprep.mubr.f32.mxu0 0.0
    %8397 = vmatmul.mubr.f32.gmra.mrb[0].mxu0 %v2678
    %v8398 = vpop.f32.mrb[0].mxu0
    %v8399 = vadd.f32 0.0, %v8398
    %v8400 = vpop.f32.mrb[0].mxu0
    %8401 = vmatprep.mubr.f32.mxu0 0.0
    %8402 = vmatmul.mubr.f32.gmra.mrb[0].mxu0 %v2680
    %v8403 = vpop.f32.mrb[0].mxu0
    %v8404 = vadd.f32 0.0, %v8403
    %v8405 = vpop.f32.mrb[0].mxu0
    %8406 = vmatprep.mubr.f32.mxu0 0.0
    %8407 = vmatmul.mubr.f32.gmra.mrb[0].mxu0 %v2682
    %v8408 = vpop.f32.mrb[0].mxu0
    %v8409 = vadd.f32 0.0, %v8408
    %v8410 = vpop.f32.mrb[0].mxu0
    %8411 = vmatprep.mubr.f32.mxu0 0.0
    %8412 = vmatmul.mubr.f32.gmra.mrb[0].mxu0 %v2684
    %v8413 = vpop.f32.mrb[0].mxu0
    %v8414 = vadd.f32 0.0, %v8413
    %v8415 = vpop.f32.mrb[0].mxu0
    %8416 = vmatprep.mubr.f32.mxu0 0.0
    %8417 = vmatmul.mubr.f32.gmra.mrb[0].mxu0 %v2686
    %v8418 = vpop.f32.mrb[0].mxu0
    %v8419 = vadd.f32 0.0, %v8418
    %v8420 = vpop.f32.mrb[0].mxu0
    %8421 = vmatprep.mubr.f32.mxu0 0.0
    %8422 = vmatmul.mubr.f32.gmra.mrb[0].mxu0 %v2688
    %v8423 = vpop.f32.mrb[0].mxu0
    %v8424 = vadd.f32 0.0, %v8423
    %v8425 = vpop.f32.mrb[0].mxu0
    %8426 = vmatprep.mubr.f32.mxu0 0.0
    %8427 = vmatmul.mubr.f32.gmra.mrb[0].mxu0 %v2690
    %v8428 = vpop.f32.mrb[0].mxu0
    %v8429 = vadd.f32 0.0, %v8428
    %v8430 = vpop.f32.mrb[0].mxu0
    %8431 = vmatprep.mubr.f32.mxu0 0.0
    %8432 = vmatmul.mubr.f32.gmra.mrb[0].mxu0 %v2692
    %v8433 = vpop.f32.mrb[0].mxu0
    %v8434 = vadd.f32 0.0, %v8433
    %v8435 = vpop.f32.mrb[0].mxu0
    %8436 = vmatprep.mubr.f32.mxu0 0.0
    %8437 = vmatmul.mubr.f32.gmra.mrb[0].mxu0 %v2694
    %v8438 = vpop.f32.mrb[0].mxu0
    %v8439 = vadd.f32 0.0, %v8438
    %v8440 = vpop.f32.mrb[0].mxu0
    %8441 = vmatprep.mubr.f32.mxu0 0.0
    %8442 = vmatmul.mubr.f32.gmra.mrb[0].mxu0 %v2696
    %v8443 = vpop.f32.mrb[0].mxu0
    %v8444 = vadd.f32 0.0, %v8443
    %v8445 = vpop.f32.mrb[0].mxu0
    %8446 = vmatprep.mubr.f32.mxu0 0.0
    %8447 = vmatmul.mubr.f32.gmra.mrb[0].mxu0 %v2698
    %v8448 = vpop.f32.mrb[0].mxu0
    %v8449 = vadd.f32 0.0, %v8448
    %v8450 = vpop.f32.mrb[0].mxu0
    %8451 = vmatprep.mubr.f32.mxu0 0.0
    %8452 = vmatmul.mubr.f32.gmra.mrb[0].mxu0 %v2700
    %v8453 = vpop.f32.mrb[0].mxu0
    %v8454 = vadd.f32 0.0, %v8453
    %v8455 = vpop.f32.mrb[0].mxu0
    %8456 = vmatprep.mubr.f32.mxu0 0.0
    %8457 = vmatmul.mubr.f32.gmra.mrb[0].mxu0 %v2702
    %v8458 = vpop.f32.mrb[0].mxu0
    %v8459 = vadd.f32 0.0, %v8458
    %v8460 = vpop.f32.mrb[0].mxu0
    %8461 = vmatprep.mubr.f32.mxu0 0.0
    %8462 = vmatmul.mubr.f32.gmra.mrb[0].mxu0 %v2704
    %v8463 = vpop.f32.mrb[0].mxu0
    %v8464 = vadd.f32 0.0, %v8463
    %v8465 = vpop.f32.mrb[0].mxu0
    %8466 = vmatprep.mubr.f32.mxu0 0.0
    %8467 = vmatmul.mubr.f32.gmra.mrb[0].mxu0 %v2706
    %v8468 = vpop.f32.mrb[0].mxu0
    %v8469 = vadd.f32 0.0, %v8468
    %v8470 = vpop.f32.mrb[0].mxu0
    %8471 = vmatprep.mubr.f32.mxu0 0.0
    %8472 = vmatmul.mubr.f32.gmra.mrb[0].mxu0 %v2708
    %v8473 = vpop.f32.mrb[0].mxu0
    %v8474 = vadd.f32 0.0, %v8473
    %v8475 = vpop.f32.mrb[0].mxu0
    %8476 = vmatprep.mubr.f32.mxu0 0.0
    %8477 = vmatmul.mubr.f32.gmra.mrb[0].mxu0 %v2710
    %v8478 = vpop.f32.mrb[0].mxu0
    %v8479 = vadd.f32 0.0, %v8478
    %v8480 = vpop.f32.mrb[0].mxu0
    %8481 = vmatprep.mubr.f32.mxu0 0.0
    %8482 = vmatmul.mubr.f32.gmra.mrb[0].mxu0 %v2712
    %v8483 = vpop.f32.mrb[0].mxu0
    %v8484 = vadd.f32 0.0, %v8483
    %v8485 = vpop.f32.mrb[0].mxu0
    %8486 = vmatprep.mubr.f32.mxu0 0.0
    %8487 = vmatmul.mubr.f32.gmra.mrb[0].mxu0 %v2714
    %v8488 = vpop.f32.mrb[0].mxu0
    %v8489 = vadd.f32 0.0, %v8488
    %v8490 = vpop.f32.mrb[0].mxu0
    %8491 = vmatprep.mubr.f32.mxu0 0.0
    %8492 = vmatmul.mubr.f32.gmra.mrb[0].mxu0 %v2716
    %v8493 = vpop.f32.mrb[0].mxu0
    %v8494 = vadd.f32 0.0, %v8493
    %v8495 = vpop.f32.mrb[0].mxu0
    %8496 = vmatprep.mubr.f32.mxu0 0.0
    %8497 = vmatmul.mubr.f32.gmra.mrb[0].mxu0 %v2718
    %v8498 = vpop.f32.mrb[0].mxu0
    %v8499 = vadd.f32 0.0, %v8498
    %v8500 = vpop.f32.mrb[0].mxu0
    %8501 = vmatprep.mubr.f32.mxu0 0.0
    %8502 = vmatmul.mubr.f32.gmra.mrb[0].mxu0 %v2720
    %v8503 = vpop.f32.mrb[0].mxu0
    %v8504 = vadd.f32 0.0, %v8503
    %v8505 = vpop.f32.mrb[0].mxu0
    %8506 = vmatprep.mubr.f32.mxu0 0.0
    %8507 = vmatmul.mubr.f32.gmra.mrb[0].mxu0 %v2722
    %v8508 = vpop.f32.mrb[0].mxu0
    %v8509 = vadd.f32 0.0, %v8508
    %v8510 = vpop.f32.mrb[0].mxu0
    %8511 = vmatprep.mubr.f32.mxu0 0.0
    %8512 = vmatmul.mubr.f32.gmra.mrb[0].mxu0 %v5741
    %v8513 = vpop.f32.mrb[0].mxu0
    %v8514 = vadd.f32 0.0, %v8513
    %v8515 = vpop.f32.mrb[0].mxu0
    %8516 = vmatprep.mubr.f32.mxu0 0.0
    %8517 = vmatmul.mubr.f32.gmra.mrb[0].mxu0 %v5743
    %v8518 = vpop.f32.mrb[0].mxu0
    %v8519 = vadd.f32 0.0, %v8518
    %v8520 = vpop.f32.mrb[0].mxu0
    %8521 = vmatprep.mubr.f32.mxu0 0.0
    %8522 = vmatmul.mubr.f32.gmra.mrb[0].mxu0 %v5745
    %v8523 = vpop.f32.mrb[0].mxu0
    %v8524 = vadd.f32 0.0, %v8523
    %v8525 = vpop.f32.mrb[0].mxu0
    %8526 = vmatprep.mubr.f32.mxu0 0.0
    %8527 = vmatmul.mubr.f32.gmra.mrb[0].mxu0 %v8324
    %v8528 = vpop.f32.mrb[0].mxu0
    %v8529 = vadd.f32 0.0, %v8528
    %v8530 = vpop.f32.mrb[0].mxu0
    %8531 = vmatprep.mubr.f32.mxu0 0.0
    %8532 = vmatmul.mubr.f32.gmra.mrb[0].mxu0 %v8326
    %v8533 = vpop.f32.mrb[0].mxu0
    %v8534 = vadd.f32 0.0, %v8533
    %v8535 = vpop.f32.mrb[0].mxu0
    %8536 = vmatprep.mubr.f32.mxu0 0.0
    %8537 = vmatmul.mubr.f32.gmra.mrb[0].mxu0 %v8328
    %v8538 = vpop.f32.mrb[0].mxu0
    %v8539 = vadd.f32 0.0, %v8538
    %v8540 = vpop.f32.mrb[0].mxu0
    %8541 = vmatprep.mubr.f32.mxu0 0.0
    %8542 = vmatmul.mubr.f32.gmra.mrb[0].mxu0 %v8330
    %v8543 = vpop.f32.mrb[0].mxu0
    %v8544 = vadd.f32 0.0, %v8543
    %v8545 = vpop.f32.mrb[0].mxu0
    %8546 = vdwg.mxu0
    %v8547 = vadd.f32 %v8285, %v8399
    %v8548 = vadd.f32 %v8286, %v8404
    %v8549 = vadd.f32 %v8287, %v8409
    %v8550 = vadd.f32 %v8288, %v8414
    %v8551 = vadd.f32 %v8289, %v8419
    %v8552 = vadd.f32 %v8290, %v8424
    %v8553 = vadd.f32 %v8291, %v8429
    %v8554 = vadd.f32 %v8292, %v8434
    %v8555 = vadd.f32 %v8293, %v8439
    %v8556 = vadd.f32 %v8294, %v8444
    %v8557 = vadd.f32 %v8295, %v8449
    %v8558 = vadd.f32 %v8296, %v8454
    %v8559 = vadd.f32 %v8297, %v8459
    %v8560 = vadd.f32 %v8298, %v8464
    %v8561 = vadd.f32 %v8299, %v8469
    %v8562 = vadd.f32 %v8300, %v8474
    %v8563 = vadd.f32 %v8301, %v8479
    %v8564 = vadd.f32 %v8302, %v8484
    %v8565 = vadd.f32 %v8303, %v8489
    %v8566 = vadd.f32 %v8304, %v8494
    %v8567 = vadd.f32 %v8305, %v8499
    %v8568 = vadd.f32 %v8306, %v8504
    %v8569 = vadd.f32 %v8307, %v8509
    %v8570 = vadd.f32 %v8308, %v8514
    %v8571 = vadd.f32 %v8309, %v8519
    %v8572 = vadd.f32 %v8310, %v8524
    %v8573 = vadd.f32 %v8311, %v8529
    %v8574 = vadd.f32 %v8312, %v8534
    %v8575 = vadd.f32 %v8313, %v8539
    %v8576 = vadd.f32 %v8314, %v8544
    %s8577 = scalar_lea.vmem %s4, 384
    %v8578 = vld [vmem:[%s8577] sm:$0xff]
    %v8579 = vld [vmem:[%s8577 + $0x8] sm:$0xff]
    %v8580 = vrot.slane %v1587, 4
    %v8581 = vsel %vm2974, %v6256, %v8580
    %v8582 = vrot.slane %v1588, 4
    %v8583 = vsel %vm2974, %v8580, %v8582
    %v8584 = vsel %vm1684, %v8581, 0
    %v8586 = vsel %vm1684, %v8583, 0
    %v8588 = vsel %vm1684, %v8582, 0
    %8590 = vmatprep.subr.mxu0 0.0
    %8591 = vmatpush1.msra.mxu0 %v8578
    %8592 = vmatprep.subr.mxu0 0.0
    %8593 = vmatpush1.msra.mxu0 %v8579
    %8594 = vmatprep.subr.mxu0 0.0
    %8595 = vmatpush1.msra.mxu0 0.0
    %8596 = vmatprep.subr.mxu0 0.0
    %8597 = vmatpush1.msra.mxu0 0.0
    %8598 = vmatprep.subr.mxu0 0.0
    %8599 = vmatpush1.msra.mxu0 0.0
    %8600 = vmatprep.subr.mxu0 0.0
    %8601 = vmatpush1.msra.mxu0 0.0
    %8602 = vmatprep.subr.mxu0 0.0
    %8603 = vmatpush1.msra.mxu0 0.0
    %8604 = vmatprep.subr.mxu0 0.0
    %8605 = vmatpush1.msra.mxu0 0.0
    %8606 = vmatprep.subr.mxu0 0.0
    %8607 = vmatpush1.msra.mxu0 0.0
    %8608 = vmatprep.subr.mxu0 0.0
    %8609 = vmatpush1.msra.mxu0 0.0
    %8610 = vmatprep.subr.mxu0 0.0
    %8611 = vmatpush1.msra.mxu0 0.0
    %8612 = vmatprep.subr.mxu0 0.0
    %8613 = vmatpush1.msra.mxu0 0.0
    %8614 = vmatprep.subr.mxu0 0.0
    %8615 = vmatpush1.msra.mxu0 0.0
    %8616 = vmatprep.subr.mxu0 0.0
    %8617 = vmatpush1.msra.mxu0 0.0
    %8618 = vmatprep.subr.mxu0 0.0
    %8619 = vmatpush1.msra.mxu0 0.0
    %8620 = vmatprep.subr.mxu0 0.0
    %8621 = vmatpush1.msra.mxu0 0.0
    %8622 = vmatprep.subr.mxu0 0.0
    %8623 = vmatpush1.msra.mxu0 0.0
    %8624 = vmatprep.subr.mxu0 0.0
    %8625 = vmatpush1.msra.mxu0 0.0
    %8626 = vmatprep.subr.mxu0 0.0
    %8627 = vmatpush1.msra.mxu0 0.0
    %8628 = vmatprep.subr.mxu0 0.0
    %8629 = vmatpush1.msra.mxu0 0.0
    %8630 = vmatprep.subr.mxu0 0.0
    %8631 = vmatpush1.msra.mxu0 0.0
    %8632 = vmatprep.subr.mxu0 0.0
    %8633 = vmatpush1.msra.mxu0 0.0
    %8634 = vmatprep.subr.mxu0 0.0
    %8635 = vmatpush1.msra.mxu0 0.0
    %8636 = vmatprep.subr.mxu0 0.0
    %8637 = vmatpush1.msra.mxu0 0.0
    %8638 = vmatprep.subr.mxu0 0.0
    %8639 = vmatpush1.msra.mxu0 0.0
    %8640 = vmatprep.subr.mxu0 0.0
    %8641 = vmatpush1.msra.mxu0 0.0
    %8642 = vmatprep.subr.mxu0 0.0
    %8643 = vmatpush1.msra.mxu0 0.0
    %8644 = vmatprep.subr.mxu0 0.0
    %8645 = vmatpush1.msra.mxu0 0.0
    %8646 = vmatprep.subr.mxu0 0.0
    %8647 = vmatpush1.msra.mxu0 0.0
    %8648 = vmatprep.subr.mxu0 0.0
    %8649 = vmatpush1.msra.mxu0 0.0
    %8650 = vmatprep.subr.mxu0 0.0
    %8651 = vmatpush1.msra.mxu0 0.0
    %8652 = vmatprep.subr.mxu0 0.0
    %8653 = vmatpush1.msra.mxu0 0.0
    %8654 = vmatprep.mubr.f32.mxu0 0.0
    %8655 = vmatmul.mubr.f32.gmra.mrb[0].mxu0 %v3046
    %v8656 = vpop.f32.mrb[0].mxu0
    %v8657 = vadd.f32 0.0, %v8656
    %v8658 = vpop.f32.mrb[0].mxu0
    %8659 = vmatprep.mubr.f32.mxu0 0.0
    %8660 = vmatmul.mubr.f32.gmra.mrb[0].mxu0 %v3048
    %v8661 = vpop.f32.mrb[0].mxu0
    %v8662 = vadd.f32 0.0, %v8661
    %v8663 = vpop.f32.mrb[0].mxu0
    %8664 = vmatprep.mubr.f32.mxu0 0.0
    %8665 = vmatmul.mubr.f32.gmra.mrb[0].mxu0 %v3050
    %v8666 = vpop.f32.mrb[0].mxu0
    %v8667 = vadd.f32 0.0, %v8666
    %v8668 = vpop.f32.mrb[0].mxu0
    %8669 = vmatprep.mubr.f32.mxu0 0.0
    %8670 = vmatmul.mubr.f32.gmra.mrb[0].mxu0 %v3052
    %v8671 = vpop.f32.mrb[0].mxu0
    %v8672 = vadd.f32 0.0, %v8671
    %v8673 = vpop.f32.mrb[0].mxu0
    %8674 = vmatprep.mubr.f32.mxu0 0.0
    %8675 = vmatmul.mubr.f32.gmra.mrb[0].mxu0 %v3054
    %v8676 = vpop.f32.mrb[0].mxu0
    %v8677 = vadd.f32 0.0, %v8676
    %v8678 = vpop.f32.mrb[0].mxu0
    %8679 = vmatprep.mubr.f32.mxu0 0.0
    %8680 = vmatmul.mubr.f32.gmra.mrb[0].mxu0 %v3056
    %v8681 = vpop.f32.mrb[0].mxu0
    %v8682 = vadd.f32 0.0, %v8681
    %v8683 = vpop.f32.mrb[0].mxu0
    %8684 = vmatprep.mubr.f32.mxu0 0.0
    %8685 = vmatmul.mubr.f32.gmra.mrb[0].mxu0 %v3058
    %v8686 = vpop.f32.mrb[0].mxu0
    %v8687 = vadd.f32 0.0, %v8686
    %v8688 = vpop.f32.mrb[0].mxu0
    %8689 = vmatprep.mubr.f32.mxu0 0.0
    %8690 = vmatmul.mubr.f32.gmra.mrb[0].mxu0 %v3060
    %v8691 = vpop.f32.mrb[0].mxu0
    %v8692 = vadd.f32 0.0, %v8691
    %v8693 = vpop.f32.mrb[0].mxu0
    %8694 = vmatprep.mubr.f32.mxu0 0.0
    %8695 = vmatmul.mubr.f32.gmra.mrb[0].mxu0 %v3062
    %v8696 = vpop.f32.mrb[0].mxu0
    %v8697 = vadd.f32 0.0, %v8696
    %v8698 = vpop.f32.mrb[0].mxu0
    %8699 = vmatprep.mubr.f32.mxu0 0.0
    %8700 = vmatmul.mubr.f32.gmra.mrb[0].mxu0 %v3064
    %v8701 = vpop.f32.mrb[0].mxu0
    %v8702 = vadd.f32 0.0, %v8701
    %v8703 = vpop.f32.mrb[0].mxu0
    %8704 = vmatprep.mubr.f32.mxu0 0.0
    %8705 = vmatmul.mubr.f32.gmra.mrb[0].mxu0 %v3066
    %v8706 = vpop.f32.mrb[0].mxu0
    %v8707 = vadd.f32 0.0, %v8706
    %v8708 = vpop.f32.mrb[0].mxu0
    %8709 = vmatprep.mubr.f32.mxu0 0.0
    %8710 = vmatmul.mubr.f32.gmra.mrb[0].mxu0 %v3068
    %v8711 = vpop.f32.mrb[0].mxu0
    %v8712 = vadd.f32 0.0, %v8711
    %v8713 = vpop.f32.mrb[0].mxu0
    %8714 = vmatprep.mubr.f32.mxu0 0.0
    %8715 = vmatmul.mubr.f32.gmra.mrb[0].mxu0 %v3070
    %v8716 = vpop.f32.mrb[0].mxu0
    %v8717 = vadd.f32 0.0, %v8716
    %v8718 = vpop.f32.mrb[0].mxu0
    %8719 = vmatprep.mubr.f32.mxu0 0.0
    %8720 = vmatmul.mubr.f32.gmra.mrb[0].mxu0 %v3072
    %v8721 = vpop.f32.mrb[0].mxu0
    %v8722 = vadd.f32 0.0, %v8721
    %v8723 = vpop.f32.mrb[0].mxu0
    %8724 = vmatprep.mubr.f32.mxu0 0.0
    %8725 = vmatmul.mubr.f32.gmra.mrb[0].mxu0 %v3074
    %v8726 = vpop.f32.mrb[0].mxu0
    %v8727 = vadd.f32 0.0, %v8726
    %v8728 = vpop.f32.mrb[0].mxu0
    %8729 = vmatprep.mubr.f32.mxu0 0.0
    %8730 = vmatmul.mubr.f32.gmra.mrb[0].mxu0 %v3076
    %v8731 = vpop.f32.mrb[0].mxu0
    %v8732 = vadd.f32 0.0, %v8731
    %v8733 = vpop.f32.mrb[0].mxu0
    %8734 = vmatprep.mubr.f32.mxu0 0.0
    %8735 = vmatmul.mubr.f32.gmra.mrb[0].mxu0 %v3078
    %v8736 = vpop.f32.mrb[0].mxu0
    %v8737 = vadd.f32 0.0, %v8736
    %v8738 = vpop.f32.mrb[0].mxu0
    %8739 = vmatprep.mubr.f32.mxu0 0.0
    %8740 = vmatmul.mubr.f32.gmra.mrb[0].mxu0 %v3080
    %v8741 = vpop.f32.mrb[0].mxu0
    %v8742 = vadd.f32 0.0, %v8741
    %v8743 = vpop.f32.mrb[0].mxu0
    %8744 = vmatprep.mubr.f32.mxu0 0.0
    %8745 = vmatmul.mubr.f32.gmra.mrb[0].mxu0 %v3082
    %v8746 = vpop.f32.mrb[0].mxu0
    %v8747 = vadd.f32 0.0, %v8746
    %v8748 = vpop.f32.mrb[0].mxu0
    %8749 = vmatprep.mubr.f32.mxu0 0.0
    %8750 = vmatmul.mubr.f32.gmra.mrb[0].mxu0 %v3084
    %v8751 = vpop.f32.mrb[0].mxu0
    %v8752 = vadd.f32 0.0, %v8751
    %v8753 = vpop.f32.mrb[0].mxu0
    %8754 = vmatprep.mubr.f32.mxu0 0.0
    %8755 = vmatmul.mubr.f32.gmra.mrb[0].mxu0 %v3086
    %v8756 = vpop.f32.mrb[0].mxu0
    %v8757 = vadd.f32 0.0, %v8756
    %v8758 = vpop.f32.mrb[0].mxu0
    %8759 = vmatprep.mubr.f32.mxu0 0.0
    %8760 = vmatmul.mubr.f32.gmra.mrb[0].mxu0 %v3088
    %v8761 = vpop.f32.mrb[0].mxu0
    %v8762 = vadd.f32 0.0, %v8761
    %v8763 = vpop.f32.mrb[0].mxu0
    %8764 = vmatprep.mubr.f32.mxu0 0.0
    %8765 = vmatmul.mubr.f32.gmra.mrb[0].mxu0 %v3090
    %v8766 = vpop.f32.mrb[0].mxu0
    %v8767 = vadd.f32 0.0, %v8766
    %v8768 = vpop.f32.mrb[0].mxu0
    %8769 = vmatprep.mubr.f32.mxu0 0.0
    %8770 = vmatmul.mubr.f32.gmra.mrb[0].mxu0 %v3345
    %v8771 = vpop.f32.mrb[0].mxu0
    %v8772 = vadd.f32 0.0, %v8771
    %v8773 = vpop.f32.mrb[0].mxu0
    %8774 = vmatprep.mubr.f32.mxu0 0.0
    %8775 = vmatmul.mubr.f32.gmra.mrb[0].mxu0 %v6001
    %v8776 = vpop.f32.mrb[0].mxu0
    %v8777 = vadd.f32 0.0, %v8776
    %v8778 = vpop.f32.mrb[0].mxu0
    %8779 = vmatprep.mubr.f32.mxu0 0.0
    %8780 = vmatmul.mubr.f32.gmra.mrb[0].mxu0 %v6003
    %v8781 = vpop.f32.mrb[0].mxu0
    %v8782 = vadd.f32 0.0, %v8781
    %v8783 = vpop.f32.mrb[0].mxu0
    %8784 = vmatprep.mubr.f32.mxu0 0.0
    %8785 = vmatmul.mubr.f32.gmra.mrb[0].mxu0 %v6258
    %v8786 = vpop.f32.mrb[0].mxu0
    %v8787 = vadd.f32 0.0, %v8786
    %v8788 = vpop.f32.mrb[0].mxu0
    %8789 = vmatprep.mubr.f32.mxu0 0.0
    %8790 = vmatmul.mubr.f32.gmra.mrb[0].mxu0 %v8584
    %v8791 = vpop.f32.mrb[0].mxu0
    %v8792 = vadd.f32 0.0, %v8791
    %v8793 = vpop.f32.mrb[0].mxu0
    %8794 = vmatprep.mubr.f32.mxu0 0.0
    %8795 = vmatmul.mubr.f32.gmra.mrb[0].mxu0 %v8586
    %v8796 = vpop.f32.mrb[0].mxu0
    %v8797 = vadd.f32 0.0, %v8796
    %v8798 = vpop.f32.mrb[0].mxu0
    %8799 = vmatprep.mubr.f32.mxu0 0.0
    %8800 = vmatmul.mubr.f32.gmra.mrb[0].mxu0 %v8588
    %v8801 = vpop.f32.mrb[0].mxu0
    %v8802 = vadd.f32 0.0, %v8801
    %v8803 = vpop.f32.mrb[0].mxu0
    %8804 = vdwg.mxu0
    %v8805 = vadd.f32 %v8547, %v8657
    %v8806 = vadd.f32 %v8548, %v8662
    %v8807 = vadd.f32 %v8549, %v8667
    %v8808 = vadd.f32 %v8550, %v8672
    %v8809 = vadd.f32 %v8551, %v8677
    %v8810 = vadd.f32 %v8552, %v8682
    %v8811 = vadd.f32 %v8553, %v8687
    %v8812 = vadd.f32 %v8554, %v8692
    %v8813 = vadd.f32 %v8555, %v8697
    %v8814 = vadd.f32 %v8556, %v8702
    %v8815 = vadd.f32 %v8557, %v8707
    %v8816 = vadd.f32 %v8558, %v8712
    %v8817 = vadd.f32 %v8559, %v8717
    %v8818 = vadd.f32 %v8560, %v8722
    %v8819 = vadd.f32 %v8561, %v8727
    %v8820 = vadd.f32 %v8562, %v8732
    %v8821 = vadd.f32 %v8563, %v8737
    %v8822 = vadd.f32 %v8564, %v8742
    %v8823 = vadd.f32 %v8565, %v8747
    %v8824 = vadd.f32 %v8566, %v8752
    %v8825 = vadd.f32 %v8567, %v8757
    %v8826 = vadd.f32 %v8568, %v8762
    %v8827 = vadd.f32 %v8569, %v8767
    %v8828 = vadd.f32 %v8570, %v8772
    %v8829 = vadd.f32 %v8571, %v8777
    %v8830 = vadd.f32 %v8572, %v8782
    %v8831 = vadd.f32 %v8573, %v8787
    %v8832 = vadd.f32 %v8574, %v8792
    %v8833 = vadd.f32 %v8575, %v8797
    %v8834 = vadd.f32 %v8576, %v8802
    %v8835 = vld [vmem:[%s1] sm:$0xff]
    %v8836 = vld [vmem:[%s1 + $0x8] sm:$0xff]
    %v8837 = vld [vmem:[%s1 + $0x10] sm:$0xff]
    %v8838 = vld [vmem:[%s1 + $0x18] sm:$0xff]
    %v8839 = vld [vmem:[%s1 + $0x20] sm:$0xff]
    %v8840 = vld [vmem:[%s1 + $0x28] sm:$0xff]
    %v8841 = vld [vmem:[%s1 + $0x30] sm:$0xff]
    %v8842 = vld [vmem:[%s1 + $0x38] sm:$0xff]
    %v8843 = vld [vmem:[%s1 + $0x40] sm:$0xff]
    %v8844 = vld [vmem:[%s1 + $0x48] sm:$0xff]
    %v8845 = vld [vmem:[%s1 + $0x50] sm:$0xff]
    %v8846 = vld [vmem:[%s1 + $0x58] sm:$0xff]
    %v8847 = vld [vmem:[%s1 + $0x60] sm:$0xff]
    %v8848 = vld [vmem:[%s1 + $0x68] sm:$0xff]
    %v8849 = vld [vmem:[%s1 + $0x70] sm:$0xff]
    %v8850 = vld [vmem:[%s1 + $0x78] sm:$0xff]
    %v8851 = vld [vmem:[%s1 + $0x80] sm:$0xff]
    %v8852 = vld [vmem:[%s1 + $0x88] sm:$0xff]
    %v8853 = vld [vmem:[%s1 + $0x90] sm:$0xff]
    %v8854 = vld [vmem:[%s1 + $0x98] sm:$0xff]
    %v8855 = vld [vmem:[%s1 + $0xa0] sm:$0xff]
    %v8856 = vld [vmem:[%s1 + $0xa8] sm:$0xff]
    %v8857 = vld [vmem:[%s1 + $0xb0] sm:$0xff]
    %v8858 = vld [vmem:[%s1 + $0xb8] sm:$0xff]
    %v8859 = vld [vmem:[%s1 + $0xc0] sm:$0xff]
    %v8860 = vld [vmem:[%s1 + $0xc8] sm:$0xff]
    %v8861 = vld [vmem:[%s1 + $0xd0] sm:$0xff]
    %v8862 = vld [vmem:[%s1 + $0xd8] sm:$0xff]
    %v8863 = vld [vmem:[%s1 + $0xe0] sm:$0xff]
    %v8864 = vld [vmem:[%s1 + $0xe8] sm:$0xff]
    %v8865 = vld [vmem:[%s1 + $0xf0] sm:$0xff]
    %v8866 = vld [vmem:[%s1 + $0xf8] sm:$0xff]
    %vm8867 = vcmask 883712
    %v8869 = vsel %vm8867, %v8836, 0
    %v8872 = vsel %vm8867, %v8838, 0
    %v8875 = vsel %vm8867, %v8840, 0
    %v8878 = vsel %vm8867, %v8842, 0
    %v8881 = vsel %vm8867, %v8844, 0
    %v8884 = vsel %vm8867, %v8846, 0
    %v8887 = vsel %vm8867, %v8848, 0
    %v8890 = vsel %vm8867, %v8850, 0
    %v8893 = vsel %vm8867, %v8852, 0
    %v8896 = vsel %vm8867, %v8854, 0
    %v8899 = vsel %vm8867, %v8856, 0
    %v8902 = vsel %vm8867, %v8858, 0
    %v8905 = vsel %vm8867, %v8860, 0
    %v8908 = vsel %vm8867, %v8862, 0
    %v8911 = vsel %vm8867, %v8864, 0
    %v8914 = vsel %vm8867, %v8866, 0
    %v8917 = vsel %vm2974, %v8834, 0
    %8919 = vmatprep.subr.mxu0 0.0
    %8920 = vmatpush1.msra.mxu0 %v8805
    %8921 = vmatprep.subr.mxu0 0.0
    %8922 = vmatpush1.msra.mxu0 %v8806
    %8923 = vmatprep.subr.mxu0 0.0
    %8924 = vmatpush1.msra.mxu0 %v8807
    %8925 = vmatprep.subr.mxu0 0.0
    %8926 = vmatpush1.msra.mxu0 %v8808
    %8927 = vmatprep.subr.mxu0 0.0
    %8928 = vmatpush1.msra.mxu0 %v8809
    %8929 = vmatprep.subr.mxu0 0.0
    %8930 = vmatpush1.msra.mxu0 %v8810
    %8931 = vmatprep.subr.mxu0 0.0
    %8932 = vmatpush1.msra.mxu0 %v8811
    %8933 = vmatprep.subr.mxu0 0.0
    %8934 = vmatpush1.msra.mxu0 %v8812
    %8935 = vmatprep.subr.mxu0 0.0
    %8936 = vmatpush1.msra.mxu0 %v8813
    %8937 = vmatprep.subr.mxu0 0.0
    %8938 = vmatpush1.msra.mxu0 %v8814
    %8939 = vmatprep.subr.mxu0 0.0
    %8940 = vmatpush1.msra.mxu0 %v8815
    %8941 = vmatprep.subr.mxu0 0.0
    %8942 = vmatpush1.msra.mxu0 %v8816
    %8943 = vmatprep.subr.mxu0 0.0
    %8944 = vmatpush1.msra.mxu0 %v8817
    %8945 = vmatprep.subr.mxu0 0.0
    %8946 = vmatpush1.msra.mxu0 %v8818
    %8947 = vmatprep.subr.mxu0 0.0
    %8948 = vmatpush1.msra.mxu0 %v8819
    %8949 = vmatprep.subr.mxu0 0.0
    %8950 = vmatpush1.msra.mxu0 %v8820
    %8951 = vmatprep.subr.mxu0 0.0
    %8952 = vmatpush1.msra.mxu0 %v8821
    %8953 = vmatprep.subr.mxu0 0.0
    %8954 = vmatpush1.msra.mxu0 %v8822
    %8955 = vmatprep.subr.mxu0 0.0
    %8956 = vmatpush1.msra.mxu0 %v8823
    %8957 = vmatprep.subr.mxu0 0.0
    %8958 = vmatpush1.msra.mxu0 %v8824
    %8959 = vmatprep.subr.mxu0 0.0
    %8960 = vmatpush1.msra.mxu0 %v8825
    %8961 = vmatprep.subr.mxu0 0.0
    %8962 = vmatpush1.msra.mxu0 %v8826
    %8963 = vmatprep.subr.mxu0 0.0
    %8964 = vmatpush1.msra.mxu0 %v8827
    %8965 = vmatprep.subr.mxu0 0.0
    %8966 = vmatpush1.msra.mxu0 %v8828
    %8967 = vmatprep.subr.mxu0 0.0
    %8968 = vmatpush1.msra.mxu0 %v8829
    %8969 = vmatprep.subr.mxu0 0.0
    %8970 = vmatpush1.msra.mxu0 %v8830
    %8971 = vmatprep.subr.mxu0 0.0
    %8972 = vmatpush1.msra.mxu0 %v8831
    %8973 = vmatprep.subr.mxu0 0.0
    %8974 = vmatpush1.msra.mxu0 %v8832
    %8975 = vmatprep.subr.mxu0 0.0
    %8976 = vmatpush1.msra.mxu0 %v8833
    %8977 = vmatprep.subr.mxu0 0.0
    %8978 = vmatpush1.msra.mxu0 %v8917
    %8979 = vmatprep.subr.mxu0 0.0
    %8980 = vmatpush1.msra.mxu0 0.0
    %8981 = vmatprep.subr.mxu0 0.0
    %8982 = vmatpush1.msra.mxu0 0.0
    %8983 = vmatprep.mubr.f32.mxu0 %v8869
    %8984 = vmatmul.mubr.f32.gmra.mrb[0].mxu0 %v8835
    %v8985 = vpop.f32.mrb[0].mxu0
    %v8986 = vadd.f32 0.0, %v8985
    %v8987 = vpop.f32.mrb[0].mxu0
    %8988 = vmatprep.mubr.f32.mxu0 %v8872
    %8989 = vmatmul.mubr.f32.gmra.mrb[0].mxu0 %v8837
    %v8990 = vpop.f32.mrb[0].mxu0
    %v8991 = vadd.f32 0.0, %v8990
    %v8992 = vpop.f32.mrb[0].mxu0
    %8993 = vmatprep.mubr.f32.mxu0 %v8875
    %8994 = vmatmul.mubr.f32.gmra.mrb[0].mxu0 %v8839
    %v8995 = vpop.f32.mrb[0].mxu0
    %v8996 = vadd.f32 0.0, %v8995
    %v8997 = vpop.f32.mrb[0].mxu0
    %8998 = vmatprep.mubr.f32.mxu0 %v8878
    %8999 = vmatmul.mubr.f32.gmra.mrb[0].mxu0 %v8841
    %v9000 = vpop.f32.mrb[0].mxu0
    %v9001 = vadd.f32 0.0, %v9000
    %v9002 = vpop.f32.mrb[0].mxu0
    %9003 = vmatprep.mubr.f32.mxu0 %v8881
    %9004 = vmatmul.mubr.f32.gmra.mrb[0].mxu0 %v8843
    %v9005 = vpop.f32.mrb[0].mxu0
    %v9006 = vadd.f32 0.0, %v9005
    %v9007 = vpop.f32.mrb[0].mxu0
    %9008 = vmatprep.mubr.f32.mxu0 %v8884
    %9009 = vmatmul.mubr.f32.gmra.mrb[0].mxu0 %v8845
    %v9010 = vpop.f32.mrb[0].mxu0
    %v9011 = vadd.f32 0.0, %v9010
    %v9012 = vpop.f32.mrb[0].mxu0
    %9013 = vmatprep.mubr.f32.mxu0 %v8887
    %9014 = vmatmul.mubr.f32.gmra.mrb[0].mxu0 %v8847
    %v9015 = vpop.f32.mrb[0].mxu0
    %v9016 = vadd.f32 0.0, %v9015
    %v9017 = vpop.f32.mrb[0].mxu0
    %9018 = vmatprep.mubr.f32.mxu0 %v8890
    %9019 = vmatmul.mubr.f32.gmra.mrb[0].mxu0 %v8849
    %v9020 = vpop.f32.mrb[0].mxu0
    %v9021 = vadd.f32 0.0, %v9020
    %v9022 = vpop.f32.mrb[0].mxu0
    %9023 = vmatprep.mubr.f32.mxu0 %v8893
    %9024 = vmatmul.mubr.f32.gmra.mrb[0].mxu0 %v8851
    %v9025 = vpop.f32.mrb[0].mxu0
    %v9026 = vadd.f32 0.0, %v9025
    %v9027 = vpop.f32.mrb[0].mxu0
    %9028 = vmatprep.mubr.f32.mxu0 %v8896
    %9029 = vmatmul.mubr.f32.gmra.mrb[0].mxu0 %v8853
    %v9030 = vpop.f32.mrb[0].mxu0
    %v9031 = vadd.f32 0.0, %v9030
    %v9032 = vpop.f32.mrb[0].mxu0
    %9033 = vmatprep.mubr.f32.mxu0 %v8899
    %9034 = vmatmul.mubr.f32.gmra.mrb[0].mxu0 %v8855
    %v9035 = vpop.f32.mrb[0].mxu0
    %v9036 = vadd.f32 0.0, %v9035
    %v9037 = vpop.f32.mrb[0].mxu0
    %9038 = vmatprep.mubr.f32.mxu0 %v8902
    %9039 = vmatmul.mubr.f32.gmra.mrb[0].mxu0 %v8857
    %v9040 = vpop.f32.mrb[0].mxu0
    %v9041 = vadd.f32 0.0, %v9040
    %v9042 = vpop.f32.mrb[0].mxu0
    %9043 = vmatprep.mubr.f32.mxu0 %v8905
    %9044 = vmatmul.mubr.f32.gmra.mrb[0].mxu0 %v8859
    %v9045 = vpop.f32.mrb[0].mxu0
    %v9046 = vadd.f32 0.0, %v9045
    %v9047 = vpop.f32.mrb[0].mxu0
    %9048 = vmatprep.mubr.f32.mxu0 %v8908
    %9049 = vmatmul.mubr.f32.gmra.mrb[0].mxu0 %v8861
    %v9050 = vpop.f32.mrb[0].mxu0
    %v9051 = vadd.f32 0.0, %v9050
    %v9052 = vpop.f32.mrb[0].mxu0
    %9053 = vmatprep.mubr.f32.mxu0 %v8911
    %9054 = vmatmul.mubr.f32.gmra.mrb[0].mxu0 %v8863
    %v9055 = vpop.f32.mrb[0].mxu0
    %v9056 = vadd.f32 0.0, %v9055
    %v9057 = vpop.f32.mrb[0].mxu0
    %9058 = vmatprep.mubr.f32.mxu0 %v8914
    %9059 = vmatmul.mubr.f32.gmra.mrb[0].mxu0 %v8865
    %v9060 = vpop.f32.mrb[0].mxu0
    %v9061 = vadd.f32 0.0, %v9060
    %v9062 = vpop.f32.mrb[0].mxu0
    %9063 = vdwg.mxu0
    %v9064 = vmax.f32 %v8986, %v9006
    %v9065 = vmax.f32 %v8991, %v9011
    %v9066 = vmax.f32 %v8996, %v9016
    %v9067 = vmax.f32 %v9001, %v9021
    %v9068 = vmax.f32 %v9026, %v9046
    %v9069 = vmax.f32 %v9031, %v9051
    %v9070 = vmax.f32 %v9036, %v9056
    %v9071 = vmax.f32 %v9041, %v9061
    %v9072 = vmax.f32 %v9064, %v9068
    %v9073 = vmax.f32 %v9065, %v9069
    %v9074 = vmax.f32 %v9066, %v9070
    %v9075 = vmax.f32 %v9067, %v9071
    %v9076 = vld [vmem:[%s5] sm:$0x1]
    %v9078 = vlaneseq
    %v9079 = vshrl.u32 %v9078, 7
    %v9080 = vsub.s32 0, %v9079
    %v9081 = vrot.slane %v9076, %v9080
    %v9083 = vadd.f32 %v9072, %v9081
    %v9084 = vadd.f32 %v9073, %v9081
    %v9085 = vadd.f32 %v9074, %v9081
    %v9086 = vadd.f32 %v9075, %v9081
    %v9087 = vmax.f32 %v9083, 0.0
    %v9088 = vmax.f32 %v9084, 0.0
    %v9089 = vmax.f32 %v9085, 0.0
    %v9090 = vmax.f32 %v9086, 0.0
    %v9091 = vld [vmem:[%s6] sm:$0xff]
    %v9092 = vld [vmem:[%s6 + $0x8] sm:$0xff]
    %v9093 = vld [vmem:[%s6 + $0x10] sm:$0xff]
    %v9094 = vld [vmem:[%s6 + $0x18] sm:$0xff]
    %s9095 = scalar_lea.vmem %s6, 32
    %v9096 = vld [vmem:[%s9095] sm:$0xff]
    %v9097 = vld [vmem:[%s9095 + $0x8] sm:$0xff]
    %v9098 = vld [vmem:[%s9095 + $0x10] sm:$0xff]
    %v9099 = vld [vmem:[%s9095 + $0x18] sm:$0xff]
    %v9101 = vrot.slane %v9087, 2
    %v9102 = vsel %vm184, %v9101, 0
    %9104 = vmatprep.subr.mxu0 0.0
    %9105 = vmatpush1.msra.mxu0 %v9096
    %9106 = vmatprep.subr.mxu0 0.0
    %9107 = vmatpush1.msra.mxu0 %v9097
    %9108 = vmatprep.subr.mxu0 0.0
    %9109 = vmatpush1.msra.mxu0 %v9098
    %9110 = vmatprep.subr.mxu0 0.0
    %9111 = vmatpush1.msra.mxu0 %v9099
    %9112 = vmatprep.subr.mxu0 0.0
    %9113 = vmatpush1.msra.mxu0 0.0
    %9114 = vmatprep.subr.mxu0 0.0
    %9115 = vmatpush1.msra.mxu0 0.0
    %9116 = vmatprep.subr.mxu0 0.0
    %9117 = vmatpush1.msra.mxu0 0.0
    %9118 = vmatprep.subr.mxu0 0.0
    %9119 = vmatpush1.msra.mxu0 0.0
    %9120 = vmatprep.subr.mxu0 0.0
    %9121 = vmatpush1.msra.mxu0 0.0
    %9122 = vmatprep.subr.mxu0 0.0
    %9123 = vmatpush1.msra.mxu0 0.0
    %9124 = vmatprep.subr.mxu0 0.0
    %9125 = vmatpush1.msra.mxu0 0.0
    %9126 = vmatprep.subr.mxu0 0.0
    %9127 = vmatpush1.msra.mxu0 0.0
    %9128 = vmatprep.subr.mxu0 0.0
    %9129 = vmatpush1.msra.mxu0 0.0
    %9130 = vmatprep.subr.mxu0 0.0
    %9131 = vmatpush1.msra.mxu0 0.0
    %9132 = vmatprep.subr.mxu0 0.0
    %9133 = vmatpush1.msra.mxu0 0.0
    %9134 = vmatprep.subr.mxu0 0.0
    %9135 = vmatpush1.msra.mxu0 0.0
    %9136 = vmatprep.subr.mxu0 0.0
    %9137 = vmatpush1.msra.mxu0 0.0
    %9138 = vmatprep.subr.mxu0 0.0
    %9139 = vmatpush1.msra.mxu0 0.0
    %9140 = vmatprep.subr.mxu0 0.0
    %9141 = vmatpush1.msra.mxu0 0.0
    %9142 = vmatprep.subr.mxu0 0.0
    %9143 = vmatpush1.msra.mxu0 0.0
    %9144 = vmatprep.subr.mxu0 0.0
    %9145 = vmatpush1.msra.mxu0 0.0
    %9146 = vmatprep.subr.mxu0 0.0
    %9147 = vmatpush1.msra.mxu0 0.0
    %9148 = vmatprep.subr.mxu0 0.0
    %9149 = vmatpush1.msra.mxu0 0.0
    %9150 = vmatprep.subr.mxu0 0.0
    %9151 = vmatpush1.msra.mxu0 0.0
    %9152 = vmatprep.subr.mxu0 0.0
    %9153 = vmatpush1.msra.mxu0 0.0
    %9154 = vmatprep.subr.mxu0 0.0
    %9155 = vmatpush1.msra.mxu0 0.0
    %9156 = vmatprep.subr.mxu0 0.0
    %9157 = vmatpush1.msra.mxu0 0.0
    %9158 = vmatprep.subr.mxu0 0.0
    %9159 = vmatpush1.msra.mxu0 0.0
    %9160 = vmatprep.subr.mxu0 0.0
    %9161 = vmatpush1.msra.mxu0 0.0
    %9162 = vmatprep.subr.mxu0 0.0
    %9163 = vmatpush1.msra.mxu0 0.0
    %9164 = vmatprep.subr.mxu0 0.0
    %9165 = vmatpush1.msra.mxu0 0.0
    %9166 = vmatprep.subr.mxu0 0.0
    %9167 = vmatpush1.msra.mxu0 0.0
    %9168 = vmatprep.mubr.f32.mxu0 0.0
    %9169 = vmatmul.mubr.f32.gmra.mrb[0].mxu0 %v9102
    %v9170 = vpop.f32.mrb[0].mxu0
    %v9171 = vadd.f32 0.0, %v9170
    %v9172 = vpop.f32.mrb[0].mxu0
    %9173 = vdwg.mxu0
    %v9174 = vsel %vm184, %v9087, 0
    %9176 = vmatprep.subr.mxu0 0.0
    %9177 = vmatpush1.msra.mxu0 %v9091
    %9178 = vmatprep.subr.mxu0 0.0
    %9179 = vmatpush1.msra.mxu0 %v9092
    %9180 = vmatprep.subr.mxu0 0.0
    %9181 = vmatpush1.msra.mxu0 %v9093
    %9182 = vmatprep.subr.mxu0 0.0
    %9183 = vmatpush1.msra.mxu0 %v9094
    %9184 = vmatprep.subr.mxu0 0.0
    %9185 = vmatpush1.msra.mxu0 0.0
    %9186 = vmatprep.subr.mxu0 0.0
    %9187 = vmatpush1.msra.mxu0 0.0
    %9188 = vmatprep.subr.mxu0 0.0
    %9189 = vmatpush1.msra.mxu0 0.0
    %9190 = vmatprep.subr.mxu0 0.0
    %9191 = vmatpush1.msra.mxu0 0.0
    %9192 = vmatprep.subr.mxu0 0.0
    %9193 = vmatpush1.msra.mxu0 0.0
    %9194 = vmatprep.subr.mxu0 0.0
    %9195 = vmatpush1.msra.mxu0 0.0
    %9196 = vmatprep.subr.mxu0 0.0
    %9197 = vmatpush1.msra.mxu0 0.0
    %9198 = vmatprep.subr.mxu0 0.0
    %9199 = vmatpush1.msra.mxu0 0.0
    %9200 = vmatprep.subr.mxu0 0.0
    %9201 = vmatpush1.msra.mxu0 0.0
    %9202 = vmatprep.subr.mxu0 0.0
    %9203 = vmatpush1.msra.mxu0 0.0
    %9204 = vmatprep.subr.mxu0 0.0
    %9205 = vmatpush1.msra.mxu0 0.0
    %9206 = vmatprep.subr.mxu0 0.0
    %9207 = vmatpush1.msra.mxu0 0.0
    %9208 = vmatprep.subr.mxu0 0.0
    %9209 = vmatpush1.msra.mxu0 0.0
    %9210 = vmatprep.subr.mxu0 0.0
    %9211 = vmatpush1.msra.mxu0 0.0
    %9212 = vmatprep.subr.mxu0 0.0
    %9213 = vmatpush1.msra.mxu0 0.0
    %9214 = vmatprep.subr.mxu0 0.0
    %9215 = vmatpush1.msra.mxu0 0.0
    %9216 = vmatprep.subr.mxu0 0.0
    %9217 = vmatpush1.msra.mxu0 0.0
    %9218 = vmatprep.subr.mxu0 0.0
    %9219 = vmatpush1.msra.mxu0 0.0
    %9220 = vmatprep.subr.mxu0 0.0
    %9221 = vmatpush1.msra.mxu0 0.0
    %9222 = vmatprep.subr.mxu0 0.0
    %9223 = vmatpush1.msra.mxu0 0.0
    %9224 = vmatprep.subr.mxu0 0.0
    %9225 = vmatpush1.msra.mxu0 0.0
    %9226 = vmatprep.subr.mxu0 0.0
    %9227 = vmatpush1.msra.mxu0 0.0
    %9228 = vmatprep.subr.mxu0 0.0
    %9229 = vmatpush1.msra.mxu0 0.0
    %9230 = vmatprep.subr.mxu0 0.0
    %9231 = vmatpush1.msra.mxu0 0.0
    %9232 = vmatprep.subr.mxu0 0.0
    %9233 = vmatpush1.msra.mxu0 0.0
    %9234 = vmatprep.subr.mxu0 0.0
    %9235 = vmatpush1.msra.mxu0 0.0
    %9236 = vmatprep.subr.mxu0 0.0
    %9237 = vmatpush1.msra.mxu0 0.0
    %9238 = vmatprep.subr.mxu0 0.0
    %9239 = vmatpush1.msra.mxu0 0.0
    %9240 = vmatprep.mubr.f32.mxu0 0.0
    %9241 = vmatmul.mubr.f32.gmra.mrb[0].mxu0 %v9174
    %v9242 = vpop.f32.mrb[0].mxu0
    %v9243 = vadd.f32 %v9171, %v9242
    %v9244 = vpop.f32.mrb[0].mxu0
    %9245 = vdwg.mxu0
    %s9246 = scalar_lea.vmem %s6, 64
    %v9247 = vld [vmem:[%s9246] sm:$0xff]
    %v9248 = vld [vmem:[%s9246 + $0x8] sm:$0xff]
    %v9249 = vld [vmem:[%s9246 + $0x10] sm:$0xff]
    %v9250 = vld [vmem:[%s9246 + $0x18] sm:$0xff]
    %v9251 = vrot.slane %v9087, 4
    %v9252 = vsel %vm184, %v9251, 0
    %9254 = vmatprep.subr.mxu0 0.0
    %9255 = vmatpush1.msra.mxu0 %v9247
    %9256 = vmatprep.subr.mxu0 0.0
    %9257 = vmatpush1.msra.mxu0 %v9248
    %9258 = vmatprep.subr.mxu0 0.0
    %9259 = vmatpush1.msra.mxu0 %v9249
    %9260 = vmatprep.subr.mxu0 0.0
    %9261 = vmatpush1.msra.mxu0 %v9250
    %9262 = vmatprep.subr.mxu0 0.0
    %9263 = vmatpush1.msra.mxu0 0.0
    %9264 = vmatprep.subr.mxu0 0.0
    %9265 = vmatpush1.msra.mxu0 0.0
    %9266 = vmatprep.subr.mxu0 0.0
    %9267 = vmatpush1.msra.mxu0 0.0
    %9268 = vmatprep.subr.mxu0 0.0
    %9269 = vmatpush1.msra.mxu0 0.0
    %9270 = vmatprep.subr.mxu0 0.0
    %9271 = vmatpush1.msra.mxu0 0.0
    %9272 = vmatprep.subr.mxu0 0.0
    %9273 = vmatpush1.msra.mxu0 0.0
    %9274 = vmatprep.subr.mxu0 0.0
    %9275 = vmatpush1.msra.mxu0 0.0
    %9276 = vmatprep.subr.mxu0 0.0
    %9277 = vmatpush1.msra.mxu0 0.0
    %9278 = vmatprep.subr.mxu0 0.0
    %9279 = vmatpush1.msra.mxu0 0.0
    %9280 = vmatprep.subr.mxu0 0.0
    %9281 = vmatpush1.msra.mxu0 0.0
    %9282 = vmatprep.subr.mxu0 0.0
    %9283 = vmatpush1.msra.mxu0 0.0
    %9284 = vmatprep.subr.mxu0 0.0
    %9285 = vmatpush1.msra.mxu0 0.0
    %9286 = vmatprep.subr.mxu0 0.0
    %9287 = vmatpush1.msra.mxu0 0.0
    %9288 = vmatprep.subr.mxu0 0.0
    %9289 = vmatpush1.msra.mxu0 0.0
    %9290 = vmatprep.subr.mxu0 0.0
    %9291 = vmatpush1.msra.mxu0 0.0
    %9292 = vmatprep.subr.mxu0 0.0
    %9293 = vmatpush1.msra.mxu0 0.0
    %9294 = vmatprep.subr.mxu0 0.0
    %9295 = vmatpush1.msra.mxu0 0.0
    %9296 = vmatprep.subr.mxu0 0.0
    %9297 = vmatpush1.msra.mxu0 0.0
    %9298 = vmatprep.subr.mxu0 0.0
    %9299 = vmatpush1.msra.mxu0 0.0
    %9300 = vmatprep.subr.mxu0 0.0
    %9301 = vmatpush1.msra.mxu0 0.0
    %9302 = vmatprep.subr.mxu0 0.0
    %9303 = vmatpush1.msra.mxu0 0.0
    %9304 = vmatprep.subr.mxu0 0.0
    %9305 = vmatpush1.msra.mxu0 0.0
    %9306 = vmatprep.subr.mxu0 0.0
    %9307 = vmatpush1.msra.mxu0 0.0
    %9308 = vmatprep.subr.mxu0 0.0
    %9309 = vmatpush1.msra.mxu0 0.0
    %9310 = vmatprep.subr.mxu0 0.0
    %9311 = vmatpush1.msra.mxu0 0.0
    %9312 = vmatprep.subr.mxu0 0.0
    %9313 = vmatpush1.msra.mxu0 0.0
    %9314 = vmatprep.subr.mxu0 0.0
    %9315 = vmatpush1.msra.mxu0 0.0
    %9316 = vmatprep.subr.mxu0 0.0
    %9317 = vmatpush1.msra.mxu0 0.0
    %9318 = vmatprep.mubr.f32.mxu0 0.0
    %9319 = vmatmul.mubr.f32.gmra.mrb[0].mxu0 %v9252
    %v9320 = vpop.f32.mrb[0].mxu0
    %v9321 = vadd.f32 0.0, %v9320
    %v9322 = vpop.f32.mrb[0].mxu0
    %9323 = vdwg.mxu0
    %v9324 = vadd.f32 %v9243, %v9321
    %s9325 = scalar_lea.vmem %s6, 96
    %v9326 = vld [vmem:[%s9325] sm:$0xff]
    %v9327 = vld [vmem:[%s9325 + $0x8] sm:$0xff]
    %v9328 = vld [vmem:[%s9325 + $0x10] sm:$0xff]
    %v9329 = vld [vmem:[%s9325 + $0x18] sm:$0xff]
    %v9330 = vrot.slane %v9087, 6
    %v9331 = vsel %vm184, %v9330, 0
    %9333 = vmatprep.subr.mxu0 0.0
    %9334 = vmatpush1.msra.mxu0 %v9326
    %9335 = vmatprep.subr.mxu0 0.0
    %9336 = vmatpush1.msra.mxu0 %v9327
    %9337 = vmatprep.subr.mxu0 0.0
    %9338 = vmatpush1.msra.mxu0 %v9328
    %9339 = vmatprep.subr.mxu0 0.0
    %9340 = vmatpush1.msra.mxu0 %v9329
    %9341 = vmatprep.subr.mxu0 0.0
    %9342 = vmatpush1.msra.mxu0 0.0
    %9343 = vmatprep.subr.mxu0 0.0
    %9344 = vmatpush1.msra.mxu0 0.0
    %9345 = vmatprep.subr.mxu0 0.0
    %9346 = vmatpush1.msra.mxu0 0.0
    %9347 = vmatprep.subr.mxu0 0.0
    %9348 = vmatpush1.msra.mxu0 0.0
    %9349 = vmatprep.subr.mxu0 0.0
    %9350 = vmatpush1.msra.mxu0 0.0
    %9351 = vmatprep.subr.mxu0 0.0
    %9352 = vmatpush1.msra.mxu0 0.0
    %9353 = vmatprep.subr.mxu0 0.0
    %9354 = vmatpush1.msra.mxu0 0.0
    %9355 = vmatprep.subr.mxu0 0.0
    %9356 = vmatpush1.msra.mxu0 0.0
    %9357 = vmatprep.subr.mxu0 0.0
    %9358 = vmatpush1.msra.mxu0 0.0
    %9359 = vmatprep.subr.mxu0 0.0
    %9360 = vmatpush1.msra.mxu0 0.0
    %9361 = vmatprep.subr.mxu0 0.0
    %9362 = vmatpush1.msra.mxu0 0.0
    %9363 = vmatprep.subr.mxu0 0.0
    %9364 = vmatpush1.msra.mxu0 0.0
    %9365 = vmatprep.subr.mxu0 0.0
    %9366 = vmatpush1.msra.mxu0 0.0
    %9367 = vmatprep.subr.mxu0 0.0
    %9368 = vmatpush1.msra.mxu0 0.0
    %9369 = vmatprep.subr.mxu0 0.0
    %9370 = vmatpush1.msra.mxu0 0.0
    %9371 = vmatprep.subr.mxu0 0.0
    %9372 = vmatpush1.msra.mxu0 0.0
    %9373 = vmatprep.subr.mxu0 0.0
    %9374 = vmatpush1.msra.mxu0 0.0
    %9375 = vmatprep.subr.mxu0 0.0
    %9376 = vmatpush1.msra.mxu0 0.0
    %9377 = vmatprep.subr.mxu0 0.0
    %9378 = vmatpush1.msra.mxu0 0.0
    %9379 = vmatprep.subr.mxu0 0.0
    %9380 = vmatpush1.msra.mxu0 0.0
    %9381 = vmatprep.subr.mxu0 0.0
    %9382 = vmatpush1.msra.mxu0 0.0
    %9383 = vmatprep.subr.mxu0 0.0
    %9384 = vmatpush1.msra.mxu0 0.0
    %9385 = vmatprep.subr.mxu0 0.0
    %9386 = vmatpush1.msra.mxu0 0.0
    %9387 = vmatprep.subr.mxu0 0.0
    %9388 = vmatpush1.msra.mxu0 0.0
    %9389 = vmatprep.subr.mxu0 0.0
    %9390 = vmatpush1.msra.mxu0 0.0
    %9391 = vmatprep.subr.mxu0 0.0
    %9392 = vmatpush1.msra.mxu0 0.0
    %9393 = vmatprep.subr.mxu0 0.0
    %9394 = vmatpush1.msra.mxu0 0.0
    %9395 = vmatprep.subr.mxu0 0.0
    %9396 = vmatpush1.msra.mxu0 0.0
    %9397 = vmatprep.mubr.f32.mxu0 0.0
    %9398 = vmatmul.mubr.f32.gmra.mrb[0].mxu0 %v9331
    %v9399 = vpop.f32.mrb[0].mxu0
    %v9400 = vadd.f32 0.0, %v9399
    %v9401 = vpop.f32.mrb[0].mxu0
    %9402 = vdwg.mxu0
    %v9403 = vadd.f32 %v9324, %v9400
    %s9404 = scalar_lea.vmem %s6, 128
    %v9405 = vld [vmem:[%s9404] sm:$0xff]
    %v9406 = vld [vmem:[%s9404 + $0x8] sm:$0xff]
    %v9407 = vld [vmem:[%s9404 + $0x10] sm:$0xff]
    %v9408 = vld [vmem:[%s9404 + $0x18] sm:$0xff]
    %v9410 = vsel %vm184, %v9088, 0
    %9412 = vmatprep.subr.mxu0 0.0
    %9413 = vmatpush1.msra.mxu0 %v9405
    %9414 = vmatprep.subr.mxu0 0.0
    %9415 = vmatpush1.msra.mxu0 %v9406
    %9416 = vmatprep.subr.mxu0 0.0
    %9417 = vmatpush1.msra.mxu0 %v9407
    %9418 = vmatprep.subr.mxu0 0.0
    %9419 = vmatpush1.msra.mxu0 %v9408
    %9420 = vmatprep.subr.mxu0 0.0
    %9421 = vmatpush1.msra.mxu0 0.0
    %9422 = vmatprep.subr.mxu0 0.0
    %9423 = vmatpush1.msra.mxu0 0.0
    %9424 = vmatprep.subr.mxu0 0.0
    %9425 = vmatpush1.msra.mxu0 0.0
    %9426 = vmatprep.subr.mxu0 0.0
    %9427 = vmatpush1.msra.mxu0 0.0
    %9428 = vmatprep.subr.mxu0 0.0
    %9429 = vmatpush1.msra.mxu0 0.0
    %9430 = vmatprep.subr.mxu0 0.0
    %9431 = vmatpush1.msra.mxu0 0.0
    %9432 = vmatprep.subr.mxu0 0.0
    %9433 = vmatpush1.msra.mxu0 0.0
    %9434 = vmatprep.subr.mxu0 0.0
    %9435 = vmatpush1.msra.mxu0 0.0
    %9436 = vmatprep.subr.mxu0 0.0
    %9437 = vmatpush1.msra.mxu0 0.0
    %9438 = vmatprep.subr.mxu0 0.0
    %9439 = vmatpush1.msra.mxu0 0.0
    %9440 = vmatprep.subr.mxu0 0.0
    %9441 = vmatpush1.msra.mxu0 0.0
    %9442 = vmatprep.subr.mxu0 0.0
    %9443 = vmatpush1.msra.mxu0 0.0
    %9444 = vmatprep.subr.mxu0 0.0
    %9445 = vmatpush1.msra.mxu0 0.0
    %9446 = vmatprep.subr.mxu0 0.0
    %9447 = vmatpush1.msra.mxu0 0.0
    %9448 = vmatprep.subr.mxu0 0.0
    %9449 = vmatpush1.msra.mxu0 0.0
    %9450 = vmatprep.subr.mxu0 0.0
    %9451 = vmatpush1.msra.mxu0 0.0
    %9452 = vmatprep.subr.mxu0 0.0
    %9453 = vmatpush1.msra.mxu0 0.0
    %9454 = vmatprep.subr.mxu0 0.0
    %9455 = vmatpush1.msra.mxu0 0.0
    %9456 = vmatprep.subr.mxu0 0.0
    %9457 = vmatpush1.msra.mxu0 0.0
    %9458 = vmatprep.subr.mxu0 0.0
    %9459 = vmatpush1.msra.mxu0 0.0
    %9460 = vmatprep.subr.mxu0 0.0
    %9461 = vmatpush1.msra.mxu0 0.0
    %9462 = vmatprep.subr.mxu0 0.0
    %9463 = vmatpush1.msra.mxu0 0.0
    %9464 = vmatprep.subr.mxu0 0.0
    %9465 = vmatpush1.msra.mxu0 0.0
    %9466 = vmatprep.subr.mxu0 0.0
    %9467 = vmatpush1.msra.mxu0 0.0
    %9468 = vmatprep.subr.mxu0 0.0
    %9469 = vmatpush1.msra.mxu0 0.0
    %9470 = vmatprep.subr.mxu0 0.0
    %9471 = vmatpush1.msra.mxu0 0.0
    %9472 = vmatprep.subr.mxu0 0.0
    %9473 = vmatpush1.msra.mxu0 0.0
    %9474 = vmatprep.subr.mxu0 0.0
    %9475 = vmatpush1.msra.mxu0 0.0
    %9476 = vmatprep.mubr.f32.mxu0 0.0
    %9477 = vmatmul.mubr.f32.gmra.mrb[0].mxu0 %v9410
    %v9478 = vpop.f32.mrb[0].mxu0
    %v9479 = vadd.f32 0.0, %v9478
    %v9480 = vpop.f32.mrb[0].mxu0
    %9481 = vdwg.mxu0
    %v9482 = vadd.f32 %v9403, %v9479
    %s9483 = scalar_lea.vmem %s6, 160
    %v9484 = vld [vmem:[%s9483] sm:$0xff]
    %v9485 = vld [vmem:[%s9483 + $0x8] sm:$0xff]
    %v9486 = vld [vmem:[%s9483 + $0x10] sm:$0xff]
    %v9487 = vld [vmem:[%s9483 + $0x18] sm:$0xff]
    %v9488 = vrot.slane %v9088, 2
    %v9489 = vsel %vm184, %v9488, 0
    %9491 = vmatprep.subr.mxu0 0.0
    %9492 = vmatpush1.msra.mxu0 %v9484
    %9493 = vmatprep.subr.mxu0 0.0
    %9494 = vmatpush1.msra.mxu0 %v9485
    %9495 = vmatprep.subr.mxu0 0.0
    %9496 = vmatpush1.msra.mxu0 %v9486
    %9497 = vmatprep.subr.mxu0 0.0
    %9498 = vmatpush1.msra.mxu0 %v9487
    %9499 = vmatprep.subr.mxu0 0.0
    %9500 = vmatpush1.msra.mxu0 0.0
    %9501 = vmatprep.subr.mxu0 0.0
    %9502 = vmatpush1.msra.mxu0 0.0
    %9503 = vmatprep.subr.mxu0 0.0
    %9504 = vmatpush1.msra.mxu0 0.0
    %9505 = vmatprep.subr.mxu0 0.0
    %9506 = vmatpush1.msra.mxu0 0.0
    %9507 = vmatprep.subr.mxu0 0.0
    %9508 = vmatpush1.msra.mxu0 0.0
    %9509 = vmatprep.subr.mxu0 0.0
    %9510 = vmatpush1.msra.mxu0 0.0
    %9511 = vmatprep.subr.mxu0 0.0
    %9512 = vmatpush1.msra.mxu0 0.0
    %9513 = vmatprep.subr.mxu0 0.0
    %9514 = vmatpush1.msra.mxu0 0.0
    %9515 = vmatprep.subr.mxu0 0.0
    %9516 = vmatpush1.msra.mxu0 0.0
    %9517 = vmatprep.subr.mxu0 0.0
    %9518 = vmatpush1.msra.mxu0 0.0
    %9519 = vmatprep.subr.mxu0 0.0
    %9520 = vmatpush1.msra.mxu0 0.0
    %9521 = vmatprep.subr.mxu0 0.0
    %9522 = vmatpush1.msra.mxu0 0.0
    %9523 = vmatprep.subr.mxu0 0.0
    %9524 = vmatpush1.msra.mxu0 0.0
    %9525 = vmatprep.subr.mxu0 0.0
    %9526 = vmatpush1.msra.mxu0 0.0
    %9527 = vmatprep.subr.mxu0 0.0
    %9528 = vmatpush1.msra.mxu0 0.0
    %9529 = vmatprep.subr.mxu0 0.0
    %9530 = vmatpush1.msra.mxu0 0.0
    %9531 = vmatprep.subr.mxu0 0.0
    %9532 = vmatpush1.msra.mxu0 0.0
    %9533 = vmatprep.subr.mxu0 0.0
    %9534 = vmatpush1.msra.mxu0 0.0
    %9535 = vmatprep.subr.mxu0 0.0
    %9536 = vmatpush1.msra.mxu0 0.0
    %9537 = vmatprep.subr.mxu0 0.0
    %9538 = vmatpush1.msra.mxu0 0.0
    %9539 = vmatprep.subr.mxu0 0.0
    %9540 = vmatpush1.msra.mxu0 0.0
    %9541 = vmatprep.subr.mxu0 0.0
    %9542 = vmatpush1.msra.mxu0 0.0
    %9543 = vmatprep.subr.mxu0 0.0
    %9544 = vmatpush1.msra.mxu0 0.0
    %9545 = vmatprep.subr.mxu0 0.0
    %9546 = vmatpush1.msra.mxu0 0.0
    %9547 = vmatprep.subr.mxu0 0.0
    %9548 = vmatpush1.msra.mxu0 0.0
    %9549 = vmatprep.subr.mxu0 0.0
    %9550 = vmatpush1.msra.mxu0 0.0
    %9551 = vmatprep.subr.mxu0 0.0
    %9552 = vmatpush1.msra.mxu0 0.0
    %9553 = vmatprep.subr.mxu0 0.0
    %9554 = vmatpush1.msra.mxu0 0.0
    %9555 = vmatprep.mubr.f32.mxu0 0.0
    %9556 = vmatmul.mubr.f32.gmra.mrb[0].mxu0 %v9489
    %v9557 = vpop.f32.mrb[0].mxu0
    %v9558 = vadd.f32 0.0, %v9557
    %v9559 = vpop.f32.mrb[0].mxu0
    %9560 = vdwg.mxu0
    %v9561 = vadd.f32 %v9482, %v9558
    %s9562 = scalar_lea.vmem %s6, 192
    %v9563 = vld [vmem:[%s9562] sm:$0xff]
    %v9564 = vld [vmem:[%s9562 + $0x8] sm:$0xff]
    %v9565 = vld [vmem:[%s9562 + $0x10] sm:$0xff]
    %v9566 = vld [vmem:[%s9562 + $0x18] sm:$0xff]
    %v9567 = vrot.slane %v9088, 4
    %v9568 = vsel %vm184, %v9567, 0
    %9570 = vmatprep.subr.mxu0 0.0
    %9571 = vmatpush1.msra.mxu0 %v9563
    %9572 = vmatprep.subr.mxu0 0.0
    %9573 = vmatpush1.msra.mxu0 %v9564
    %9574 = vmatprep.subr.mxu0 0.0
    %9575 = vmatpush1.msra.mxu0 %v9565
    %9576 = vmatprep.subr.mxu0 0.0
    %9577 = vmatpush1.msra.mxu0 %v9566
    %9578 = vmatprep.subr.mxu0 0.0
    %9579 = vmatpush1.msra.mxu0 0.0
    %9580 = vmatprep.subr.mxu0 0.0
    %9581 = vmatpush1.msra.mxu0 0.0
    %9582 = vmatprep.subr.mxu0 0.0
    %9583 = vmatpush1.msra.mxu0 0.0
    %9584 = vmatprep.subr.mxu0 0.0
    %9585 = vmatpush1.msra.mxu0 0.0
    %9586 = vmatprep.subr.mxu0 0.0
    %9587 = vmatpush1.msra.mxu0 0.0
    %9588 = vmatprep.subr.mxu0 0.0
    %9589 = vmatpush1.msra.mxu0 0.0
    %9590 = vmatprep.subr.mxu0 0.0
    %9591 = vmatpush1.msra.mxu0 0.0
    %9592 = vmatprep.subr.mxu0 0.0
    %9593 = vmatpush1.msra.mxu0 0.0
    %9594 = vmatprep.subr.mxu0 0.0
    %9595 = vmatpush1.msra.mxu0 0.0
    %9596 = vmatprep.subr.mxu0 0.0
    %9597 = vmatpush1.msra.mxu0 0.0
    %9598 = vmatprep.subr.mxu0 0.0
    %9599 = vmatpush1.msra.mxu0 0.0
    %9600 = vmatprep.subr.mxu0 0.0
    %9601 = vmatpush1.msra.mxu0 0.0
    %9602 = vmatprep.subr.mxu0 0.0
    %9603 = vmatpush1.msra.mxu0 0.0
    %9604 = vmatprep.subr.mxu0 0.0
    %9605 = vmatpush1.msra.mxu0 0.0
    %9606 = vmatprep.subr.mxu0 0.0
    %9607 = vmatpush1.msra.mxu0 0.0
    %9608 = vmatprep.subr.mxu0 0.0
    %9609 = vmatpush1.msra.mxu0 0.0
    %9610 = vmatprep.subr.mxu0 0.0
    %9611 = vmatpush1.msra.mxu0 0.0
    %9612 = vmatprep.subr.mxu0 0.0
    %9613 = vmatpush1.msra.mxu0 0.0
    %9614 = vmatprep.subr.mxu0 0.0
    %9615 = vmatpush1.msra.mxu0 0.0
    %9616 = vmatprep.subr.mxu0 0.0
    %9617 = vmatpush1.msra.mxu0 0.0
    %9618 = vmatprep.subr.mxu0 0.0
    %9619 = vmatpush1.msra.mxu0 0.0
    %9620 = vmatprep.subr.mxu0 0.0
    %9621 = vmatpush1.msra.mxu0 0.0
    %9622 = vmatprep.subr.mxu0 0.0
    %9623 = vmatpush1.msra.mxu0 0.0
    %9624 = vmatprep.subr.mxu0 0.0
    %9625 = vmatpush1.msra.mxu0 0.0
    %9626 = vmatprep.subr.mxu0 0.0
    %9627 = vmatpush1.msra.mxu0 0.0
    %9628 = vmatprep.subr.mxu0 0.0
    %9629 = vmatpush1.msra.mxu0 0.0
    %9630 = vmatprep.subr.mxu0 0.0
    %9631 = vmatpush1.msra.mxu0 0.0
    %9632 = vmatprep.subr.mxu0 0.0
    %9633 = vmatpush1.msra.mxu0 0.0
    %9634 = vmatprep.mubr.f32.mxu0 0.0
    %9635 = vmatmul.mubr.f32.gmra.mrb[0].mxu0 %v9568
    %v9636 = vpop.f32.mrb[0].mxu0
    %v9637 = vadd.f32 0.0, %v9636
    %v9638 = vpop.f32.mrb[0].mxu0
    %9639 = vdwg.mxu0
    %v9640 = vadd.f32 %v9561, %v9637
    %s9641 = scalar_lea.vmem %s6, 224
    %v9642 = vld [vmem:[%s9641] sm:$0xff]
    %v9643 = vld [vmem:[%s9641 + $0x8] sm:$0xff]
    %v9644 = vld [vmem:[%s9641 + $0x10] sm:$0xff]
    %v9645 = vld [vmem:[%s9641 + $0x18] sm:$0xff]
    %v9646 = vrot.slane %v9088, 6
    %v9647 = vsel %vm184, %v9646, 0
    %9649 = vmatprep.subr.mxu0 0.0
    %9650 = vmatpush1.msra.mxu0 %v9642
    %9651 = vmatprep.subr.mxu0 0.0
    %9652 = vmatpush1.msra.mxu0 %v9643
    %9653 = vmatprep.subr.mxu0 0.0
    %9654 = vmatpush1.msra.mxu0 %v9644
    %9655 = vmatprep.subr.mxu0 0.0
    %9656 = vmatpush1.msra.mxu0 %v9645
    %9657 = vmatprep.subr.mxu0 0.0
    %9658 = vmatpush1.msra.mxu0 0.0
    %9659 = vmatprep.subr.mxu0 0.0
    %9660 = vmatpush1.msra.mxu0 0.0
    %9661 = vmatprep.subr.mxu0 0.0
    %9662 = vmatpush1.msra.mxu0 0.0
    %9663 = vmatprep.subr.mxu0 0.0
    %9664 = vmatpush1.msra.mxu0 0.0
    %9665 = vmatprep.subr.mxu0 0.0
    %9666 = vmatpush1.msra.mxu0 0.0
    %9667 = vmatprep.subr.mxu0 0.0
    %9668 = vmatpush1.msra.mxu0 0.0
    %9669 = vmatprep.subr.mxu0 0.0
    %9670 = vmatpush1.msra.mxu0 0.0
    %9671 = vmatprep.subr.mxu0 0.0
    %9672 = vmatpush1.msra.mxu0 0.0
    %9673 = vmatprep.subr.mxu0 0.0
    %9674 = vmatpush1.msra.mxu0 0.0
    %9675 = vmatprep.subr.mxu0 0.0
    %9676 = vmatpush1.msra.mxu0 0.0
    %9677 = vmatprep.subr.mxu0 0.0
    %9678 = vmatpush1.msra.mxu0 0.0
    %9679 = vmatprep.subr.mxu0 0.0
    %9680 = vmatpush1.msra.mxu0 0.0
    %9681 = vmatprep.subr.mxu0 0.0
    %9682 = vmatpush1.msra.mxu0 0.0
    %9683 = vmatprep.subr.mxu0 0.0
    %9684 = vmatpush1.msra.mxu0 0.0
    %9685 = vmatprep.subr.mxu0 0.0
    %9686 = vmatpush1.msra.mxu0 0.0
    %9687 = vmatprep.subr.mxu0 0.0
    %9688 = vmatpush1.msra.mxu0 0.0
    %9689 = vmatprep.subr.mxu0 0.0
    %9690 = vmatpush1.msra.mxu0 0.0
    %9691 = vmatprep.subr.mxu0 0.0
    %9692 = vmatpush1.msra.mxu0 0.0
    %9693 = vmatprep.subr.mxu0 0.0
    %9694 = vmatpush1.msra.mxu0 0.0
    %9695 = vmatprep.subr.mxu0 0.0
    %9696 = vmatpush1.msra.mxu0 0.0
    %9697 = vmatprep.subr.mxu0 0.0
    %9698 = vmatpush1.msra.mxu0 0.0
    %9699 = vmatprep.subr.mxu0 0.0
    %9700 = vmatpush1.msra.mxu0 0.0
    %9701 = vmatprep.subr.mxu0 0.0
    %9702 = vmatpush1.msra.mxu0 0.0
    %9703 = vmatprep.subr.mxu0 0.0
    %9704 = vmatpush1.msra.mxu0 0.0
    %9705 = vmatprep.subr.mxu0 0.0
    %9706 = vmatpush1.msra.mxu0 0.0
    %9707 = vmatprep.subr.mxu0 0.0
    %9708 = vmatpush1.msra.mxu0 0.0
    %9709 = vmatprep.subr.mxu0 0.0
    %9710 = vmatpush1.msra.mxu0 0.0
    %9711 = vmatprep.subr.mxu0 0.0
    %9712 = vmatpush1.msra.mxu0 0.0
    %9713 = vmatprep.mubr.f32.mxu0 0.0
    %9714 = vmatmul.mubr.f32.gmra.mrb[0].mxu0 %v9647
    %v9715 = vpop.f32.mrb[0].mxu0
    %v9716 = vadd.f32 0.0, %v9715
    %v9717 = vpop.f32.mrb[0].mxu0
    %9718 = vdwg.mxu0
    %v9719 = vadd.f32 %v9640, %v9716
    %s9720 = scalar_lea.vmem %s6, 256
    %v9721 = vld [vmem:[%s9720] sm:$0xff]
    %v9722 = vld [vmem:[%s9720 + $0x8] sm:$0xff]
    %v9723 = vld [vmem:[%s9720 + $0x10] sm:$0xff]
    %v9724 = vld [vmem:[%s9720 + $0x18] sm:$0xff]
    %v9726 = vsel %vm184, %v9089, 0
    %9728 = vmatprep.subr.mxu0 0.0
    %9729 = vmatpush1.msra.mxu0 %v9721
    %9730 = vmatprep.subr.mxu0 0.0
    %9731 = vmatpush1.msra.mxu0 %v9722
    %9732 = vmatprep.subr.mxu0 0.0
    %9733 = vmatpush1.msra.mxu0 %v9723
    %9734 = vmatprep.subr.mxu0 0.0
    %9735 = vmatpush1.msra.mxu0 %v9724
    %9736 = vmatprep.subr.mxu0 0.0
    %9737 = vmatpush1.msra.mxu0 0.0
    %9738 = vmatprep.subr.mxu0 0.0
    %9739 = vmatpush1.msra.mxu0 0.0
    %9740 = vmatprep.subr.mxu0 0.0
    %9741 = vmatpush1.msra.mxu0 0.0
    %9742 = vmatprep.subr.mxu0 0.0
    %9743 = vmatpush1.msra.mxu0 0.0
    %9744 = vmatprep.subr.mxu0 0.0
    %9745 = vmatpush1.msra.mxu0 0.0
    %9746 = vmatprep.subr.mxu0 0.0
    %9747 = vmatpush1.msra.mxu0 0.0
    %9748 = vmatprep.subr.mxu0 0.0
    %9749 = vmatpush1.msra.mxu0 0.0
    %9750 = vmatprep.subr.mxu0 0.0
    %9751 = vmatpush1.msra.mxu0 0.0
    %9752 = vmatprep.subr.mxu0 0.0
    %9753 = vmatpush1.msra.mxu0 0.0
    %9754 = vmatprep.subr.mxu0 0.0
    %9755 = vmatpush1.msra.mxu0 0.0
    %9756 = vmatprep.subr.mxu0 0.0
    %9757 = vmatpush1.msra.mxu0 0.0
    %9758 = vmatprep.subr.mxu0 0.0
    %9759 = vmatpush1.msra.mxu0 0.0
    %9760 = vmatprep.subr.mxu0 0.0
    %9761 = vmatpush1.msra.mxu0 0.0
    %9762 = vmatprep.subr.mxu0 0.0
    %9763 = vmatpush1.msra.mxu0 0.0
    %9764 = vmatprep.subr.mxu0 0.0
    %9765 = vmatpush1.msra.mxu0 0.0
    %9766 = vmatprep.subr.mxu0 0.0
    %9767 = vmatpush1.msra.mxu0 0.0
    %9768 = vmatprep.subr.mxu0 0.0
    %9769 = vmatpush1.msra.mxu0 0.0
    %9770 = vmatprep.subr.mxu0 0.0
    %9771 = vmatpush1.msra.mxu0 0.0
    %9772 = vmatprep.subr.mxu0 0.0
    %9773 = vmatpush1.msra.mxu0 0.0
    %9774 = vmatprep.subr.mxu0 0.0
    %9775 = vmatpush1.msra.mxu0 0.0
    %9776 = vmatprep.subr.mxu0 0.0
    %9777 = vmatpush1.msra.mxu0 0.0
    %9778 = vmatprep.subr.mxu0 0.0
    %9779 = vmatpush1.msra.mxu0 0.0
    %9780 = vmatprep.subr.mxu0 0.0
    %9781 = vmatpush1.msra.mxu0 0.0
    %9782 = vmatprep.subr.mxu0 0.0
    %9783 = vmatpush1.msra.mxu0 0.0
    %9784 = vmatprep.subr.mxu0 0.0
    %9785 = vmatpush1.msra.mxu0 0.0
    %9786 = vmatprep.subr.mxu0 0.0
    %9787 = vmatpush1.msra.mxu0 0.0
    %9788 = vmatprep.subr.mxu0 0.0
    %9789 = vmatpush1.msra.mxu0 0.0
    %9790 = vmatprep.subr.mxu0 0.0
    %9791 = vmatpush1.msra.mxu0 0.0
    %9792 = vmatprep.mubr.f32.mxu0 0.0
    %9793 = vmatmul.mubr.f32.gmra.mrb[0].mxu0 %v9726
    %v9794 = vpop.f32.mrb[0].mxu0
    %v9795 = vadd.f32 0.0, %v9794
    %v9796 = vpop.f32.mrb[0].mxu0
    %9797 = vdwg.mxu0
    %v9798 = vadd.f32 %v9719, %v9795
    %s9799 = scalar_lea.vmem %s6, 288
    %v9800 = vld [vmem:[%s9799] sm:$0xff]
    %v9801 = vld [vmem:[%s9799 + $0x8] sm:$0xff]
    %v9802 = vld [vmem:[%s9799 + $0x10] sm:$0xff]
    %v9803 = vld [vmem:[%s9799 + $0x18] sm:$0xff]
    %v9804 = vrot.slane %v9089, 2
    %v9805 = vsel %vm184, %v9804, 0
    %9807 = vmatprep.subr.mxu0 0.0
    %9808 = vmatpush1.msra.mxu0 %v9800
    %9809 = vmatprep.subr.mxu0 0.0
    %9810 = vmatpush1.msra.mxu0 %v9801
    %9811 = vmatprep.subr.mxu0 0.0
    %9812 = vmatpush1.msra.mxu0 %v9802
    %9813 = vmatprep.subr.mxu0 0.0
    %9814 = vmatpush1.msra.mxu0 %v9803
    %9815 = vmatprep.subr.mxu0 0.0
    %9816 = vmatpush1.msra.mxu0 0.0
    %9817 = vmatprep.subr.mxu0 0.0
    %9818 = vmatpush1.msra.mxu0 0.0
    %9819 = vmatprep.subr.mxu0 0.0
    %9820 = vmatpush1.msra.mxu0 0.0
    %9821 = vmatprep.subr.mxu0 0.0
    %9822 = vmatpush1.msra.mxu0 0.0
    %9823 = vmatprep.subr.mxu0 0.0
    %9824 = vmatpush1.msra.mxu0 0.0
    %9825 = vmatprep.subr.mxu0 0.0
    %9826 = vmatpush1.msra.mxu0 0.0
    %9827 = vmatprep.subr.mxu0 0.0
    %9828 = vmatpush1.msra.mxu0 0.0
    %9829 = vmatprep.subr.mxu0 0.0
    %9830 = vmatpush1.msra.mxu0 0.0
    %9831 = vmatprep.subr.mxu0 0.0
    %9832 = vmatpush1.msra.mxu0 0.0
    %9833 = vmatprep.subr.mxu0 0.0
    %9834 = vmatpush1.msra.mxu0 0.0
    %9835 = vmatprep.subr.mxu0 0.0
    %9836 = vmatpush1.msra.mxu0 0.0
    %9837 = vmatprep.subr.mxu0 0.0
    %9838 = vmatpush1.msra.mxu0 0.0
    %9839 = vmatprep.subr.mxu0 0.0
    %9840 = vmatpush1.msra.mxu0 0.0
    %9841 = vmatprep.subr.mxu0 0.0
    %9842 = vmatpush1.msra.mxu0 0.0
    %9843 = vmatprep.subr.mxu0 0.0
    %9844 = vmatpush1.msra.mxu0 0.0
    %9845 = vmatprep.subr.mxu0 0.0
    %9846 = vmatpush1.msra.mxu0 0.0
    %9847 = vmatprep.subr.mxu0 0.0
    %9848 = vmatpush1.msra.mxu0 0.0
    %9849 = vmatprep.subr.mxu0 0.0
    %9850 = vmatpush1.msra.mxu0 0.0
    %9851 = vmatprep.subr.mxu0 0.0
    %9852 = vmatpush1.msra.mxu0 0.0
    %9853 = vmatprep.subr.mxu0 0.0
    %9854 = vmatpush1.msra.mxu0 0.0
    %9855 = vmatprep.subr.mxu0 0.0
    %9856 = vmatpush1.msra.mxu0 0.0
    %9857 = vmatprep.subr.mxu0 0.0
    %9858 = vmatpush1.msra.mxu0 0.0
    %9859 = vmatprep.subr.mxu0 0.0
    %9860 = vmatpush1.msra.mxu0 0.0
    %9861 = vmatprep.subr.mxu0 0.0
    %9862 = vmatpush1.msra.mxu0 0.0
    %9863 = vmatprep.subr.mxu0 0.0
    %9864 = vmatpush1.msra.mxu0 0.0
    %9865 = vmatprep.subr.mxu0 0.0
    %9866 = vmatpush1.msra.mxu0 0.0
    %9867 = vmatprep.subr.mxu0 0.0
    %9868 = vmatpush1.msra.mxu0 0.0
    %9869 = vmatprep.subr.mxu0 0.0
    %9870 = vmatpush1.msra.mxu0 0.0
    %9871 = vmatprep.mubr.f32.mxu0 0.0
    %9872 = vmatmul.mubr.f32.gmra.mrb[0].mxu0 %v9805
    %v9873 = vpop.f32.mrb[0].mxu0
    %v9874 = vadd.f32 0.0, %v9873
    %v9875 = vpop.f32.mrb[0].mxu0
    %9876 = vdwg.mxu0
    %v9877 = vadd.f32 %v9798, %v9874
    %s9878 = scalar_lea.vmem %s6, 320
    %v9879 = vld [vmem:[%s9878] sm:$0xff]
    %v9880 = vld [vmem:[%s9878 + $0x8] sm:$0xff]
    %v9881 = vld [vmem:[%s9878 + $0x10] sm:$0xff]
    %v9882 = vld [vmem:[%s9878 + $0x18] sm:$0xff]
    %v9883 = vrot.slane %v9089, 4
    %v9884 = vsel %vm184, %v9883, 0
    %9886 = vmatprep.subr.mxu0 0.0
    %9887 = vmatpush1.msra.mxu0 %v9879
    %9888 = vmatprep.subr.mxu0 0.0
    %9889 = vmatpush1.msra.mxu0 %v9880
    %9890 = vmatprep.subr.mxu0 0.0
    %9891 = vmatpush1.msra.mxu0 %v9881
    %9892 = vmatprep.subr.mxu0 0.0
    %9893 = vmatpush1.msra.mxu0 %v9882
    %9894 = vmatprep.subr.mxu0 0.0
    %9895 = vmatpush1.msra.mxu0 0.0
    %9896 = vmatprep.subr.mxu0 0.0
    %9897 = vmatpush1.msra.mxu0 0.0
    %9898 = vmatprep.subr.mxu0 0.0
    %9899 = vmatpush1.msra.mxu0 0.0
    %9900 = vmatprep.subr.mxu0 0.0
    %9901 = vmatpush1.msra.mxu0 0.0
    %9902 = vmatprep.subr.mxu0 0.0
    %9903 = vmatpush1.msra.mxu0 0.0
    %9904 = vmatprep.subr.mxu0 0.0
    %9905 = vmatpush1.msra.mxu0 0.0
    %9906 = vmatprep.subr.mxu0 0.0
    %9907 = vmatpush1.msra.mxu0 0.0
    %9908 = vmatprep.subr.mxu0 0.0
    %9909 = vmatpush1.msra.mxu0 0.0
    %9910 = vmatprep.subr.mxu0 0.0
    %9911 = vmatpush1.msra.mxu0 0.0
    %9912 = vmatprep.subr.mxu0 0.0
    %9913 = vmatpush1.msra.mxu0 0.0
    %9914 = vmatprep.subr.mxu0 0.0
    %9915 = vmatpush1.msra.mxu0 0.0
    %9916 = vmatprep.subr.mxu0 0.0
    %9917 = vmatpush1.msra.mxu0 0.0
    %9918 = vmatprep.subr.mxu0 0.0
    %9919 = vmatpush1.msra.mxu0 0.0
    %9920 = vmatprep.subr.mxu0 0.0
    %9921 = vmatpush1.msra.mxu0 0.0
    %9922 = vmatprep.subr.mxu0 0.0
    %9923 = vmatpush1.msra.mxu0 0.0
    %9924 = vmatprep.subr.mxu0 0.0
    %9925 = vmatpush1.msra.mxu0 0.0
    %9926 = vmatprep.subr.mxu0 0.0
    %9927 = vmatpush1.msra.mxu0 0.0
    %9928 = vmatprep.subr.mxu0 0.0
    %9929 = vmatpush1.msra.mxu0 0.0
    %9930 = vmatprep.subr.mxu0 0.0
    %9931 = vmatpush1.msra.mxu0 0.0
    %9932 = vmatprep.subr.mxu0 0.0
    %9933 = vmatpush1.msra.mxu0 0.0
    %9934 = vmatprep.subr.mxu0 0.0
    %9935 = vmatpush1.msra.mxu0 0.0
    %9936 = vmatprep.subr.mxu0 0.0
    %9937 = vmatpush1.msra.mxu0 0.0
    %9938 = vmatprep.subr.mxu0 0.0
    %9939 = vmatpush1.msra.mxu0 0.0
    %9940 = vmatprep.subr.mxu0 0.0
    %9941 = vmatpush1.msra.mxu0 0.0
    %9942 = vmatprep.subr.mxu0 0.0
    %9943 = vmatpush1.msra.mxu0 0.0
    %9944 = vmatprep.subr.mxu0 0.0
    %9945 = vmatpush1.msra.mxu0 0.0
    %9946 = vmatprep.subr.mxu0 0.0
    %9947 = vmatpush1.msra.mxu0 0.0
    %9948 = vmatprep.subr.mxu0 0.0
    %9949 = vmatpush1.msra.mxu0 0.0
    %9950 = vmatprep.mubr.f32.mxu0 0.0
    %9951 = vmatmul.mubr.f32.gmra.mrb[0].mxu0 %v9884
    %v9952 = vpop.f32.mrb[0].mxu0
    %v9953 = vadd.f32 0.0, %v9952
    %v9954 = vpop.f32.mrb[0].mxu0
    %9955 = vdwg.mxu0
    %v9956 = vadd.f32 %v9877, %v9953
    %s9957 = scalar_lea.vmem %s6, 352
    %v9958 = vld [vmem:[%s9957] sm:$0xff]
    %v9959 = vld [vmem:[%s9957 + $0x8] sm:$0xff]
    %v9960 = vld [vmem:[%s9957 + $0x10] sm:$0xff]
    %v9961 = vld [vmem:[%s9957 + $0x18] sm:$0xff]
    %v9962 = vrot.slane %v9089, 6
    %v9963 = vsel %vm184, %v9962, 0
    %9965 = vmatprep.subr.mxu0 0.0
    %9966 = vmatpush1.msra.mxu0 %v9958
    %9967 = vmatprep.subr.mxu0 0.0
    %9968 = vmatpush1.msra.mxu0 %v9959
    %9969 = vmatprep.subr.mxu0 0.0
    %9970 = vmatpush1.msra.mxu0 %v9960
    %9971 = vmatprep.subr.mxu0 0.0
    %9972 = vmatpush1.msra.mxu0 %v9961
    %9973 = vmatprep.subr.mxu0 0.0
    %9974 = vmatpush1.msra.mxu0 0.0
    %9975 = vmatprep.subr.mxu0 0.0
    %9976 = vmatpush1.msra.mxu0 0.0
    %9977 = vmatprep.subr.mxu0 0.0
    %9978 = vmatpush1.msra.mxu0 0.0
    %9979 = vmatprep.subr.mxu0 0.0
    %9980 = vmatpush1.msra.mxu0 0.0
    %9981 = vmatprep.subr.mxu0 0.0
    %9982 = vmatpush1.msra.mxu0 0.0
    %9983 = vmatprep.subr.mxu0 0.0
    %9984 = vmatpush1.msra.mxu0 0.0
    %9985 = vmatprep.subr.mxu0 0.0
    %9986 = vmatpush1.msra.mxu0 0.0
    %9987 = vmatprep.subr.mxu0 0.0
    %9988 = vmatpush1.msra.mxu0 0.0
    %9989 = vmatprep.subr.mxu0 0.0
    %9990 = vmatpush1.msra.mxu0 0.0
    %9991 = vmatprep.subr.mxu0 0.0
    %9992 = vmatpush1.msra.mxu0 0.0
    %9993 = vmatprep.subr.mxu0 0.0
    %9994 = vmatpush1.msra.mxu0 0.0
    %9995 = vmatprep.subr.mxu0 0.0
    %9996 = vmatpush1.msra.mxu0 0.0
    %9997 = vmatprep.subr.mxu0 0.0
    %9998 = vmatpush1.msra.mxu0 0.0
    %9999 = vmatprep.subr.mxu0 0.0
    %10000 = vmatpush1.msra.mxu0 0.0
    %10001 = vmatprep.subr.mxu0 0.0
    %10002 = vmatpush1.msra.mxu0 0.0
    %10003 = vmatprep.subr.mxu0 0.0
    %10004 = vmatpush1.msra.mxu0 0.0
    %10005 = vmatprep.subr.mxu0 0.0
    %10006 = vmatpush1.msra.mxu0 0.0
    %10007 = vmatprep.subr.mxu0 0.0
    %10008 = vmatpush1.msra.mxu0 0.0
    %10009 = vmatprep.subr.mxu0 0.0
    %10010 = vmatpush1.msra.mxu0 0.0
    %10011 = vmatprep.subr.mxu0 0.0
    %10012 = vmatpush1.msra.mxu0 0.0
    %10013 = vmatprep.subr.mxu0 0.0
    %10014 = vmatpush1.msra.mxu0 0.0
    %10015 = vmatprep.subr.mxu0 0.0
    %10016 = vmatpush1.msra.mxu0 0.0
    %10017 = vmatprep.subr.mxu0 0.0
    %10018 = vmatpush1.msra.mxu0 0.0
    %10019 = vmatprep.subr.mxu0 0.0
    %10020 = vmatpush1.msra.mxu0 0.0
    %10021 = vmatprep.subr.mxu0 0.0
    %10022 = vmatpush1.msra.mxu0 0.0
    %10023 = vmatprep.subr.mxu0 0.0
    %10024 = vmatpush1.msra.mxu0 0.0
    %10025 = vmatprep.subr.mxu0 0.0
    %10026 = vmatpush1.msra.mxu0 0.0
    %10027 = vmatprep.subr.mxu0 0.0
    %10028 = vmatpush1.msra.mxu0 0.0
    %10029 = vmatprep.mubr.f32.mxu0 0.0
    %10030 = vmatmul.mubr.f32.gmra.mrb[0].mxu0 %v9963
    %v10031 = vpop.f32.mrb[0].mxu0
    %v10032 = vadd.f32 0.0, %v10031
    %v10033 = vpop.f32.mrb[0].mxu0
    %10034 = vdwg.mxu0
    %v10035 = vadd.f32 %v9956, %v10032
    %s10036 = scalar_lea.vmem %s6, 384
    %v10037 = vld [vmem:[%s10036] sm:$0xff]
    %v10038 = vld [vmem:[%s10036 + $0x8] sm:$0xff]
    %v10039 = vld [vmem:[%s10036 + $0x10] sm:$0xff]
    %v10040 = vld [vmem:[%s10036 + $0x18] sm:$0xff]
    %v10042 = vsel %vm184, %v9090, 0
    %10044 = vmatprep.subr.mxu0 0.0
    %10045 = vmatpush1.msra.mxu0 %v10037
    %10046 = vmatprep.subr.mxu0 0.0
    %10047 = vmatpush1.msra.mxu0 %v10038
    %10048 = vmatprep.subr.mxu0 0.0
    %10049 = vmatpush1.msra.mxu0 %v10039
    %10050 = vmatprep.subr.mxu0 0.0
    %10051 = vmatpush1.msra.mxu0 %v10040
    %10052 = vmatprep.subr.mxu0 0.0
    %10053 = vmatpush1.msra.mxu0 0.0
    %10054 = vmatprep.subr.mxu0 0.0
    %10055 = vmatpush1.msra.mxu0 0.0
    %10056 = vmatprep.subr.mxu0 0.0
    %10057 = vmatpush1.msra.mxu0 0.0
    %10058 = vmatprep.subr.mxu0 0.0
    %10059 = vmatpush1.msra.mxu0 0.0
    %10060 = vmatprep.subr.mxu0 0.0
    %10061 = vmatpush1.msra.mxu0 0.0
    %10062 = vmatprep.subr.mxu0 0.0
    %10063 = vmatpush1.msra.mxu0 0.0
    %10064 = vmatprep.subr.mxu0 0.0
    %10065 = vmatpush1.msra.mxu0 0.0
    %10066 = vmatprep.subr.mxu0 0.0
    %10067 = vmatpush1.msra.mxu0 0.0
    %10068 = vmatprep.subr.mxu0 0.0
    %10069 = vmatpush1.msra.mxu0 0.0
    %10070 = vmatprep.subr.mxu0 0.0
    %10071 = vmatpush1.msra.mxu0 0.0
    %10072 = vmatprep.subr.mxu0 0.0
    %10073 = vmatpush1.msra.mxu0 0.0
    %10074 = vmatprep.subr.mxu0 0.0
    %10075 = vmatpush1.msra.mxu0 0.0
    %10076 = vmatprep.subr.mxu0 0.0
    %10077 = vmatpush1.msra.mxu0 0.0
    %10078 = vmatprep.subr.mxu0 0.0
    %10079 = vmatpush1.msra.mxu0 0.0
    %10080 = vmatprep.subr.mxu0 0.0
    %10081 = vmatpush1.msra.mxu0 0.0
    %10082 = vmatprep.subr.mxu0 0.0
    %10083 = vmatpush1.msra.mxu0 0.0
    %10084 = vmatprep.subr.mxu0 0.0
    %10085 = vmatpush1.msra.mxu0 0.0
    %10086 = vmatprep.subr.mxu0 0.0
    %10087 = vmatpush1.msra.mxu0 0.0
    %10088 = vmatprep.subr.mxu0 0.0
    %10089 = vmatpush1.msra.mxu0 0.0
    %10090 = vmatprep.subr.mxu0 0.0
    %10091 = vmatpush1.msra.mxu0 0.0
    %10092 = vmatprep.subr.mxu0 0.0
    %10093 = vmatpush1.msra.mxu0 0.0
    %10094 = vmatprep.subr.mxu0 0.0
    %10095 = vmatpush1.msra.mxu0 0.0
    %10096 = vmatprep.subr.mxu0 0.0
    %10097 = vmatpush1.msra.mxu0 0.0
    %10098 = vmatprep.subr.mxu0 0.0
    %10099 = vmatpush1.msra.mxu0 0.0
    %10100 = vmatprep.subr.mxu0 0.0
    %10101 = vmatpush1.msra.mxu0 0.0
    %10102 = vmatprep.subr.mxu0 0.0
    %10103 = vmatpush1.msra.mxu0 0.0
    %10104 = vmatprep.subr.mxu0 0.0
    %10105 = vmatpush1.msra.mxu0 0.0
    %10106 = vmatprep.subr.mxu0 0.0
    %10107 = vmatpush1.msra.mxu0 0.0
    %10108 = vmatprep.mubr.f32.mxu0 0.0
    %10109 = vmatmul.mubr.f32.gmra.mrb[0].mxu0 %v10042
    %v10110 = vpop.f32.mrb[0].mxu0
    %v10111 = vadd.f32 0.0, %v10110
    %v10112 = vpop.f32.mrb[0].mxu0
    %10113 = vdwg.mxu0
    %v10114 = vadd.f32 %v10035, %v10111
    %s10115 = scalar_lea.vmem %s6, 416
    %v10116 = vld [vmem:[%s10115] sm:$0xff]
    %v10117 = vld [vmem:[%s10115 + $0x8] sm:$0xff]
    %v10118 = vld [vmem:[%s10115 + $0x10] sm:$0xff]
    %v10119 = vld [vmem:[%s10115 + $0x18] sm:$0xff]
    %v10120 = vrot.slane %v9090, 2
    %v10121 = vsel %vm184, %v10120, 0
    %10123 = vmatprep.subr.mxu0 0.0
    %10124 = vmatpush1.msra.mxu0 %v10116
    %10125 = vmatprep.subr.mxu0 0.0
    %10126 = vmatpush1.msra.mxu0 %v10117
    %10127 = vmatprep.subr.mxu0 0.0
    %10128 = vmatpush1.msra.mxu0 %v10118
    %10129 = vmatprep.subr.mxu0 0.0
    %10130 = vmatpush1.msra.mxu0 %v10119
    %10131 = vmatprep.subr.mxu0 0.0
    %10132 = vmatpush1.msra.mxu0 0.0
    %10133 = vmatprep.subr.mxu0 0.0
    %10134 = vmatpush1.msra.mxu0 0.0
    %10135 = vmatprep.subr.mxu0 0.0
    %10136 = vmatpush1.msra.mxu0 0.0
    %10137 = vmatprep.subr.mxu0 0.0
    %10138 = vmatpush1.msra.mxu0 0.0
    %10139 = vmatprep.subr.mxu0 0.0
    %10140 = vmatpush1.msra.mxu0 0.0
    %10141 = vmatprep.subr.mxu0 0.0
    %10142 = vmatpush1.msra.mxu0 0.0
    %10143 = vmatprep.subr.mxu0 0.0
    %10144 = vmatpush1.msra.mxu0 0.0
    %10145 = vmatprep.subr.mxu0 0.0
    %10146 = vmatpush1.msra.mxu0 0.0
    %10147 = vmatprep.subr.mxu0 0.0
    %10148 = vmatpush1.msra.mxu0 0.0
    %10149 = vmatprep.subr.mxu0 0.0
    %10150 = vmatpush1.msra.mxu0 0.0
    %10151 = vmatprep.subr.mxu0 0.0
    %10152 = vmatpush1.msra.mxu0 0.0
    %10153 = vmatprep.subr.mxu0 0.0
    %10154 = vmatpush1.msra.mxu0 0.0
    %10155 = vmatprep.subr.mxu0 0.0
    %10156 = vmatpush1.msra.mxu0 0.0
    %10157 = vmatprep.subr.mxu0 0.0
    %10158 = vmatpush1.msra.mxu0 0.0
    %10159 = vmatprep.subr.mxu0 0.0
    %10160 = vmatpush1.msra.mxu0 0.0
    %10161 = vmatprep.subr.mxu0 0.0
    %10162 = vmatpush1.msra.mxu0 0.0
    %10163 = vmatprep.subr.mxu0 0.0
    %10164 = vmatpush1.msra.mxu0 0.0
    %10165 = vmatprep.subr.mxu0 0.0
    %10166 = vmatpush1.msra.mxu0 0.0
    %10167 = vmatprep.subr.mxu0 0.0
    %10168 = vmatpush1.msra.mxu0 0.0
    %10169 = vmatprep.subr.mxu0 0.0
    %10170 = vmatpush1.msra.mxu0 0.0
    %10171 = vmatprep.subr.mxu0 0.0
    %10172 = vmatpush1.msra.mxu0 0.0
    %10173 = vmatprep.subr.mxu0 0.0
    %10174 = vmatpush1.msra.mxu0 0.0
    %10175 = vmatprep.subr.mxu0 0.0
    %10176 = vmatpush1.msra.mxu0 0.0
    %10177 = vmatprep.subr.mxu0 0.0
    %10178 = vmatpush1.msra.mxu0 0.0
    %10179 = vmatprep.subr.mxu0 0.0
    %10180 = vmatpush1.msra.mxu0 0.0
    %10181 = vmatprep.subr.mxu0 0.0
    %10182 = vmatpush1.msra.mxu0 0.0
    %10183 = vmatprep.subr.mxu0 0.0
    %10184 = vmatpush1.msra.mxu0 0.0
    %10185 = vmatprep.subr.mxu0 0.0
    %10186 = vmatpush1.msra.mxu0 0.0
    %10187 = vmatprep.mubr.f32.mxu0 0.0
    %10188 = vmatmul.mubr.f32.gmra.mrb[0].mxu0 %v10121
    %v10189 = vpop.f32.mrb[0].mxu0
    %v10190 = vadd.f32 0.0, %v10189
    %v10191 = vpop.f32.mrb[0].mxu0
    %10192 = vdwg.mxu0
    %v10193 = vadd.f32 %v10114, %v10190
    %s10194 = scalar_lea.vmem %s6, 448
    %v10195 = vld [vmem:[%s10194] sm:$0xff]
    %v10196 = vld [vmem:[%s10194 + $0x8] sm:$0xff]
    %v10197 = vld [vmem:[%s10194 + $0x10] sm:$0xff]
    %v10198 = vld [vmem:[%s10194 + $0x18] sm:$0xff]
    %v10199 = vrot.slane %v9090, 4
    %v10200 = vsel %vm184, %v10199, 0
    %10202 = vmatprep.subr.mxu0 0.0
    %10203 = vmatpush1.msra.mxu0 %v10195
    %10204 = vmatprep.subr.mxu0 0.0
    %10205 = vmatpush1.msra.mxu0 %v10196
    %10206 = vmatprep.subr.mxu0 0.0
    %10207 = vmatpush1.msra.mxu0 %v10197
    %10208 = vmatprep.subr.mxu0 0.0
    %10209 = vmatpush1.msra.mxu0 %v10198
    %10210 = vmatprep.subr.mxu0 0.0
    %10211 = vmatpush1.msra.mxu0 0.0
    %10212 = vmatprep.subr.mxu0 0.0
    %10213 = vmatpush1.msra.mxu0 0.0
    %10214 = vmatprep.subr.mxu0 0.0
    %10215 = vmatpush1.msra.mxu0 0.0
    %10216 = vmatprep.subr.mxu0 0.0
    %10217 = vmatpush1.msra.mxu0 0.0
    %10218 = vmatprep.subr.mxu0 0.0
    %10219 = vmatpush1.msra.mxu0 0.0
    %10220 = vmatprep.subr.mxu0 0.0
    %10221 = vmatpush1.msra.mxu0 0.0
    %10222 = vmatprep.subr.mxu0 0.0
    %10223 = vmatpush1.msra.mxu0 0.0
    %10224 = vmatprep.subr.mxu0 0.0
    %10225 = vmatpush1.msra.mxu0 0.0
    %10226 = vmatprep.subr.mxu0 0.0
    %10227 = vmatpush1.msra.mxu0 0.0
    %10228 = vmatprep.subr.mxu0 0.0
    %10229 = vmatpush1.msra.mxu0 0.0
    %10230 = vmatprep.subr.mxu0 0.0
    %10231 = vmatpush1.msra.mxu0 0.0
    %10232 = vmatprep.subr.mxu0 0.0
    %10233 = vmatpush1.msra.mxu0 0.0
    %10234 = vmatprep.subr.mxu0 0.0
    %10235 = vmatpush1.msra.mxu0 0.0
    %10236 = vmatprep.subr.mxu0 0.0
    %10237 = vmatpush1.msra.mxu0 0.0
    %10238 = vmatprep.subr.mxu0 0.0
    %10239 = vmatpush1.msra.mxu0 0.0
    %10240 = vmatprep.subr.mxu0 0.0
    %10241 = vmatpush1.msra.mxu0 0.0
    %10242 = vmatprep.subr.mxu0 0.0
    %10243 = vmatpush1.msra.mxu0 0.0
    %10244 = vmatprep.subr.mxu0 0.0
    %10245 = vmatpush1.msra.mxu0 0.0
    %10246 = vmatprep.subr.mxu0 0.0
    %10247 = vmatpush1.msra.mxu0 0.0
    %10248 = vmatprep.subr.mxu0 0.0
    %10249 = vmatpush1.msra.mxu0 0.0
    %10250 = vmatprep.subr.mxu0 0.0
    %10251 = vmatpush1.msra.mxu0 0.0
    %10252 = vmatprep.subr.mxu0 0.0
    %10253 = vmatpush1.msra.mxu0 0.0
    %10254 = vmatprep.subr.mxu0 0.0
    %10255 = vmatpush1.msra.mxu0 0.0
    %10256 = vmatprep.subr.mxu0 0.0
    %10257 = vmatpush1.msra.mxu0 0.0
    %10258 = vmatprep.subr.mxu0 0.0
    %10259 = vmatpush1.msra.mxu0 0.0
    %10260 = vmatprep.subr.mxu0 0.0
    %10261 = vmatpush1.msra.mxu0 0.0
    %10262 = vmatprep.subr.mxu0 0.0
    %10263 = vmatpush1.msra.mxu0 0.0
    %10264 = vmatprep.subr.mxu0 0.0
    %10265 = vmatpush1.msra.mxu0 0.0
    %10266 = vmatprep.mubr.f32.mxu0 0.0
    %10267 = vmatmul.mubr.f32.gmra.mrb[0].mxu0 %v10200
    %v10268 = vpop.f32.mrb[0].mxu0
    %v10269 = vadd.f32 0.0, %v10268
    %v10270 = vpop.f32.mrb[0].mxu0
    %10271 = vdwg.mxu0
    %v10272 = vadd.f32 %v10193, %v10269
    %s10273 = scalar_lea.vmem %s6, 480
    %v10274 = vld [vmem:[%s10273] sm:$0xff]
    %v10275 = vld [vmem:[%s10273 + $0x8] sm:$0xff]
    %v10276 = vld [vmem:[%s10273 + $0x10] sm:$0xff]
    %v10277 = vld [vmem:[%s10273 + $0x18] sm:$0xff]
    %v10278 = vrot.slane %v9090, 6
    %v10279 = vsel %vm184, %v10278, 0
    %10281 = vmatprep.subr.mxu0 0.0
    %10282 = vmatpush1.msra.mxu0 %v10274
    %10283 = vmatprep.subr.mxu0 0.0
    %10284 = vmatpush1.msra.mxu0 %v10275
    %10285 = vmatprep.subr.mxu0 0.0
    %10286 = vmatpush1.msra.mxu0 %v10276
    %10287 = vmatprep.subr.mxu0 0.0
    %10288 = vmatpush1.msra.mxu0 %v10277
    %10289 = vmatprep.subr.mxu0 0.0
    %10290 = vmatpush1.msra.mxu0 0.0
    %10291 = vmatprep.subr.mxu0 0.0
    %10292 = vmatpush1.msra.mxu0 0.0
    %10293 = vmatprep.subr.mxu0 0.0
    %10294 = vmatpush1.msra.mxu0 0.0
    %10295 = vmatprep.subr.mxu0 0.0
    %10296 = vmatpush1.msra.mxu0 0.0
    %10297 = vmatprep.subr.mxu0 0.0
    %10298 = vmatpush1.msra.mxu0 0.0
    %10299 = vmatprep.subr.mxu0 0.0
    %10300 = vmatpush1.msra.mxu0 0.0
    %10301 = vmatprep.subr.mxu0 0.0
    %10302 = vmatpush1.msra.mxu0 0.0
    %10303 = vmatprep.subr.mxu0 0.0
    %10304 = vmatpush1.msra.mxu0 0.0
    %10305 = vmatprep.subr.mxu0 0.0
    %10306 = vmatpush1.msra.mxu0 0.0
    %10307 = vmatprep.subr.mxu0 0.0
    %10308 = vmatpush1.msra.mxu0 0.0
    %10309 = vmatprep.subr.mxu0 0.0
    %10310 = vmatpush1.msra.mxu0 0.0
    %10311 = vmatprep.subr.mxu0 0.0
    %10312 = vmatpush1.msra.mxu0 0.0
    %10313 = vmatprep.subr.mxu0 0.0
    %10314 = vmatpush1.msra.mxu0 0.0
    %10315 = vmatprep.subr.mxu0 0.0
    %10316 = vmatpush1.msra.mxu0 0.0
    %10317 = vmatprep.subr.mxu0 0.0
    %10318 = vmatpush1.msra.mxu0 0.0
    %10319 = vmatprep.subr.mxu0 0.0
    %10320 = vmatpush1.msra.mxu0 0.0
    %10321 = vmatprep.subr.mxu0 0.0
    %10322 = vmatpush1.msra.mxu0 0.0
    %10323 = vmatprep.subr.mxu0 0.0
    %10324 = vmatpush1.msra.mxu0 0.0
    %10325 = vmatprep.subr.mxu0 0.0
    %10326 = vmatpush1.msra.mxu0 0.0
    %10327 = vmatprep.subr.mxu0 0.0
    %10328 = vmatpush1.msra.mxu0 0.0
    %10329 = vmatprep.subr.mxu0 0.0
    %10330 = vmatpush1.msra.mxu0 0.0
    %10331 = vmatprep.subr.mxu0 0.0
    %10332 = vmatpush1.msra.mxu0 0.0
    %10333 = vmatprep.subr.mxu0 0.0
    %10334 = vmatpush1.msra.mxu0 0.0
    %10335 = vmatprep.subr.mxu0 0.0
    %10336 = vmatpush1.msra.mxu0 0.0
    %10337 = vmatprep.subr.mxu0 0.0
    %10338 = vmatpush1.msra.mxu0 0.0
    %10339 = vmatprep.subr.mxu0 0.0
    %10340 = vmatpush1.msra.mxu0 0.0
    %10341 = vmatprep.subr.mxu0 0.0
    %10342 = vmatpush1.msra.mxu0 0.0
    %10343 = vmatprep.subr.mxu0 0.0
    %10344 = vmatpush1.msra.mxu0 0.0
    %10345 = vmatprep.mubr.f32.mxu0 0.0
    %10346 = vmatmul.mubr.f32.gmra.mrb[0].mxu0 %v10279
    %v10347 = vpop.f32.mrb[0].mxu0
    %v10348 = vadd.f32 0.0, %v10347
    %v10349 = vpop.f32.mrb[0].mxu0
    %10350 = vdwg.mxu0
    %v10351 = vadd.f32 %v10272, %v10348
    %v10352 = vld [vmem:[%s7] sm:$0x1]
    %v10354 = vlaneseq
    %v10355 = vshrl.u32 %v10354, 7
    %v10356 = vsub.s32 0, %v10355
    %v10357 = vrot.slane %v10352, %v10356
    %v10359 = vadd.f32 %v10351, %v10357
    %v10360 = vmax.f32 %v10359, 0.0
    %v10361 = vld [vmem:[%s8] sm:$0xff]
    %v10362 = vld [vmem:[%s8 + $0x8] sm:$0xff]
    %v10363 = vld [vmem:[%s8 + $0x10] sm:$0xff]
    %v10364 = vld [vmem:[%s8 + $0x18] sm:$0xff]
    %v10365 = vld [vmem:[%s8 + $0x20] sm:$0xff]
    %v10366 = vld [vmem:[%s8 + $0x28] sm:$0xff]
    %v10367 = vld [vmem:[%s8 + $0x30] sm:$0xff]
    %v10368 = vld [vmem:[%s8 + $0x38] sm:$0xff]
    %v10369 = vld [vmem:[%s8 + $0x40] sm:$0xff]
    %v10370 = vld [vmem:[%s8 + $0x48] sm:$0xff]
    %v10371 = vld [vmem:[%s8 + $0x50] sm:$0xff]
    %v10372 = vld [vmem:[%s8 + $0x58] sm:$0xff]
    %v10373 = vld [vmem:[%s8 + $0x60] sm:$0xff]
    %v10374 = vld [vmem:[%s8 + $0x68] sm:$0xff]
    %v10375 = vld [vmem:[%s8 + $0x70] sm:$0xff]
    %v10376 = vld [vmem:[%s8 + $0x78] sm:$0xff]
    %v10377 = vld [vmem:[%s9] sm:$0x1]
    %v10379 = vlaneseq
    %v10380 = vshrl.u32 %v10379, 7
    %v10381 = vsub.s32 0, %v10380
    %v10382 = vrot.slane %v10377, %v10381
    %10384 = vmatprep.subr.mxu0 0.0
    %10385 = vmatpush1.msra.mxu0 %v10361
    %10386 = vmatprep.subr.mxu0 0.0
    %10387 = vmatpush1.msra.mxu0 %v10362
    %10388 = vmatprep.subr.mxu0 0.0
    %10389 = vmatpush1.msra.mxu0 %v10363
    %10390 = vmatprep.subr.mxu0 0.0
    %10391 = vmatpush1.msra.mxu0 %v10364
    %10392 = vmatprep.subr.mxu0 0.0
    %10393 = vmatpush1.msra.mxu0 %v10365
    %10394 = vmatprep.subr.mxu0 0.0
    %10395 = vmatpush1.msra.mxu0 %v10366
    %10396 = vmatprep.subr.mxu0 0.0
    %10397 = vmatpush1.msra.mxu0 %v10367
    %10398 = vmatprep.subr.mxu0 0.0
    %10399 = vmatpush1.msra.mxu0 %v10368
    %10400 = vmatprep.subr.mxu0 0.0
    %10401 = vmatpush1.msra.mxu0 %v10369
    %10402 = vmatprep.subr.mxu0 0.0
    %10403 = vmatpush1.msra.mxu0 %v10370
    %10404 = vmatprep.subr.mxu0 0.0
    %10405 = vmatpush1.msra.mxu0 %v10371
    %10406 = vmatprep.subr.mxu0 0.0
    %10407 = vmatpush1.msra.mxu0 %v10372
    %10408 = vmatprep.subr.mxu0 0.0
    %10409 = vmatpush1.msra.mxu0 %v10373
    %10410 = vmatprep.subr.mxu0 0.0
    %10411 = vmatpush1.msra.mxu0 %v10374
    %10412 = vmatprep.subr.mxu0 0.0
    %10413 = vmatpush1.msra.mxu0 %v10375
    %10414 = vmatprep.subr.mxu0 0.0
    %10415 = vmatpush1.msra.mxu0 %v10376
    %10416 = vmatprep.subr.mxu0 0.0
    %10417 = vmatpush1.msra.mxu0 0.0
    %10418 = vmatprep.subr.mxu0 0.0
    %10419 = vmatpush1.msra.mxu0 0.0
    %10420 = vmatprep.subr.mxu0 0.0
    %10421 = vmatpush1.msra.mxu0 0.0
    %10422 = vmatprep.subr.mxu0 0.0
    %10423 = vmatpush1.msra.mxu0 0.0
    %10424 = vmatprep.subr.mxu0 0.0
    %10425 = vmatpush1.msra.mxu0 0.0
    %10426 = vmatprep.subr.mxu0 0.0
    %10427 = vmatpush1.msra.mxu0 0.0
    %10428 = vmatprep.subr.mxu0 0.0
    %10429 = vmatpush1.msra.mxu0 0.0
    %10430 = vmatprep.subr.mxu0 0.0
    %10431 = vmatpush1.msra.mxu0 0.0
    %10432 = vmatprep.subr.mxu0 0.0
    %10433 = vmatpush1.msra.mxu0 0.0
    %10434 = vmatprep.subr.mxu0 0.0
    %10435 = vmatpush1.msra.mxu0 0.0
    %10436 = vmatprep.subr.mxu0 0.0
    %10437 = vmatpush1.msra.mxu0 0.0
    %10438 = vmatprep.subr.mxu0 0.0
    %10439 = vmatpush1.msra.mxu0 0.0
    %10440 = vmatprep.subr.mxu0 0.0
    %10441 = vmatpush1.msra.mxu0 0.0
    %10442 = vmatprep.subr.mxu0 0.0
    %10443 = vmatpush1.msra.mxu0 0.0
    %10444 = vmatprep.subr.mxu0 0.0
    %10445 = vmatpush1.msra.mxu0 0.0
    %10446 = vmatprep.subr.mxu0 0.0
    %10447 = vmatpush1.msra.mxu0 0.0
    %10448 = vmatprep.mubr.f32.mxu0 0.0
    %10449 = vmatmul.mubr.f32.gmra.mrb[0].mxu0 %v10360
    %v10450 = vpop.f32.mrb[0].mxu0
    %v10451 = vadd.f32 %v10382, %v10450
    %v10452 = vpop.f32.mrb[0].mxu0
    %10453 = vdwg.mxu0
    %vm10454 = vcmask 123904
    %v10455 = vsel %vm10454, %v10451, -inf
    %10456 = vmax.xlane.f32.xlu0 %v10455
    %v10457 = vpop.xlane.xlu0 %10456
    %v10458 = vsub.f32 %v10451, %v10457
    %v10459 = vmul.f32 %v10458, 1.442695
    %v10460 = vpow.pop %v10459
    %v10461 = vsel %vm10454, %v10460, 0.0
    %10462 = vadd.xlane.f32.xlu0 %v10461
    %v10463 = vpop.xlane.xlu0 %10462
    %v10464 = vlog2.pop %v10463
    %v10465 = vmul.f32 %v10464, 0.6931472
    %v10466 = vsub.f32 %v10458, %v10465
    %vm10467 = vcmask 74752
    %10468 = vst.msk [vmem:[#allocation2] sm:$0x3] %vm10467, %v10466
    // Predicated region
    $region42: #{net_forward.1} parent=1 // pred_check
      _
    $region43: #{net_forward.1} parent=1 // pred_check_branch
      %10470 = sbr.rel (0) target = $region45
    $region44: #{net_forward.1} parent=1 // pred_region
      %s10472 = ssub.s32 32, 32
      %10473 = vsyncadd [#allocation3], %s10472
      %s10475 = sshll.u32 [#allocation2], 4
      %s10476 = int_to_ptr.vmem [resolvable:$true] %s10475
      %10478 = dma.vmem_to_hbm [thread:$0]  %s10476, 32, %s10, [#allocation3]
    $region45: #{net_forward.1} parent=1 // pred_fallthru
      _
    // Predicated region
    $region46: #{net_forward.1} parent=1 // pred_check
      _
    $region47: #{net_forward.1} parent=1 // pred_check_branch
      %10480 = sbr.rel (0) target = $region49
    $region48: #{net_forward.1} parent=1 // pred_region
      %10481 = dma.done [#allocation3], 32
    $region49: #{net_forward.1} parent=1 // pred_fallthru
      _
    %10482 = vsyncpa [#allocation3], 1

</llo_original>
